<compile_context>
chip_gen: v7x
topology: tpu7x:2x2x1
jax: 0.10.0
libtpu: 0.0.40
codegen_flags: <defaults>
</compile_context>

<pallas_src>
import math
import jax
import jax.numpy as jnp
from jax.experimental import pallas as pl
from jax.experimental.pallas import tpu as pltpu

# ----------------------------- synthetic BERT config -----------------------------
VOCAB = 100
HIDDEN = 32           # stands in for 768
NUM_HEADS = 2
HEAD_DIM = HIDDEN // NUM_HEADS
INTERMEDIATE = 64
NUM_LAYERS = 2
MAX_POS = 32
LN_EPS = 1e-12
NUM_CLASSES = 2
# dropout is identity (inference / eval mode)


def _gelu_tanh(x):
    # TODO(synk): HF BERT default is exact erf-GELU; tanh approximation used here.
    return 0.5 * x * (1.0 + jnp.tanh(0.7978845608028654 * (x + 0.044715 * x * x * x)))


def _ln(x, g, b, eps):
    mu = jnp.mean(x, axis=-1, keepdims=True)
    var = jnp.mean((x - mu) ** 2, axis=-1, keepdims=True)
    return (x - mu) * jax.lax.rsqrt(var + eps) * g + b


# ----------------------------- fused Pallas kernel --------------------------------
def make_fused_kernel(S, L, B, N, eps):
    """S = bsz*num_tweets sequences of length L; B batches of N tweets."""
    SL = S * L
    scale = 1.0 / math.sqrt(HEAD_DIM)

    def kernel(emb_ref, attn_bias_ref, tok_mask_ref, tweet_mask_ref,
               embg_ref, embb_ref,
               wq_ref, bq_ref, wk_ref, bk_ref, wv_ref, bv_ref,
               wo_ref, bo_ref, ln1g_ref, ln1b_ref,
               wi_ref, bi_ref, wo2_ref, bo2_ref, ln2g_ref, ln2b_ref,
               tokw_ref, tweetw_ref, clsw_ref, clsb_ref,
               out_ref):
        # ---- BERT embedding LayerNorm (all S*L rows at once) ----
        x = _ln(emb_ref[...], embg_ref[...], embb_ref[...], eps)      # (S*L, H) f32
        attn_bias = attn_bias_ref[...]                                 # (S, 1, L) f32

        # ---- encoder: all layers fused, weights resident in VMEM ----
        for l in range(NUM_LAYERS):
            xb = x.astype(jnp.bfloat16)                                # (S*L, H)
            wq_l = wq_ref[l]; bq_l = bq_ref[l]      # (NH,H,HD) bf16 / (NH,1,HD) f32
            wk_l = wk_ref[l]; bk_l = bk_ref[l]
            wv_l = wv_ref[l]; bv_l = bv_ref[l]
            wo_l = wo_ref[l]                        # (NH,HD,H) bf16

            attn_out = jnp.zeros((SL, HIDDEN), jnp.float32) + bo_ref[l]   # (S*L, H)
            for h in range(NUM_HEADS):              # static, weights pre-split per head
                q = jnp.dot(xb, wq_l[h], preferred_element_type=jnp.float32) + bq_l[h]
                k = jnp.dot(xb, wk_l[h], preferred_element_type=jnp.float32) + bk_l[h]
                v = jnp.dot(xb, wv_l[h], preferred_element_type=jnp.float32) + bv_l[h]
                q3 = q.reshape(S, L, HEAD_DIM).astype(jnp.bfloat16)
                k3 = k.reshape(S, L, HEAD_DIM).astype(jnp.bfloat16)
                v3 = v.reshape(S, L, HEAD_DIM).astype(jnp.bfloat16)
                # batched-over-sequence attention scores (S, L, L)
                sc = jnp.einsum("sqd,skd->sqk", q3, k3,
                                preferred_element_type=jnp.float32) * scale
                sc = sc + attn_bias
                sc = sc - jnp.max(sc, axis=-1, keepdims=True)
                p = jnp.exp(sc)
                p = p / jnp.sum(p, axis=-1, keepdims=True)
                ctx = jnp.einsum("sqk,skd->sqd", p.astype(jnp.bfloat16), v3,
                                 preferred_element_type=jnp.float32)   # (S, L, HD)
                # per-head output projection accumulated (no concat)
                attn_out = attn_out + jnp.dot(
                    ctx.reshape(SL, HEAD_DIM).astype(jnp.bfloat16), wo_l[h],
                    preferred_element_type=jnp.float32)

            h1 = _ln(attn_out + x, ln1g_ref[l], ln1b_ref[l], eps)
            inter = _gelu_tanh(
                jnp.dot(h1.astype(jnp.bfloat16), wi_ref[l],
                        preferred_element_type=jnp.float32) + bi_ref[l])
            ff = jnp.dot(inter.astype(jnp.bfloat16), wo2_ref[l],
                         preferred_element_type=jnp.float32) + bo2_ref[l]
            x = _ln(ff + h1, ln2g_ref[l], ln2b_ref[l], eps)

        # ---- token-level attention pooling (all S rows at once) ----
        tok_scores = jnp.dot(x, tokw_ref[...],
                             preferred_element_type=jnp.float32)       # (S*L, 1)
        tok_scores = tok_scores.reshape(S, L, 1)
        tok_scores = jnp.where(tok_mask_ref[...] == 0.0, -1e9, tok_scores)
        tok_scores = tok_scores - jnp.max(tok_scores, axis=1, keepdims=True)
        pt = jnp.exp(tok_scores)
        pt = pt / jnp.sum(pt, axis=1, keepdims=True)                    # softmax over L
        tweet_emb = jnp.sum(x.reshape(S, L, HIDDEN) * pt, axis=1)       # (S, H)

        # ---- tweet-level attention pooling ----
        tw_scores = jnp.dot(tweet_emb, tweetw_ref[...],
                            preferred_element_type=jnp.float32)         # (S, 1)
        tw_scores = tw_scores.reshape(B, N, 1)
        tw_scores = jnp.where(tweet_mask_ref[...] == 0.0, -1e9, tw_scores)
        tw_scores = tw_scores - jnp.max(tw_scores, axis=1, keepdims=True)
        pw = jnp.exp(tw_scores)
        pw = pw / jnp.sum(pw, axis=1, keepdims=True)                     # softmax over N
        period = jnp.sum(tweet_emb.reshape(B, N, HIDDEN) * pw, axis=1)   # (B, H)

        # ---- classifier (dropout is identity in eval mode) ----
        out_ref[...] = (jnp.dot(period, clsw_ref[...],
                                preferred_element_type=jnp.float32) + clsb_ref[...])

    return kernel


def _fullspec(a):
    rank = a.ndim
    return pl.BlockSpec(a.shape, lambda i, rank=rank: (0,) * rank)


def fused_forward_pallas(emb2d, attn_bias, tok_mask, tweet_mask, kp, B, N):
    S, _, L = attn_bias.shape
    kernel = make_fused_kernel(S, L, B, N, LN_EPS)
    args = [emb2d, attn_bias, tok_mask, tweet_mask,
            kp["emb_ln_g"], kp["emb_ln_b"],
            kp["wq"], kp["bq"], kp["wk"], kp["bk"], kp["wv"], kp["bv"],
            kp["wo"], kp["bo"], kp["ln1_g"], kp["ln1_b"],
            kp["wi"], kp["bi"], kp["wo2"], kp["bo2"], kp["ln2_g"], kp["ln2_b"],
            kp["tok_w"], kp["tweet_w"], kp["cls_w"], kp["cls_b"]]
    return pl.pallas_call(
        kernel,
        out_shape=jax.ShapeDtypeStruct((B, NUM_CLASSES), jnp.float32),
        grid=(1,),
        in_specs=[_fullspec(a) for a in args],
        out_specs=pl.BlockSpec((B, NUM_CLASSES), lambda i: (0, 0)),
        compiler_params=pltpu.CompilerParams(dimension_semantics=("arbitrary",)),
    )(*args)


# ----------------------------- parameters -----------------------------------------
def init_params(key):
    keys = iter(jax.random.split(key, 64))

    def dense_w(shape):
        return jax.random.normal(next(keys), shape, jnp.float32) * 0.02

    params = {
        "word_emb": dense_w((VOCAB, HIDDEN)),
        "pos_emb": dense_w((MAX_POS, HIDDEN)),
        "type_emb": dense_w((2, HIDDEN)),
        "emb_ln_g": jnp.ones((1, HIDDEN), jnp.float32),
        "emb_ln_b": jnp.zeros((1, HIDDEN), jnp.float32),
        "layers": [],
        # AttentionLayer: nn.Linear(hidden, 1, bias=False) -> weight stored as (1, H)
        "token_att_w": dense_w((1, HIDDEN)),
        "tweet_att_w": dense_w((1, HIDDEN)),
        # classifier: nn.Linear(hidden, 2) stored pre-transposed (H, 2)
        "cls_w": dense_w((HIDDEN, NUM_CLASSES)),
        "cls_b": jnp.zeros((1, NUM_CLASSES), jnp.float32),
    }
    for _ in range(NUM_LAYERS):
        params["layers"].append({
            "wq": dense_w((HIDDEN, HIDDEN)), "bq": jnp.zeros((1, HIDDEN), jnp.float32),
            "wk": dense_w((HIDDEN, HIDDEN)), "bk": jnp.zeros((1, HIDDEN), jnp.float32),
            "wv": dense_w((HIDDEN, HIDDEN)), "bv": jnp.zeros((1, HIDDEN), jnp.float32),
            "wo": dense_w((HIDDEN, HIDDEN)), "bo": jnp.zeros((1, HIDDEN), jnp.float32),
            "ln1_g": jnp.ones((1, HIDDEN), jnp.float32),
            "ln1_b": jnp.zeros((1, HIDDEN), jnp.float32),
            "wi": dense_w((HIDDEN, INTERMEDIATE)),
            "bi": jnp.zeros((1, INTERMEDIATE), jnp.float32),
            "wo2": dense_w((INTERMEDIATE, HIDDEN)),
            "bo2": jnp.zeros((1, HIDDEN), jnp.float32),
            "ln2_g": jnp.ones((1, HIDDEN), jnp.float32),
            "ln2_b": jnp.zeros((1, HIDDEN), jnp.float32),
        })
    return params


def prepare_kernel_params(params):
    """Stack per-layer weights, pre-split heads, cast matmul weights to bf16."""
    HD, NH = HEAD_DIM, NUM_HEADS

    def split_cols(w):   # (H, H) -> (NH, H, HD)
        return jnp.stack([w[:, h * HD:(h + 1) * HD] for h in range(NH)], axis=0)

    def split_rows(w):   # (H, H) -> (NH, HD, H)
        return jnp.stack([w[h * HD:(h + 1) * HD, :] for h in range(NH)], axis=0)

    def split_bias(b):   # (1, H) -> (NH, 1, HD)
        return jnp.stack([b[:, h * HD:(h + 1) * HD] for h in range(NH)], axis=0)

    Ls = params["layers"]
    stack = lambda name: jnp.stack([lp[name] for lp in Ls], axis=0)
    return {
        "emb_ln_g": params["emb_ln_g"], "emb_ln_b": params["emb_ln_b"],
        "wq": jnp.stack([split_cols(lp["wq"]) for lp in Ls]).astype(jnp.bfloat16),
        "bq": jnp.stack([split_bias(lp["bq"]) for lp in Ls]),
        "wk": jnp.stack([split_cols(lp["wk"]) for lp in Ls]).astype(jnp.bfloat16),
        "bk": jnp.stack([split_bias(lp["bk"]) for lp in Ls]),
        "wv": jnp.stack([split_cols(lp["wv"]) for lp in Ls]).astype(jnp.bfloat16),
        "bv": jnp.stack([split_bias(lp["bv"]) for lp in Ls]),
        "wo": jnp.stack([split_rows(lp["wo"]) for lp in Ls]).astype(jnp.bfloat16),
        "bo": stack("bo"),
        "ln1_g": stack("ln1_g"), "ln1_b": stack("ln1_b"),
        "wi": stack("wi").astype(jnp.bfloat16), "bi": stack("bi"),
        "wo2": stack("wo2").astype(jnp.bfloat16), "bo2": stack("bo2"),
        "ln2_g": stack("ln2_g"), "ln2_b": stack("ln2_b"),
        "tok_w": params["token_att_w"].T,      # (H, 1)
        "tweet_w": params["tweet_att_w"].T,    # (H, 1)
        "cls_w": params["cls_w"], "cls_b": params["cls_b"],
    }


# ----------------------------- forward (glue + fused kernel) ----------------------
def hierarchical_bert_forward(params, input_ids, attention_masks):
    bsz, num_tweets, max_len = input_ids.shape
    S = bsz * num_tweets
    flat_ids = input_ids.reshape(S, max_len)
    flat_mask = attention_masks.reshape(S, max_len).astype(jnp.float32)

    # ---- BERT embeddings (gather stays in glue) ----
    emb = (params["word_emb"][flat_ids]
           + params["pos_emb"][:max_len][None, :, :]
           + params["type_emb"][0][None, None, :])                    # (S, L, H)
    emb2d = emb.reshape(S * max_len, HIDDEN)

    # ---- masks precomputed once (hoisted out of the kernel) ----
    attn_bias = ((1.0 - flat_mask) * -10000.0).reshape(S, 1, max_len)  # additive
    tok_mask = flat_mask.reshape(S, max_len, 1)
    tweet_mask = jnp.any(input_ids != 0, axis=-1).astype(jnp.float32)
    tweet_mask = tweet_mask.reshape(bsz, num_tweets, 1)

    kp = prepare_kernel_params(params)
    logits = fused_forward_pallas(emb2d, attn_bias, tok_mask, tweet_mask, kp,
                                  bsz, num_tweets)
    return logits


# ----------------------------- main ------------------------------------------------
if __name__ == "__main__":
    key = jax.random.PRNGKey(0)
    k_ids, k_params = jax.random.split(key, 2)

    bsz, num_tweets, max_len = 2, 4, 8
    input_ids = jax.random.randint(k_ids, (bsz, num_tweets, max_len), 1, VOCAB,
                                   dtype=jnp.int32)
    # one fully-empty tweet (exercises the tweet-existence mask) + padded tokens.
    input_ids = input_ids.at[1, 3].set(0)
    input_ids = input_ids.at[0, 1, 6:].set(0)
    attention_masks = (input_ids != 0).astype(jnp.int32)

    params = init_params(k_params)

    fwd = jax.jit(hierarchical_bert_forward)
    logits = fwd(params, input_ids, attention_masks)
    logits = jax.block_until_ready(logits)

    assert logits.shape == (bsz, NUM_CLASSES)
    assert bool(jnp.all(jnp.isfinite(logits)))
    print("KERNEL_OK")
</pallas_src>

<mosaic_0001>
module attributes {stable_mosaic.version = 11 : i64} {
  func.func @kernel(%arg0: i32, %arg1: memref<64x32xf32, #tpu.memory_space<vmem>>, %arg2: memref<8x1x8xf32, #tpu.memory_space<vmem>>, %arg3: memref<8x8x1xf32, #tpu.memory_space<vmem>>, %arg4: memref<2x4x1xf32, #tpu.memory_space<vmem>>, %arg5: memref<1x32xf32, #tpu.memory_space<vmem>>, %arg6: memref<1x32xf32, #tpu.memory_space<vmem>>, %arg7: memref<2x2x32x16xbf16, #tpu.memory_space<vmem>>, %arg8: memref<2x2x1x16xf32, #tpu.memory_space<vmem>>, %arg9: memref<2x2x32x16xbf16, #tpu.memory_space<vmem>>, %arg10: memref<2x2x1x16xf32, #tpu.memory_space<vmem>>, %arg11: memref<2x2x32x16xbf16, #tpu.memory_space<vmem>>, %arg12: memref<2x2x1x16xf32, #tpu.memory_space<vmem>>, %arg13: memref<2x2x16x32xbf16, #tpu.memory_space<vmem>>, %arg14: memref<2x1x32xf32, #tpu.memory_space<vmem>>, %arg15: memref<2x1x32xf32, #tpu.memory_space<vmem>>, %arg16: memref<2x1x32xf32, #tpu.memory_space<vmem>>, %arg17: memref<2x32x64xbf16, #tpu.memory_space<vmem>>, %arg18: memref<2x1x64xf32, #tpu.memory_space<vmem>>, %arg19: memref<2x64x32xbf16, #tpu.memory_space<vmem>>, %arg20: memref<2x1x32xf32, #tpu.memory_space<vmem>>, %arg21: memref<2x1x32xf32, #tpu.memory_space<vmem>>, %arg22: memref<2x1x32xf32, #tpu.memory_space<vmem>>, %arg23: memref<32x1xf32, #tpu.memory_space<vmem>>, %arg24: memref<32x1xf32, #tpu.memory_space<vmem>>, %arg25: memref<32x2xf32, #tpu.memory_space<vmem>>, %arg26: memref<1x2xf32, #tpu.memory_space<vmem>>, %arg27: memref<2x2xf32, #tpu.memory_space<vmem>>) attributes {dimension_semantics = [#tpu.dimension_semantics<arbitrary>], iteration_bounds = array<i64: 1>, scalar_prefetch = 0 : i64, scratch_operands = 0 : i64, tpu.core_type = #tpu.core_type<tc>, window_params = [{pipeline_mode = #tpu.pipeline_mode<synchronous>, transform_indices = @transform_0, window_bounds = array<i64: 64, 32>}, {pipeline_mode = #tpu.pipeline_mode<synchronous>, transform_indices = @transform_1, window_bounds = array<i64: 8, 1, 8>}, {pipeline_mode = #tpu.pipeline_mode<synchronous>, transform_indices = @transform_2, window_bounds = array<i64: 8, 8, 1>}, {pipeline_mode = #tpu.pipeline_mode<synchronous>, transform_indices = @transform_3, window_bounds = array<i64: 2, 4, 1>}, {pipeline_mode = #tpu.pipeline_mode<synchronous>, transform_indices = @transform_4, window_bounds = array<i64: 1, 32>}, {pipeline_mode = #tpu.pipeline_mode<synchronous>, transform_indices = @transform_5, window_bounds = array<i64: 1, 32>}, {pipeline_mode = #tpu.pipeline_mode<synchronous>, transform_indices = @transform_6, window_bounds = array<i64: 2, 2, 32, 16>}, {pipeline_mode = #tpu.pipeline_mode<synchronous>, transform_indices = @transform_7, window_bounds = array<i64: 2, 2, 1, 16>}, {pipeline_mode = #tpu.pipeline_mode<synchronous>, transform_indices = @transform_8, window_bounds = array<i64: 2, 2, 32, 16>}, {pipeline_mode = #tpu.pipeline_mode<synchronous>, transform_indices = @transform_9, window_bounds = array<i64: 2, 2, 1, 16>}, {pipeline_mode = #tpu.pipeline_mode<synchronous>, transform_indices = @transform_10, window_bounds = array<i64: 2, 2, 32, 16>}, {pipeline_mode = #tpu.pipeline_mode<synchronous>, transform_indices = @transform_11, window_bounds = array<i64: 2, 2, 1, 16>}, {pipeline_mode = #tpu.pipeline_mode<synchronous>, transform_indices = @transform_12, window_bounds = array<i64: 2, 2, 16, 32>}, {pipeline_mode = #tpu.pipeline_mode<synchronous>, transform_indices = @transform_13, window_bounds = array<i64: 2, 1, 32>}, {pipeline_mode = #tpu.pipeline_mode<synchronous>, transform_indices = @transform_14, window_bounds = array<i64: 2, 1, 32>}, {pipeline_mode = #tpu.pipeline_mode<synchronous>, transform_indices = @transform_15, window_bounds = array<i64: 2, 1, 32>}, {pipeline_mode = #tpu.pipeline_mode<synchronous>, transform_indices = @transform_16, window_bounds = array<i64: 2, 32, 64>}, {pipeline_mode = #tpu.pipeline_mode<synchronous>, transform_indices = @transform_17, window_bounds = array<i64: 2, 1, 64>}, {pipeline_mode = #tpu.pipeline_mode<synchronous>, transform_indices = @transform_18, window_bounds = array<i64: 2, 64, 32>}, {pipeline_mode = #tpu.pipeline_mode<synchronous>, transform_indices = @transform_19, window_bounds = array<i64: 2, 1, 32>}, {pipeline_mode = #tpu.pipeline_mode<synchronous>, transform_indices = @transform_20, window_bounds = array<i64: 2, 1, 32>}, {pipeline_mode = #tpu.pipeline_mode<synchronous>, transform_indices = @transform_21, window_bounds = array<i64: 2, 1, 32>}, {pipeline_mode = #tpu.pipeline_mode<synchronous>, transform_indices = @transform_22, window_bounds = array<i64: 32, 1>}, {pipeline_mode = #tpu.pipeline_mode<synchronous>, transform_indices = @transform_23, window_bounds = array<i64: 32, 1>}, {pipeline_mode = #tpu.pipeline_mode<synchronous>, transform_indices = @transform_24, window_bounds = array<i64: 32, 2>}, {pipeline_mode = #tpu.pipeline_mode<synchronous>, transform_indices = @transform_25, window_bounds = array<i64: 1, 2>}, {pipeline_mode = #tpu.pipeline_mode<synchronous>, transform_indices = @transform_26, window_bounds = array<i64: 2, 2>}]} {
    %c0 = arith.constant 0 : index
    %c0_0 = arith.constant 0 : index
    %0 = vector.load %arg1[%c0, %c0_0] : memref<64x32xf32, #tpu.memory_space<vmem>>, vector<64x32xf32>
    %c0_1 = arith.constant 0 : index
    %c0_2 = arith.constant 0 : index
    %1 = vector.load %arg5[%c0_1, %c0_2] : memref<1x32xf32, #tpu.memory_space<vmem>>, vector<1x32xf32>
    %c0_3 = arith.constant 0 : index
    %c0_4 = arith.constant 0 : index
    %2 = vector.load %arg6[%c0_3, %c0_4] : memref<1x32xf32, #tpu.memory_space<vmem>>, vector<1x32xf32>
    %cst = arith.constant dense<0.000000e+00> : vector<64xf32>
    %3 = vector.multi_reduction <add>, %0, %cst [1] : vector<64x32xf32> to vector<64xf32>
    %4 = vector.shape_cast %3 : vector<64xf32> to vector<64x1xf32>
    %cst_5 = arith.constant 3.200000e+01 : f32
    %5 = vector.broadcast %cst_5 : f32 to vector<64x1xf32>
    %6 = arith.divf %4, %5 : vector<64x1xf32>
    %7 = vector.broadcast %6 : vector<64x1xf32> to vector<64x32xf32>
    %8 = arith.subf %0, %7 : vector<64x32xf32>
    %9 = arith.mulf %8, %8 : vector<64x32xf32>
    %cst_6 = arith.constant dense<0.000000e+00> : vector<64xf32>
    %10 = vector.multi_reduction <add>, %9, %cst_6 [1] : vector<64x32xf32> to vector<64xf32>
    %11 = vector.shape_cast %10 : vector<64xf32> to vector<64x1xf32>
    %cst_7 = arith.constant 3.200000e+01 : f32
    %12 = vector.broadcast %cst_7 : f32 to vector<64x1xf32>
    %13 = arith.divf %11, %12 : vector<64x1xf32>
    %14 = vector.broadcast %6 : vector<64x1xf32> to vector<64x32xf32>
    %15 = arith.subf %0, %14 : vector<64x32xf32>
    %cst_8 = arith.constant 9.99999996E-13 : f32
    %16 = vector.broadcast %cst_8 : f32 to vector<64x1xf32>
    %17 = arith.addf %13, %16 : vector<64x1xf32>
    %18 = math.rsqrt %17 : vector<64x1xf32>
    %19 = vector.broadcast %18 : vector<64x1xf32> to vector<64x32xf32>
    %20 = arith.mulf %15, %19 : vector<64x32xf32>
    %21 = vector.broadcast %1 : vector<1x32xf32> to vector<64x32xf32>
    %22 = arith.mulf %20, %21 : vector<64x32xf32>
    %23 = vector.broadcast %2 : vector<1x32xf32> to vector<64x32xf32>
    %24 = arith.addf %22, %23 : vector<64x32xf32>
    %c0_9 = arith.constant 0 : index
    %c0_10 = arith.constant 0 : index
    %c0_11 = arith.constant 0 : index
    %25 = vector.load %arg2[%c0_9, %c0_10, %c0_11] : memref<8x1x8xf32, #tpu.memory_space<vmem>>, vector<8x1x8xf32>
    %26 = arith.truncf %24 : vector<64x32xf32> to vector<64x32xbf16>
    %c0_12 = arith.constant 0 : index
    %c0_13 = arith.constant 0 : index
    %c0_14 = arith.constant 0 : index
    %c0_15 = arith.constant 0 : index
    %27 = vector.load %arg7[%c0_12, %c0_13, %c0_14, %c0_15] : memref<2x2x32x16xbf16, #tpu.memory_space<vmem>>, vector<1x2x32x16xbf16>
    %28 = vector.shape_cast %27 : vector<1x2x32x16xbf16> to vector<2x32x16xbf16>
    %c0_16 = arith.constant 0 : index
    %c0_17 = arith.constant 0 : index
    %c0_18 = arith.constant 0 : index
    %c0_19 = arith.constant 0 : index
    %29 = vector.load %arg8[%c0_16, %c0_17, %c0_18, %c0_19] : memref<2x2x1x16xf32, #tpu.memory_space<vmem>>, vector<1x2x1x16xf32>
    %30 = vector.shape_cast %29 : vector<1x2x1x16xf32> to vector<2x1x16xf32>
    %c0_20 = arith.constant 0 : index
    %c0_21 = arith.constant 0 : index
    %c0_22 = arith.constant 0 : index
    %c0_23 = arith.constant 0 : index
    %31 = vector.load %arg9[%c0_20, %c0_21, %c0_22, %c0_23] : memref<2x2x32x16xbf16, #tpu.memory_space<vmem>>, vector<1x2x32x16xbf16>
    %32 = vector.shape_cast %31 : vector<1x2x32x16xbf16> to vector<2x32x16xbf16>
    %c0_24 = arith.constant 0 : index
    %c0_25 = arith.constant 0 : index
    %c0_26 = arith.constant 0 : index
    %c0_27 = arith.constant 0 : index
    %33 = vector.load %arg10[%c0_24, %c0_25, %c0_26, %c0_27] : memref<2x2x1x16xf32, #tpu.memory_space<vmem>>, vector<1x2x1x16xf32>
    %34 = vector.shape_cast %33 : vector<1x2x1x16xf32> to vector<2x1x16xf32>
    %c0_28 = arith.constant 0 : index
    %c0_29 = arith.constant 0 : index
    %c0_30 = arith.constant 0 : index
    %c0_31 = arith.constant 0 : index
    %35 = vector.load %arg11[%c0_28, %c0_29, %c0_30, %c0_31] : memref<2x2x32x16xbf16, #tpu.memory_space<vmem>>, vector<1x2x32x16xbf16>
    %36 = vector.shape_cast %35 : vector<1x2x32x16xbf16> to vector<2x32x16xbf16>
    %c0_32 = arith.constant 0 : index
    %c0_33 = arith.constant 0 : index
    %c0_34 = arith.constant 0 : index
    %c0_35 = arith.constant 0 : index
    %37 = vector.load %arg12[%c0_32, %c0_33, %c0_34, %c0_35] : memref<2x2x1x16xf32, #tpu.memory_space<vmem>>, vector<1x2x1x16xf32>
    %38 = vector.shape_cast %37 : vector<1x2x1x16xf32> to vector<2x1x16xf32>
    %c0_36 = arith.constant 0 : index
    %c0_37 = arith.constant 0 : index
    %c0_38 = arith.constant 0 : index
    %c0_39 = arith.constant 0 : index
    %39 = vector.load %arg13[%c0_36, %c0_37, %c0_38, %c0_39] : memref<2x2x16x32xbf16, #tpu.memory_space<vmem>>, vector<1x2x16x32xbf16>
    %40 = vector.shape_cast %39 : vector<1x2x16x32xbf16> to vector<2x16x32xbf16>
    %cst_40 = arith.constant 0.000000e+00 : f32
    %41 = vector.broadcast %cst_40 : f32 to vector<64x32xf32>
    %c0_41 = arith.constant 0 : index
    %c0_42 = arith.constant 0 : index
    %c0_43 = arith.constant 0 : index
    %42 = vector.load %arg14[%c0_41, %c0_42, %c0_43] : memref<2x1x32xf32, #tpu.memory_space<vmem>>, vector<1x1x32xf32>
    %43 = vector.shape_cast %42 : vector<1x1x32xf32> to vector<1x32xf32>
    %44 = vector.broadcast %43 : vector<1x32xf32> to vector<64x32xf32>
    %45 = arith.addf %41, %44 : vector<64x32xf32>
    %46 = vector.extract_strided_slice %28 {offsets = [0, 0, 0], sizes = [1, 32, 16], strides = [1, 1, 1]} : vector<2x32x16xbf16> to vector<1x32x16xbf16>
    %47 = vector.shape_cast %46 : vector<1x32x16xbf16> to vector<32x16xbf16>
    %cst_44 = arith.constant dense<0.000000e+00> : vector<64x16xf32>
    %48 = tpu.matmul %26, %47, %cst_44 {dimension_numbers = #tpu.dot_dimension_numbers<[1], [0], [0], [1], [0, 0, 1, 1], [], []>} : vector<64x32xbf16>, vector<32x16xbf16>, vector<64x16xf32> -> vector<64x16xf32>
    %49 = vector.extract_strided_slice %30 {offsets = [0, 0, 0], sizes = [1, 1, 16], strides = [1, 1, 1]} : vector<2x1x16xf32> to vector<1x1x16xf32>
    %50 = vector.shape_cast %49 : vector<1x1x16xf32> to vector<1x16xf32>
    %51 = vector.broadcast %50 : vector<1x16xf32> to vector<64x16xf32>
    %52 = arith.addf %48, %51 : vector<64x16xf32>
    %53 = vector.extract_strided_slice %32 {offsets = [0, 0, 0], sizes = [1, 32, 16], strides = [1, 1, 1]} : vector<2x32x16xbf16> to vector<1x32x16xbf16>
    %54 = vector.shape_cast %53 : vector<1x32x16xbf16> to vector<32x16xbf16>
    %cst_45 = arith.constant dense<0.000000e+00> : vector<64x16xf32>
    %55 = tpu.matmul %26, %54, %cst_45 {dimension_numbers = #tpu.dot_dimension_numbers<[1], [0], [0], [1], [0, 0, 1, 1], [], []>} : vector<64x32xbf16>, vector<32x16xbf16>, vector<64x16xf32> -> vector<64x16xf32>
    %56 = vector.extract_strided_slice %34 {offsets = [0, 0, 0], sizes = [1, 1, 16], strides = [1, 1, 1]} : vector<2x1x16xf32> to vector<1x1x16xf32>
    %57 = vector.shape_cast %56 : vector<1x1x16xf32> to vector<1x16xf32>
    %58 = vector.broadcast %57 : vector<1x16xf32> to vector<64x16xf32>
    %59 = arith.addf %55, %58 : vector<64x16xf32>
    %60 = vector.extract_strided_slice %36 {offsets = [0, 0, 0], sizes = [1, 32, 16], strides = [1, 1, 1]} : vector<2x32x16xbf16> to vector<1x32x16xbf16>
    %61 = vector.shape_cast %60 : vector<1x32x16xbf16> to vector<32x16xbf16>
    %cst_46 = arith.constant dense<0.000000e+00> : vector<64x16xf32>
    %62 = tpu.matmul %26, %61, %cst_46 {dimension_numbers = #tpu.dot_dimension_numbers<[1], [0], [0], [1], [0, 0, 1, 1], [], []>} : vector<64x32xbf16>, vector<32x16xbf16>, vector<64x16xf32> -> vector<64x16xf32>
    %63 = vector.extract_strided_slice %38 {offsets = [0, 0, 0], sizes = [1, 1, 16], strides = [1, 1, 1]} : vector<2x1x16xf32> to vector<1x1x16xf32>
    %64 = vector.shape_cast %63 : vector<1x1x16xf32> to vector<1x16xf32>
    %65 = vector.broadcast %64 : vector<1x16xf32> to vector<64x16xf32>
    %66 = arith.addf %62, %65 : vector<64x16xf32>
    %67 = vector.shape_cast %52 : vector<64x16xf32> to vector<8x8x16xf32>
    %68 = arith.truncf %67 : vector<8x8x16xf32> to vector<8x8x16xbf16>
    %69 = vector.shape_cast %59 : vector<64x16xf32> to vector<8x8x16xf32>
    %70 = arith.truncf %69 : vector<8x8x16xf32> to vector<8x8x16xbf16>
    %71 = vector.shape_cast %66 : vector<64x16xf32> to vector<8x8x16xf32>
    %72 = arith.truncf %71 : vector<8x8x16xf32> to vector<8x8x16xbf16>
    "tpu.trace_start"() <{level = 10 : i32, message = "sqd,skd->sqk"}> : () -> ()
    %cst_47 = arith.constant dense<0.000000e+00> : vector<8x8x8xf32>
    %73 = tpu.matmul %68, %70, %cst_47 {dimension_numbers = #tpu.dot_dimension_numbers<[2], [2], [1], [1], [0, 0, 0, 1, 1, 1], [0], [0]>} : vector<8x8x16xbf16>, vector<8x8x16xbf16>, vector<8x8x8xf32> -> vector<8x8x8xf32>
    "tpu.trace_stop"() : () -> ()
    %cst_48 = arith.constant 2.500000e-01 : f32
    %74 = vector.broadcast %cst_48 : f32 to vector<8x8x8xf32>
    %75 = arith.mulf %73, %74 : vector<8x8x8xf32>
    %76 = vector.broadcast %25 : vector<8x1x8xf32> to vector<8x8x8xf32>
    %77 = arith.addf %75, %76 : vector<8x8x8xf32>
    %cst_49 = arith.constant dense<0xFF800000> : vector<8x8xf32>
    %78 = vector.multi_reduction <maximumf>, %77, %cst_49 [2] : vector<8x8x8xf32> to vector<8x8xf32>
    %79 = vector.shape_cast %78 : vector<8x8xf32> to vector<8x8x1xf32>
    %80 = vector.broadcast %79 : vector<8x8x1xf32> to vector<8x8x8xf32>
    %81 = arith.subf %77, %80 : vector<8x8x8xf32>
    %82 = math.exp %81 : vector<8x8x8xf32>
    %cst_50 = arith.constant dense<0.000000e+00> : vector<8x8xf32>
    %83 = vector.multi_reduction <add>, %82, %cst_50 [2] : vector<8x8x8xf32> to vector<8x8xf32>
    %84 = vector.shape_cast %83 : vector<8x8xf32> to vector<8x8x1xf32>
    %85 = vector.broadcast %84 : vector<8x8x1xf32> to vector<8x8x8xf32>
    %86 = arith.divf %82, %85 : vector<8x8x8xf32>
    %87 = arith.truncf %86 : vector<8x8x8xf32> to vector<8x8x8xbf16>
    "tpu.trace_start"() <{level = 10 : i32, message = "sqk,skd->sqd"}> : () -> ()
    %cst_51 = arith.constant dense<0.000000e+00> : vector<8x8x16xf32>
    %88 = tpu.matmul %87, %72, %cst_51 {dimension_numbers = #tpu.dot_dimension_numbers<[2], [1], [1], [2], [0, 0, 0, 1, 1, 2], [0], [0]>} : vector<8x8x8xbf16>, vector<8x8x16xbf16>, vector<8x8x16xf32> -> vector<8x8x16xf32>
    "tpu.trace_stop"() : () -> ()
    %89 = vector.shape_cast %88 : vector<8x8x16xf32> to vector<64x16xf32>
    %90 = arith.truncf %89 : vector<64x16xf32> to vector<64x16xbf16>
    %91 = vector.extract_strided_slice %40 {offsets = [0, 0, 0], sizes = [1, 16, 32], strides = [1, 1, 1]} : vector<2x16x32xbf16> to vector<1x16x32xbf16>
    %92 = vector.shape_cast %91 : vector<1x16x32xbf16> to vector<16x32xbf16>
    %cst_52 = arith.constant dense<0.000000e+00> : vector<64x32xf32>
    %93 = tpu.matmul %90, %92, %cst_52 {dimension_numbers = #tpu.dot_dimension_numbers<[1], [0], [0], [1], [0, 0, 1, 1], [], []>} : vector<64x16xbf16>, vector<16x32xbf16>, vector<64x32xf32> -> vector<64x32xf32>
    %94 = arith.addf %45, %93 : vector<64x32xf32>
    %95 = vector.extract_strided_slice %28 {offsets = [1, 0, 0], sizes = [1, 32, 16], strides = [1, 1, 1]} : vector<2x32x16xbf16> to vector<1x32x16xbf16>
    %96 = vector.shape_cast %95 : vector<1x32x16xbf16> to vector<32x16xbf16>
    %cst_53 = arith.constant dense<0.000000e+00> : vector<64x16xf32>
    %97 = tpu.matmul %26, %96, %cst_53 {dimension_numbers = #tpu.dot_dimension_numbers<[1], [0], [0], [1], [0, 0, 1, 1], [], []>} : vector<64x32xbf16>, vector<32x16xbf16>, vector<64x16xf32> -> vector<64x16xf32>
    %98 = vector.extract_strided_slice %30 {offsets = [1, 0, 0], sizes = [1, 1, 16], strides = [1, 1, 1]} : vector<2x1x16xf32> to vector<1x1x16xf32>
    %99 = vector.shape_cast %98 : vector<1x1x16xf32> to vector<1x16xf32>
    %100 = vector.broadcast %99 : vector<1x16xf32> to vector<64x16xf32>
    %101 = arith.addf %97, %100 : vector<64x16xf32>
    %102 = vector.extract_strided_slice %32 {offsets = [1, 0, 0], sizes = [1, 32, 16], strides = [1, 1, 1]} : vector<2x32x16xbf16> to vector<1x32x16xbf16>
    %103 = vector.shape_cast %102 : vector<1x32x16xbf16> to vector<32x16xbf16>
    %cst_54 = arith.constant dense<0.000000e+00> : vector<64x16xf32>
    %104 = tpu.matmul %26, %103, %cst_54 {dimension_numbers = #tpu.dot_dimension_numbers<[1], [0], [0], [1], [0, 0, 1, 1], [], []>} : vector<64x32xbf16>, vector<32x16xbf16>, vector<64x16xf32> -> vector<64x16xf32>
    %105 = vector.extract_strided_slice %34 {offsets = [1, 0, 0], sizes = [1, 1, 16], strides = [1, 1, 1]} : vector<2x1x16xf32> to vector<1x1x16xf32>
    %106 = vector.shape_cast %105 : vector<1x1x16xf32> to vector<1x16xf32>
    %107 = vector.broadcast %106 : vector<1x16xf32> to vector<64x16xf32>
    %108 = arith.addf %104, %107 : vector<64x16xf32>
    %109 = vector.extract_strided_slice %36 {offsets = [1, 0, 0], sizes = [1, 32, 16], strides = [1, 1, 1]} : vector<2x32x16xbf16> to vector<1x32x16xbf16>
    %110 = vector.shape_cast %109 : vector<1x32x16xbf16> to vector<32x16xbf16>
    %cst_55 = arith.constant dense<0.000000e+00> : vector<64x16xf32>
    %111 = tpu.matmul %26, %110, %cst_55 {dimension_numbers = #tpu.dot_dimension_numbers<[1], [0], [0], [1], [0, 0, 1, 1], [], []>} : vector<64x32xbf16>, vector<32x16xbf16>, vector<64x16xf32> -> vector<64x16xf32>
    %112 = vector.extract_strided_slice %38 {offsets = [1, 0, 0], sizes = [1, 1, 16], strides = [1, 1, 1]} : vector<2x1x16xf32> to vector<1x1x16xf32>
    %113 = vector.shape_cast %112 : vector<1x1x16xf32> to vector<1x16xf32>
    %114 = vector.broadcast %113 : vector<1x16xf32> to vector<64x16xf32>
    %115 = arith.addf %111, %114 : vector<64x16xf32>
    %116 = vector.shape_cast %101 : vector<64x16xf32> to vector<8x8x16xf32>
    %117 = arith.truncf %116 : vector<8x8x16xf32> to vector<8x8x16xbf16>
    %118 = vector.shape_cast %108 : vector<64x16xf32> to vector<8x8x16xf32>
    %119 = arith.truncf %118 : vector<8x8x16xf32> to vector<8x8x16xbf16>
    %120 = vector.shape_cast %115 : vector<64x16xf32> to vector<8x8x16xf32>
    %121 = arith.truncf %120 : vector<8x8x16xf32> to vector<8x8x16xbf16>
    "tpu.trace_start"() <{level = 10 : i32, message = "sqd,skd->sqk"}> : () -> ()
    %cst_56 = arith.constant dense<0.000000e+00> : vector<8x8x8xf32>
    %122 = tpu.matmul %117, %119, %cst_56 {dimension_numbers = #tpu.dot_dimension_numbers<[2], [2], [1], [1], [0, 0, 0, 1, 1, 1], [0], [0]>} : vector<8x8x16xbf16>, vector<8x8x16xbf16>, vector<8x8x8xf32> -> vector<8x8x8xf32>
    "tpu.trace_stop"() : () -> ()
    %cst_57 = arith.constant 2.500000e-01 : f32
    %123 = vector.broadcast %cst_57 : f32 to vector<8x8x8xf32>
    %124 = arith.mulf %122, %123 : vector<8x8x8xf32>
    %125 = vector.broadcast %25 : vector<8x1x8xf32> to vector<8x8x8xf32>
    %126 = arith.addf %124, %125 : vector<8x8x8xf32>
    %cst_58 = arith.constant dense<0xFF800000> : vector<8x8xf32>
    %127 = vector.multi_reduction <maximumf>, %126, %cst_58 [2] : vector<8x8x8xf32> to vector<8x8xf32>
    %128 = vector.shape_cast %127 : vector<8x8xf32> to vector<8x8x1xf32>
    %129 = vector.broadcast %128 : vector<8x8x1xf32> to vector<8x8x8xf32>
    %130 = arith.subf %126, %129 : vector<8x8x8xf32>
    %131 = math.exp %130 : vector<8x8x8xf32>
    %cst_59 = arith.constant dense<0.000000e+00> : vector<8x8xf32>
    %132 = vector.multi_reduction <add>, %131, %cst_59 [2] : vector<8x8x8xf32> to vector<8x8xf32>
    %133 = vector.shape_cast %132 : vector<8x8xf32> to vector<8x8x1xf32>
    %134 = vector.broadcast %133 : vector<8x8x1xf32> to vector<8x8x8xf32>
    %135 = arith.divf %131, %134 : vector<8x8x8xf32>
    %136 = arith.truncf %135 : vector<8x8x8xf32> to vector<8x8x8xbf16>
    "tpu.trace_start"() <{level = 10 : i32, message = "sqk,skd->sqd"}> : () -> ()
    %cst_60 = arith.constant dense<0.000000e+00> : vector<8x8x16xf32>
    %137 = tpu.matmul %136, %121, %cst_60 {dimension_numbers = #tpu.dot_dimension_numbers<[2], [1], [1], [2], [0, 0, 0, 1, 1, 2], [0], [0]>} : vector<8x8x8xbf16>, vector<8x8x16xbf16>, vector<8x8x16xf32> -> vector<8x8x16xf32>
    "tpu.trace_stop"() : () -> ()
    %138 = vector.shape_cast %137 : vector<8x8x16xf32> to vector<64x16xf32>
    %139 = arith.truncf %138 : vector<64x16xf32> to vector<64x16xbf16>
    %140 = vector.extract_strided_slice %40 {offsets = [1, 0, 0], sizes = [1, 16, 32], strides = [1, 1, 1]} : vector<2x16x32xbf16> to vector<1x16x32xbf16>
    %141 = vector.shape_cast %140 : vector<1x16x32xbf16> to vector<16x32xbf16>
    %cst_61 = arith.constant dense<0.000000e+00> : vector<64x32xf32>
    %142 = tpu.matmul %139, %141, %cst_61 {dimension_numbers = #tpu.dot_dimension_numbers<[1], [0], [0], [1], [0, 0, 1, 1], [], []>} : vector<64x16xbf16>, vector<16x32xbf16>, vector<64x32xf32> -> vector<64x32xf32>
    %143 = arith.addf %94, %142 : vector<64x32xf32>
    %144 = arith.addf %143, %24 : vector<64x32xf32>
    %c0_62 = arith.constant 0 : index
    %c0_63 = arith.constant 0 : index
    %c0_64 = arith.constant 0 : index
    %145 = vector.load %arg15[%c0_62, %c0_63, %c0_64] : memref<2x1x32xf32, #tpu.memory_space<vmem>>, vector<1x1x32xf32>
    %146 = vector.shape_cast %145 : vector<1x1x32xf32> to vector<1x32xf32>
    %c0_65 = arith.constant 0 : index
    %c0_66 = arith.constant 0 : index
    %c0_67 = arith.constant 0 : index
    %147 = vector.load %arg16[%c0_65, %c0_66, %c0_67] : memref<2x1x32xf32, #tpu.memory_space<vmem>>, vector<1x1x32xf32>
    %148 = vector.shape_cast %147 : vector<1x1x32xf32> to vector<1x32xf32>
    %cst_68 = arith.constant dense<0.000000e+00> : vector<64xf32>
    %149 = vector.multi_reduction <add>, %144, %cst_68 [1] : vector<64x32xf32> to vector<64xf32>
    %150 = vector.shape_cast %149 : vector<64xf32> to vector<64x1xf32>
    %cst_69 = arith.constant 3.200000e+01 : f32
    %151 = vector.broadcast %cst_69 : f32 to vector<64x1xf32>
    %152 = arith.divf %150, %151 : vector<64x1xf32>
    %153 = vector.broadcast %152 : vector<64x1xf32> to vector<64x32xf32>
    %154 = arith.subf %144, %153 : vector<64x32xf32>
    %155 = arith.mulf %154, %154 : vector<64x32xf32>
    %cst_70 = arith.constant dense<0.000000e+00> : vector<64xf32>
    %156 = vector.multi_reduction <add>, %155, %cst_70 [1] : vector<64x32xf32> to vector<64xf32>
    %157 = vector.shape_cast %156 : vector<64xf32> to vector<64x1xf32>
    %cst_71 = arith.constant 3.200000e+01 : f32
    %158 = vector.broadcast %cst_71 : f32 to vector<64x1xf32>
    %159 = arith.divf %157, %158 : vector<64x1xf32>
    %160 = vector.broadcast %152 : vector<64x1xf32> to vector<64x32xf32>
    %161 = arith.subf %144, %160 : vector<64x32xf32>
    %cst_72 = arith.constant 9.99999996E-13 : f32
    %162 = vector.broadcast %cst_72 : f32 to vector<64x1xf32>
    %163 = arith.addf %159, %162 : vector<64x1xf32>
    %164 = math.rsqrt %163 : vector<64x1xf32>
    %165 = vector.broadcast %164 : vector<64x1xf32> to vector<64x32xf32>
    %166 = arith.mulf %161, %165 : vector<64x32xf32>
    %167 = vector.broadcast %146 : vector<1x32xf32> to vector<64x32xf32>
    %168 = arith.mulf %166, %167 : vector<64x32xf32>
    %169 = vector.broadcast %148 : vector<1x32xf32> to vector<64x32xf32>
    %170 = arith.addf %168, %169 : vector<64x32xf32>
    %171 = arith.truncf %170 : vector<64x32xf32> to vector<64x32xbf16>
    %c0_73 = arith.constant 0 : index
    %c0_74 = arith.constant 0 : index
    %c0_75 = arith.constant 0 : index
    %172 = vector.load %arg17[%c0_73, %c0_74, %c0_75] : memref<2x32x64xbf16, #tpu.memory_space<vmem>>, vector<1x32x64xbf16>
    %173 = vector.shape_cast %172 : vector<1x32x64xbf16> to vector<32x64xbf16>
    %cst_76 = arith.constant dense<0.000000e+00> : vector<64x64xf32>
    %174 = tpu.matmul %171, %173, %cst_76 {dimension_numbers = #tpu.dot_dimension_numbers<[1], [0], [0], [1], [0, 0, 1, 1], [], []>} : vector<64x32xbf16>, vector<32x64xbf16>, vector<64x64xf32> -> vector<64x64xf32>
    %c0_77 = arith.constant 0 : index
    %c0_78 = arith.constant 0 : index
    %c0_79 = arith.constant 0 : index
    %175 = vector.load %arg18[%c0_77, %c0_78, %c0_79] : memref<2x1x64xf32, #tpu.memory_space<vmem>>, vector<1x1x64xf32>
    %176 = vector.shape_cast %175 : vector<1x1x64xf32> to vector<1x64xf32>
    %177 = vector.broadcast %176 : vector<1x64xf32> to vector<64x64xf32>
    %178 = arith.addf %174, %177 : vector<64x64xf32>
    %cst_80 = arith.constant 5.000000e-01 : f32
    %179 = vector.broadcast %cst_80 : f32 to vector<64x64xf32>
    %180 = arith.mulf %179, %178 : vector<64x64xf32>
    %cst_81 = arith.constant 4.471500e-02 : f32
    %181 = vector.broadcast %cst_81 : f32 to vector<64x64xf32>
    %182 = arith.mulf %181, %178 : vector<64x64xf32>
    %183 = arith.mulf %182, %178 : vector<64x64xf32>
    %184 = arith.mulf %183, %178 : vector<64x64xf32>
    %185 = arith.addf %178, %184 : vector<64x64xf32>
    %cst_82 = arith.constant 0.797884583 : f32
    %186 = vector.broadcast %cst_82 : f32 to vector<64x64xf32>
    %187 = arith.mulf %186, %185 : vector<64x64xf32>
    %188 = math.tanh %187 : vector<64x64xf32>
    %cst_83 = arith.constant 1.000000e+00 : f32
    %189 = vector.broadcast %cst_83 : f32 to vector<64x64xf32>
    %190 = arith.addf %189, %188 : vector<64x64xf32>
    %191 = arith.mulf %180, %190 : vector<64x64xf32>
    %192 = arith.truncf %191 : vector<64x64xf32> to vector<64x64xbf16>
    %c0_84 = arith.constant 0 : index
    %c0_85 = arith.constant 0 : index
    %c0_86 = arith.constant 0 : index
    %193 = vector.load %arg19[%c0_84, %c0_85, %c0_86] : memref<2x64x32xbf16, #tpu.memory_space<vmem>>, vector<1x64x32xbf16>
    %194 = vector.shape_cast %193 : vector<1x64x32xbf16> to vector<64x32xbf16>
    %cst_87 = arith.constant dense<0.000000e+00> : vector<64x32xf32>
    %195 = tpu.matmul %192, %194, %cst_87 {dimension_numbers = #tpu.dot_dimension_numbers<[1], [0], [0], [1], [0, 0, 1, 1], [], []>} : vector<64x64xbf16>, vector<64x32xbf16>, vector<64x32xf32> -> vector<64x32xf32>
    %c0_88 = arith.constant 0 : index
    %c0_89 = arith.constant 0 : index
    %c0_90 = arith.constant 0 : index
    %196 = vector.load %arg20[%c0_88, %c0_89, %c0_90] : memref<2x1x32xf32, #tpu.memory_space<vmem>>, vector<1x1x32xf32>
    %197 = vector.shape_cast %196 : vector<1x1x32xf32> to vector<1x32xf32>
    %198 = vector.broadcast %197 : vector<1x32xf32> to vector<64x32xf32>
    %199 = arith.addf %195, %198 : vector<64x32xf32>
    %200 = arith.addf %199, %170 : vector<64x32xf32>
    %c0_91 = arith.constant 0 : index
    %c0_92 = arith.constant 0 : index
    %c0_93 = arith.constant 0 : index
    %201 = vector.load %arg21[%c0_91, %c0_92, %c0_93] : memref<2x1x32xf32, #tpu.memory_space<vmem>>, vector<1x1x32xf32>
    %202 = vector.shape_cast %201 : vector<1x1x32xf32> to vector<1x32xf32>
    %c0_94 = arith.constant 0 : index
    %c0_95 = arith.constant 0 : index
    %c0_96 = arith.constant 0 : index
    %203 = vector.load %arg22[%c0_94, %c0_95, %c0_96] : memref<2x1x32xf32, #tpu.memory_space<vmem>>, vector<1x1x32xf32>
    %204 = vector.shape_cast %203 : vector<1x1x32xf32> to vector<1x32xf32>
    %cst_97 = arith.constant dense<0.000000e+00> : vector<64xf32>
    %205 = vector.multi_reduction <add>, %200, %cst_97 [1] : vector<64x32xf32> to vector<64xf32>
    %206 = vector.shape_cast %205 : vector<64xf32> to vector<64x1xf32>
    %cst_98 = arith.constant 3.200000e+01 : f32
    %207 = vector.broadcast %cst_98 : f32 to vector<64x1xf32>
    %208 = arith.divf %206, %207 : vector<64x1xf32>
    %209 = vector.broadcast %208 : vector<64x1xf32> to vector<64x32xf32>
    %210 = arith.subf %200, %209 : vector<64x32xf32>
    %211 = arith.mulf %210, %210 : vector<64x32xf32>
    %cst_99 = arith.constant dense<0.000000e+00> : vector<64xf32>
    %212 = vector.multi_reduction <add>, %211, %cst_99 [1] : vector<64x32xf32> to vector<64xf32>
    %213 = vector.shape_cast %212 : vector<64xf32> to vector<64x1xf32>
    %cst_100 = arith.constant 3.200000e+01 : f32
    %214 = vector.broadcast %cst_100 : f32 to vector<64x1xf32>
    %215 = arith.divf %213, %214 : vector<64x1xf32>
    %216 = vector.broadcast %208 : vector<64x1xf32> to vector<64x32xf32>
    %217 = arith.subf %200, %216 : vector<64x32xf32>
    %cst_101 = arith.constant 9.99999996E-13 : f32
    %218 = vector.broadcast %cst_101 : f32 to vector<64x1xf32>
    %219 = arith.addf %215, %218 : vector<64x1xf32>
    %220 = math.rsqrt %219 : vector<64x1xf32>
    %221 = vector.broadcast %220 : vector<64x1xf32> to vector<64x32xf32>
    %222 = arith.mulf %217, %221 : vector<64x32xf32>
    %223 = vector.broadcast %202 : vector<1x32xf32> to vector<64x32xf32>
    %224 = arith.mulf %222, %223 : vector<64x32xf32>
    %225 = vector.broadcast %204 : vector<1x32xf32> to vector<64x32xf32>
    %226 = arith.addf %224, %225 : vector<64x32xf32>
    %227 = arith.truncf %226 : vector<64x32xf32> to vector<64x32xbf16>
    %c1 = arith.constant 1 : index
    %c0_102 = arith.constant 0 : index
    %c0_103 = arith.constant 0 : index
    %c0_104 = arith.constant 0 : index
    %228 = vector.load %arg7[%c1, %c0_102, %c0_103, %c0_104] : memref<2x2x32x16xbf16, #tpu.memory_space<vmem>>, vector<1x2x32x16xbf16>
    %229 = vector.shape_cast %228 : vector<1x2x32x16xbf16> to vector<2x32x16xbf16>
    %c1_105 = arith.constant 1 : index
    %c0_106 = arith.constant 0 : index
    %c0_107 = arith.constant 0 : index
    %c0_108 = arith.constant 0 : index
    %230 = vector.load %arg8[%c1_105, %c0_106, %c0_107, %c0_108] : memref<2x2x1x16xf32, #tpu.memory_space<vmem>>, vector<1x2x1x16xf32>
    %231 = vector.shape_cast %230 : vector<1x2x1x16xf32> to vector<2x1x16xf32>
    %c1_109 = arith.constant 1 : index
    %c0_110 = arith.constant 0 : index
    %c0_111 = arith.constant 0 : index
    %c0_112 = arith.constant 0 : index
    %232 = vector.load %arg9[%c1_109, %c0_110, %c0_111, %c0_112] : memref<2x2x32x16xbf16, #tpu.memory_space<vmem>>, vector<1x2x32x16xbf16>
    %233 = vector.shape_cast %232 : vector<1x2x32x16xbf16> to vector<2x32x16xbf16>
    %c1_113 = arith.constant 1 : index
    %c0_114 = arith.constant 0 : index
    %c0_115 = arith.constant 0 : index
    %c0_116 = arith.constant 0 : index
    %234 = vector.load %arg10[%c1_113, %c0_114, %c0_115, %c0_116] : memref<2x2x1x16xf32, #tpu.memory_space<vmem>>, vector<1x2x1x16xf32>
    %235 = vector.shape_cast %234 : vector<1x2x1x16xf32> to vector<2x1x16xf32>
    %c1_117 = arith.constant 1 : index
    %c0_118 = arith.constant 0 : index
    %c0_119 = arith.constant 0 : index
    %c0_120 = arith.constant 0 : index
    %236 = vector.load %arg11[%c1_117, %c0_118, %c0_119, %c0_120] : memref<2x2x32x16xbf16, #tpu.memory_space<vmem>>, vector<1x2x32x16xbf16>
    %237 = vector.shape_cast %236 : vector<1x2x32x16xbf16> to vector<2x32x16xbf16>
    %c1_121 = arith.constant 1 : index
    %c0_122 = arith.constant 0 : index
    %c0_123 = arith.constant 0 : index
    %c0_124 = arith.constant 0 : index
    %238 = vector.load %arg12[%c1_121, %c0_122, %c0_123, %c0_124] : memref<2x2x1x16xf32, #tpu.memory_space<vmem>>, vector<1x2x1x16xf32>
    %239 = vector.shape_cast %238 : vector<1x2x1x16xf32> to vector<2x1x16xf32>
    %c1_125 = arith.constant 1 : index
    %c0_126 = arith.constant 0 : index
    %c0_127 = arith.constant 0 : index
    %c0_128 = arith.constant 0 : index
    %240 = vector.load %arg13[%c1_125, %c0_126, %c0_127, %c0_128] : memref<2x2x16x32xbf16, #tpu.memory_space<vmem>>, vector<1x2x16x32xbf16>
    %241 = vector.shape_cast %240 : vector<1x2x16x32xbf16> to vector<2x16x32xbf16>
    %cst_129 = arith.constant 0.000000e+00 : f32
    %242 = vector.broadcast %cst_129 : f32 to vector<64x32xf32>
    %c1_130 = arith.constant 1 : index
    %c0_131 = arith.constant 0 : index
    %c0_132 = arith.constant 0 : index
    %243 = vector.load %arg14[%c1_130, %c0_131, %c0_132] : memref<2x1x32xf32, #tpu.memory_space<vmem>>, vector<1x1x32xf32>
    %244 = vector.shape_cast %243 : vector<1x1x32xf32> to vector<1x32xf32>
    %245 = vector.broadcast %244 : vector<1x32xf32> to vector<64x32xf32>
    %246 = arith.addf %242, %245 : vector<64x32xf32>
    %247 = vector.extract_strided_slice %229 {offsets = [0, 0, 0], sizes = [1, 32, 16], strides = [1, 1, 1]} : vector<2x32x16xbf16> to vector<1x32x16xbf16>
    %248 = vector.shape_cast %247 : vector<1x32x16xbf16> to vector<32x16xbf16>
    %cst_133 = arith.constant dense<0.000000e+00> : vector<64x16xf32>
    %249 = tpu.matmul %227, %248, %cst_133 {dimension_numbers = #tpu.dot_dimension_numbers<[1], [0], [0], [1], [0, 0, 1, 1], [], []>} : vector<64x32xbf16>, vector<32x16xbf16>, vector<64x16xf32> -> vector<64x16xf32>
    %250 = vector.extract_strided_slice %231 {offsets = [0, 0, 0], sizes = [1, 1, 16], strides = [1, 1, 1]} : vector<2x1x16xf32> to vector<1x1x16xf32>
    %251 = vector.shape_cast %250 : vector<1x1x16xf32> to vector<1x16xf32>
    %252 = vector.broadcast %251 : vector<1x16xf32> to vector<64x16xf32>
    %253 = arith.addf %249, %252 : vector<64x16xf32>
    %254 = vector.extract_strided_slice %233 {offsets = [0, 0, 0], sizes = [1, 32, 16], strides = [1, 1, 1]} : vector<2x32x16xbf16> to vector<1x32x16xbf16>
    %255 = vector.shape_cast %254 : vector<1x32x16xbf16> to vector<32x16xbf16>
    %cst_134 = arith.constant dense<0.000000e+00> : vector<64x16xf32>
    %256 = tpu.matmul %227, %255, %cst_134 {dimension_numbers = #tpu.dot_dimension_numbers<[1], [0], [0], [1], [0, 0, 1, 1], [], []>} : vector<64x32xbf16>, vector<32x16xbf16>, vector<64x16xf32> -> vector<64x16xf32>
    %257 = vector.extract_strided_slice %235 {offsets = [0, 0, 0], sizes = [1, 1, 16], strides = [1, 1, 1]} : vector<2x1x16xf32> to vector<1x1x16xf32>
    %258 = vector.shape_cast %257 : vector<1x1x16xf32> to vector<1x16xf32>
    %259 = vector.broadcast %258 : vector<1x16xf32> to vector<64x16xf32>
    %260 = arith.addf %256, %259 : vector<64x16xf32>
    %261 = vector.extract_strided_slice %237 {offsets = [0, 0, 0], sizes = [1, 32, 16], strides = [1, 1, 1]} : vector<2x32x16xbf16> to vector<1x32x16xbf16>
    %262 = vector.shape_cast %261 : vector<1x32x16xbf16> to vector<32x16xbf16>
    %cst_135 = arith.constant dense<0.000000e+00> : vector<64x16xf32>
    %263 = tpu.matmul %227, %262, %cst_135 {dimension_numbers = #tpu.dot_dimension_numbers<[1], [0], [0], [1], [0, 0, 1, 1], [], []>} : vector<64x32xbf16>, vector<32x16xbf16>, vector<64x16xf32> -> vector<64x16xf32>
    %264 = vector.extract_strided_slice %239 {offsets = [0, 0, 0], sizes = [1, 1, 16], strides = [1, 1, 1]} : vector<2x1x16xf32> to vector<1x1x16xf32>
    %265 = vector.shape_cast %264 : vector<1x1x16xf32> to vector<1x16xf32>
    %266 = vector.broadcast %265 : vector<1x16xf32> to vector<64x16xf32>
    %267 = arith.addf %263, %266 : vector<64x16xf32>
    %268 = vector.shape_cast %253 : vector<64x16xf32> to vector<8x8x16xf32>
    %269 = arith.truncf %268 : vector<8x8x16xf32> to vector<8x8x16xbf16>
    %270 = vector.shape_cast %260 : vector<64x16xf32> to vector<8x8x16xf32>
    %271 = arith.truncf %270 : vector<8x8x16xf32> to vector<8x8x16xbf16>
    %272 = vector.shape_cast %267 : vector<64x16xf32> to vector<8x8x16xf32>
    %273 = arith.truncf %272 : vector<8x8x16xf32> to vector<8x8x16xbf16>
    "tpu.trace_start"() <{level = 10 : i32, message = "sqd,skd->sqk"}> : () -> ()
    %cst_136 = arith.constant dense<0.000000e+00> : vector<8x8x8xf32>
    %274 = tpu.matmul %269, %271, %cst_136 {dimension_numbers = #tpu.dot_dimension_numbers<[2], [2], [1], [1], [0, 0, 0, 1, 1, 1], [0], [0]>} : vector<8x8x16xbf16>, vector<8x8x16xbf16>, vector<8x8x8xf32> -> vector<8x8x8xf32>
    "tpu.trace_stop"() : () -> ()
    %cst_137 = arith.constant 2.500000e-01 : f32
    %275 = vector.broadcast %cst_137 : f32 to vector<8x8x8xf32>
    %276 = arith.mulf %274, %275 : vector<8x8x8xf32>
    %277 = vector.broadcast %25 : vector<8x1x8xf32> to vector<8x8x8xf32>
    %278 = arith.addf %276, %277 : vector<8x8x8xf32>
    %cst_138 = arith.constant dense<0xFF800000> : vector<8x8xf32>
    %279 = vector.multi_reduction <maximumf>, %278, %cst_138 [2] : vector<8x8x8xf32> to vector<8x8xf32>
    %280 = vector.shape_cast %279 : vector<8x8xf32> to vector<8x8x1xf32>
    %281 = vector.broadcast %280 : vector<8x8x1xf32> to vector<8x8x8xf32>
    %282 = arith.subf %278, %281 : vector<8x8x8xf32>
    %283 = math.exp %282 : vector<8x8x8xf32>
    %cst_139 = arith.constant dense<0.000000e+00> : vector<8x8xf32>
    %284 = vector.multi_reduction <add>, %283, %cst_139 [2] : vector<8x8x8xf32> to vector<8x8xf32>
    %285 = vector.shape_cast %284 : vector<8x8xf32> to vector<8x8x1xf32>
    %286 = vector.broadcast %285 : vector<8x8x1xf32> to vector<8x8x8xf32>
    %287 = arith.divf %283, %286 : vector<8x8x8xf32>
    %288 = arith.truncf %287 : vector<8x8x8xf32> to vector<8x8x8xbf16>
    "tpu.trace_start"() <{level = 10 : i32, message = "sqk,skd->sqd"}> : () -> ()
    %cst_140 = arith.constant dense<0.000000e+00> : vector<8x8x16xf32>
    %289 = tpu.matmul %288, %273, %cst_140 {dimension_numbers = #tpu.dot_dimension_numbers<[2], [1], [1], [2], [0, 0, 0, 1, 1, 2], [0], [0]>} : vector<8x8x8xbf16>, vector<8x8x16xbf16>, vector<8x8x16xf32> -> vector<8x8x16xf32>
    "tpu.trace_stop"() : () -> ()
    %290 = vector.shape_cast %289 : vector<8x8x16xf32> to vector<64x16xf32>
    %291 = arith.truncf %290 : vector<64x16xf32> to vector<64x16xbf16>
    %292 = vector.extract_strided_slice %241 {offsets = [0, 0, 0], sizes = [1, 16, 32], strides = [1, 1, 1]} : vector<2x16x32xbf16> to vector<1x16x32xbf16>
    %293 = vector.shape_cast %292 : vector<1x16x32xbf16> to vector<16x32xbf16>
    %cst_141 = arith.constant dense<0.000000e+00> : vector<64x32xf32>
    %294 = tpu.matmul %291, %293, %cst_141 {dimension_numbers = #tpu.dot_dimension_numbers<[1], [0], [0], [1], [0, 0, 1, 1], [], []>} : vector<64x16xbf16>, vector<16x32xbf16>, vector<64x32xf32> -> vector<64x32xf32>
    %295 = arith.addf %246, %294 : vector<64x32xf32>
    %296 = vector.extract_strided_slice %229 {offsets = [1, 0, 0], sizes = [1, 32, 16], strides = [1, 1, 1]} : vector<2x32x16xbf16> to vector<1x32x16xbf16>
    %297 = vector.shape_cast %296 : vector<1x32x16xbf16> to vector<32x16xbf16>
    %cst_142 = arith.constant dense<0.000000e+00> : vector<64x16xf32>
    %298 = tpu.matmul %227, %297, %cst_142 {dimension_numbers = #tpu.dot_dimension_numbers<[1], [0], [0], [1], [0, 0, 1, 1], [], []>} : vector<64x32xbf16>, vector<32x16xbf16>, vector<64x16xf32> -> vector<64x16xf32>
    %299 = vector.extract_strided_slice %231 {offsets = [1, 0, 0], sizes = [1, 1, 16], strides = [1, 1, 1]} : vector<2x1x16xf32> to vector<1x1x16xf32>
    %300 = vector.shape_cast %299 : vector<1x1x16xf32> to vector<1x16xf32>
    %301 = vector.broadcast %300 : vector<1x16xf32> to vector<64x16xf32>
    %302 = arith.addf %298, %301 : vector<64x16xf32>
    %303 = vector.extract_strided_slice %233 {offsets = [1, 0, 0], sizes = [1, 32, 16], strides = [1, 1, 1]} : vector<2x32x16xbf16> to vector<1x32x16xbf16>
    %304 = vector.shape_cast %303 : vector<1x32x16xbf16> to vector<32x16xbf16>
    %cst_143 = arith.constant dense<0.000000e+00> : vector<64x16xf32>
    %305 = tpu.matmul %227, %304, %cst_143 {dimension_numbers = #tpu.dot_dimension_numbers<[1], [0], [0], [1], [0, 0, 1, 1], [], []>} : vector<64x32xbf16>, vector<32x16xbf16>, vector<64x16xf32> -> vector<64x16xf32>
    %306 = vector.extract_strided_slice %235 {offsets = [1, 0, 0], sizes = [1, 1, 16], strides = [1, 1, 1]} : vector<2x1x16xf32> to vector<1x1x16xf32>
    %307 = vector.shape_cast %306 : vector<1x1x16xf32> to vector<1x16xf32>
    %308 = vector.broadcast %307 : vector<1x16xf32> to vector<64x16xf32>
    %309 = arith.addf %305, %308 : vector<64x16xf32>
    %310 = vector.extract_strided_slice %237 {offsets = [1, 0, 0], sizes = [1, 32, 16], strides = [1, 1, 1]} : vector<2x32x16xbf16> to vector<1x32x16xbf16>
    %311 = vector.shape_cast %310 : vector<1x32x16xbf16> to vector<32x16xbf16>
    %cst_144 = arith.constant dense<0.000000e+00> : vector<64x16xf32>
    %312 = tpu.matmul %227, %311, %cst_144 {dimension_numbers = #tpu.dot_dimension_numbers<[1], [0], [0], [1], [0, 0, 1, 1], [], []>} : vector<64x32xbf16>, vector<32x16xbf16>, vector<64x16xf32> -> vector<64x16xf32>
    %313 = vector.extract_strided_slice %239 {offsets = [1, 0, 0], sizes = [1, 1, 16], strides = [1, 1, 1]} : vector<2x1x16xf32> to vector<1x1x16xf32>
    %314 = vector.shape_cast %313 : vector<1x1x16xf32> to vector<1x16xf32>
    %315 = vector.broadcast %314 : vector<1x16xf32> to vector<64x16xf32>
    %316 = arith.addf %312, %315 : vector<64x16xf32>
    %317 = vector.shape_cast %302 : vector<64x16xf32> to vector<8x8x16xf32>
    %318 = arith.truncf %317 : vector<8x8x16xf32> to vector<8x8x16xbf16>
    %319 = vector.shape_cast %309 : vector<64x16xf32> to vector<8x8x16xf32>
    %320 = arith.truncf %319 : vector<8x8x16xf32> to vector<8x8x16xbf16>
    %321 = vector.shape_cast %316 : vector<64x16xf32> to vector<8x8x16xf32>
    %322 = arith.truncf %321 : vector<8x8x16xf32> to vector<8x8x16xbf16>
    "tpu.trace_start"() <{level = 10 : i32, message = "sqd,skd->sqk"}> : () -> ()
    %cst_145 = arith.constant dense<0.000000e+00> : vector<8x8x8xf32>
    %323 = tpu.matmul %318, %320, %cst_145 {dimension_numbers = #tpu.dot_dimension_numbers<[2], [2], [1], [1], [0, 0, 0, 1, 1, 1], [0], [0]>} : vector<8x8x16xbf16>, vector<8x8x16xbf16>, vector<8x8x8xf32> -> vector<8x8x8xf32>
    "tpu.trace_stop"() : () -> ()
    %cst_146 = arith.constant 2.500000e-01 : f32
    %324 = vector.broadcast %cst_146 : f32 to vector<8x8x8xf32>
    %325 = arith.mulf %323, %324 : vector<8x8x8xf32>
    %326 = vector.broadcast %25 : vector<8x1x8xf32> to vector<8x8x8xf32>
    %327 = arith.addf %325, %326 : vector<8x8x8xf32>
    %cst_147 = arith.constant dense<0xFF800000> : vector<8x8xf32>
    %328 = vector.multi_reduction <maximumf>, %327, %cst_147 [2] : vector<8x8x8xf32> to vector<8x8xf32>
    %329 = vector.shape_cast %328 : vector<8x8xf32> to vector<8x8x1xf32>
    %330 = vector.broadcast %329 : vector<8x8x1xf32> to vector<8x8x8xf32>
    %331 = arith.subf %327, %330 : vector<8x8x8xf32>
    %332 = math.exp %331 : vector<8x8x8xf32>
    %cst_148 = arith.constant dense<0.000000e+00> : vector<8x8xf32>
    %333 = vector.multi_reduction <add>, %332, %cst_148 [2] : vector<8x8x8xf32> to vector<8x8xf32>
    %334 = vector.shape_cast %333 : vector<8x8xf32> to vector<8x8x1xf32>
    %335 = vector.broadcast %334 : vector<8x8x1xf32> to vector<8x8x8xf32>
    %336 = arith.divf %332, %335 : vector<8x8x8xf32>
    %337 = arith.truncf %336 : vector<8x8x8xf32> to vector<8x8x8xbf16>
    "tpu.trace_start"() <{level = 10 : i32, message = "sqk,skd->sqd"}> : () -> ()
    %cst_149 = arith.constant dense<0.000000e+00> : vector<8x8x16xf32>
    %338 = tpu.matmul %337, %322, %cst_149 {dimension_numbers = #tpu.dot_dimension_numbers<[2], [1], [1], [2], [0, 0, 0, 1, 1, 2], [0], [0]>} : vector<8x8x8xbf16>, vector<8x8x16xbf16>, vector<8x8x16xf32> -> vector<8x8x16xf32>
    "tpu.trace_stop"() : () -> ()
    %339 = vector.shape_cast %338 : vector<8x8x16xf32> to vector<64x16xf32>
    %340 = arith.truncf %339 : vector<64x16xf32> to vector<64x16xbf16>
    %341 = vector.extract_strided_slice %241 {offsets = [1, 0, 0], sizes = [1, 16, 32], strides = [1, 1, 1]} : vector<2x16x32xbf16> to vector<1x16x32xbf16>
    %342 = vector.shape_cast %341 : vector<1x16x32xbf16> to vector<16x32xbf16>
    %cst_150 = arith.constant dense<0.000000e+00> : vector<64x32xf32>
    %343 = tpu.matmul %340, %342, %cst_150 {dimension_numbers = #tpu.dot_dimension_numbers<[1], [0], [0], [1], [0, 0, 1, 1], [], []>} : vector<64x16xbf16>, vector<16x32xbf16>, vector<64x32xf32> -> vector<64x32xf32>
    %344 = arith.addf %295, %343 : vector<64x32xf32>
    %345 = arith.addf %344, %226 : vector<64x32xf32>
    %c1_151 = arith.constant 1 : index
    %c0_152 = arith.constant 0 : index
    %c0_153 = arith.constant 0 : index
    %346 = vector.load %arg15[%c1_151, %c0_152, %c0_153] : memref<2x1x32xf32, #tpu.memory_space<vmem>>, vector<1x1x32xf32>
    %347 = vector.shape_cast %346 : vector<1x1x32xf32> to vector<1x32xf32>
    %c1_154 = arith.constant 1 : index
    %c0_155 = arith.constant 0 : index
    %c0_156 = arith.constant 0 : index
    %348 = vector.load %arg16[%c1_154, %c0_155, %c0_156] : memref<2x1x32xf32, #tpu.memory_space<vmem>>, vector<1x1x32xf32>
    %349 = vector.shape_cast %348 : vector<1x1x32xf32> to vector<1x32xf32>
    %cst_157 = arith.constant dense<0.000000e+00> : vector<64xf32>
    %350 = vector.multi_reduction <add>, %345, %cst_157 [1] : vector<64x32xf32> to vector<64xf32>
    %351 = vector.shape_cast %350 : vector<64xf32> to vector<64x1xf32>
    %cst_158 = arith.constant 3.200000e+01 : f32
    %352 = vector.broadcast %cst_158 : f32 to vector<64x1xf32>
    %353 = arith.divf %351, %352 : vector<64x1xf32>
    %354 = vector.broadcast %353 : vector<64x1xf32> to vector<64x32xf32>
    %355 = arith.subf %345, %354 : vector<64x32xf32>
    %356 = arith.mulf %355, %355 : vector<64x32xf32>
    %cst_159 = arith.constant dense<0.000000e+00> : vector<64xf32>
    %357 = vector.multi_reduction <add>, %356, %cst_159 [1] : vector<64x32xf32> to vector<64xf32>
    %358 = vector.shape_cast %357 : vector<64xf32> to vector<64x1xf32>
    %cst_160 = arith.constant 3.200000e+01 : f32
    %359 = vector.broadcast %cst_160 : f32 to vector<64x1xf32>
    %360 = arith.divf %358, %359 : vector<64x1xf32>
    %361 = vector.broadcast %353 : vector<64x1xf32> to vector<64x32xf32>
    %362 = arith.subf %345, %361 : vector<64x32xf32>
    %cst_161 = arith.constant 9.99999996E-13 : f32
    %363 = vector.broadcast %cst_161 : f32 to vector<64x1xf32>
    %364 = arith.addf %360, %363 : vector<64x1xf32>
    %365 = math.rsqrt %364 : vector<64x1xf32>
    %366 = vector.broadcast %365 : vector<64x1xf32> to vector<64x32xf32>
    %367 = arith.mulf %362, %366 : vector<64x32xf32>
    %368 = vector.broadcast %347 : vector<1x32xf32> to vector<64x32xf32>
    %369 = arith.mulf %367, %368 : vector<64x32xf32>
    %370 = vector.broadcast %349 : vector<1x32xf32> to vector<64x32xf32>
    %371 = arith.addf %369, %370 : vector<64x32xf32>
    %372 = arith.truncf %371 : vector<64x32xf32> to vector<64x32xbf16>
    %c1_162 = arith.constant 1 : index
    %c0_163 = arith.constant 0 : index
    %c0_164 = arith.constant 0 : index
    %373 = vector.load %arg17[%c1_162, %c0_163, %c0_164] : memref<2x32x64xbf16, #tpu.memory_space<vmem>>, vector<1x32x64xbf16>
    %374 = vector.shape_cast %373 : vector<1x32x64xbf16> to vector<32x64xbf16>
    %cst_165 = arith.constant dense<0.000000e+00> : vector<64x64xf32>
    %375 = tpu.matmul %372, %374, %cst_165 {dimension_numbers = #tpu.dot_dimension_numbers<[1], [0], [0], [1], [0, 0, 1, 1], [], []>} : vector<64x32xbf16>, vector<32x64xbf16>, vector<64x64xf32> -> vector<64x64xf32>
    %c1_166 = arith.constant 1 : index
    %c0_167 = arith.constant 0 : index
    %c0_168 = arith.constant 0 : index
    %376 = vector.load %arg18[%c1_166, %c0_167, %c0_168] : memref<2x1x64xf32, #tpu.memory_space<vmem>>, vector<1x1x64xf32>
    %377 = vector.shape_cast %376 : vector<1x1x64xf32> to vector<1x64xf32>
    %378 = vector.broadcast %377 : vector<1x64xf32> to vector<64x64xf32>
    %379 = arith.addf %375, %378 : vector<64x64xf32>
    %cst_169 = arith.constant 5.000000e-01 : f32
    %380 = vector.broadcast %cst_169 : f32 to vector<64x64xf32>
    %381 = arith.mulf %380, %379 : vector<64x64xf32>
    %cst_170 = arith.constant 4.471500e-02 : f32
    %382 = vector.broadcast %cst_170 : f32 to vector<64x64xf32>
    %383 = arith.mulf %382, %379 : vector<64x64xf32>
    %384 = arith.mulf %383, %379 : vector<64x64xf32>
    %385 = arith.mulf %384, %379 : vector<64x64xf32>
    %386 = arith.addf %379, %385 : vector<64x64xf32>
    %cst_171 = arith.constant 0.797884583 : f32
    %387 = vector.broadcast %cst_171 : f32 to vector<64x64xf32>
    %388 = arith.mulf %387, %386 : vector<64x64xf32>
    %389 = math.tanh %388 : vector<64x64xf32>
    %cst_172 = arith.constant 1.000000e+00 : f32
    %390 = vector.broadcast %cst_172 : f32 to vector<64x64xf32>
    %391 = arith.addf %390, %389 : vector<64x64xf32>
    %392 = arith.mulf %381, %391 : vector<64x64xf32>
    %393 = arith.truncf %392 : vector<64x64xf32> to vector<64x64xbf16>
    %c1_173 = arith.constant 1 : index
    %c0_174 = arith.constant 0 : index
    %c0_175 = arith.constant 0 : index
    %394 = vector.load %arg19[%c1_173, %c0_174, %c0_175] : memref<2x64x32xbf16, #tpu.memory_space<vmem>>, vector<1x64x32xbf16>
    %395 = vector.shape_cast %394 : vector<1x64x32xbf16> to vector<64x32xbf16>
    %cst_176 = arith.constant dense<0.000000e+00> : vector<64x32xf32>
    %396 = tpu.matmul %393, %395, %cst_176 {dimension_numbers = #tpu.dot_dimension_numbers<[1], [0], [0], [1], [0, 0, 1, 1], [], []>} : vector<64x64xbf16>, vector<64x32xbf16>, vector<64x32xf32> -> vector<64x32xf32>
    %c1_177 = arith.constant 1 : index
    %c0_178 = arith.constant 0 : index
    %c0_179 = arith.constant 0 : index
    %397 = vector.load %arg20[%c1_177, %c0_178, %c0_179] : memref<2x1x32xf32, #tpu.memory_space<vmem>>, vector<1x1x32xf32>
    %398 = vector.shape_cast %397 : vector<1x1x32xf32> to vector<1x32xf32>
    %399 = vector.broadcast %398 : vector<1x32xf32> to vector<64x32xf32>
    %400 = arith.addf %396, %399 : vector<64x32xf32>
    %401 = arith.addf %400, %371 : vector<64x32xf32>
    %c1_180 = arith.constant 1 : index
    %c0_181 = arith.constant 0 : index
    %c0_182 = arith.constant 0 : index
    %402 = vector.load %arg21[%c1_180, %c0_181, %c0_182] : memref<2x1x32xf32, #tpu.memory_space<vmem>>, vector<1x1x32xf32>
    %403 = vector.shape_cast %402 : vector<1x1x32xf32> to vector<1x32xf32>
    %c1_183 = arith.constant 1 : index
    %c0_184 = arith.constant 0 : index
    %c0_185 = arith.constant 0 : index
    %404 = vector.load %arg22[%c1_183, %c0_184, %c0_185] : memref<2x1x32xf32, #tpu.memory_space<vmem>>, vector<1x1x32xf32>
    %405 = vector.shape_cast %404 : vector<1x1x32xf32> to vector<1x32xf32>
    %cst_186 = arith.constant dense<0.000000e+00> : vector<64xf32>
    %406 = vector.multi_reduction <add>, %401, %cst_186 [1] : vector<64x32xf32> to vector<64xf32>
    %407 = vector.shape_cast %406 : vector<64xf32> to vector<64x1xf32>
    %cst_187 = arith.constant 3.200000e+01 : f32
    %408 = vector.broadcast %cst_187 : f32 to vector<64x1xf32>
    %409 = arith.divf %407, %408 : vector<64x1xf32>
    %410 = vector.broadcast %409 : vector<64x1xf32> to vector<64x32xf32>
    %411 = arith.subf %401, %410 : vector<64x32xf32>
    %412 = arith.mulf %411, %411 : vector<64x32xf32>
    %cst_188 = arith.constant dense<0.000000e+00> : vector<64xf32>
    %413 = vector.multi_reduction <add>, %412, %cst_188 [1] : vector<64x32xf32> to vector<64xf32>
    %414 = vector.shape_cast %413 : vector<64xf32> to vector<64x1xf32>
    %cst_189 = arith.constant 3.200000e+01 : f32
    %415 = vector.broadcast %cst_189 : f32 to vector<64x1xf32>
    %416 = arith.divf %414, %415 : vector<64x1xf32>
    %417 = vector.broadcast %409 : vector<64x1xf32> to vector<64x32xf32>
    %418 = arith.subf %401, %417 : vector<64x32xf32>
    %cst_190 = arith.constant 9.99999996E-13 : f32
    %419 = vector.broadcast %cst_190 : f32 to vector<64x1xf32>
    %420 = arith.addf %416, %419 : vector<64x1xf32>
    %421 = math.rsqrt %420 : vector<64x1xf32>
    %422 = vector.broadcast %421 : vector<64x1xf32> to vector<64x32xf32>
    %423 = arith.mulf %418, %422 : vector<64x32xf32>
    %424 = vector.broadcast %403 : vector<1x32xf32> to vector<64x32xf32>
    %425 = arith.mulf %423, %424 : vector<64x32xf32>
    %426 = vector.broadcast %405 : vector<1x32xf32> to vector<64x32xf32>
    %427 = arith.addf %425, %426 : vector<64x32xf32>
    %c0_191 = arith.constant 0 : index
    %c0_192 = arith.constant 0 : index
    %428 = vector.load %arg23[%c0_191, %c0_192] : memref<32x1xf32, #tpu.memory_space<vmem>>, vector<32x1xf32>
    %cst_193 = arith.constant dense<0.000000e+00> : vector<64x1xf32>
    %429 = tpu.matmul %427, %428, %cst_193 {dimension_numbers = #tpu.dot_dimension_numbers<[1], [0], [0], [1], [0, 0, 1, 1], [], []>} : vector<64x32xf32>, vector<32x1xf32>, vector<64x1xf32> -> vector<64x1xf32>
    %430 = vector.shape_cast %429 : vector<64x1xf32> to vector<8x8x1xf32>
    %c0_194 = arith.constant 0 : index
    %c0_195 = arith.constant 0 : index
    %c0_196 = arith.constant 0 : index
    %431 = vector.load %arg3[%c0_194, %c0_195, %c0_196] : memref<8x8x1xf32, #tpu.memory_space<vmem>>, vector<8x8x1xf32>
    %cst_197 = arith.constant 0.000000e+00 : f32
    %432 = vector.broadcast %cst_197 : f32 to vector<8x8x1xf32>
    %433 = arith.cmpf oeq, %431, %432 : vector<8x8x1xf32>
    %cst_198 = arith.constant -1.000000e+09 : f32
    %434 = vector.broadcast %cst_198 : f32 to vector<8x8x1xf32>
    %435 = arith.select %433, %434, %430 : vector<8x8x1xi1>, vector<8x8x1xf32>
    %cst_199 = arith.constant dense<0xFF800000> : vector<8x1xf32>
    %436 = vector.multi_reduction <maximumf>, %435, %cst_199 [1] : vector<8x8x1xf32> to vector<8x1xf32>
    %437 = vector.shape_cast %436 : vector<8x1xf32> to vector<8x1x1xf32>
    %438 = vector.broadcast %437 : vector<8x1x1xf32> to vector<8x8x1xf32>
    %439 = arith.subf %435, %438 : vector<8x8x1xf32>
    %440 = math.exp %439 : vector<8x8x1xf32>
    %cst_200 = arith.constant dense<0.000000e+00> : vector<8x1xf32>
    %441 = vector.multi_reduction <add>, %440, %cst_200 [1] : vector<8x8x1xf32> to vector<8x1xf32>
    %442 = vector.shape_cast %441 : vector<8x1xf32> to vector<8x1x1xf32>
    %443 = vector.broadcast %442 : vector<8x1x1xf32> to vector<8x8x1xf32>
    %444 = arith.divf %440, %443 : vector<8x8x1xf32>
    %445 = vector.shape_cast %427 : vector<64x32xf32> to vector<8x8x32xf32>
    %446 = vector.broadcast %444 : vector<8x8x1xf32> to vector<8x8x32xf32>
    %447 = arith.mulf %445, %446 : vector<8x8x32xf32>
    %cst_201 = arith.constant dense<0.000000e+00> : vector<8x32xf32>
    %448 = vector.multi_reduction <add>, %447, %cst_201 [1] : vector<8x8x32xf32> to vector<8x32xf32>
    %c0_202 = arith.constant 0 : index
    %c0_203 = arith.constant 0 : index
    %449 = vector.load %arg24[%c0_202, %c0_203] : memref<32x1xf32, #tpu.memory_space<vmem>>, vector<32x1xf32>
    %cst_204 = arith.constant dense<0.000000e+00> : vector<8x1xf32>
    %450 = tpu.matmul %448, %449, %cst_204 {dimension_numbers = #tpu.dot_dimension_numbers<[1], [0], [0], [1], [0, 0, 1, 1], [], []>} : vector<8x32xf32>, vector<32x1xf32>, vector<8x1xf32> -> vector<8x1xf32>
    %451 = vector.shape_cast %450 : vector<8x1xf32> to vector<2x4x1xf32>
    %c0_205 = arith.constant 0 : index
    %c0_206 = arith.constant 0 : index
    %c0_207 = arith.constant 0 : index
    %452 = vector.load %arg4[%c0_205, %c0_206, %c0_207] : memref<2x4x1xf32, #tpu.memory_space<vmem>>, vector<2x4x1xf32>
    %cst_208 = arith.constant 0.000000e+00 : f32
    %453 = vector.broadcast %cst_208 : f32 to vector<2x4x1xf32>
    %454 = arith.cmpf oeq, %452, %453 : vector<2x4x1xf32>
    %cst_209 = arith.constant -1.000000e+09 : f32
    %455 = vector.broadcast %cst_209 : f32 to vector<2x4x1xf32>
    %456 = arith.select %454, %455, %451 : vector<2x4x1xi1>, vector<2x4x1xf32>
    %cst_210 = arith.constant dense<0xFF800000> : vector<2x1xf32>
    %457 = vector.multi_reduction <maximumf>, %456, %cst_210 [1] : vector<2x4x1xf32> to vector<2x1xf32>
    %458 = vector.shape_cast %457 : vector<2x1xf32> to vector<2x1x1xf32>
    %459 = vector.broadcast %458 : vector<2x1x1xf32> to vector<2x4x1xf32>
    %460 = arith.subf %456, %459 : vector<2x4x1xf32>
    %461 = math.exp %460 : vector<2x4x1xf32>
    %cst_211 = arith.constant dense<0.000000e+00> : vector<2x1xf32>
    %462 = vector.multi_reduction <add>, %461, %cst_211 [1] : vector<2x4x1xf32> to vector<2x1xf32>
    %463 = vector.shape_cast %462 : vector<2x1xf32> to vector<2x1x1xf32>
    %464 = vector.broadcast %463 : vector<2x1x1xf32> to vector<2x4x1xf32>
    %465 = arith.divf %461, %464 : vector<2x4x1xf32>
    %466 = vector.shape_cast %448 : vector<8x32xf32> to vector<2x4x32xf32>
    %467 = vector.broadcast %465 : vector<2x4x1xf32> to vector<2x4x32xf32>
    %468 = arith.mulf %466, %467 : vector<2x4x32xf32>
    %cst_212 = arith.constant dense<0.000000e+00> : vector<2x32xf32>
    %469 = vector.multi_reduction <add>, %468, %cst_212 [1] : vector<2x4x32xf32> to vector<2x32xf32>
    %c0_213 = arith.constant 0 : index
    %c0_214 = arith.constant 0 : index
    %470 = vector.load %arg25[%c0_213, %c0_214] : memref<32x2xf32, #tpu.memory_space<vmem>>, vector<32x2xf32>
    %cst_215 = arith.constant dense<0.000000e+00> : vector<2x2xf32>
    %471 = tpu.matmul %469, %470, %cst_215 {dimension_numbers = #tpu.dot_dimension_numbers<[1], [0], [0], [1], [0, 0, 1, 1], [], []>} : vector<2x32xf32>, vector<32x2xf32>, vector<2x2xf32> -> vector<2x2xf32>
    %c0_216 = arith.constant 0 : index
    %c0_217 = arith.constant 0 : index
    %472 = vector.load %arg26[%c0_216, %c0_217] : memref<1x2xf32, #tpu.memory_space<vmem>>, vector<1x2xf32>
    %473 = vector.broadcast %472 : vector<1x2xf32> to vector<2x2xf32>
    %474 = arith.addf %471, %473 : vector<2x2xf32>
    %c0_218 = arith.constant 0 : index
    %c0_219 = arith.constant 0 : index
    %475 = vector.load %arg27[%c0_218, %c0_219] : memref<2x2xf32, #tpu.memory_space<vmem>>, vector<2x2xf32>
    tpu.vector_store %arg27[%c0_218, %c0_219], %474 {strides = array<i32>} : memref<2x2xf32, #tpu.memory_space<vmem>>, vector<2x2xf32>,
    return
  }
  func.func @transform_0(%arg0: i32) -> (i32, i32) {
    %c0_i32 = arith.constant 0 : i32
    %c0_i32_0 = arith.constant 0 : i32
    %c0_i32_1 = arith.constant 0 : i32
    return %c0_i32, %c0_i32_0 : i32, i32
  }
  func.func @transform_1(%arg0: i32) -> (i32, i32, i32) {
    %c0_i32 = arith.constant 0 : i32
    %c0_i32_0 = arith.constant 0 : i32
    %c0_i32_1 = arith.constant 0 : i32
    %c0_i32_2 = arith.constant 0 : i32
    return %c0_i32, %c0_i32_0, %c0_i32_1 : i32, i32, i32
  }
  func.func @transform_2(%arg0: i32) -> (i32, i32, i32) {
    %c0_i32 = arith.constant 0 : i32
    %c0_i32_0 = arith.constant 0 : i32
    %c0_i32_1 = arith.constant 0 : i32
    %c0_i32_2 = arith.constant 0 : i32
    return %c0_i32, %c0_i32_0, %c0_i32_1 : i32, i32, i32
  }
  func.func @transform_3(%arg0: i32) -> (i32, i32, i32) {
    %c0_i32 = arith.constant 0 : i32
    %c0_i32_0 = arith.constant 0 : i32
    %c0_i32_1 = arith.constant 0 : i32
    %c0_i32_2 = arith.constant 0 : i32
    return %c0_i32, %c0_i32_0, %c0_i32_1 : i32, i32, i32
  }
  func.func @transform_4(%arg0: i32) -> (i32, i32) {
    %c0_i32 = arith.constant 0 : i32
    %c0_i32_0 = arith.constant 0 : i32
    %c0_i32_1 = arith.constant 0 : i32
    return %c0_i32, %c0_i32_0 : i32, i32
  }
  func.func @transform_5(%arg0: i32) -> (i32, i32) {
    %c0_i32 = arith.constant 0 : i32
    %c0_i32_0 = arith.constant 0 : i32
    %c0_i32_1 = arith.constant 0 : i32
    return %c0_i32, %c0_i32_0 : i32, i32
  }
  func.func @transform_6(%arg0: i32) -> (i32, i32, i32, i32) {
    %c0_i32 = arith.constant 0 : i32
    %c0_i32_0 = arith.constant 0 : i32
    %c0_i32_1 = arith.constant 0 : i32
    %c0_i32_2 = arith.constant 0 : i32
    %c0_i32_3 = arith.constant 0 : i32
    return %c0_i32, %c0_i32_0, %c0_i32_1, %c0_i32_2 : i32, i32, i32, i32
  }
  func.func @transform_7(%arg0: i32) -> (i32, i32, i32, i32) {
    %c0_i32 = arith.constant 0 : i32
    %c0_i32_0 = arith.constant 0 : i32
    %c0_i32_1 = arith.constant 0 : i32
    %c0_i32_2 = arith.constant 0 : i32
    %c0_i32_3 = arith.constant 0 : i32
    return %c0_i32, %c0_i32_0, %c0_i32_1, %c0_i32_2 : i32, i32, i32, i32
  }
  func.func @transform_8(%arg0: i32) -> (i32, i32, i32, i32) {
    %c0_i32 = arith.constant 0 : i32
    %c0_i32_0 = arith.constant 0 : i32
    %c0_i32_1 = arith.constant 0 : i32
    %c0_i32_2 = arith.constant 0 : i32
    %c0_i32_3 = arith.constant 0 : i32
    return %c0_i32, %c0_i32_0, %c0_i32_1, %c0_i32_2 : i32, i32, i32, i32
  }
  func.func @transform_9(%arg0: i32) -> (i32, i32, i32, i32) {
    %c0_i32 = arith.constant 0 : i32
    %c0_i32_0 = arith.constant 0 : i32
    %c0_i32_1 = arith.constant 0 : i32
    %c0_i32_2 = arith.constant 0 : i32
    %c0_i32_3 = arith.constant 0 : i32
    return %c0_i32, %c0_i32_0, %c0_i32_1, %c0_i32_2 : i32, i32, i32, i32
  }
  func.func @transform_10(%arg0: i32) -> (i32, i32, i32, i32) {
    %c0_i32 = arith.constant 0 : i32
    %c0_i32_0 = arith.constant 0 : i32
    %c0_i32_1 = arith.constant 0 : i32
    %c0_i32_2 = arith.constant 0 : i32
    %c0_i32_3 = arith.constant 0 : i32
    return %c0_i32, %c0_i32_0, %c0_i32_1, %c0_i32_2 : i32, i32, i32, i32
  }
  func.func @transform_11(%arg0: i32) -> (i32, i32, i32, i32) {
    %c0_i32 = arith.constant 0 : i32
    %c0_i32_0 = arith.constant 0 : i32
    %c0_i32_1 = arith.constant 0 : i32
    %c0_i32_2 = arith.constant 0 : i32
    %c0_i32_3 = arith.constant 0 : i32
    return %c0_i32, %c0_i32_0, %c0_i32_1, %c0_i32_2 : i32, i32, i32, i32
  }
  func.func @transform_12(%arg0: i32) -> (i32, i32, i32, i32) {
    %c0_i32 = arith.constant 0 : i32
    %c0_i32_0 = arith.constant 0 : i32
    %c0_i32_1 = arith.constant 0 : i32
    %c0_i32_2 = arith.constant 0 : i32
    %c0_i32_3 = arith.constant 0 : i32
    return %c0_i32, %c0_i32_0, %c0_i32_1, %c0_i32_2 : i32, i32, i32, i32
  }
  func.func @transform_13(%arg0: i32) -> (i32, i32, i32) {
    %c0_i32 = arith.constant 0 : i32
    %c0_i32_0 = arith.constant 0 : i32
    %c0_i32_1 = arith.constant 0 : i32
    %c0_i32_2 = arith.constant 0 : i32
    return %c0_i32, %c0_i32_0, %c0_i32_1 : i32, i32, i32
  }
  func.func @transform_14(%arg0: i32) -> (i32, i32, i32) {
    %c0_i32 = arith.constant 0 : i32
    %c0_i32_0 = arith.constant 0 : i32
    %c0_i32_1 = arith.constant 0 : i32
    %c0_i32_2 = arith.constant 0 : i32
    return %c0_i32, %c0_i32_0, %c0_i32_1 : i32, i32, i32
  }
  func.func @transform_15(%arg0: i32) -> (i32, i32, i32) {
    %c0_i32 = arith.constant 0 : i32
    %c0_i32_0 = arith.constant 0 : i32
    %c0_i32_1 = arith.constant 0 : i32
    %c0_i32_2 = arith.constant 0 : i32
    return %c0_i32, %c0_i32_0, %c0_i32_1 : i32, i32, i32
  }
  func.func @transform_16(%arg0: i32) -> (i32, i32, i32) {
    %c0_i32 = arith.constant 0 : i32
    %c0_i32_0 = arith.constant 0 : i32
    %c0_i32_1 = arith.constant 0 : i32
    %c0_i32_2 = arith.constant 0 : i32
    return %c0_i32, %c0_i32_0, %c0_i32_1 : i32, i32, i32
  }
  func.func @transform_17(%arg0: i32) -> (i32, i32, i32) {
    %c0_i32 = arith.constant 0 : i32
    %c0_i32_0 = arith.constant 0 : i32
    %c0_i32_1 = arith.constant 0 : i32
    %c0_i32_2 = arith.constant 0 : i32
    return %c0_i32, %c0_i32_0, %c0_i32_1 : i32, i32, i32
  }
  func.func @transform_18(%arg0: i32) -> (i32, i32, i32) {
    %c0_i32 = arith.constant 0 : i32
    %c0_i32_0 = arith.constant 0 : i32
    %c0_i32_1 = arith.constant 0 : i32
    %c0_i32_2 = arith.constant 0 : i32
    return %c0_i32, %c0_i32_0, %c0_i32_1 : i32, i32, i32
  }
  func.func @transform_19(%arg0: i32) -> (i32, i32, i32) {
    %c0_i32 = arith.constant 0 : i32
    %c0_i32_0 = arith.constant 0 : i32
    %c0_i32_1 = arith.constant 0 : i32
    %c0_i32_2 = arith.constant 0 : i32
    return %c0_i32, %c0_i32_0, %c0_i32_1 : i32, i32, i32
  }
  func.func @transform_20(%arg0: i32) -> (i32, i32, i32) {
    %c0_i32 = arith.constant 0 : i32
    %c0_i32_0 = arith.constant 0 : i32
    %c0_i32_1 = arith.constant 0 : i32
    %c0_i32_2 = arith.constant 0 : i32
    return %c0_i32, %c0_i32_0, %c0_i32_1 : i32, i32, i32
  }
  func.func @transform_21(%arg0: i32) -> (i32, i32, i32) {
    %c0_i32 = arith.constant 0 : i32
    %c0_i32_0 = arith.constant 0 : i32
    %c0_i32_1 = arith.constant 0 : i32
    %c0_i32_2 = arith.constant 0 : i32
    return %c0_i32, %c0_i32_0, %c0_i32_1 : i32, i32, i32
  }
  func.func @transform_22(%arg0: i32) -> (i32, i32) {
    %c0_i32 = arith.constant 0 : i32
    %c0_i32_0 = arith.constant 0 : i32
    %c0_i32_1 = arith.constant 0 : i32
    return %c0_i32, %c0_i32_0 : i32, i32
  }
  func.func @transform_23(%arg0: i32) -> (i32, i32) {
    %c0_i32 = arith.constant 0 : i32
    %c0_i32_0 = arith.constant 0 : i32
    %c0_i32_1 = arith.constant 0 : i32
    return %c0_i32, %c0_i32_0 : i32, i32
  }
  func.func @transform_24(%arg0: i32) -> (i32, i32) {
    %c0_i32 = arith.constant 0 : i32
    %c0_i32_0 = arith.constant 0 : i32
    %c0_i32_1 = arith.constant 0 : i32
    return %c0_i32, %c0_i32_0 : i32, i32
  }
  func.func @transform_25(%arg0: i32) -> (i32, i32) {
    %c0_i32 = arith.constant 0 : i32
    %c0_i32_0 = arith.constant 0 : i32
    %c0_i32_1 = arith.constant 0 : i32
    return %c0_i32, %c0_i32_0 : i32, i32
  }
  func.func @transform_26(%arg0: i32) -> (i32, i32) {
    %c0_i32 = arith.constant 0 : i32
    %c0_i32_0 = arith.constant 0 : i32
    %c0_i32_1 = arith.constant 0 : i32
    return %c0_i32, %c0_i32_0 : i32, i32
  }
}

</mosaic_0001>

<llo_original>
// kernel: hierarchical_bert_forward.1
$region0: #{hierarchical_bert_forward.1}
  #allocation0 [shape = 'u32[]', space=smem, size = 0x4, offset = 0x4, fixed_abs, tag = 'smem constant byte address 0x4 - core index']
  #allocation1 [shape = 'u32[144,128]{1,0:T(1,128)}', space=vmem, size = 0x12000, scoped, tag = 'internal scratch']
  %s0 = inlined_call_operand.vmem [shape: f32[64,32], index: 0, kind: input, shape index: {}]
  %s1 = inlined_call_operand.vmem [shape: f32[8,1,8], index: 1, kind: input, shape index: {}]
  %s2 = inlined_call_operand.vmem [shape: f32[8,8,1], index: 2, kind: input, shape index: {}]
  %s3 = inlined_call_operand.vmem [shape: f32[2,4,1], index: 3, kind: input, shape index: {}]
  %s4 = inlined_call_operand.vmem [shape: f32[1,32], index: 4, kind: input, shape index: {}]
  %s5 = inlined_call_operand.vmem [shape: f32[1,32], index: 5, kind: input, shape index: {}]
  %s6 = inlined_call_operand.vmem [shape: bf16[2,2,32,16], index: 6, kind: input, shape index: {}]
  %s7 = inlined_call_operand.vmem [shape: f32[2,2,1,16], index: 7, kind: input, shape index: {}]
  %s8 = inlined_call_operand.vmem [shape: bf16[2,2,32,16], index: 8, kind: input, shape index: {}]
  %s9 = inlined_call_operand.vmem [shape: f32[2,2,1,16], index: 9, kind: input, shape index: {}]
  %s10 = inlined_call_operand.vmem [shape: bf16[2,2,32,16], index: 10, kind: input, shape index: {}]
  %s11 = inlined_call_operand.vmem [shape: f32[2,2,1,16], index: 11, kind: input, shape index: {}]
  %s12 = inlined_call_operand.vmem [shape: bf16[2,2,16,32], index: 12, kind: input, shape index: {}]
  %s13 = inlined_call_operand.vmem [shape: f32[2,1,32], index: 13, kind: input, shape index: {}]
  %s14 = inlined_call_operand.vmem [shape: f32[2,1,32], index: 14, kind: input, shape index: {}]
  %s15 = inlined_call_operand.vmem [shape: f32[2,1,32], index: 15, kind: input, shape index: {}]
  %s16 = inlined_call_operand.vmem [shape: bf16[2,32,64], index: 16, kind: input, shape index: {}]
  %s17 = inlined_call_operand.vmem [shape: f32[2,1,64], index: 17, kind: input, shape index: {}]
  %s18 = inlined_call_operand.vmem [shape: bf16[2,64,32], index: 18, kind: input, shape index: {}]
  %s19 = inlined_call_operand.vmem [shape: f32[2,1,32], index: 19, kind: input, shape index: {}]
  %s20 = inlined_call_operand.vmem [shape: f32[2,1,32], index: 20, kind: input, shape index: {}]
  %s21 = inlined_call_operand.vmem [shape: f32[2,1,32], index: 21, kind: input, shape index: {}]
  %s22 = inlined_call_operand.vmem [shape: f32[32,1], index: 22, kind: input, shape index: {}]
  %s23 = inlined_call_operand.vmem [shape: f32[32,1], index: 23, kind: input, shape index: {}]
  %s24 = inlined_call_operand.vmem [shape: f32[32,2], index: 24, kind: input, shape index: {}]
  %s25 = inlined_call_operand.vmem [shape: f32[1,2], index: 25, kind: input, shape index: {}]
  %s26 = inlined_call_operand.hbm [shape: f32[2,2], index: 26, kind: output, shape index: {}]
  %s27 = sld [smem:[#allocation0]]
  $region114: #{hierarchical_bert_forward.1} parent=0
    _
  %s29 = ssub.s32 1, %s27
  %s30 = scalar_select 0, %s29, %s27
  $region1: #{hierarchical_bert_forward.1} parent=0
    #allocation2 [shape = 'u8[1024]{0}', space=vmem, size = 0x400, scoped, tag = 'output window, operand 0, single buffered']
    #allocation3 [shape = 's32[1]{0}', space=sflag, size = 0x4, scoped, tag = 'scoped memory for hierarchical_bert_forward.1']
    %31 = vsyncpa [#allocation3], 0
    // Predicated region
    $region2: #{hierarchical_bert_forward.1} parent=1 // pred_check
      _
    $region3: #{hierarchical_bert_forward.1} parent=1 // pred_check_branch
      %33 = sbr.rel (0) target = $region5
    $region4: #{hierarchical_bert_forward.1} parent=1 // pred_region
      _
    $region5: #{hierarchical_bert_forward.1} parent=1 // pred_fallthru
      _
    // Predicated region
    $region6: #{hierarchical_bert_forward.1} parent=1 // pred_check
      _
    $region7: #{hierarchical_bert_forward.1} parent=1 // pred_check_branch
      %35 = sbr.rel (0) target = $region9
    $region8: #{hierarchical_bert_forward.1} parent=1 // pred_region
      _
    $region9: #{hierarchical_bert_forward.1} parent=1 // pred_fallthru
      _
    // Predicated region
    $region10: #{hierarchical_bert_forward.1} parent=1 // pred_check
      _
    $region11: #{hierarchical_bert_forward.1} parent=1 // pred_check_branch
      %37 = sbr.rel (0) target = $region13
    $region12: #{hierarchical_bert_forward.1} parent=1 // pred_region
      _
    $region13: #{hierarchical_bert_forward.1} parent=1 // pred_fallthru
      _
    // Predicated region
    $region14: #{hierarchical_bert_forward.1} parent=1 // pred_check
      _
    $region15: #{hierarchical_bert_forward.1} parent=1 // pred_check_branch
      %39 = sbr.rel (0) target = $region17
    $region16: #{hierarchical_bert_forward.1} parent=1 // pred_region
      _
    $region17: #{hierarchical_bert_forward.1} parent=1 // pred_fallthru
      _
    // Predicated region
    $region18: #{hierarchical_bert_forward.1} parent=1 // pred_check
      _
    $region19: #{hierarchical_bert_forward.1} parent=1 // pred_check_branch
      %41 = sbr.rel (0) target = $region21
    $region20: #{hierarchical_bert_forward.1} parent=1 // pred_region
      _
    $region21: #{hierarchical_bert_forward.1} parent=1 // pred_fallthru
      _
    // Predicated region
    $region22: #{hierarchical_bert_forward.1} parent=1 // pred_check
      _
    $region23: #{hierarchical_bert_forward.1} parent=1 // pred_check_branch
      %43 = sbr.rel (0) target = $region25
    $region24: #{hierarchical_bert_forward.1} parent=1 // pred_region
      _
    $region25: #{hierarchical_bert_forward.1} parent=1 // pred_fallthru
      _
    // Predicated region
    $region26: #{hierarchical_bert_forward.1} parent=1 // pred_check
      _
    $region27: #{hierarchical_bert_forward.1} parent=1 // pred_check_branch
      %45 = sbr.rel (0) target = $region29
    $region28: #{hierarchical_bert_forward.1} parent=1 // pred_region
      _
    $region29: #{hierarchical_bert_forward.1} parent=1 // pred_fallthru
      _
    // Predicated region
    $region30: #{hierarchical_bert_forward.1} parent=1 // pred_check
      _
    $region31: #{hierarchical_bert_forward.1} parent=1 // pred_check_branch
      %47 = sbr.rel (0) target = $region33
    $region32: #{hierarchical_bert_forward.1} parent=1 // pred_region
      _
    $region33: #{hierarchical_bert_forward.1} parent=1 // pred_fallthru
      _
    // Predicated region
    $region34: #{hierarchical_bert_forward.1} parent=1 // pred_check
      _
    $region35: #{hierarchical_bert_forward.1} parent=1 // pred_check_branch
      %49 = sbr.rel (0) target = $region37
    $region36: #{hierarchical_bert_forward.1} parent=1 // pred_region
      _
    $region37: #{hierarchical_bert_forward.1} parent=1 // pred_fallthru
      _
    // Predicated region
    $region38: #{hierarchical_bert_forward.1} parent=1 // pred_check
      _
    $region39: #{hierarchical_bert_forward.1} parent=1 // pred_check_branch
      %51 = sbr.rel (0) target = $region41
    $region40: #{hierarchical_bert_forward.1} parent=1 // pred_region
      _
    $region41: #{hierarchical_bert_forward.1} parent=1 // pred_fallthru
      _
    // Predicated region
    $region42: #{hierarchical_bert_forward.1} parent=1 // pred_check
      _
    $region43: #{hierarchical_bert_forward.1} parent=1 // pred_check_branch
      %53 = sbr.rel (0) target = $region45
    $region44: #{hierarchical_bert_forward.1} parent=1 // pred_region
      _
    $region45: #{hierarchical_bert_forward.1} parent=1 // pred_fallthru
      _
    // Predicated region
    $region46: #{hierarchical_bert_forward.1} parent=1 // pred_check
      _
    $region47: #{hierarchical_bert_forward.1} parent=1 // pred_check_branch
      %55 = sbr.rel (0) target = $region49
    $region48: #{hierarchical_bert_forward.1} parent=1 // pred_region
      _
    $region49: #{hierarchical_bert_forward.1} parent=1 // pred_fallthru
      _
    // Predicated region
    $region50: #{hierarchical_bert_forward.1} parent=1 // pred_check
      _
    $region51: #{hierarchical_bert_forward.1} parent=1 // pred_check_branch
      %57 = sbr.rel (0) target = $region53
    $region52: #{hierarchical_bert_forward.1} parent=1 // pred_region
      _
    $region53: #{hierarchical_bert_forward.1} parent=1 // pred_fallthru
      _
    // Predicated region
    $region54: #{hierarchical_bert_forward.1} parent=1 // pred_check
      _
    $region55: #{hierarchical_bert_forward.1} parent=1 // pred_check_branch
      %59 = sbr.rel (0) target = $region57
    $region56: #{hierarchical_bert_forward.1} parent=1 // pred_region
      _
    $region57: #{hierarchical_bert_forward.1} parent=1 // pred_fallthru
      _
    // Predicated region
    $region58: #{hierarchical_bert_forward.1} parent=1 // pred_check
      _
    $region59: #{hierarchical_bert_forward.1} parent=1 // pred_check_branch
      %61 = sbr.rel (0) target = $region61
    $region60: #{hierarchical_bert_forward.1} parent=1 // pred_region
      _
    $region61: #{hierarchical_bert_forward.1} parent=1 // pred_fallthru
      _
    // Predicated region
    $region62: #{hierarchical_bert_forward.1} parent=1 // pred_check
      _
    $region63: #{hierarchical_bert_forward.1} parent=1 // pred_check_branch
      %63 = sbr.rel (0) target = $region65
    $region64: #{hierarchical_bert_forward.1} parent=1 // pred_region
      _
    $region65: #{hierarchical_bert_forward.1} parent=1 // pred_fallthru
      _
    // Predicated region
    $region66: #{hierarchical_bert_forward.1} parent=1 // pred_check
      _
    $region67: #{hierarchical_bert_forward.1} parent=1 // pred_check_branch
      %65 = sbr.rel (0) target = $region69
    $region68: #{hierarchical_bert_forward.1} parent=1 // pred_region
      _
    $region69: #{hierarchical_bert_forward.1} parent=1 // pred_fallthru
      _
    // Predicated region
    $region70: #{hierarchical_bert_forward.1} parent=1 // pred_check
      _
    $region71: #{hierarchical_bert_forward.1} parent=1 // pred_check_branch
      %67 = sbr.rel (0) target = $region73
    $region72: #{hierarchical_bert_forward.1} parent=1 // pred_region
      _
    $region73: #{hierarchical_bert_forward.1} parent=1 // pred_fallthru
      _
    // Predicated region
    $region74: #{hierarchical_bert_forward.1} parent=1 // pred_check
      _
    $region75: #{hierarchical_bert_forward.1} parent=1 // pred_check_branch
      %69 = sbr.rel (0) target = $region77
    $region76: #{hierarchical_bert_forward.1} parent=1 // pred_region
      _
    $region77: #{hierarchical_bert_forward.1} parent=1 // pred_fallthru
      _
    // Predicated region
    $region78: #{hierarchical_bert_forward.1} parent=1 // pred_check
      _
    $region79: #{hierarchical_bert_forward.1} parent=1 // pred_check_branch
      %71 = sbr.rel (0) target = $region81
    $region80: #{hierarchical_bert_forward.1} parent=1 // pred_region
      _
    $region81: #{hierarchical_bert_forward.1} parent=1 // pred_fallthru
      _
    // Predicated region
    $region82: #{hierarchical_bert_forward.1} parent=1 // pred_check
      _
    $region83: #{hierarchical_bert_forward.1} parent=1 // pred_check_branch
      %73 = sbr.rel (0) target = $region85
    $region84: #{hierarchical_bert_forward.1} parent=1 // pred_region
      _
    $region85: #{hierarchical_bert_forward.1} parent=1 // pred_fallthru
      _
    // Predicated region
    $region86: #{hierarchical_bert_forward.1} parent=1 // pred_check
      _
    $region87: #{hierarchical_bert_forward.1} parent=1 // pred_check_branch
      %75 = sbr.rel (0) target = $region89
    $region88: #{hierarchical_bert_forward.1} parent=1 // pred_region
      _
    $region89: #{hierarchical_bert_forward.1} parent=1 // pred_fallthru
      _
    // Predicated region
    $region90: #{hierarchical_bert_forward.1} parent=1 // pred_check
      _
    $region91: #{hierarchical_bert_forward.1} parent=1 // pred_check_branch
      %77 = sbr.rel (0) target = $region93
    $region92: #{hierarchical_bert_forward.1} parent=1 // pred_region
      _
    $region93: #{hierarchical_bert_forward.1} parent=1 // pred_fallthru
      _
    // Predicated region
    $region94: #{hierarchical_bert_forward.1} parent=1 // pred_check
      _
    $region95: #{hierarchical_bert_forward.1} parent=1 // pred_check_branch
      %79 = sbr.rel (0) target = $region97
    $region96: #{hierarchical_bert_forward.1} parent=1 // pred_region
      _
    $region97: #{hierarchical_bert_forward.1} parent=1 // pred_fallthru
      _
    // Predicated region
    $region98: #{hierarchical_bert_forward.1} parent=1 // pred_check
      _
    $region99: #{hierarchical_bert_forward.1} parent=1 // pred_check_branch
      %81 = sbr.rel (0) target = $region101
    $region100: #{hierarchical_bert_forward.1} parent=1 // pred_region
      _
    $region101: #{hierarchical_bert_forward.1} parent=1 // pred_fallthru
      _
    // Predicated region
    $region102: #{hierarchical_bert_forward.1} parent=1 // pred_check
      _
    $region103: #{hierarchical_bert_forward.1} parent=1 // pred_check_branch
      %83 = sbr.rel (0) target = $region105
    $region104: #{hierarchical_bert_forward.1} parent=1 // pred_region
      _
    $region105: #{hierarchical_bert_forward.1} parent=1 // pred_fallthru
      _
    %v85 = vld [vmem:[%s0] sm:$0xff]
    %v86 = vld [vmem:[%s0 + $0x8] sm:$0xff]
    %v87 = vld [vmem:[%s0 + $0x10] sm:$0xff]
    %v88 = vld [vmem:[%s0 + $0x18] sm:$0xff]
    %v89 = vld [vmem:[%s0 + $0x20] sm:$0xff]
    %v90 = vld [vmem:[%s0 + $0x28] sm:$0xff]
    %v91 = vld [vmem:[%s0 + $0x30] sm:$0xff]
    %v92 = vld [vmem:[%s0 + $0x38] sm:$0xff]
    %v93 = vld [vmem:[%s4] sm:$0x1]
    %v94 = vld [vmem:[%s5] sm:$0x1]
    %vm95 = vcmask 261120
    %v96 = vsel %vm95, %v85, 0.0
    %97 = vadd.xlane.f32.xlu0 %v96
    %v98 = vpop.xlane.xlu0 %97
    %v99 = vsel %vm95, %v86, 0.0
    %100 = vadd.xlane.f32.xlu0 %v99
    %v101 = vpop.xlane.xlu0 %100
    %v102 = vsel %vm95, %v87, 0.0
    %103 = vadd.xlane.f32.xlu0 %v102
    %v104 = vpop.xlane.xlu0 %103
    %v105 = vsel %vm95, %v88, 0.0
    %106 = vadd.xlane.f32.xlu0 %v105
    %v107 = vpop.xlane.xlu0 %106
    %v108 = vsel %vm95, %v89, 0.0
    %109 = vadd.xlane.f32.xlu0 %v108
    %v110 = vpop.xlane.xlu0 %109
    %v111 = vsel %vm95, %v90, 0.0
    %112 = vadd.xlane.f32.xlu0 %v111
    %v113 = vpop.xlane.xlu0 %112
    %v114 = vsel %vm95, %v91, 0.0
    %115 = vadd.xlane.f32.xlu0 %v114
    %v116 = vpop.xlane.xlu0 %115
    %v117 = vsel %vm95, %v92, 0.0
    %118 = vadd.xlane.f32.xlu0 %v117
    %v119 = vpop.xlane.xlu0 %118
    %v120 = vrcp.pop 32.0
    %v121 = vmul.f32 %v98, %v120
    %v122 = vmul.f32 %v101, %v120
    %v123 = vmul.f32 %v104, %v120
    %v124 = vmul.f32 %v107, %v120
    %v125 = vmul.f32 %v110, %v120
    %v126 = vmul.f32 %v113, %v120
    %v127 = vmul.f32 %v116, %v120
    %v128 = vmul.f32 %v119, %v120
    %v129 = vsub.f32 %v85, %v121
    %v130 = vsub.f32 %v86, %v122
    %v131 = vsub.f32 %v87, %v123
    %v132 = vsub.f32 %v88, %v124
    %v133 = vsub.f32 %v89, %v125
    %v134 = vsub.f32 %v90, %v126
    %v135 = vsub.f32 %v91, %v127
    %v136 = vsub.f32 %v92, %v128
    %v137 = vmul.f32 %v129, %v129
    %v138 = vmul.f32 %v130, %v130
    %v139 = vmul.f32 %v131, %v131
    %v140 = vmul.f32 %v132, %v132
    %v141 = vmul.f32 %v133, %v133
    %v142 = vmul.f32 %v134, %v134
    %v143 = vmul.f32 %v135, %v135
    %v144 = vmul.f32 %v136, %v136
    %v145 = vsel %vm95, %v137, 0.0
    %146 = vadd.xlane.f32.xlu0 %v145
    %v147 = vpop.xlane.xlu0 %146
    %v148 = vsel %vm95, %v138, 0.0
    %149 = vadd.xlane.f32.xlu0 %v148
    %v150 = vpop.xlane.xlu0 %149
    %v151 = vsel %vm95, %v139, 0.0
    %152 = vadd.xlane.f32.xlu0 %v151
    %v153 = vpop.xlane.xlu0 %152
    %v154 = vsel %vm95, %v140, 0.0
    %155 = vadd.xlane.f32.xlu0 %v154
    %v156 = vpop.xlane.xlu0 %155
    %v157 = vsel %vm95, %v141, 0.0
    %158 = vadd.xlane.f32.xlu0 %v157
    %v159 = vpop.xlane.xlu0 %158
    %v160 = vsel %vm95, %v142, 0.0
    %161 = vadd.xlane.f32.xlu0 %v160
    %v162 = vpop.xlane.xlu0 %161
    %v163 = vsel %vm95, %v143, 0.0
    %164 = vadd.xlane.f32.xlu0 %v163
    %v165 = vpop.xlane.xlu0 %164
    %v166 = vsel %vm95, %v144, 0.0
    %167 = vadd.xlane.f32.xlu0 %v166
    %v168 = vpop.xlane.xlu0 %167
    %v169 = vmul.f32 %v147, %v120
    %v170 = vmul.f32 %v150, %v120
    %v171 = vmul.f32 %v153, %v120
    %v172 = vmul.f32 %v156, %v120
    %v173 = vmul.f32 %v159, %v120
    %v174 = vmul.f32 %v162, %v120
    %v175 = vmul.f32 %v165, %v120
    %v176 = vmul.f32 %v168, %v120
    %v177 = vadd.f32 %v169, 1e-12
    %v178 = vadd.f32 %v170, 1e-12
    %v179 = vadd.f32 %v171, 1e-12
    %v180 = vadd.f32 %v172, 1e-12
    %v181 = vadd.f32 %v173, 1e-12
    %v182 = vadd.f32 %v174, 1e-12
    %v183 = vadd.f32 %v175, 1e-12
    %v184 = vadd.f32 %v176, 1e-12
    %v185 = vrsqrt.pop %v177
    %v186 = vrsqrt.pop %v178
    %v187 = vrsqrt.pop %v179
    %v188 = vrsqrt.pop %v180
    %v189 = vrsqrt.pop %v181
    %v190 = vrsqrt.pop %v182
    %v191 = vrsqrt.pop %v183
    %v192 = vrsqrt.pop %v184
    %v193 = vmul.f32 %v129, %v185
    %v194 = vmul.f32 %v130, %v186
    %v195 = vmul.f32 %v131, %v187
    %v196 = vmul.f32 %v132, %v188
    %v197 = vmul.f32 %v133, %v189
    %v198 = vmul.f32 %v134, %v190
    %v199 = vmul.f32 %v135, %v191
    %v200 = vmul.f32 %v136, %v192
    %v202 = vlaneseq
    %v203 = vshrl.u32 %v202, 7
    %v204 = vsub.s32 0, %v203
    %v205 = vrot.slane %v93, %v204
    %v207 = vmul.f32 %v193, %v205
    %v208 = vmul.f32 %v194, %v205
    %v209 = vmul.f32 %v195, %v205
    %v210 = vmul.f32 %v196, %v205
    %v211 = vmul.f32 %v197, %v205
    %v212 = vmul.f32 %v198, %v205
    %v213 = vmul.f32 %v199, %v205
    %v214 = vmul.f32 %v200, %v205
    %v216 = vlaneseq
    %v217 = vshrl.u32 %v216, 7
    %v218 = vsub.s32 0, %v217
    %v219 = vrot.slane %v94, %v218
    %v221 = vadd.f32 %v207, %v219
    %v222 = vadd.f32 %v208, %v219
    %v223 = vadd.f32 %v209, %v219
    %v224 = vadd.f32 %v210, %v219
    %v225 = vadd.f32 %v211, %v219
    %v226 = vadd.f32 %v212, %v219
    %v227 = vadd.f32 %v213, %v219
    %v228 = vadd.f32 %v214, %v219
    %v229 = vld [vmem:[%s1] sm:$0x1]
    %v230 = vld [vmem:[%s1 + $0x1] sm:$0x1]
    %v231 = vld [vmem:[%s1 + $0x2] sm:$0x1]
    %v232 = vld [vmem:[%s1 + $0x3] sm:$0x1]
    %v233 = vld [vmem:[%s1 + $0x4] sm:$0x1]
    %v234 = vld [vmem:[%s1 + $0x5] sm:$0x1]
    %v235 = vld [vmem:[%s1 + $0x6] sm:$0x1]
    %v236 = vld [vmem:[%s1 + $0x7] sm:$0x1]
    %v237 = vpack.c.bf16 %v222, %v221
    %v238 = vpack.c.bf16 %v224, %v223
    %v239 = vpack.c.bf16 %v226, %v225
    %v240 = vpack.c.bf16 %v228, %v227
    %v241 = vld [vmem:[%s6] sm:$0xf]
    %v242 = vld [vmem:[%s6 + $0x4] sm:$0xf]
    %v243 = vld [vmem:[%s6 + $0x8] sm:$0xf]
    %v244 = vld [vmem:[%s6 + $0xc] sm:$0xf]
    %v245 = vld [vmem:[%s6 + $0x10] sm:$0xf]
    %v246 = vld [vmem:[%s6 + $0x14] sm:$0xf]
    %v247 = vld [vmem:[%s6 + $0x18] sm:$0xf]
    %v248 = vld [vmem:[%s6 + $0x1c] sm:$0xf]
    %v249 = vld [vmem:[%s7] sm:$0x1]
    %v250 = vld [vmem:[%s7 + $0x1] sm:$0x1]
    %v251 = vld [vmem:[%s8] sm:$0xf]
    %v252 = vld [vmem:[%s8 + $0x4] sm:$0xf]
    %v253 = vld [vmem:[%s8 + $0x8] sm:$0xf]
    %v254 = vld [vmem:[%s8 + $0xc] sm:$0xf]
    %v255 = vld [vmem:[%s8 + $0x10] sm:$0xf]
    %v256 = vld [vmem:[%s8 + $0x14] sm:$0xf]
    %v257 = vld [vmem:[%s8 + $0x18] sm:$0xf]
    %v258 = vld [vmem:[%s8 + $0x1c] sm:$0xf]
    %v259 = vld [vmem:[%s9] sm:$0x1]
    %v260 = vld [vmem:[%s9 + $0x1] sm:$0x1]
    %v261 = vld [vmem:[%s10] sm:$0xf]
    %v262 = vld [vmem:[%s10 + $0x4] sm:$0xf]
    %v263 = vld [vmem:[%s10 + $0x8] sm:$0xf]
    %v264 = vld [vmem:[%s10 + $0xc] sm:$0xf]
    %v265 = vld [vmem:[%s10 + $0x10] sm:$0xf]
    %v266 = vld [vmem:[%s10 + $0x14] sm:$0xf]
    %v267 = vld [vmem:[%s10 + $0x18] sm:$0xf]
    %v268 = vld [vmem:[%s10 + $0x1c] sm:$0xf]
    %v269 = vld [vmem:[%s11] sm:$0x1]
    %v270 = vld [vmem:[%s11 + $0x1] sm:$0x1]
    %v271 = vld [vmem:[%s12] sm:$0xf]
    %v272 = vld [vmem:[%s12 + $0x4] sm:$0xf]
    %v273 = vld [vmem:[%s12 + $0x8] sm:$0xf]
    %v274 = vld [vmem:[%s12 + $0xc] sm:$0xf]
    %v275 = vld [vmem:[%s13] sm:$0x1]
    %v277 = vlaneseq
    %v278 = vshrl.u32 %v277, 7
    %v279 = vsub.s32 0, %v278
    %v280 = vrot.slane %v275, %v279
    %v282 = vadd.f32 %v280, 0.0
    %v284 = vlaneseq
    %v285 = vshrl.u32 %v284, 7
    %v286 = vsub.s32 0, %v285
    %v287 = vrot.slane %v249, %v286
    %v293 = vunpack.c.l.b16 %v241
    %v294 = vunpack.c.l.b16 %v242
    %v295 = vunpack.c.l.b16 %v243
    %v296 = vunpack.c.l.b16 %v244
    %v297 = vpack.c.b16 %v294, %v293
    %v298 = vpack.c.b16 %v296, %v295
    %v302 = vsel %vm95, %v237, 0
    %v305 = vsel %vm95, %v238, 0
    %v308 = vsel %vm95, %v239, 0
    %v311 = vsel %vm95, %v240, 0
    %313 = vmatprep.subr.bf16.mxu0 0
    %314 = vmatpush1.bf16.msra.mxu0 %v297
    %315 = vmatprep.subr.bf16.mxu0 0
    %316 = vmatpush1.bf16.msra.mxu0 %v298
    %317 = vmatprep.subr.bf16.mxu0 0
    %318 = vmatpush1.bf16.msra.mxu0 0
    %319 = vmatprep.subr.bf16.mxu0 0
    %320 = vmatpush1.bf16.msra.mxu0 0
    %321 = vmatprep.subr.bf16.mxu0 0
    %322 = vmatpush1.bf16.msra.mxu0 0
    %323 = vmatprep.subr.bf16.mxu0 0
    %324 = vmatpush1.bf16.msra.mxu0 0
    %325 = vmatprep.subr.bf16.mxu0 0
    %326 = vmatpush1.bf16.msra.mxu0 0
    %327 = vmatprep.subr.bf16.mxu0 0
    %328 = vmatpush1.bf16.msra.mxu0 0
    %329 = vmatprep.subr.bf16.mxu0 0
    %330 = vmatpush1.bf16.msra.mxu0 0
    %331 = vmatprep.subr.bf16.mxu0 0
    %332 = vmatpush1.bf16.msra.mxu0 0
    %333 = vmatprep.subr.bf16.mxu0 0
    %334 = vmatpush1.bf16.msra.mxu0 0
    %335 = vmatprep.subr.bf16.mxu0 0
    %336 = vmatpush1.bf16.msra.mxu0 0
    %337 = vmatprep.subr.bf16.mxu0 0
    %338 = vmatpush1.bf16.msra.mxu0 0
    %339 = vmatprep.subr.bf16.mxu0 0
    %340 = vmatpush1.bf16.msra.mxu0 0
    %341 = vmatprep.subr.bf16.mxu0 0
    %342 = vmatpush1.bf16.msra.mxu0 0
    %343 = vmatprep.subr.bf16.mxu0 0
    %344 = vmatpush1.bf16.msra.mxu0 0
    %345 = vmatprep.mubr.bf16.mxu0 0
    %346 = vmatmul.mubr.bf16.gmra.mrb[0].mxu0 %v302
    %v347 = vpop.f32.mrb[0].mxu0
    %v348 = vadd.f32 %v287, %v347
    %v349 = vpop.f32.mrb[0].mxu0
    %v350 = vpop.f32.mrb[0].mxu0
    %v351 = vadd.f32 %v287, %v350
    %v352 = vpop.f32.mrb[0].mxu0
    %353 = vmatprep.mubr.bf16.mxu0 0
    %354 = vmatmul.mubr.bf16.gmra.mrb[0].mxu0 %v305
    %v355 = vpop.f32.mrb[0].mxu0
    %v356 = vadd.f32 %v287, %v355
    %v357 = vpop.f32.mrb[0].mxu0
    %v358 = vpop.f32.mrb[0].mxu0
    %v359 = vadd.f32 %v287, %v358
    %v360 = vpop.f32.mrb[0].mxu0
    %361 = vmatprep.mubr.bf16.mxu0 0
    %362 = vmatmul.mubr.bf16.gmra.mrb[0].mxu0 %v308
    %v363 = vpop.f32.mrb[0].mxu0
    %v364 = vadd.f32 %v287, %v363
    %v365 = vpop.f32.mrb[0].mxu0
    %v366 = vpop.f32.mrb[0].mxu0
    %v367 = vadd.f32 %v287, %v366
    %v368 = vpop.f32.mrb[0].mxu0
    %369 = vmatprep.mubr.bf16.mxu0 0
    %370 = vmatmul.mubr.bf16.gmra.mrb[0].mxu0 %v311
    %v371 = vpop.f32.mrb[0].mxu0
    %v372 = vadd.f32 %v287, %v371
    %v373 = vpop.f32.mrb[0].mxu0
    %v374 = vpop.f32.mrb[0].mxu0
    %v375 = vadd.f32 %v287, %v374
    %v376 = vpop.f32.mrb[0].mxu0
    %377 = vdwg.mxu0
    %v379 = vlaneseq
    %v380 = vshrl.u32 %v379, 7
    %v381 = vsub.s32 0, %v380
    %v382 = vrot.slane %v259, %v381
    %v388 = vunpack.c.l.b16 %v251
    %v389 = vunpack.c.l.b16 %v252
    %v390 = vunpack.c.l.b16 %v253
    %v391 = vunpack.c.l.b16 %v254
    %v392 = vpack.c.b16 %v389, %v388
    %v393 = vpack.c.b16 %v391, %v390
    %396 = vmatprep.subr.bf16.mxu0 0
    %397 = vmatpush1.bf16.msra.mxu0 %v392
    %398 = vmatprep.subr.bf16.mxu0 0
    %399 = vmatpush1.bf16.msra.mxu0 %v393
    %400 = vmatprep.subr.bf16.mxu0 0
    %401 = vmatpush1.bf16.msra.mxu0 0
    %402 = vmatprep.subr.bf16.mxu0 0
    %403 = vmatpush1.bf16.msra.mxu0 0
    %404 = vmatprep.subr.bf16.mxu0 0
    %405 = vmatpush1.bf16.msra.mxu0 0
    %406 = vmatprep.subr.bf16.mxu0 0
    %407 = vmatpush1.bf16.msra.mxu0 0
    %408 = vmatprep.subr.bf16.mxu0 0
    %409 = vmatpush1.bf16.msra.mxu0 0
    %410 = vmatprep.subr.bf16.mxu0 0
    %411 = vmatpush1.bf16.msra.mxu0 0
    %412 = vmatprep.subr.bf16.mxu0 0
    %413 = vmatpush1.bf16.msra.mxu0 0
    %414 = vmatprep.subr.bf16.mxu0 0
    %415 = vmatpush1.bf16.msra.mxu0 0
    %416 = vmatprep.subr.bf16.mxu0 0
    %417 = vmatpush1.bf16.msra.mxu0 0
    %418 = vmatprep.subr.bf16.mxu0 0
    %419 = vmatpush1.bf16.msra.mxu0 0
    %420 = vmatprep.subr.bf16.mxu0 0
    %421 = vmatpush1.bf16.msra.mxu0 0
    %422 = vmatprep.subr.bf16.mxu0 0
    %423 = vmatpush1.bf16.msra.mxu0 0
    %424 = vmatprep.subr.bf16.mxu0 0
    %425 = vmatpush1.bf16.msra.mxu0 0
    %426 = vmatprep.subr.bf16.mxu0 0
    %427 = vmatpush1.bf16.msra.mxu0 0
    %428 = vmatprep.mubr.bf16.mxu0 0
    %429 = vmatmul.mubr.bf16.gmra.mrb[0].mxu0 %v302
    %v430 = vpop.f32.mrb[0].mxu0
    %v431 = vadd.f32 %v382, %v430
    %v432 = vpop.f32.mrb[0].mxu0
    %v433 = vpop.f32.mrb[0].mxu0
    %v434 = vadd.f32 %v382, %v433
    %v435 = vpop.f32.mrb[0].mxu0
    %436 = vmatprep.mubr.bf16.mxu0 0
    %437 = vmatmul.mubr.bf16.gmra.mrb[0].mxu0 %v305
    %v438 = vpop.f32.mrb[0].mxu0
    %v439 = vadd.f32 %v382, %v438
    %v440 = vpop.f32.mrb[0].mxu0
    %v441 = vpop.f32.mrb[0].mxu0
    %v442 = vadd.f32 %v382, %v441
    %v443 = vpop.f32.mrb[0].mxu0
    %444 = vmatprep.mubr.bf16.mxu0 0
    %445 = vmatmul.mubr.bf16.gmra.mrb[0].mxu0 %v308
    %v446 = vpop.f32.mrb[0].mxu0
    %v447 = vadd.f32 %v382, %v446
    %v448 = vpop.f32.mrb[0].mxu0
    %v449 = vpop.f32.mrb[0].mxu0
    %v450 = vadd.f32 %v382, %v449
    %v451 = vpop.f32.mrb[0].mxu0
    %452 = vmatprep.mubr.bf16.mxu0 0
    %453 = vmatmul.mubr.bf16.gmra.mrb[0].mxu0 %v311
    %v454 = vpop.f32.mrb[0].mxu0
    %v455 = vadd.f32 %v382, %v454
    %v456 = vpop.f32.mrb[0].mxu0
    %v457 = vpop.f32.mrb[0].mxu0
    %v458 = vadd.f32 %v382, %v457
    %v459 = vpop.f32.mrb[0].mxu0
    %460 = vdwg.mxu0
    %v462 = vlaneseq
    %v463 = vshrl.u32 %v462, 7
    %v464 = vsub.s32 0, %v463
    %v465 = vrot.slane %v269, %v464
    %v471 = vunpack.c.l.b16 %v261
    %v472 = vunpack.c.l.b16 %v262
    %v473 = vunpack.c.l.b16 %v263
    %v474 = vunpack.c.l.b16 %v264
    %v475 = vpack.c.b16 %v472, %v471
    %v476 = vpack.c.b16 %v474, %v473
    %479 = vmatprep.subr.bf16.mxu0 0
    %480 = vmatpush1.bf16.msra.mxu0 %v475
    %481 = vmatprep.subr.bf16.mxu0 0
    %482 = vmatpush1.bf16.msra.mxu0 %v476
    %483 = vmatprep.subr.bf16.mxu0 0
    %484 = vmatpush1.bf16.msra.mxu0 0
    %485 = vmatprep.subr.bf16.mxu0 0
    %486 = vmatpush1.bf16.msra.mxu0 0
    %487 = vmatprep.subr.bf16.mxu0 0
    %488 = vmatpush1.bf16.msra.mxu0 0
    %489 = vmatprep.subr.bf16.mxu0 0
    %490 = vmatpush1.bf16.msra.mxu0 0
    %491 = vmatprep.subr.bf16.mxu0 0
    %492 = vmatpush1.bf16.msra.mxu0 0
    %493 = vmatprep.subr.bf16.mxu0 0
    %494 = vmatpush1.bf16.msra.mxu0 0
    %495 = vmatprep.subr.bf16.mxu0 0
    %496 = vmatpush1.bf16.msra.mxu0 0
    %497 = vmatprep.subr.bf16.mxu0 0
    %498 = vmatpush1.bf16.msra.mxu0 0
    %499 = vmatprep.subr.bf16.mxu0 0
    %500 = vmatpush1.bf16.msra.mxu0 0
    %501 = vmatprep.subr.bf16.mxu0 0
    %502 = vmatpush1.bf16.msra.mxu0 0
    %503 = vmatprep.subr.bf16.mxu0 0
    %504 = vmatpush1.bf16.msra.mxu0 0
    %505 = vmatprep.subr.bf16.mxu0 0
    %506 = vmatpush1.bf16.msra.mxu0 0
    %507 = vmatprep.subr.bf16.mxu0 0
    %508 = vmatpush1.bf16.msra.mxu0 0
    %509 = vmatprep.subr.bf16.mxu0 0
    %510 = vmatpush1.bf16.msra.mxu0 0
    %511 = vmatprep.mubr.bf16.mxu0 0
    %512 = vmatmul.mubr.bf16.gmra.mrb[0].mxu0 %v302
    %v513 = vpop.f32.mrb[0].mxu0
    %v514 = vadd.f32 %v465, %v513
    %v515 = vpop.f32.mrb[0].mxu0
    %v516 = vpop.f32.mrb[0].mxu0
    %v517 = vadd.f32 %v465, %v516
    %v518 = vpop.f32.mrb[0].mxu0
    %519 = vmatprep.mubr.bf16.mxu0 0
    %520 = vmatmul.mubr.bf16.gmra.mrb[0].mxu0 %v305
    %v521 = vpop.f32.mrb[0].mxu0
    %v522 = vadd.f32 %v465, %v521
    %v523 = vpop.f32.mrb[0].mxu0
    %v524 = vpop.f32.mrb[0].mxu0
    %v525 = vadd.f32 %v465, %v524
    %v526 = vpop.f32.mrb[0].mxu0
    %527 = vmatprep.mubr.bf16.mxu0 0
    %528 = vmatmul.mubr.bf16.gmra.mrb[0].mxu0 %v308
    %v529 = vpop.f32.mrb[0].mxu0
    %v530 = vadd.f32 %v465, %v529
    %v531 = vpop.f32.mrb[0].mxu0
    %v532 = vpop.f32.mrb[0].mxu0
    %v533 = vadd.f32 %v465, %v532
    %v534 = vpop.f32.mrb[0].mxu0
    %535 = vmatprep.mubr.bf16.mxu0 0
    %536 = vmatmul.mubr.bf16.gmra.mrb[0].mxu0 %v311
    %v537 = vpop.f32.mrb[0].mxu0
    %v538 = vadd.f32 %v465, %v537
    %v539 = vpop.f32.mrb[0].mxu0
    %v540 = vpop.f32.mrb[0].mxu0
    %v541 = vadd.f32 %v465, %v540
    %v542 = vpop.f32.mrb[0].mxu0
    %543 = vdwg.mxu0
    %v544 = vpack.c.bf16 %v348, %v348
    %v545 = vpack.c.bf16 %v351, %v351
    %v546 = vpack.c.bf16 %v356, %v356
    %v547 = vpack.c.bf16 %v359, %v359
    %v548 = vpack.c.bf16 %v364, %v364
    %v549 = vpack.c.bf16 %v367, %v367
    %v550 = vpack.c.bf16 %v372, %v372
    %v551 = vpack.c.bf16 %v375, %v375
    %v552 = vpack.c.bf16 %v431, %v431
    %v553 = vpack.c.bf16 %v434, %v434
    %v554 = vpack.c.bf16 %v439, %v439
    %v555 = vpack.c.bf16 %v442, %v442
    %v556 = vpack.c.bf16 %v447, %v447
    %v557 = vpack.c.bf16 %v450, %v450
    %v558 = vpack.c.bf16 %v455, %v455
    %v559 = vpack.c.bf16 %v458, %v458
    %v560 = vpack.c.bf16 %v514, %v514
    %v561 = vpack.c.bf16 %v517, %v517
    %v562 = vpack.c.bf16 %v522, %v522
    %v563 = vpack.c.bf16 %v525, %v525
    %v564 = vpack.c.bf16 %v530, %v530
    %v565 = vpack.c.bf16 %v533, %v533
    %v566 = vpack.c.bf16 %v538, %v538
    %v567 = vpack.c.bf16 %v541, %v541
    %vm568 = vcmask 130048
    %v570 = vsel %vm568, %v544, 0
    %v573 = vsel %vm568, %v552, 0
    %575 = vmatprep.subr.bf16.mxu0 0
    %576 = vmatpush1.bf16.xpose.msra.mxu0 %v573
    %577 = vmatprep.subr.bf16.mxu0 0
    %578 = vmatpush1.bf16.xpose.msra.mxu0 0
    %579 = vmatprep.subr.bf16.mxu0 0
    %580 = vmatpush1.bf16.xpose.msra.mxu0 0
    %581 = vmatprep.subr.bf16.mxu0 0
    %582 = vmatpush1.bf16.xpose.msra.mxu0 0
    %583 = vmatprep.subr.bf16.mxu0 0
    %584 = vmatpush1.bf16.xpose.msra.mxu0 0
    %585 = vmatprep.subr.bf16.mxu0 0
    %586 = vmatpush1.bf16.xpose.msra.mxu0 0
    %587 = vmatprep.subr.bf16.mxu0 0
    %588 = vmatpush1.bf16.xpose.msra.mxu0 0
    %589 = vmatprep.subr.bf16.mxu0 0
    %590 = vmatpush1.bf16.xpose.msra.mxu0 0
    %591 = vmatprep.subr.bf16.mxu0 0
    %592 = vmatpush1.bf16.xpose.msra.mxu0 0
    %593 = vmatprep.subr.bf16.mxu0 0
    %594 = vmatpush1.bf16.xpose.msra.mxu0 0
    %595 = vmatprep.subr.bf16.mxu0 0
    %596 = vmatpush1.bf16.xpose.msra.mxu0 0
    %597 = vmatprep.subr.bf16.mxu0 0
    %598 = vmatpush1.bf16.xpose.msra.mxu0 0
    %599 = vmatprep.subr.bf16.mxu0 0
    %600 = vmatpush1.bf16.xpose.msra.mxu0 0
    %601 = vmatprep.subr.bf16.mxu0 0
    %602 = vmatpush1.bf16.xpose.msra.mxu0 0
    %603 = vmatprep.subr.bf16.mxu0 0
    %604 = vmatpush1.bf16.xpose.msra.mxu0 0
    %605 = vmatprep.subr.bf16.mxu0 0
    %606 = vmatpush1.bf16.xpose.msra.mxu0 0
    %607 = vmatprep.mubr.bf16.mxu0 0
    %608 = vmatmul.mubr.bf16.gmra.mrb[0].mxu0 %v570
    %v609 = vpop.f32.mrb[0].mxu0
    %v610 = vadd.f32 0.0, %v609
    %v611 = vpop.f32.mrb[0].mxu0
    %v612 = vpop.f32.mrb[0].mxu0
    %v613 = vpop.f32.mrb[0].mxu0
    %614 = vdwg.mxu0
    %v616 = vsel %vm568, %v545, 0
    %v619 = vsel %vm568, %v553, 0
    %621 = vmatprep.subr.bf16.mxu0 0
    %622 = vmatpush1.bf16.xpose.msra.mxu0 %v619
    %623 = vmatprep.subr.bf16.mxu0 0
    %624 = vmatpush1.bf16.xpose.msra.mxu0 0
    %625 = vmatprep.subr.bf16.mxu0 0
    %626 = vmatpush1.bf16.xpose.msra.mxu0 0
    %627 = vmatprep.subr.bf16.mxu0 0
    %628 = vmatpush1.bf16.xpose.msra.mxu0 0
    %629 = vmatprep.subr.bf16.mxu0 0
    %630 = vmatpush1.bf16.xpose.msra.mxu0 0
    %631 = vmatprep.subr.bf16.mxu0 0
    %632 = vmatpush1.bf16.xpose.msra.mxu0 0
    %633 = vmatprep.subr.bf16.mxu0 0
    %634 = vmatpush1.bf16.xpose.msra.mxu0 0
    %635 = vmatprep.subr.bf16.mxu0 0
    %636 = vmatpush1.bf16.xpose.msra.mxu0 0
    %637 = vmatprep.subr.bf16.mxu0 0
    %638 = vmatpush1.bf16.xpose.msra.mxu0 0
    %639 = vmatprep.subr.bf16.mxu0 0
    %640 = vmatpush1.bf16.xpose.msra.mxu0 0
    %641 = vmatprep.subr.bf16.mxu0 0
    %642 = vmatpush1.bf16.xpose.msra.mxu0 0
    %643 = vmatprep.subr.bf16.mxu0 0
    %644 = vmatpush1.bf16.xpose.msra.mxu0 0
    %645 = vmatprep.subr.bf16.mxu0 0
    %646 = vmatpush1.bf16.xpose.msra.mxu0 0
    %647 = vmatprep.subr.bf16.mxu0 0
    %648 = vmatpush1.bf16.xpose.msra.mxu0 0
    %649 = vmatprep.subr.bf16.mxu0 0
    %650 = vmatpush1.bf16.xpose.msra.mxu0 0
    %651 = vmatprep.subr.bf16.mxu0 0
    %652 = vmatpush1.bf16.xpose.msra.mxu0 0
    %653 = vmatprep.mubr.bf16.mxu0 0
    %654 = vmatmul.mubr.bf16.gmra.mrb[0].mxu0 %v616
    %v655 = vpop.f32.mrb[0].mxu0
    %v656 = vadd.f32 0.0, %v655
    %v657 = vpop.f32.mrb[0].mxu0
    %v658 = vpop.f32.mrb[0].mxu0
    %v659 = vpop.f32.mrb[0].mxu0
    %660 = vdwg.mxu0
    %v662 = vsel %vm568, %v546, 0
    %v665 = vsel %vm568, %v554, 0
    %667 = vmatprep.subr.bf16.mxu0 0
    %668 = vmatpush1.bf16.xpose.msra.mxu0 %v665
    %669 = vmatprep.subr.bf16.mxu0 0
    %670 = vmatpush1.bf16.xpose.msra.mxu0 0
    %671 = vmatprep.subr.bf16.mxu0 0
    %672 = vmatpush1.bf16.xpose.msra.mxu0 0
    %673 = vmatprep.subr.bf16.mxu0 0
    %674 = vmatpush1.bf16.xpose.msra.mxu0 0
    %675 = vmatprep.subr.bf16.mxu0 0
    %676 = vmatpush1.bf16.xpose.msra.mxu0 0
    %677 = vmatprep.subr.bf16.mxu0 0
    %678 = vmatpush1.bf16.xpose.msra.mxu0 0
    %679 = vmatprep.subr.bf16.mxu0 0
    %680 = vmatpush1.bf16.xpose.msra.mxu0 0
    %681 = vmatprep.subr.bf16.mxu0 0
    %682 = vmatpush1.bf16.xpose.msra.mxu0 0
    %683 = vmatprep.subr.bf16.mxu0 0
    %684 = vmatpush1.bf16.xpose.msra.mxu0 0
    %685 = vmatprep.subr.bf16.mxu0 0
    %686 = vmatpush1.bf16.xpose.msra.mxu0 0
    %687 = vmatprep.subr.bf16.mxu0 0
    %688 = vmatpush1.bf16.xpose.msra.mxu0 0
    %689 = vmatprep.subr.bf16.mxu0 0
    %690 = vmatpush1.bf16.xpose.msra.mxu0 0
    %691 = vmatprep.subr.bf16.mxu0 0
    %692 = vmatpush1.bf16.xpose.msra.mxu0 0
    %693 = vmatprep.subr.bf16.mxu0 0
    %694 = vmatpush1.bf16.xpose.msra.mxu0 0
    %695 = vmatprep.subr.bf16.mxu0 0
    %696 = vmatpush1.bf16.xpose.msra.mxu0 0
    %697 = vmatprep.subr.bf16.mxu0 0
    %698 = vmatpush1.bf16.xpose.msra.mxu0 0
    %699 = vmatprep.mubr.bf16.mxu0 0
    %700 = vmatmul.mubr.bf16.gmra.mrb[0].mxu0 %v662
    %v701 = vpop.f32.mrb[0].mxu0
    %v702 = vadd.f32 0.0, %v701
    %v703 = vpop.f32.mrb[0].mxu0
    %v704 = vpop.f32.mrb[0].mxu0
    %v705 = vpop.f32.mrb[0].mxu0
    %706 = vdwg.mxu0
    %v708 = vsel %vm568, %v547, 0
    %v711 = vsel %vm568, %v555, 0
    %713 = vmatprep.subr.bf16.mxu0 0
    %714 = vmatpush1.bf16.xpose.msra.mxu0 %v711
    %715 = vmatprep.subr.bf16.mxu0 0
    %716 = vmatpush1.bf16.xpose.msra.mxu0 0
    %717 = vmatprep.subr.bf16.mxu0 0
    %718 = vmatpush1.bf16.xpose.msra.mxu0 0
    %719 = vmatprep.subr.bf16.mxu0 0
    %720 = vmatpush1.bf16.xpose.msra.mxu0 0
    %721 = vmatprep.subr.bf16.mxu0 0
    %722 = vmatpush1.bf16.xpose.msra.mxu0 0
    %723 = vmatprep.subr.bf16.mxu0 0
    %724 = vmatpush1.bf16.xpose.msra.mxu0 0
    %725 = vmatprep.subr.bf16.mxu0 0
    %726 = vmatpush1.bf16.xpose.msra.mxu0 0
    %727 = vmatprep.subr.bf16.mxu0 0
    %728 = vmatpush1.bf16.xpose.msra.mxu0 0
    %729 = vmatprep.subr.bf16.mxu0 0
    %730 = vmatpush1.bf16.xpose.msra.mxu0 0
    %731 = vmatprep.subr.bf16.mxu0 0
    %732 = vmatpush1.bf16.xpose.msra.mxu0 0
    %733 = vmatprep.subr.bf16.mxu0 0
    %734 = vmatpush1.bf16.xpose.msra.mxu0 0
    %735 = vmatprep.subr.bf16.mxu0 0
    %736 = vmatpush1.bf16.xpose.msra.mxu0 0
    %737 = vmatprep.subr.bf16.mxu0 0
    %738 = vmatpush1.bf16.xpose.msra.mxu0 0
    %739 = vmatprep.subr.bf16.mxu0 0
    %740 = vmatpush1.bf16.xpose.msra.mxu0 0
    %741 = vmatprep.subr.bf16.mxu0 0
    %742 = vmatpush1.bf16.xpose.msra.mxu0 0
    %743 = vmatprep.subr.bf16.mxu0 0
    %744 = vmatpush1.bf16.xpose.msra.mxu0 0
    %745 = vmatprep.mubr.bf16.mxu0 0
    %746 = vmatmul.mubr.bf16.gmra.mrb[0].mxu0 %v708
    %v747 = vpop.f32.mrb[0].mxu0
    %v748 = vadd.f32 0.0, %v747
    %v749 = vpop.f32.mrb[0].mxu0
    %v750 = vpop.f32.mrb[0].mxu0
    %v751 = vpop.f32.mrb[0].mxu0
    %752 = vdwg.mxu0
    %v754 = vsel %vm568, %v548, 0
    %v757 = vsel %vm568, %v556, 0
    %759 = vmatprep.subr.bf16.mxu0 0
    %760 = vmatpush1.bf16.xpose.msra.mxu0 %v757
    %761 = vmatprep.subr.bf16.mxu0 0
    %762 = vmatpush1.bf16.xpose.msra.mxu0 0
    %763 = vmatprep.subr.bf16.mxu0 0
    %764 = vmatpush1.bf16.xpose.msra.mxu0 0
    %765 = vmatprep.subr.bf16.mxu0 0
    %766 = vmatpush1.bf16.xpose.msra.mxu0 0
    %767 = vmatprep.subr.bf16.mxu0 0
    %768 = vmatpush1.bf16.xpose.msra.mxu0 0
    %769 = vmatprep.subr.bf16.mxu0 0
    %770 = vmatpush1.bf16.xpose.msra.mxu0 0
    %771 = vmatprep.subr.bf16.mxu0 0
    %772 = vmatpush1.bf16.xpose.msra.mxu0 0
    %773 = vmatprep.subr.bf16.mxu0 0
    %774 = vmatpush1.bf16.xpose.msra.mxu0 0
    %775 = vmatprep.subr.bf16.mxu0 0
    %776 = vmatpush1.bf16.xpose.msra.mxu0 0
    %777 = vmatprep.subr.bf16.mxu0 0
    %778 = vmatpush1.bf16.xpose.msra.mxu0 0
    %779 = vmatprep.subr.bf16.mxu0 0
    %780 = vmatpush1.bf16.xpose.msra.mxu0 0
    %781 = vmatprep.subr.bf16.mxu0 0
    %782 = vmatpush1.bf16.xpose.msra.mxu0 0
    %783 = vmatprep.subr.bf16.mxu0 0
    %784 = vmatpush1.bf16.xpose.msra.mxu0 0
    %785 = vmatprep.subr.bf16.mxu0 0
    %786 = vmatpush1.bf16.xpose.msra.mxu0 0
    %787 = vmatprep.subr.bf16.mxu0 0
    %788 = vmatpush1.bf16.xpose.msra.mxu0 0
    %789 = vmatprep.subr.bf16.mxu0 0
    %790 = vmatpush1.bf16.xpose.msra.mxu0 0
    %791 = vmatprep.mubr.bf16.mxu0 0
    %792 = vmatmul.mubr.bf16.gmra.mrb[0].mxu0 %v754
    %v793 = vpop.f32.mrb[0].mxu0
    %v794 = vadd.f32 0.0, %v793
    %v795 = vpop.f32.mrb[0].mxu0
    %v796 = vpop.f32.mrb[0].mxu0
    %v797 = vpop.f32.mrb[0].mxu0
    %798 = vdwg.mxu0
    %v800 = vsel %vm568, %v549, 0
    %v803 = vsel %vm568, %v557, 0
    %805 = vmatprep.subr.bf16.mxu0 0
    %806 = vmatpush1.bf16.xpose.msra.mxu0 %v803
    %807 = vmatprep.subr.bf16.mxu0 0
    %808 = vmatpush1.bf16.xpose.msra.mxu0 0
    %809 = vmatprep.subr.bf16.mxu0 0
    %810 = vmatpush1.bf16.xpose.msra.mxu0 0
    %811 = vmatprep.subr.bf16.mxu0 0
    %812 = vmatpush1.bf16.xpose.msra.mxu0 0
    %813 = vmatprep.subr.bf16.mxu0 0
    %814 = vmatpush1.bf16.xpose.msra.mxu0 0
    %815 = vmatprep.subr.bf16.mxu0 0
    %816 = vmatpush1.bf16.xpose.msra.mxu0 0
    %817 = vmatprep.subr.bf16.mxu0 0
    %818 = vmatpush1.bf16.xpose.msra.mxu0 0
    %819 = vmatprep.subr.bf16.mxu0 0
    %820 = vmatpush1.bf16.xpose.msra.mxu0 0
    %821 = vmatprep.subr.bf16.mxu0 0
    %822 = vmatpush1.bf16.xpose.msra.mxu0 0
    %823 = vmatprep.subr.bf16.mxu0 0
    %824 = vmatpush1.bf16.xpose.msra.mxu0 0
    %825 = vmatprep.subr.bf16.mxu0 0
    %826 = vmatpush1.bf16.xpose.msra.mxu0 0
    %827 = vmatprep.subr.bf16.mxu0 0
    %828 = vmatpush1.bf16.xpose.msra.mxu0 0
    %829 = vmatprep.subr.bf16.mxu0 0
    %830 = vmatpush1.bf16.xpose.msra.mxu0 0
    %831 = vmatprep.subr.bf16.mxu0 0
    %832 = vmatpush1.bf16.xpose.msra.mxu0 0
    %833 = vmatprep.subr.bf16.mxu0 0
    %834 = vmatpush1.bf16.xpose.msra.mxu0 0
    %835 = vmatprep.subr.bf16.mxu0 0
    %836 = vmatpush1.bf16.xpose.msra.mxu0 0
    %837 = vmatprep.mubr.bf16.mxu0 0
    %838 = vmatmul.mubr.bf16.gmra.mrb[0].mxu0 %v800
    %v839 = vpop.f32.mrb[0].mxu0
    %v840 = vadd.f32 0.0, %v839
    %v841 = vpop.f32.mrb[0].mxu0
    %v842 = vpop.f32.mrb[0].mxu0
    %v843 = vpop.f32.mrb[0].mxu0
    %844 = vdwg.mxu0
    %v846 = vsel %vm568, %v550, 0
    %v849 = vsel %vm568, %v558, 0
    %851 = vmatprep.subr.bf16.mxu0 0
    %852 = vmatpush1.bf16.xpose.msra.mxu0 %v849
    %853 = vmatprep.subr.bf16.mxu0 0
    %854 = vmatpush1.bf16.xpose.msra.mxu0 0
    %855 = vmatprep.subr.bf16.mxu0 0
    %856 = vmatpush1.bf16.xpose.msra.mxu0 0
    %857 = vmatprep.subr.bf16.mxu0 0
    %858 = vmatpush1.bf16.xpose.msra.mxu0 0
    %859 = vmatprep.subr.bf16.mxu0 0
    %860 = vmatpush1.bf16.xpose.msra.mxu0 0
    %861 = vmatprep.subr.bf16.mxu0 0
    %862 = vmatpush1.bf16.xpose.msra.mxu0 0
    %863 = vmatprep.subr.bf16.mxu0 0
    %864 = vmatpush1.bf16.xpose.msra.mxu0 0
    %865 = vmatprep.subr.bf16.mxu0 0
    %866 = vmatpush1.bf16.xpose.msra.mxu0 0
    %867 = vmatprep.subr.bf16.mxu0 0
    %868 = vmatpush1.bf16.xpose.msra.mxu0 0
    %869 = vmatprep.subr.bf16.mxu0 0
    %870 = vmatpush1.bf16.xpose.msra.mxu0 0
    %871 = vmatprep.subr.bf16.mxu0 0
    %872 = vmatpush1.bf16.xpose.msra.mxu0 0
    %873 = vmatprep.subr.bf16.mxu0 0
    %874 = vmatpush1.bf16.xpose.msra.mxu0 0
    %875 = vmatprep.subr.bf16.mxu0 0
    %876 = vmatpush1.bf16.xpose.msra.mxu0 0
    %877 = vmatprep.subr.bf16.mxu0 0
    %878 = vmatpush1.bf16.xpose.msra.mxu0 0
    %879 = vmatprep.subr.bf16.mxu0 0
    %880 = vmatpush1.bf16.xpose.msra.mxu0 0
    %881 = vmatprep.subr.bf16.mxu0 0
    %882 = vmatpush1.bf16.xpose.msra.mxu0 0
    %883 = vmatprep.mubr.bf16.mxu0 0
    %884 = vmatmul.mubr.bf16.gmra.mrb[0].mxu0 %v846
    %v885 = vpop.f32.mrb[0].mxu0
    %v886 = vadd.f32 0.0, %v885
    %v887 = vpop.f32.mrb[0].mxu0
    %v888 = vpop.f32.mrb[0].mxu0
    %v889 = vpop.f32.mrb[0].mxu0
    %890 = vdwg.mxu0
    %v892 = vsel %vm568, %v551, 0
    %v895 = vsel %vm568, %v559, 0
    %897 = vmatprep.subr.bf16.mxu0 0
    %898 = vmatpush1.bf16.xpose.msra.mxu0 %v895
    %899 = vmatprep.subr.bf16.mxu0 0
    %900 = vmatpush1.bf16.xpose.msra.mxu0 0
    %901 = vmatprep.subr.bf16.mxu0 0
    %902 = vmatpush1.bf16.xpose.msra.mxu0 0
    %903 = vmatprep.subr.bf16.mxu0 0
    %904 = vmatpush1.bf16.xpose.msra.mxu0 0
    %905 = vmatprep.subr.bf16.mxu0 0
    %906 = vmatpush1.bf16.xpose.msra.mxu0 0
    %907 = vmatprep.subr.bf16.mxu0 0
    %908 = vmatpush1.bf16.xpose.msra.mxu0 0
    %909 = vmatprep.subr.bf16.mxu0 0
    %910 = vmatpush1.bf16.xpose.msra.mxu0 0
    %911 = vmatprep.subr.bf16.mxu0 0
    %912 = vmatpush1.bf16.xpose.msra.mxu0 0
    %913 = vmatprep.subr.bf16.mxu0 0
    %914 = vmatpush1.bf16.xpose.msra.mxu0 0
    %915 = vmatprep.subr.bf16.mxu0 0
    %916 = vmatpush1.bf16.xpose.msra.mxu0 0
    %917 = vmatprep.subr.bf16.mxu0 0
    %918 = vmatpush1.bf16.xpose.msra.mxu0 0
    %919 = vmatprep.subr.bf16.mxu0 0
    %920 = vmatpush1.bf16.xpose.msra.mxu0 0
    %921 = vmatprep.subr.bf16.mxu0 0
    %922 = vmatpush1.bf16.xpose.msra.mxu0 0
    %923 = vmatprep.subr.bf16.mxu0 0
    %924 = vmatpush1.bf16.xpose.msra.mxu0 0
    %925 = vmatprep.subr.bf16.mxu0 0
    %926 = vmatpush1.bf16.xpose.msra.mxu0 0
    %927 = vmatprep.subr.bf16.mxu0 0
    %928 = vmatpush1.bf16.xpose.msra.mxu0 0
    %929 = vmatprep.mubr.bf16.mxu0 0
    %930 = vmatmul.mubr.bf16.gmra.mrb[0].mxu0 %v892
    %v931 = vpop.f32.mrb[0].mxu0
    %v932 = vadd.f32 0.0, %v931
    %v933 = vpop.f32.mrb[0].mxu0
    %v934 = vpop.f32.mrb[0].mxu0
    %v935 = vpop.f32.mrb[0].mxu0
    %936 = vdwg.mxu0
    %v937 = vmul.f32 %v610, 0.25
    %v938 = vmul.f32 %v656, 0.25
    %v939 = vmul.f32 %v702, 0.25
    %v940 = vmul.f32 %v748, 0.25
    %v941 = vmul.f32 %v794, 0.25
    %v942 = vmul.f32 %v840, 0.25
    %v943 = vmul.f32 %v886, 0.25
    %v944 = vmul.f32 %v932, 0.25
    %v953 = vlaneseq
    %v954 = vshrl.u32 %v953, 7
    %v955 = vsub.s32 0, %v954
    %v956 = vrot.slane %v229, %v955
    %v957 = vlaneseq
    %v958 = vshrl.u32 %v957, 7
    %v959 = vsub.s32 0, %v958
    %v960 = vrot.slane %v230, %v959
    %v961 = vlaneseq
    %v962 = vshrl.u32 %v961, 7
    %v963 = vsub.s32 0, %v962
    %v964 = vrot.slane %v231, %v963
    %v965 = vlaneseq
    %v966 = vshrl.u32 %v965, 7
    %v967 = vsub.s32 0, %v966
    %v968 = vrot.slane %v232, %v967
    %v969 = vlaneseq
    %v970 = vshrl.u32 %v969, 7
    %v971 = vsub.s32 0, %v970
    %v972 = vrot.slane %v233, %v971
    %v973 = vlaneseq
    %v974 = vshrl.u32 %v973, 7
    %v975 = vsub.s32 0, %v974
    %v976 = vrot.slane %v234, %v975
    %v977 = vlaneseq
    %v978 = vshrl.u32 %v977, 7
    %v979 = vsub.s32 0, %v978
    %v980 = vrot.slane %v235, %v979
    %v981 = vlaneseq
    %v982 = vshrl.u32 %v981, 7
    %v983 = vsub.s32 0, %v982
    %v984 = vrot.slane %v236, %v983
    %v993 = vadd.f32 %v937, %v956
    %v994 = vadd.f32 %v938, %v960
    %v995 = vadd.f32 %v939, %v964
    %v996 = vadd.f32 %v940, %v968
    %v997 = vadd.f32 %v941, %v972
    %v998 = vadd.f32 %v942, %v976
    %v999 = vadd.f32 %v943, %v980
    %v1000 = vadd.f32 %v944, %v984
    %vm1001 = vcmask 64512
    %v1002 = vsel %vm1001, %v993, -inf
    %1003 = vmax.xlane.f32.xlu0 %v1002
    %v1004 = vpop.xlane.xlu0 %1003
    %v1005 = vsel %vm1001, %v994, -inf
    %1006 = vmax.xlane.f32.xlu0 %v1005
    %v1007 = vpop.xlane.xlu0 %1006
    %v1008 = vsel %vm1001, %v995, -inf
    %1009 = vmax.xlane.f32.xlu0 %v1008
    %v1010 = vpop.xlane.xlu0 %1009
    %v1011 = vsel %vm1001, %v996, -inf
    %1012 = vmax.xlane.f32.xlu0 %v1011
    %v1013 = vpop.xlane.xlu0 %1012
    %v1014 = vsel %vm1001, %v997, -inf
    %1015 = vmax.xlane.f32.xlu0 %v1014
    %v1016 = vpop.xlane.xlu0 %1015
    %v1017 = vsel %vm1001, %v998, -inf
    %1018 = vmax.xlane.f32.xlu0 %v1017
    %v1019 = vpop.xlane.xlu0 %1018
    %v1020 = vsel %vm1001, %v999, -inf
    %1021 = vmax.xlane.f32.xlu0 %v1020
    %v1022 = vpop.xlane.xlu0 %1021
    %v1023 = vsel %vm1001, %v1000, -inf
    %1024 = vmax.xlane.f32.xlu0 %v1023
    %v1025 = vpop.xlane.xlu0 %1024
    %v1026 = vsub.f32 %v993, %v1004
    %v1027 = vsub.f32 %v994, %v1007
    %v1028 = vsub.f32 %v995, %v1010
    %v1029 = vsub.f32 %v996, %v1013
    %v1030 = vsub.f32 %v997, %v1016
    %v1031 = vsub.f32 %v998, %v1019
    %v1032 = vsub.f32 %v999, %v1022
    %v1033 = vsub.f32 %v1000, %v1025
    %v1034 = vmul.f32 %v1026, 1.442695
    %v1035 = vpow.pop %v1034
    %v1036 = vmul.f32 %v1027, 1.442695
    %v1037 = vpow.pop %v1036
    %v1038 = vmul.f32 %v1028, 1.442695
    %v1039 = vpow.pop %v1038
    %v1040 = vmul.f32 %v1029, 1.442695
    %v1041 = vpow.pop %v1040
    %v1042 = vmul.f32 %v1030, 1.442695
    %v1043 = vpow.pop %v1042
    %v1044 = vmul.f32 %v1031, 1.442695
    %v1045 = vpow.pop %v1044
    %v1046 = vmul.f32 %v1032, 1.442695
    %v1047 = vpow.pop %v1046
    %v1048 = vmul.f32 %v1033, 1.442695
    %v1049 = vpow.pop %v1048
    %v1050 = vsel %vm1001, %v1035, 0.0
    %1051 = vadd.xlane.f32.xlu0 %v1050
    %v1052 = vpop.xlane.xlu0 %1051
    %v1053 = vsel %vm1001, %v1037, 0.0
    %1054 = vadd.xlane.f32.xlu0 %v1053
    %v1055 = vpop.xlane.xlu0 %1054
    %v1056 = vsel %vm1001, %v1039, 0.0
    %1057 = vadd.xlane.f32.xlu0 %v1056
    %v1058 = vpop.xlane.xlu0 %1057
    %v1059 = vsel %vm1001, %v1041, 0.0
    %1060 = vadd.xlane.f32.xlu0 %v1059
    %v1061 = vpop.xlane.xlu0 %1060
    %v1062 = vsel %vm1001, %v1043, 0.0
    %1063 = vadd.xlane.f32.xlu0 %v1062
    %v1064 = vpop.xlane.xlu0 %1063
    %v1065 = vsel %vm1001, %v1045, 0.0
    %1066 = vadd.xlane.f32.xlu0 %v1065
    %v1067 = vpop.xlane.xlu0 %1066
    %v1068 = vsel %vm1001, %v1047, 0.0
    %1069 = vadd.xlane.f32.xlu0 %v1068
    %v1070 = vpop.xlane.xlu0 %1069
    %v1071 = vsel %vm1001, %v1049, 0.0
    %1072 = vadd.xlane.f32.xlu0 %v1071
    %v1073 = vpop.xlane.xlu0 %1072
    %v1074 = vrcp.pop %v1052
    %v1075 = vmul.f32 %v1035, %v1074
    %v1076 = vrcp.pop %v1055
    %v1077 = vmul.f32 %v1037, %v1076
    %v1078 = vrcp.pop %v1058
    %v1079 = vmul.f32 %v1039, %v1078
    %v1080 = vrcp.pop %v1061
    %v1081 = vmul.f32 %v1041, %v1080
    %v1082 = vrcp.pop %v1064
    %v1083 = vmul.f32 %v1043, %v1082
    %v1084 = vrcp.pop %v1067
    %v1085 = vmul.f32 %v1045, %v1084
    %v1086 = vrcp.pop %v1070
    %v1087 = vmul.f32 %v1047, %v1086
    %v1088 = vrcp.pop %v1073
    %v1089 = vmul.f32 %v1049, %v1088
    %v1090 = vpack.c.bf16 %v1075, %v1075
    %v1091 = vpack.c.bf16 %v1077, %v1077
    %v1092 = vpack.c.bf16 %v1079, %v1079
    %v1093 = vpack.c.bf16 %v1081, %v1081
    %v1094 = vpack.c.bf16 %v1083, %v1083
    %v1095 = vpack.c.bf16 %v1085, %v1085
    %v1096 = vpack.c.bf16 %v1087, %v1087
    %v1097 = vpack.c.bf16 %v1089, %v1089
    %v1099 = vsel %vm1001, %v1090, 0
    %vm1101 = vcmask 1043456
    %v1103 = vsel %vm1101, %v560, 0
    %1105 = vmatprep.subr.bf16.mxu0 0
    %1106 = vmatpush1.bf16.msra.mxu0 %v1103
    %1107 = vmatprep.subr.bf16.mxu0 0
    %1108 = vmatpush1.bf16.msra.mxu0 0
    %1109 = vmatprep.subr.bf16.mxu0 0
    %1110 = vmatpush1.bf16.msra.mxu0 0
    %1111 = vmatprep.subr.bf16.mxu0 0
    %1112 = vmatpush1.bf16.msra.mxu0 0
    %1113 = vmatprep.subr.bf16.mxu0 0
    %1114 = vmatpush1.bf16.msra.mxu0 0
    %1115 = vmatprep.subr.bf16.mxu0 0
    %1116 = vmatpush1.bf16.msra.mxu0 0
    %1117 = vmatprep.subr.bf16.mxu0 0
    %1118 = vmatpush1.bf16.msra.mxu0 0
    %1119 = vmatprep.subr.bf16.mxu0 0
    %1120 = vmatpush1.bf16.msra.mxu0 0
    %1121 = vmatprep.subr.bf16.mxu0 0
    %1122 = vmatpush1.bf16.msra.mxu0 0
    %1123 = vmatprep.subr.bf16.mxu0 0
    %1124 = vmatpush1.bf16.msra.mxu0 0
    %1125 = vmatprep.subr.bf16.mxu0 0
    %1126 = vmatpush1.bf16.msra.mxu0 0
    %1127 = vmatprep.subr.bf16.mxu0 0
    %1128 = vmatpush1.bf16.msra.mxu0 0
    %1129 = vmatprep.subr.bf16.mxu0 0
    %1130 = vmatpush1.bf16.msra.mxu0 0
    %1131 = vmatprep.subr.bf16.mxu0 0
    %1132 = vmatpush1.bf16.msra.mxu0 0
    %1133 = vmatprep.subr.bf16.mxu0 0
    %1134 = vmatpush1.bf16.msra.mxu0 0
    %1135 = vmatprep.subr.bf16.mxu0 0
    %1136 = vmatpush1.bf16.msra.mxu0 0
    %1137 = vmatprep.mubr.bf16.mxu0 0
    %1138 = vmatmul.mubr.bf16.gmra.mrb[0].mxu0 %v1099
    %v1139 = vpop.f32.mrb[0].mxu0
    %v1140 = vadd.f32 0.0, %v1139
    %v1141 = vpop.f32.mrb[0].mxu0
    %v1142 = vpop.f32.mrb[0].mxu0
    %v1143 = vpop.f32.mrb[0].mxu0
    %1144 = vdwg.mxu0
    %v1146 = vsel %vm1001, %v1091, 0
    %v1149 = vsel %vm1101, %v561, 0
    %1151 = vmatprep.subr.bf16.mxu0 0
    %1152 = vmatpush1.bf16.msra.mxu0 %v1149
    %1153 = vmatprep.subr.bf16.mxu0 0
    %1154 = vmatpush1.bf16.msra.mxu0 0
    %1155 = vmatprep.subr.bf16.mxu0 0
    %1156 = vmatpush1.bf16.msra.mxu0 0
    %1157 = vmatprep.subr.bf16.mxu0 0
    %1158 = vmatpush1.bf16.msra.mxu0 0
    %1159 = vmatprep.subr.bf16.mxu0 0
    %1160 = vmatpush1.bf16.msra.mxu0 0
    %1161 = vmatprep.subr.bf16.mxu0 0
    %1162 = vmatpush1.bf16.msra.mxu0 0
    %1163 = vmatprep.subr.bf16.mxu0 0
    %1164 = vmatpush1.bf16.msra.mxu0 0
    %1165 = vmatprep.subr.bf16.mxu0 0
    %1166 = vmatpush1.bf16.msra.mxu0 0
    %1167 = vmatprep.subr.bf16.mxu0 0
    %1168 = vmatpush1.bf16.msra.mxu0 0
    %1169 = vmatprep.subr.bf16.mxu0 0
    %1170 = vmatpush1.bf16.msra.mxu0 0
    %1171 = vmatprep.subr.bf16.mxu0 0
    %1172 = vmatpush1.bf16.msra.mxu0 0
    %1173 = vmatprep.subr.bf16.mxu0 0
    %1174 = vmatpush1.bf16.msra.mxu0 0
    %1175 = vmatprep.subr.bf16.mxu0 0
    %1176 = vmatpush1.bf16.msra.mxu0 0
    %1177 = vmatprep.subr.bf16.mxu0 0
    %1178 = vmatpush1.bf16.msra.mxu0 0
    %1179 = vmatprep.subr.bf16.mxu0 0
    %1180 = vmatpush1.bf16.msra.mxu0 0
    %1181 = vmatprep.subr.bf16.mxu0 0
    %1182 = vmatpush1.bf16.msra.mxu0 0
    %1183 = vmatprep.mubr.bf16.mxu0 0
    %1184 = vmatmul.mubr.bf16.gmra.mrb[0].mxu0 %v1146
    %v1185 = vpop.f32.mrb[0].mxu0
    %v1186 = vadd.f32 0.0, %v1185
    %v1187 = vpop.f32.mrb[0].mxu0
    %v1188 = vpop.f32.mrb[0].mxu0
    %v1189 = vpop.f32.mrb[0].mxu0
    %1190 = vdwg.mxu0
    %v1192 = vsel %vm1001, %v1092, 0
    %v1195 = vsel %vm1101, %v562, 0
    %1197 = vmatprep.subr.bf16.mxu0 0
    %1198 = vmatpush1.bf16.msra.mxu0 %v1195
    %1199 = vmatprep.subr.bf16.mxu0 0
    %1200 = vmatpush1.bf16.msra.mxu0 0
    %1201 = vmatprep.subr.bf16.mxu0 0
    %1202 = vmatpush1.bf16.msra.mxu0 0
    %1203 = vmatprep.subr.bf16.mxu0 0
    %1204 = vmatpush1.bf16.msra.mxu0 0
    %1205 = vmatprep.subr.bf16.mxu0 0
    %1206 = vmatpush1.bf16.msra.mxu0 0
    %1207 = vmatprep.subr.bf16.mxu0 0
    %1208 = vmatpush1.bf16.msra.mxu0 0
    %1209 = vmatprep.subr.bf16.mxu0 0
    %1210 = vmatpush1.bf16.msra.mxu0 0
    %1211 = vmatprep.subr.bf16.mxu0 0
    %1212 = vmatpush1.bf16.msra.mxu0 0
    %1213 = vmatprep.subr.bf16.mxu0 0
    %1214 = vmatpush1.bf16.msra.mxu0 0
    %1215 = vmatprep.subr.bf16.mxu0 0
    %1216 = vmatpush1.bf16.msra.mxu0 0
    %1217 = vmatprep.subr.bf16.mxu0 0
    %1218 = vmatpush1.bf16.msra.mxu0 0
    %1219 = vmatprep.subr.bf16.mxu0 0
    %1220 = vmatpush1.bf16.msra.mxu0 0
    %1221 = vmatprep.subr.bf16.mxu0 0
    %1222 = vmatpush1.bf16.msra.mxu0 0
    %1223 = vmatprep.subr.bf16.mxu0 0
    %1224 = vmatpush1.bf16.msra.mxu0 0
    %1225 = vmatprep.subr.bf16.mxu0 0
    %1226 = vmatpush1.bf16.msra.mxu0 0
    %1227 = vmatprep.subr.bf16.mxu0 0
    %1228 = vmatpush1.bf16.msra.mxu0 0
    %1229 = vmatprep.mubr.bf16.mxu0 0
    %1230 = vmatmul.mubr.bf16.gmra.mrb[0].mxu0 %v1192
    %v1231 = vpop.f32.mrb[0].mxu0
    %v1232 = vadd.f32 0.0, %v1231
    %v1233 = vpop.f32.mrb[0].mxu0
    %v1234 = vpop.f32.mrb[0].mxu0
    %v1235 = vpop.f32.mrb[0].mxu0
    %1236 = vdwg.mxu0
    %v1238 = vsel %vm1001, %v1093, 0
    %v1241 = vsel %vm1101, %v563, 0
    %1243 = vmatprep.subr.bf16.mxu0 0
    %1244 = vmatpush1.bf16.msra.mxu0 %v1241
    %1245 = vmatprep.subr.bf16.mxu0 0
    %1246 = vmatpush1.bf16.msra.mxu0 0
    %1247 = vmatprep.subr.bf16.mxu0 0
    %1248 = vmatpush1.bf16.msra.mxu0 0
    %1249 = vmatprep.subr.bf16.mxu0 0
    %1250 = vmatpush1.bf16.msra.mxu0 0
    %1251 = vmatprep.subr.bf16.mxu0 0
    %1252 = vmatpush1.bf16.msra.mxu0 0
    %1253 = vmatprep.subr.bf16.mxu0 0
    %1254 = vmatpush1.bf16.msra.mxu0 0
    %1255 = vmatprep.subr.bf16.mxu0 0
    %1256 = vmatpush1.bf16.msra.mxu0 0
    %1257 = vmatprep.subr.bf16.mxu0 0
    %1258 = vmatpush1.bf16.msra.mxu0 0
    %1259 = vmatprep.subr.bf16.mxu0 0
    %1260 = vmatpush1.bf16.msra.mxu0 0
    %1261 = vmatprep.subr.bf16.mxu0 0
    %1262 = vmatpush1.bf16.msra.mxu0 0
    %1263 = vmatprep.subr.bf16.mxu0 0
    %1264 = vmatpush1.bf16.msra.mxu0 0
    %1265 = vmatprep.subr.bf16.mxu0 0
    %1266 = vmatpush1.bf16.msra.mxu0 0
    %1267 = vmatprep.subr.bf16.mxu0 0
    %1268 = vmatpush1.bf16.msra.mxu0 0
    %1269 = vmatprep.subr.bf16.mxu0 0
    %1270 = vmatpush1.bf16.msra.mxu0 0
    %1271 = vmatprep.subr.bf16.mxu0 0
    %1272 = vmatpush1.bf16.msra.mxu0 0
    %1273 = vmatprep.subr.bf16.mxu0 0
    %1274 = vmatpush1.bf16.msra.mxu0 0
    %1275 = vmatprep.mubr.bf16.mxu0 0
    %1276 = vmatmul.mubr.bf16.gmra.mrb[0].mxu0 %v1238
    %v1277 = vpop.f32.mrb[0].mxu0
    %v1278 = vadd.f32 0.0, %v1277
    %v1279 = vpop.f32.mrb[0].mxu0
    %v1280 = vpop.f32.mrb[0].mxu0
    %v1281 = vpop.f32.mrb[0].mxu0
    %1282 = vdwg.mxu0
    %v1284 = vsel %vm1001, %v1094, 0
    %v1287 = vsel %vm1101, %v564, 0
    %1289 = vmatprep.subr.bf16.mxu0 0
    %1290 = vmatpush1.bf16.msra.mxu0 %v1287
    %1291 = vmatprep.subr.bf16.mxu0 0
    %1292 = vmatpush1.bf16.msra.mxu0 0
    %1293 = vmatprep.subr.bf16.mxu0 0
    %1294 = vmatpush1.bf16.msra.mxu0 0
    %1295 = vmatprep.subr.bf16.mxu0 0
    %1296 = vmatpush1.bf16.msra.mxu0 0
    %1297 = vmatprep.subr.bf16.mxu0 0
    %1298 = vmatpush1.bf16.msra.mxu0 0
    %1299 = vmatprep.subr.bf16.mxu0 0
    %1300 = vmatpush1.bf16.msra.mxu0 0
    %1301 = vmatprep.subr.bf16.mxu0 0
    %1302 = vmatpush1.bf16.msra.mxu0 0
    %1303 = vmatprep.subr.bf16.mxu0 0
    %1304 = vmatpush1.bf16.msra.mxu0 0
    %1305 = vmatprep.subr.bf16.mxu0 0
    %1306 = vmatpush1.bf16.msra.mxu0 0
    %1307 = vmatprep.subr.bf16.mxu0 0
    %1308 = vmatpush1.bf16.msra.mxu0 0
    %1309 = vmatprep.subr.bf16.mxu0 0
    %1310 = vmatpush1.bf16.msra.mxu0 0
    %1311 = vmatprep.subr.bf16.mxu0 0
    %1312 = vmatpush1.bf16.msra.mxu0 0
    %1313 = vmatprep.subr.bf16.mxu0 0
    %1314 = vmatpush1.bf16.msra.mxu0 0
    %1315 = vmatprep.subr.bf16.mxu0 0
    %1316 = vmatpush1.bf16.msra.mxu0 0
    %1317 = vmatprep.subr.bf16.mxu0 0
    %1318 = vmatpush1.bf16.msra.mxu0 0
    %1319 = vmatprep.subr.bf16.mxu0 0
    %1320 = vmatpush1.bf16.msra.mxu0 0
    %1321 = vmatprep.mubr.bf16.mxu0 0
    %1322 = vmatmul.mubr.bf16.gmra.mrb[0].mxu0 %v1284
    %v1323 = vpop.f32.mrb[0].mxu0
    %v1324 = vadd.f32 0.0, %v1323
    %v1325 = vpop.f32.mrb[0].mxu0
    %v1326 = vpop.f32.mrb[0].mxu0
    %v1327 = vpop.f32.mrb[0].mxu0
    %1328 = vdwg.mxu0
    %v1330 = vsel %vm1001, %v1095, 0
    %v1333 = vsel %vm1101, %v565, 0
    %1335 = vmatprep.subr.bf16.mxu0 0
    %1336 = vmatpush1.bf16.msra.mxu0 %v1333
    %1337 = vmatprep.subr.bf16.mxu0 0
    %1338 = vmatpush1.bf16.msra.mxu0 0
    %1339 = vmatprep.subr.bf16.mxu0 0
    %1340 = vmatpush1.bf16.msra.mxu0 0
    %1341 = vmatprep.subr.bf16.mxu0 0
    %1342 = vmatpush1.bf16.msra.mxu0 0
    %1343 = vmatprep.subr.bf16.mxu0 0
    %1344 = vmatpush1.bf16.msra.mxu0 0
    %1345 = vmatprep.subr.bf16.mxu0 0
    %1346 = vmatpush1.bf16.msra.mxu0 0
    %1347 = vmatprep.subr.bf16.mxu0 0
    %1348 = vmatpush1.bf16.msra.mxu0 0
    %1349 = vmatprep.subr.bf16.mxu0 0
    %1350 = vmatpush1.bf16.msra.mxu0 0
    %1351 = vmatprep.subr.bf16.mxu0 0
    %1352 = vmatpush1.bf16.msra.mxu0 0
    %1353 = vmatprep.subr.bf16.mxu0 0
    %1354 = vmatpush1.bf16.msra.mxu0 0
    %1355 = vmatprep.subr.bf16.mxu0 0
    %1356 = vmatpush1.bf16.msra.mxu0 0
    %1357 = vmatprep.subr.bf16.mxu0 0
    %1358 = vmatpush1.bf16.msra.mxu0 0
    %1359 = vmatprep.subr.bf16.mxu0 0
    %1360 = vmatpush1.bf16.msra.mxu0 0
    %1361 = vmatprep.subr.bf16.mxu0 0
    %1362 = vmatpush1.bf16.msra.mxu0 0
    %1363 = vmatprep.subr.bf16.mxu0 0
    %1364 = vmatpush1.bf16.msra.mxu0 0
    %1365 = vmatprep.subr.bf16.mxu0 0
    %1366 = vmatpush1.bf16.msra.mxu0 0
    %1367 = vmatprep.mubr.bf16.mxu0 0
    %1368 = vmatmul.mubr.bf16.gmra.mrb[0].mxu0 %v1330
    %v1369 = vpop.f32.mrb[0].mxu0
    %v1370 = vadd.f32 0.0, %v1369
    %v1371 = vpop.f32.mrb[0].mxu0
    %v1372 = vpop.f32.mrb[0].mxu0
    %v1373 = vpop.f32.mrb[0].mxu0
    %1374 = vdwg.mxu0
    %v1376 = vsel %vm1001, %v1096, 0
    %v1379 = vsel %vm1101, %v566, 0
    %1381 = vmatprep.subr.bf16.mxu0 0
    %1382 = vmatpush1.bf16.msra.mxu0 %v1379
    %1383 = vmatprep.subr.bf16.mxu0 0
    %1384 = vmatpush1.bf16.msra.mxu0 0
    %1385 = vmatprep.subr.bf16.mxu0 0
    %1386 = vmatpush1.bf16.msra.mxu0 0
    %1387 = vmatprep.subr.bf16.mxu0 0
    %1388 = vmatpush1.bf16.msra.mxu0 0
    %1389 = vmatprep.subr.bf16.mxu0 0
    %1390 = vmatpush1.bf16.msra.mxu0 0
    %1391 = vmatprep.subr.bf16.mxu0 0
    %1392 = vmatpush1.bf16.msra.mxu0 0
    %1393 = vmatprep.subr.bf16.mxu0 0
    %1394 = vmatpush1.bf16.msra.mxu0 0
    %1395 = vmatprep.subr.bf16.mxu0 0
    %1396 = vmatpush1.bf16.msra.mxu0 0
    %1397 = vmatprep.subr.bf16.mxu0 0
    %1398 = vmatpush1.bf16.msra.mxu0 0
    %1399 = vmatprep.subr.bf16.mxu0 0
    %1400 = vmatpush1.bf16.msra.mxu0 0
    %1401 = vmatprep.subr.bf16.mxu0 0
    %1402 = vmatpush1.bf16.msra.mxu0 0
    %1403 = vmatprep.subr.bf16.mxu0 0
    %1404 = vmatpush1.bf16.msra.mxu0 0
    %1405 = vmatprep.subr.bf16.mxu0 0
    %1406 = vmatpush1.bf16.msra.mxu0 0
    %1407 = vmatprep.subr.bf16.mxu0 0
    %1408 = vmatpush1.bf16.msra.mxu0 0
    %1409 = vmatprep.subr.bf16.mxu0 0
    %1410 = vmatpush1.bf16.msra.mxu0 0
    %1411 = vmatprep.subr.bf16.mxu0 0
    %1412 = vmatpush1.bf16.msra.mxu0 0
    %1413 = vmatprep.mubr.bf16.mxu0 0
    %1414 = vmatmul.mubr.bf16.gmra.mrb[0].mxu0 %v1376
    %v1415 = vpop.f32.mrb[0].mxu0
    %v1416 = vadd.f32 0.0, %v1415
    %v1417 = vpop.f32.mrb[0].mxu0
    %v1418 = vpop.f32.mrb[0].mxu0
    %v1419 = vpop.f32.mrb[0].mxu0
    %1420 = vdwg.mxu0
    %v1422 = vsel %vm1001, %v1097, 0
    %v1425 = vsel %vm1101, %v567, 0
    %1427 = vmatprep.subr.bf16.mxu0 0
    %1428 = vmatpush1.bf16.msra.mxu0 %v1425
    %1429 = vmatprep.subr.bf16.mxu0 0
    %1430 = vmatpush1.bf16.msra.mxu0 0
    %1431 = vmatprep.subr.bf16.mxu0 0
    %1432 = vmatpush1.bf16.msra.mxu0 0
    %1433 = vmatprep.subr.bf16.mxu0 0
    %1434 = vmatpush1.bf16.msra.mxu0 0
    %1435 = vmatprep.subr.bf16.mxu0 0
    %1436 = vmatpush1.bf16.msra.mxu0 0
    %1437 = vmatprep.subr.bf16.mxu0 0
    %1438 = vmatpush1.bf16.msra.mxu0 0
    %1439 = vmatprep.subr.bf16.mxu0 0
    %1440 = vmatpush1.bf16.msra.mxu0 0
    %1441 = vmatprep.subr.bf16.mxu0 0
    %1442 = vmatpush1.bf16.msra.mxu0 0
    %1443 = vmatprep.subr.bf16.mxu0 0
    %1444 = vmatpush1.bf16.msra.mxu0 0
    %1445 = vmatprep.subr.bf16.mxu0 0
    %1446 = vmatpush1.bf16.msra.mxu0 0
    %1447 = vmatprep.subr.bf16.mxu0 0
    %1448 = vmatpush1.bf16.msra.mxu0 0
    %1449 = vmatprep.subr.bf16.mxu0 0
    %1450 = vmatpush1.bf16.msra.mxu0 0
    %1451 = vmatprep.subr.bf16.mxu0 0
    %1452 = vmatpush1.bf16.msra.mxu0 0
    %1453 = vmatprep.subr.bf16.mxu0 0
    %1454 = vmatpush1.bf16.msra.mxu0 0
    %1455 = vmatprep.subr.bf16.mxu0 0
    %1456 = vmatpush1.bf16.msra.mxu0 0
    %1457 = vmatprep.subr.bf16.mxu0 0
    %1458 = vmatpush1.bf16.msra.mxu0 0
    %1459 = vmatprep.mubr.bf16.mxu0 0
    %1460 = vmatmul.mubr.bf16.gmra.mrb[0].mxu0 %v1422
    %v1461 = vpop.f32.mrb[0].mxu0
    %v1462 = vadd.f32 0.0, %v1461
    %v1463 = vpop.f32.mrb[0].mxu0
    %v1464 = vpop.f32.mrb[0].mxu0
    %v1465 = vpop.f32.mrb[0].mxu0
    %1466 = vdwg.mxu0
    %v1467 = vpack.c.bf16 %v1186, %v1140
    %v1468 = vpack.c.bf16 %v1278, %v1232
    %v1469 = vpack.c.bf16 %v1370, %v1324
    %v1470 = vpack.c.bf16 %v1462, %v1416
    %v1473 = vunpack.c.l.b16 %v271
    %v1474 = vunpack.c.l.b16 %v272
    %v1475 = vpack.c.b16 %v1474, %v1473
    %v1478 = vsel %vm568, %v1467, 0
    %v1481 = vsel %vm568, %v1468, 0
    %v1484 = vsel %vm568, %v1469, 0
    %v1487 = vsel %vm568, %v1470, 0
    %1489 = vmatprep.subr.bf16.mxu0 0
    %1490 = vmatpush1.bf16.msra.mxu0 %v1475
    %1491 = vmatprep.subr.bf16.mxu0 0
    %1492 = vmatpush1.bf16.msra.mxu0 0
    %1493 = vmatprep.subr.bf16.mxu0 0
    %1494 = vmatpush1.bf16.msra.mxu0 0
    %1495 = vmatprep.subr.bf16.mxu0 0
    %1496 = vmatpush1.bf16.msra.mxu0 0
    %1497 = vmatprep.subr.bf16.mxu0 0
    %1498 = vmatpush1.bf16.msra.mxu0 0
    %1499 = vmatprep.subr.bf16.mxu0 0
    %1500 = vmatpush1.bf16.msra.mxu0 0
    %1501 = vmatprep.subr.bf16.mxu0 0
    %1502 = vmatpush1.bf16.msra.mxu0 0
    %1503 = vmatprep.subr.bf16.mxu0 0
    %1504 = vmatpush1.bf16.msra.mxu0 0
    %1505 = vmatprep.subr.bf16.mxu0 0
    %1506 = vmatpush1.bf16.msra.mxu0 0
    %1507 = vmatprep.subr.bf16.mxu0 0
    %1508 = vmatpush1.bf16.msra.mxu0 0
    %1509 = vmatprep.subr.bf16.mxu0 0
    %1510 = vmatpush1.bf16.msra.mxu0 0
    %1511 = vmatprep.subr.bf16.mxu0 0
    %1512 = vmatpush1.bf16.msra.mxu0 0
    %1513 = vmatprep.subr.bf16.mxu0 0
    %1514 = vmatpush1.bf16.msra.mxu0 0
    %1515 = vmatprep.subr.bf16.mxu0 0
    %1516 = vmatpush1.bf16.msra.mxu0 0
    %1517 = vmatprep.subr.bf16.mxu0 0
    %1518 = vmatpush1.bf16.msra.mxu0 0
    %1519 = vmatprep.subr.bf16.mxu0 0
    %1520 = vmatpush1.bf16.msra.mxu0 0
    %1521 = vmatprep.mubr.bf16.mxu0 0
    %1522 = vmatmul.mubr.bf16.gmra.mrb[0].mxu0 %v1478
    %v1523 = vpop.f32.mrb[0].mxu0
    %v1524 = vadd.f32 0.0, %v1523
    %v1525 = vpop.f32.mrb[0].mxu0
    %v1526 = vpop.f32.mrb[0].mxu0
    %v1527 = vadd.f32 0.0, %v1526
    %v1528 = vpop.f32.mrb[0].mxu0
    %1529 = vmatprep.mubr.bf16.mxu0 0
    %1530 = vmatmul.mubr.bf16.gmra.mrb[0].mxu0 %v1481
    %v1531 = vpop.f32.mrb[0].mxu0
    %v1532 = vadd.f32 0.0, %v1531
    %v1533 = vpop.f32.mrb[0].mxu0
    %v1534 = vpop.f32.mrb[0].mxu0
    %v1535 = vadd.f32 0.0, %v1534
    %v1536 = vpop.f32.mrb[0].mxu0
    %1537 = vmatprep.mubr.bf16.mxu0 0
    %1538 = vmatmul.mubr.bf16.gmra.mrb[0].mxu0 %v1484
    %v1539 = vpop.f32.mrb[0].mxu0
    %v1540 = vadd.f32 0.0, %v1539
    %v1541 = vpop.f32.mrb[0].mxu0
    %v1542 = vpop.f32.mrb[0].mxu0
    %v1543 = vadd.f32 0.0, %v1542
    %v1544 = vpop.f32.mrb[0].mxu0
    %1545 = vmatprep.mubr.bf16.mxu0 0
    %1546 = vmatmul.mubr.bf16.gmra.mrb[0].mxu0 %v1487
    %v1547 = vpop.f32.mrb[0].mxu0
    %v1548 = vadd.f32 0.0, %v1547
    %v1549 = vpop.f32.mrb[0].mxu0
    %v1550 = vpop.f32.mrb[0].mxu0
    %v1551 = vadd.f32 0.0, %v1550
    %v1552 = vpop.f32.mrb[0].mxu0
    %1553 = vdwg.mxu0
    %v1554 = vadd.f32 %v282, %v1524
    %v1555 = vadd.f32 %v282, %v1527
    %v1556 = vadd.f32 %v282, %v1532
    %v1557 = vadd.f32 %v282, %v1535
    %v1558 = vadd.f32 %v282, %v1540
    %v1559 = vadd.f32 %v282, %v1543
    %v1560 = vadd.f32 %v282, %v1548
    %v1561 = vadd.f32 %v282, %v1551
    %v1563 = vlaneseq
    %v1564 = vshrl.u32 %v1563, 7
    %v1565 = vsub.s32 0, %v1564
    %v1566 = vrot.slane %v250, %v1565
    %v1572 = vunpack.c.l.b16 %v245
    %v1573 = vunpack.c.l.b16 %v246
    %v1574 = vunpack.c.l.b16 %v247
    %v1575 = vunpack.c.l.b16 %v248
    %v1576 = vpack.c.b16 %v1573, %v1572
    %v1577 = vpack.c.b16 %v1575, %v1574
    %1580 = vmatprep.subr.bf16.mxu0 0
    %1581 = vmatpush1.bf16.msra.mxu0 %v1576
    %1582 = vmatprep.subr.bf16.mxu0 0
    %1583 = vmatpush1.bf16.msra.mxu0 %v1577
    %1584 = vmatprep.subr.bf16.mxu0 0
    %1585 = vmatpush1.bf16.msra.mxu0 0
    %1586 = vmatprep.subr.bf16.mxu0 0
    %1587 = vmatpush1.bf16.msra.mxu0 0
    %1588 = vmatprep.subr.bf16.mxu0 0
    %1589 = vmatpush1.bf16.msra.mxu0 0
    %1590 = vmatprep.subr.bf16.mxu0 0
    %1591 = vmatpush1.bf16.msra.mxu0 0
    %1592 = vmatprep.subr.bf16.mxu0 0
    %1593 = vmatpush1.bf16.msra.mxu0 0
    %1594 = vmatprep.subr.bf16.mxu0 0
    %1595 = vmatpush1.bf16.msra.mxu0 0
    %1596 = vmatprep.subr.bf16.mxu0 0
    %1597 = vmatpush1.bf16.msra.mxu0 0
    %1598 = vmatprep.subr.bf16.mxu0 0
    %1599 = vmatpush1.bf16.msra.mxu0 0
    %1600 = vmatprep.subr.bf16.mxu0 0
    %1601 = vmatpush1.bf16.msra.mxu0 0
    %1602 = vmatprep.subr.bf16.mxu0 0
    %1603 = vmatpush1.bf16.msra.mxu0 0
    %1604 = vmatprep.subr.bf16.mxu0 0
    %1605 = vmatpush1.bf16.msra.mxu0 0
    %1606 = vmatprep.subr.bf16.mxu0 0
    %1607 = vmatpush1.bf16.msra.mxu0 0
    %1608 = vmatprep.subr.bf16.mxu0 0
    %1609 = vmatpush1.bf16.msra.mxu0 0
    %1610 = vmatprep.subr.bf16.mxu0 0
    %1611 = vmatpush1.bf16.msra.mxu0 0
    %1612 = vmatprep.mubr.bf16.mxu0 0
    %1613 = vmatmul.mubr.bf16.gmra.mrb[0].mxu0 %v302
    %v1614 = vpop.f32.mrb[0].mxu0
    %v1615 = vadd.f32 %v1566, %v1614
    %v1616 = vpop.f32.mrb[0].mxu0
    %v1617 = vpop.f32.mrb[0].mxu0
    %v1618 = vadd.f32 %v1566, %v1617
    %v1619 = vpop.f32.mrb[0].mxu0
    %1620 = vmatprep.mubr.bf16.mxu0 0
    %1621 = vmatmul.mubr.bf16.gmra.mrb[0].mxu0 %v305
    %v1622 = vpop.f32.mrb[0].mxu0
    %v1623 = vadd.f32 %v1566, %v1622
    %v1624 = vpop.f32.mrb[0].mxu0
    %v1625 = vpop.f32.mrb[0].mxu0
    %v1626 = vadd.f32 %v1566, %v1625
    %v1627 = vpop.f32.mrb[0].mxu0
    %1628 = vmatprep.mubr.bf16.mxu0 0
    %1629 = vmatmul.mubr.bf16.gmra.mrb[0].mxu0 %v308
    %v1630 = vpop.f32.mrb[0].mxu0
    %v1631 = vadd.f32 %v1566, %v1630
    %v1632 = vpop.f32.mrb[0].mxu0
    %v1633 = vpop.f32.mrb[0].mxu0
    %v1634 = vadd.f32 %v1566, %v1633
    %v1635 = vpop.f32.mrb[0].mxu0
    %1636 = vmatprep.mubr.bf16.mxu0 0
    %1637 = vmatmul.mubr.bf16.gmra.mrb[0].mxu0 %v311
    %v1638 = vpop.f32.mrb[0].mxu0
    %v1639 = vadd.f32 %v1566, %v1638
    %v1640 = vpop.f32.mrb[0].mxu0
    %v1641 = vpop.f32.mrb[0].mxu0
    %v1642 = vadd.f32 %v1566, %v1641
    %v1643 = vpop.f32.mrb[0].mxu0
    %1644 = vdwg.mxu0
    %v1646 = vlaneseq
    %v1647 = vshrl.u32 %v1646, 7
    %v1648 = vsub.s32 0, %v1647
    %v1649 = vrot.slane %v260, %v1648
    %v1655 = vunpack.c.l.b16 %v255
    %v1656 = vunpack.c.l.b16 %v256
    %v1657 = vunpack.c.l.b16 %v257
    %v1658 = vunpack.c.l.b16 %v258
    %v1659 = vpack.c.b16 %v1656, %v1655
    %v1660 = vpack.c.b16 %v1658, %v1657
    %1663 = vmatprep.subr.bf16.mxu0 0
    %1664 = vmatpush1.bf16.msra.mxu0 %v1659
    %1665 = vmatprep.subr.bf16.mxu0 0
    %1666 = vmatpush1.bf16.msra.mxu0 %v1660
    %1667 = vmatprep.subr.bf16.mxu0 0
    %1668 = vmatpush1.bf16.msra.mxu0 0
    %1669 = vmatprep.subr.bf16.mxu0 0
    %1670 = vmatpush1.bf16.msra.mxu0 0
    %1671 = vmatprep.subr.bf16.mxu0 0
    %1672 = vmatpush1.bf16.msra.mxu0 0
    %1673 = vmatprep.subr.bf16.mxu0 0
    %1674 = vmatpush1.bf16.msra.mxu0 0
    %1675 = vmatprep.subr.bf16.mxu0 0
    %1676 = vmatpush1.bf16.msra.mxu0 0
    %1677 = vmatprep.subr.bf16.mxu0 0
    %1678 = vmatpush1.bf16.msra.mxu0 0
    %1679 = vmatprep.subr.bf16.mxu0 0
    %1680 = vmatpush1.bf16.msra.mxu0 0
    %1681 = vmatprep.subr.bf16.mxu0 0
    %1682 = vmatpush1.bf16.msra.mxu0 0
    %1683 = vmatprep.subr.bf16.mxu0 0
    %1684 = vmatpush1.bf16.msra.mxu0 0
    %1685 = vmatprep.subr.bf16.mxu0 0
    %1686 = vmatpush1.bf16.msra.mxu0 0
    %1687 = vmatprep.subr.bf16.mxu0 0
    %1688 = vmatpush1.bf16.msra.mxu0 0
    %1689 = vmatprep.subr.bf16.mxu0 0
    %1690 = vmatpush1.bf16.msra.mxu0 0
    %1691 = vmatprep.subr.bf16.mxu0 0
    %1692 = vmatpush1.bf16.msra.mxu0 0
    %1693 = vmatprep.subr.bf16.mxu0 0
    %1694 = vmatpush1.bf16.msra.mxu0 0
    %1695 = vmatprep.mubr.bf16.mxu0 0
    %1696 = vmatmul.mubr.bf16.gmra.mrb[0].mxu0 %v302
    %v1697 = vpop.f32.mrb[0].mxu0
    %v1698 = vadd.f32 %v1649, %v1697
    %v1699 = vpop.f32.mrb[0].mxu0
    %v1700 = vpop.f32.mrb[0].mxu0
    %v1701 = vadd.f32 %v1649, %v1700
    %v1702 = vpop.f32.mrb[0].mxu0
    %1703 = vmatprep.mubr.bf16.mxu0 0
    %1704 = vmatmul.mubr.bf16.gmra.mrb[0].mxu0 %v305
    %v1705 = vpop.f32.mrb[0].mxu0
    %v1706 = vadd.f32 %v1649, %v1705
    %v1707 = vpop.f32.mrb[0].mxu0
    %v1708 = vpop.f32.mrb[0].mxu0
    %v1709 = vadd.f32 %v1649, %v1708
    %v1710 = vpop.f32.mrb[0].mxu0
    %1711 = vmatprep.mubr.bf16.mxu0 0
    %1712 = vmatmul.mubr.bf16.gmra.mrb[0].mxu0 %v308
    %v1713 = vpop.f32.mrb[0].mxu0
    %v1714 = vadd.f32 %v1649, %v1713
    %v1715 = vpop.f32.mrb[0].mxu0
    %v1716 = vpop.f32.mrb[0].mxu0
    %v1717 = vadd.f32 %v1649, %v1716
    %v1718 = vpop.f32.mrb[0].mxu0
    %1719 = vmatprep.mubr.bf16.mxu0 0
    %1720 = vmatmul.mubr.bf16.gmra.mrb[0].mxu0 %v311
    %v1721 = vpop.f32.mrb[0].mxu0
    %v1722 = vadd.f32 %v1649, %v1721
    %v1723 = vpop.f32.mrb[0].mxu0
    %v1724 = vpop.f32.mrb[0].mxu0
    %v1725 = vadd.f32 %v1649, %v1724
    %v1726 = vpop.f32.mrb[0].mxu0
    %1727 = vdwg.mxu0
    %v1729 = vlaneseq
    %v1730 = vshrl.u32 %v1729, 7
    %v1731 = vsub.s32 0, %v1730
    %v1732 = vrot.slane %v270, %v1731
    %v1738 = vunpack.c.l.b16 %v265
    %v1739 = vunpack.c.l.b16 %v266
    %v1740 = vunpack.c.l.b16 %v267
    %v1741 = vunpack.c.l.b16 %v268
    %v1742 = vpack.c.b16 %v1739, %v1738
    %v1743 = vpack.c.b16 %v1741, %v1740
    %1746 = vmatprep.subr.bf16.mxu0 0
    %1747 = vmatpush1.bf16.msra.mxu0 %v1742
    %1748 = vmatprep.subr.bf16.mxu0 0
    %1749 = vmatpush1.bf16.msra.mxu0 %v1743
    %1750 = vmatprep.subr.bf16.mxu0 0
    %1751 = vmatpush1.bf16.msra.mxu0 0
    %1752 = vmatprep.subr.bf16.mxu0 0
    %1753 = vmatpush1.bf16.msra.mxu0 0
    %1754 = vmatprep.subr.bf16.mxu0 0
    %1755 = vmatpush1.bf16.msra.mxu0 0
    %1756 = vmatprep.subr.bf16.mxu0 0
    %1757 = vmatpush1.bf16.msra.mxu0 0
    %1758 = vmatprep.subr.bf16.mxu0 0
    %1759 = vmatpush1.bf16.msra.mxu0 0
    %1760 = vmatprep.subr.bf16.mxu0 0
    %1761 = vmatpush1.bf16.msra.mxu0 0
    %1762 = vmatprep.subr.bf16.mxu0 0
    %1763 = vmatpush1.bf16.msra.mxu0 0
    %1764 = vmatprep.subr.bf16.mxu0 0
    %1765 = vmatpush1.bf16.msra.mxu0 0
    %1766 = vmatprep.subr.bf16.mxu0 0
    %1767 = vmatpush1.bf16.msra.mxu0 0
    %1768 = vmatprep.subr.bf16.mxu0 0
    %1769 = vmatpush1.bf16.msra.mxu0 0
    %1770 = vmatprep.subr.bf16.mxu0 0
    %1771 = vmatpush1.bf16.msra.mxu0 0
    %1772 = vmatprep.subr.bf16.mxu0 0
    %1773 = vmatpush1.bf16.msra.mxu0 0
    %1774 = vmatprep.subr.bf16.mxu0 0
    %1775 = vmatpush1.bf16.msra.mxu0 0
    %1776 = vmatprep.subr.bf16.mxu0 0
    %1777 = vmatpush1.bf16.msra.mxu0 0
    %1778 = vmatprep.mubr.bf16.mxu0 0
    %1779 = vmatmul.mubr.bf16.gmra.mrb[0].mxu0 %v302
    %v1780 = vpop.f32.mrb[0].mxu0
    %v1781 = vadd.f32 %v1732, %v1780
    %v1782 = vpop.f32.mrb[0].mxu0
    %v1783 = vpop.f32.mrb[0].mxu0
    %v1784 = vadd.f32 %v1732, %v1783
    %v1785 = vpop.f32.mrb[0].mxu0
    %1786 = vmatprep.mubr.bf16.mxu0 0
    %1787 = vmatmul.mubr.bf16.gmra.mrb[0].mxu0 %v305
    %v1788 = vpop.f32.mrb[0].mxu0
    %v1789 = vadd.f32 %v1732, %v1788
    %v1790 = vpop.f32.mrb[0].mxu0
    %v1791 = vpop.f32.mrb[0].mxu0
    %v1792 = vadd.f32 %v1732, %v1791
    %v1793 = vpop.f32.mrb[0].mxu0
    %1794 = vmatprep.mubr.bf16.mxu0 0
    %1795 = vmatmul.mubr.bf16.gmra.mrb[0].mxu0 %v308
    %v1796 = vpop.f32.mrb[0].mxu0
    %v1797 = vadd.f32 %v1732, %v1796
    %v1798 = vpop.f32.mrb[0].mxu0
    %v1799 = vpop.f32.mrb[0].mxu0
    %v1800 = vadd.f32 %v1732, %v1799
    %v1801 = vpop.f32.mrb[0].mxu0
    %1802 = vmatprep.mubr.bf16.mxu0 0
    %1803 = vmatmul.mubr.bf16.gmra.mrb[0].mxu0 %v311
    %v1804 = vpop.f32.mrb[0].mxu0
    %v1805 = vadd.f32 %v1732, %v1804
    %v1806 = vpop.f32.mrb[0].mxu0
    %v1807 = vpop.f32.mrb[0].mxu0
    %v1808 = vadd.f32 %v1732, %v1807
    %v1809 = vpop.f32.mrb[0].mxu0
    %1810 = vdwg.mxu0
    %v1811 = vpack.c.bf16 %v1615, %v1615
    %v1812 = vpack.c.bf16 %v1618, %v1618
    %v1813 = vpack.c.bf16 %v1623, %v1623
    %v1814 = vpack.c.bf16 %v1626, %v1626
    %v1815 = vpack.c.bf16 %v1631, %v1631
    %v1816 = vpack.c.bf16 %v1634, %v1634
    %v1817 = vpack.c.bf16 %v1639, %v1639
    %v1818 = vpack.c.bf16 %v1642, %v1642
    %v1819 = vpack.c.bf16 %v1698, %v1698
    %v1820 = vpack.c.bf16 %v1701, %v1701
    %v1821 = vpack.c.bf16 %v1706, %v1706
    %v1822 = vpack.c.bf16 %v1709, %v1709
    %v1823 = vpack.c.bf16 %v1714, %v1714
    %v1824 = vpack.c.bf16 %v1717, %v1717
    %v1825 = vpack.c.bf16 %v1722, %v1722
    %v1826 = vpack.c.bf16 %v1725, %v1725
    %v1827 = vpack.c.bf16 %v1781, %v1781
    %v1828 = vpack.c.bf16 %v1784, %v1784
    %v1829 = vpack.c.bf16 %v1789, %v1789
    %v1830 = vpack.c.bf16 %v1792, %v1792
    %v1831 = vpack.c.bf16 %v1797, %v1797
    %v1832 = vpack.c.bf16 %v1800, %v1800
    %v1833 = vpack.c.bf16 %v1805, %v1805
    %v1834 = vpack.c.bf16 %v1808, %v1808
    %v1836 = vsel %vm568, %v1811, 0
    %v1839 = vsel %vm568, %v1819, 0
    %1841 = vmatprep.subr.bf16.mxu0 0
    %1842 = vmatpush1.bf16.xpose.msra.mxu0 %v1839
    %1843 = vmatprep.subr.bf16.mxu0 0
    %1844 = vmatpush1.bf16.xpose.msra.mxu0 0
    %1845 = vmatprep.subr.bf16.mxu0 0
    %1846 = vmatpush1.bf16.xpose.msra.mxu0 0
    %1847 = vmatprep.subr.bf16.mxu0 0
    %1848 = vmatpush1.bf16.xpose.msra.mxu0 0
    %1849 = vmatprep.subr.bf16.mxu0 0
    %1850 = vmatpush1.bf16.xpose.msra.mxu0 0
    %1851 = vmatprep.subr.bf16.mxu0 0
    %1852 = vmatpush1.bf16.xpose.msra.mxu0 0
    %1853 = vmatprep.subr.bf16.mxu0 0
    %1854 = vmatpush1.bf16.xpose.msra.mxu0 0
    %1855 = vmatprep.subr.bf16.mxu0 0
    %1856 = vmatpush1.bf16.xpose.msra.mxu0 0
    %1857 = vmatprep.subr.bf16.mxu0 0
    %1858 = vmatpush1.bf16.xpose.msra.mxu0 0
    %1859 = vmatprep.subr.bf16.mxu0 0
    %1860 = vmatpush1.bf16.xpose.msra.mxu0 0
    %1861 = vmatprep.subr.bf16.mxu0 0
    %1862 = vmatpush1.bf16.xpose.msra.mxu0 0
    %1863 = vmatprep.subr.bf16.mxu0 0
    %1864 = vmatpush1.bf16.xpose.msra.mxu0 0
    %1865 = vmatprep.subr.bf16.mxu0 0
    %1866 = vmatpush1.bf16.xpose.msra.mxu0 0
    %1867 = vmatprep.subr.bf16.mxu0 0
    %1868 = vmatpush1.bf16.xpose.msra.mxu0 0
    %1869 = vmatprep.subr.bf16.mxu0 0
    %1870 = vmatpush1.bf16.xpose.msra.mxu0 0
    %1871 = vmatprep.subr.bf16.mxu0 0
    %1872 = vmatpush1.bf16.xpose.msra.mxu0 0
    %1873 = vmatprep.mubr.bf16.mxu0 0
    %1874 = vmatmul.mubr.bf16.gmra.mrb[0].mxu0 %v1836
    %v1875 = vpop.f32.mrb[0].mxu0
    %v1876 = vadd.f32 0.0, %v1875
    %v1877 = vpop.f32.mrb[0].mxu0
    %v1878 = vpop.f32.mrb[0].mxu0
    %v1879 = vpop.f32.mrb[0].mxu0
    %1880 = vdwg.mxu0
    %v1882 = vsel %vm568, %v1812, 0
    %v1885 = vsel %vm568, %v1820, 0
    %1887 = vmatprep.subr.bf16.mxu0 0
    %1888 = vmatpush1.bf16.xpose.msra.mxu0 %v1885
    %1889 = vmatprep.subr.bf16.mxu0 0
    %1890 = vmatpush1.bf16.xpose.msra.mxu0 0
    %1891 = vmatprep.subr.bf16.mxu0 0
    %1892 = vmatpush1.bf16.xpose.msra.mxu0 0
    %1893 = vmatprep.subr.bf16.mxu0 0
    %1894 = vmatpush1.bf16.xpose.msra.mxu0 0
    %1895 = vmatprep.subr.bf16.mxu0 0
    %1896 = vmatpush1.bf16.xpose.msra.mxu0 0
    %1897 = vmatprep.subr.bf16.mxu0 0
    %1898 = vmatpush1.bf16.xpose.msra.mxu0 0
    %1899 = vmatprep.subr.bf16.mxu0 0
    %1900 = vmatpush1.bf16.xpose.msra.mxu0 0
    %1901 = vmatprep.subr.bf16.mxu0 0
    %1902 = vmatpush1.bf16.xpose.msra.mxu0 0
    %1903 = vmatprep.subr.bf16.mxu0 0
    %1904 = vmatpush1.bf16.xpose.msra.mxu0 0
    %1905 = vmatprep.subr.bf16.mxu0 0
    %1906 = vmatpush1.bf16.xpose.msra.mxu0 0
    %1907 = vmatprep.subr.bf16.mxu0 0
    %1908 = vmatpush1.bf16.xpose.msra.mxu0 0
    %1909 = vmatprep.subr.bf16.mxu0 0
    %1910 = vmatpush1.bf16.xpose.msra.mxu0 0
    %1911 = vmatprep.subr.bf16.mxu0 0
    %1912 = vmatpush1.bf16.xpose.msra.mxu0 0
    %1913 = vmatprep.subr.bf16.mxu0 0
    %1914 = vmatpush1.bf16.xpose.msra.mxu0 0
    %1915 = vmatprep.subr.bf16.mxu0 0
    %1916 = vmatpush1.bf16.xpose.msra.mxu0 0
    %1917 = vmatprep.subr.bf16.mxu0 0
    %1918 = vmatpush1.bf16.xpose.msra.mxu0 0
    %1919 = vmatprep.mubr.bf16.mxu0 0
    %1920 = vmatmul.mubr.bf16.gmra.mrb[0].mxu0 %v1882
    %v1921 = vpop.f32.mrb[0].mxu0
    %v1922 = vadd.f32 0.0, %v1921
    %v1923 = vpop.f32.mrb[0].mxu0
    %v1924 = vpop.f32.mrb[0].mxu0
    %v1925 = vpop.f32.mrb[0].mxu0
    %1926 = vdwg.mxu0
    %v1928 = vsel %vm568, %v1813, 0
    %v1931 = vsel %vm568, %v1821, 0
    %1933 = vmatprep.subr.bf16.mxu0 0
    %1934 = vmatpush1.bf16.xpose.msra.mxu0 %v1931
    %1935 = vmatprep.subr.bf16.mxu0 0
    %1936 = vmatpush1.bf16.xpose.msra.mxu0 0
    %1937 = vmatprep.subr.bf16.mxu0 0
    %1938 = vmatpush1.bf16.xpose.msra.mxu0 0
    %1939 = vmatprep.subr.bf16.mxu0 0
    %1940 = vmatpush1.bf16.xpose.msra.mxu0 0
    %1941 = vmatprep.subr.bf16.mxu0 0
    %1942 = vmatpush1.bf16.xpose.msra.mxu0 0
    %1943 = vmatprep.subr.bf16.mxu0 0
    %1944 = vmatpush1.bf16.xpose.msra.mxu0 0
    %1945 = vmatprep.subr.bf16.mxu0 0
    %1946 = vmatpush1.bf16.xpose.msra.mxu0 0
    %1947 = vmatprep.subr.bf16.mxu0 0
    %1948 = vmatpush1.bf16.xpose.msra.mxu0 0
    %1949 = vmatprep.subr.bf16.mxu0 0
    %1950 = vmatpush1.bf16.xpose.msra.mxu0 0
    %1951 = vmatprep.subr.bf16.mxu0 0
    %1952 = vmatpush1.bf16.xpose.msra.mxu0 0
    %1953 = vmatprep.subr.bf16.mxu0 0
    %1954 = vmatpush1.bf16.xpose.msra.mxu0 0
    %1955 = vmatprep.subr.bf16.mxu0 0
    %1956 = vmatpush1.bf16.xpose.msra.mxu0 0
    %1957 = vmatprep.subr.bf16.mxu0 0
    %1958 = vmatpush1.bf16.xpose.msra.mxu0 0
    %1959 = vmatprep.subr.bf16.mxu0 0
    %1960 = vmatpush1.bf16.xpose.msra.mxu0 0
    %1961 = vmatprep.subr.bf16.mxu0 0
    %1962 = vmatpush1.bf16.xpose.msra.mxu0 0
    %1963 = vmatprep.subr.bf16.mxu0 0
    %1964 = vmatpush1.bf16.xpose.msra.mxu0 0
    %1965 = vmatprep.mubr.bf16.mxu0 0
    %1966 = vmatmul.mubr.bf16.gmra.mrb[0].mxu0 %v1928
    %v1967 = vpop.f32.mrb[0].mxu0
    %v1968 = vadd.f32 0.0, %v1967
    %v1969 = vpop.f32.mrb[0].mxu0
    %v1970 = vpop.f32.mrb[0].mxu0
    %v1971 = vpop.f32.mrb[0].mxu0
    %1972 = vdwg.mxu0
    %v1974 = vsel %vm568, %v1814, 0
    %v1977 = vsel %vm568, %v1822, 0
    %1979 = vmatprep.subr.bf16.mxu0 0
    %1980 = vmatpush1.bf16.xpose.msra.mxu0 %v1977
    %1981 = vmatprep.subr.bf16.mxu0 0
    %1982 = vmatpush1.bf16.xpose.msra.mxu0 0
    %1983 = vmatprep.subr.bf16.mxu0 0
    %1984 = vmatpush1.bf16.xpose.msra.mxu0 0
    %1985 = vmatprep.subr.bf16.mxu0 0
    %1986 = vmatpush1.bf16.xpose.msra.mxu0 0
    %1987 = vmatprep.subr.bf16.mxu0 0
    %1988 = vmatpush1.bf16.xpose.msra.mxu0 0
    %1989 = vmatprep.subr.bf16.mxu0 0
    %1990 = vmatpush1.bf16.xpose.msra.mxu0 0
    %1991 = vmatprep.subr.bf16.mxu0 0
    %1992 = vmatpush1.bf16.xpose.msra.mxu0 0
    %1993 = vmatprep.subr.bf16.mxu0 0
    %1994 = vmatpush1.bf16.xpose.msra.mxu0 0
    %1995 = vmatprep.subr.bf16.mxu0 0
    %1996 = vmatpush1.bf16.xpose.msra.mxu0 0
    %1997 = vmatprep.subr.bf16.mxu0 0
    %1998 = vmatpush1.bf16.xpose.msra.mxu0 0
    %1999 = vmatprep.subr.bf16.mxu0 0
    %2000 = vmatpush1.bf16.xpose.msra.mxu0 0
    %2001 = vmatprep.subr.bf16.mxu0 0
    %2002 = vmatpush1.bf16.xpose.msra.mxu0 0
    %2003 = vmatprep.subr.bf16.mxu0 0
    %2004 = vmatpush1.bf16.xpose.msra.mxu0 0
    %2005 = vmatprep.subr.bf16.mxu0 0
    %2006 = vmatpush1.bf16.xpose.msra.mxu0 0
    %2007 = vmatprep.subr.bf16.mxu0 0
    %2008 = vmatpush1.bf16.xpose.msra.mxu0 0
    %2009 = vmatprep.subr.bf16.mxu0 0
    %2010 = vmatpush1.bf16.xpose.msra.mxu0 0
    %2011 = vmatprep.mubr.bf16.mxu0 0
    %2012 = vmatmul.mubr.bf16.gmra.mrb[0].mxu0 %v1974
    %v2013 = vpop.f32.mrb[0].mxu0
    %v2014 = vadd.f32 0.0, %v2013
    %v2015 = vpop.f32.mrb[0].mxu0
    %v2016 = vpop.f32.mrb[0].mxu0
    %v2017 = vpop.f32.mrb[0].mxu0
    %2018 = vdwg.mxu0
    %v2020 = vsel %vm568, %v1815, 0
    %v2023 = vsel %vm568, %v1823, 0
    %2025 = vmatprep.subr.bf16.mxu0 0
    %2026 = vmatpush1.bf16.xpose.msra.mxu0 %v2023
    %2027 = vmatprep.subr.bf16.mxu0 0
    %2028 = vmatpush1.bf16.xpose.msra.mxu0 0
    %2029 = vmatprep.subr.bf16.mxu0 0
    %2030 = vmatpush1.bf16.xpose.msra.mxu0 0
    %2031 = vmatprep.subr.bf16.mxu0 0
    %2032 = vmatpush1.bf16.xpose.msra.mxu0 0
    %2033 = vmatprep.subr.bf16.mxu0 0
    %2034 = vmatpush1.bf16.xpose.msra.mxu0 0
    %2035 = vmatprep.subr.bf16.mxu0 0
    %2036 = vmatpush1.bf16.xpose.msra.mxu0 0
    %2037 = vmatprep.subr.bf16.mxu0 0
    %2038 = vmatpush1.bf16.xpose.msra.mxu0 0
    %2039 = vmatprep.subr.bf16.mxu0 0
    %2040 = vmatpush1.bf16.xpose.msra.mxu0 0
    %2041 = vmatprep.subr.bf16.mxu0 0
    %2042 = vmatpush1.bf16.xpose.msra.mxu0 0
    %2043 = vmatprep.subr.bf16.mxu0 0
    %2044 = vmatpush1.bf16.xpose.msra.mxu0 0
    %2045 = vmatprep.subr.bf16.mxu0 0
    %2046 = vmatpush1.bf16.xpose.msra.mxu0 0
    %2047 = vmatprep.subr.bf16.mxu0 0
    %2048 = vmatpush1.bf16.xpose.msra.mxu0 0
    %2049 = vmatprep.subr.bf16.mxu0 0
    %2050 = vmatpush1.bf16.xpose.msra.mxu0 0
    %2051 = vmatprep.subr.bf16.mxu0 0
    %2052 = vmatpush1.bf16.xpose.msra.mxu0 0
    %2053 = vmatprep.subr.bf16.mxu0 0
    %2054 = vmatpush1.bf16.xpose.msra.mxu0 0
    %2055 = vmatprep.subr.bf16.mxu0 0
    %2056 = vmatpush1.bf16.xpose.msra.mxu0 0
    %2057 = vmatprep.mubr.bf16.mxu0 0
    %2058 = vmatmul.mubr.bf16.gmra.mrb[0].mxu0 %v2020
    %v2059 = vpop.f32.mrb[0].mxu0
    %v2060 = vadd.f32 0.0, %v2059
    %v2061 = vpop.f32.mrb[0].mxu0
    %v2062 = vpop.f32.mrb[0].mxu0
    %v2063 = vpop.f32.mrb[0].mxu0
    %2064 = vdwg.mxu0
    %v2066 = vsel %vm568, %v1816, 0
    %v2069 = vsel %vm568, %v1824, 0
    %2071 = vmatprep.subr.bf16.mxu0 0
    %2072 = vmatpush1.bf16.xpose.msra.mxu0 %v2069
    %2073 = vmatprep.subr.bf16.mxu0 0
    %2074 = vmatpush1.bf16.xpose.msra.mxu0 0
    %2075 = vmatprep.subr.bf16.mxu0 0
    %2076 = vmatpush1.bf16.xpose.msra.mxu0 0
    %2077 = vmatprep.subr.bf16.mxu0 0
    %2078 = vmatpush1.bf16.xpose.msra.mxu0 0
    %2079 = vmatprep.subr.bf16.mxu0 0
    %2080 = vmatpush1.bf16.xpose.msra.mxu0 0
    %2081 = vmatprep.subr.bf16.mxu0 0
    %2082 = vmatpush1.bf16.xpose.msra.mxu0 0
    %2083 = vmatprep.subr.bf16.mxu0 0
    %2084 = vmatpush1.bf16.xpose.msra.mxu0 0
    %2085 = vmatprep.subr.bf16.mxu0 0
    %2086 = vmatpush1.bf16.xpose.msra.mxu0 0
    %2087 = vmatprep.subr.bf16.mxu0 0
    %2088 = vmatpush1.bf16.xpose.msra.mxu0 0
    %2089 = vmatprep.subr.bf16.mxu0 0
    %2090 = vmatpush1.bf16.xpose.msra.mxu0 0
    %2091 = vmatprep.subr.bf16.mxu0 0
    %2092 = vmatpush1.bf16.xpose.msra.mxu0 0
    %2093 = vmatprep.subr.bf16.mxu0 0
    %2094 = vmatpush1.bf16.xpose.msra.mxu0 0
    %2095 = vmatprep.subr.bf16.mxu0 0
    %2096 = vmatpush1.bf16.xpose.msra.mxu0 0
    %2097 = vmatprep.subr.bf16.mxu0 0
    %2098 = vmatpush1.bf16.xpose.msra.mxu0 0
    %2099 = vmatprep.subr.bf16.mxu0 0
    %2100 = vmatpush1.bf16.xpose.msra.mxu0 0
    %2101 = vmatprep.subr.bf16.mxu0 0
    %2102 = vmatpush1.bf16.xpose.msra.mxu0 0
    %2103 = vmatprep.mubr.bf16.mxu0 0
    %2104 = vmatmul.mubr.bf16.gmra.mrb[0].mxu0 %v2066
    %v2105 = vpop.f32.mrb[0].mxu0
    %v2106 = vadd.f32 0.0, %v2105
    %v2107 = vpop.f32.mrb[0].mxu0
    %v2108 = vpop.f32.mrb[0].mxu0
    %v2109 = vpop.f32.mrb[0].mxu0
    %2110 = vdwg.mxu0
    %v2112 = vsel %vm568, %v1817, 0
    %v2115 = vsel %vm568, %v1825, 0
    %2117 = vmatprep.subr.bf16.mxu0 0
    %2118 = vmatpush1.bf16.xpose.msra.mxu0 %v2115
    %2119 = vmatprep.subr.bf16.mxu0 0
    %2120 = vmatpush1.bf16.xpose.msra.mxu0 0
    %2121 = vmatprep.subr.bf16.mxu0 0
    %2122 = vmatpush1.bf16.xpose.msra.mxu0 0
    %2123 = vmatprep.subr.bf16.mxu0 0
    %2124 = vmatpush1.bf16.xpose.msra.mxu0 0
    %2125 = vmatprep.subr.bf16.mxu0 0
    %2126 = vmatpush1.bf16.xpose.msra.mxu0 0
    %2127 = vmatprep.subr.bf16.mxu0 0
    %2128 = vmatpush1.bf16.xpose.msra.mxu0 0
    %2129 = vmatprep.subr.bf16.mxu0 0
    %2130 = vmatpush1.bf16.xpose.msra.mxu0 0
    %2131 = vmatprep.subr.bf16.mxu0 0
    %2132 = vmatpush1.bf16.xpose.msra.mxu0 0
    %2133 = vmatprep.subr.bf16.mxu0 0
    %2134 = vmatpush1.bf16.xpose.msra.mxu0 0
    %2135 = vmatprep.subr.bf16.mxu0 0
    %2136 = vmatpush1.bf16.xpose.msra.mxu0 0
    %2137 = vmatprep.subr.bf16.mxu0 0
    %2138 = vmatpush1.bf16.xpose.msra.mxu0 0
    %2139 = vmatprep.subr.bf16.mxu0 0
    %2140 = vmatpush1.bf16.xpose.msra.mxu0 0
    %2141 = vmatprep.subr.bf16.mxu0 0
    %2142 = vmatpush1.bf16.xpose.msra.mxu0 0
    %2143 = vmatprep.subr.bf16.mxu0 0
    %2144 = vmatpush1.bf16.xpose.msra.mxu0 0
    %2145 = vmatprep.subr.bf16.mxu0 0
    %2146 = vmatpush1.bf16.xpose.msra.mxu0 0
    %2147 = vmatprep.subr.bf16.mxu0 0
    %2148 = vmatpush1.bf16.xpose.msra.mxu0 0
    %2149 = vmatprep.mubr.bf16.mxu0 0
    %2150 = vmatmul.mubr.bf16.gmra.mrb[0].mxu0 %v2112
    %v2151 = vpop.f32.mrb[0].mxu0
    %v2152 = vadd.f32 0.0, %v2151
    %v2153 = vpop.f32.mrb[0].mxu0
    %v2154 = vpop.f32.mrb[0].mxu0
    %v2155 = vpop.f32.mrb[0].mxu0
    %2156 = vdwg.mxu0
    %v2158 = vsel %vm568, %v1818, 0
    %v2161 = vsel %vm568, %v1826, 0
    %2163 = vmatprep.subr.bf16.mxu0 0
    %2164 = vmatpush1.bf16.xpose.msra.mxu0 %v2161
    %2165 = vmatprep.subr.bf16.mxu0 0
    %2166 = vmatpush1.bf16.xpose.msra.mxu0 0
    %2167 = vmatprep.subr.bf16.mxu0 0
    %2168 = vmatpush1.bf16.xpose.msra.mxu0 0
    %2169 = vmatprep.subr.bf16.mxu0 0
    %2170 = vmatpush1.bf16.xpose.msra.mxu0 0
    %2171 = vmatprep.subr.bf16.mxu0 0
    %2172 = vmatpush1.bf16.xpose.msra.mxu0 0
    %2173 = vmatprep.subr.bf16.mxu0 0
    %2174 = vmatpush1.bf16.xpose.msra.mxu0 0
    %2175 = vmatprep.subr.bf16.mxu0 0
    %2176 = vmatpush1.bf16.xpose.msra.mxu0 0
    %2177 = vmatprep.subr.bf16.mxu0 0
    %2178 = vmatpush1.bf16.xpose.msra.mxu0 0
    %2179 = vmatprep.subr.bf16.mxu0 0
    %2180 = vmatpush1.bf16.xpose.msra.mxu0 0
    %2181 = vmatprep.subr.bf16.mxu0 0
    %2182 = vmatpush1.bf16.xpose.msra.mxu0 0
    %2183 = vmatprep.subr.bf16.mxu0 0
    %2184 = vmatpush1.bf16.xpose.msra.mxu0 0
    %2185 = vmatprep.subr.bf16.mxu0 0
    %2186 = vmatpush1.bf16.xpose.msra.mxu0 0
    %2187 = vmatprep.subr.bf16.mxu0 0
    %2188 = vmatpush1.bf16.xpose.msra.mxu0 0
    %2189 = vmatprep.subr.bf16.mxu0 0
    %2190 = vmatpush1.bf16.xpose.msra.mxu0 0
    %2191 = vmatprep.subr.bf16.mxu0 0
    %2192 = vmatpush1.bf16.xpose.msra.mxu0 0
    %2193 = vmatprep.subr.bf16.mxu0 0
    %2194 = vmatpush1.bf16.xpose.msra.mxu0 0
    %2195 = vmatprep.mubr.bf16.mxu0 0
    %2196 = vmatmul.mubr.bf16.gmra.mrb[0].mxu0 %v2158
    %v2197 = vpop.f32.mrb[0].mxu0
    %v2198 = vadd.f32 0.0, %v2197
    %v2199 = vpop.f32.mrb[0].mxu0
    %v2200 = vpop.f32.mrb[0].mxu0
    %v2201 = vpop.f32.mrb[0].mxu0
    %2202 = vdwg.mxu0
    %v2203 = vmul.f32 %v1876, 0.25
    %v2204 = vmul.f32 %v1922, 0.25
    %v2205 = vmul.f32 %v1968, 0.25
    %v2206 = vmul.f32 %v2014, 0.25
    %v2207 = vmul.f32 %v2060, 0.25
    %v2208 = vmul.f32 %v2106, 0.25
    %v2209 = vmul.f32 %v2152, 0.25
    %v2210 = vmul.f32 %v2198, 0.25
    %v2211 = vadd.f32 %v2203, %v956
    %v2212 = vadd.f32 %v2204, %v960
    %v2213 = vadd.f32 %v2205, %v964
    %v2214 = vadd.f32 %v2206, %v968
    %v2215 = vadd.f32 %v2207, %v972
    %v2216 = vadd.f32 %v2208, %v976
    %v2217 = vadd.f32 %v2209, %v980
    %v2218 = vadd.f32 %v2210, %v984
    %v2219 = vsel %vm1001, %v2211, -inf
    %2220 = vmax.xlane.f32.xlu0 %v2219
    %v2221 = vpop.xlane.xlu0 %2220
    %v2222 = vsel %vm1001, %v2212, -inf
    %2223 = vmax.xlane.f32.xlu0 %v2222
    %v2224 = vpop.xlane.xlu0 %2223
    %v2225 = vsel %vm1001, %v2213, -inf
    %2226 = vmax.xlane.f32.xlu0 %v2225
    %v2227 = vpop.xlane.xlu0 %2226
    %v2228 = vsel %vm1001, %v2214, -inf
    %2229 = vmax.xlane.f32.xlu0 %v2228
    %v2230 = vpop.xlane.xlu0 %2229
    %v2231 = vsel %vm1001, %v2215, -inf
    %2232 = vmax.xlane.f32.xlu0 %v2231
    %v2233 = vpop.xlane.xlu0 %2232
    %v2234 = vsel %vm1001, %v2216, -inf
    %2235 = vmax.xlane.f32.xlu0 %v2234
    %v2236 = vpop.xlane.xlu0 %2235
    %v2237 = vsel %vm1001, %v2217, -inf
    %2238 = vmax.xlane.f32.xlu0 %v2237
    %v2239 = vpop.xlane.xlu0 %2238
    %v2240 = vsel %vm1001, %v2218, -inf
    %2241 = vmax.xlane.f32.xlu0 %v2240
    %v2242 = vpop.xlane.xlu0 %2241
    %v2243 = vsub.f32 %v2211, %v2221
    %v2244 = vsub.f32 %v2212, %v2224
    %v2245 = vsub.f32 %v2213, %v2227
    %v2246 = vsub.f32 %v2214, %v2230
    %v2247 = vsub.f32 %v2215, %v2233
    %v2248 = vsub.f32 %v2216, %v2236
    %v2249 = vsub.f32 %v2217, %v2239
    %v2250 = vsub.f32 %v2218, %v2242
    %v2251 = vmul.f32 %v2243, 1.442695
    %v2252 = vpow.pop %v2251
    %v2253 = vmul.f32 %v2244, 1.442695
    %v2254 = vpow.pop %v2253
    %v2255 = vmul.f32 %v2245, 1.442695
    %v2256 = vpow.pop %v2255
    %v2257 = vmul.f32 %v2246, 1.442695
    %v2258 = vpow.pop %v2257
    %v2259 = vmul.f32 %v2247, 1.442695
    %v2260 = vpow.pop %v2259
    %v2261 = vmul.f32 %v2248, 1.442695
    %v2262 = vpow.pop %v2261
    %v2263 = vmul.f32 %v2249, 1.442695
    %v2264 = vpow.pop %v2263
    %v2265 = vmul.f32 %v2250, 1.442695
    %v2266 = vpow.pop %v2265
    %v2267 = vsel %vm1001, %v2252, 0.0
    %2268 = vadd.xlane.f32.xlu0 %v2267
    %v2269 = vpop.xlane.xlu0 %2268
    %v2270 = vsel %vm1001, %v2254, 0.0
    %2271 = vadd.xlane.f32.xlu0 %v2270
    %v2272 = vpop.xlane.xlu0 %2271
    %v2273 = vsel %vm1001, %v2256, 0.0
    %2274 = vadd.xlane.f32.xlu0 %v2273
    %v2275 = vpop.xlane.xlu0 %2274
    %v2276 = vsel %vm1001, %v2258, 0.0
    %2277 = vadd.xlane.f32.xlu0 %v2276
    %v2278 = vpop.xlane.xlu0 %2277
    %v2279 = vsel %vm1001, %v2260, 0.0
    %2280 = vadd.xlane.f32.xlu0 %v2279
    %v2281 = vpop.xlane.xlu0 %2280
    %v2282 = vsel %vm1001, %v2262, 0.0
    %2283 = vadd.xlane.f32.xlu0 %v2282
    %v2284 = vpop.xlane.xlu0 %2283
    %v2285 = vsel %vm1001, %v2264, 0.0
    %2286 = vadd.xlane.f32.xlu0 %v2285
    %v2287 = vpop.xlane.xlu0 %2286
    %v2288 = vsel %vm1001, %v2266, 0.0
    %2289 = vadd.xlane.f32.xlu0 %v2288
    %v2290 = vpop.xlane.xlu0 %2289
    %v2291 = vrcp.pop %v2269
    %v2292 = vmul.f32 %v2252, %v2291
    %v2293 = vrcp.pop %v2272
    %v2294 = vmul.f32 %v2254, %v2293
    %v2295 = vrcp.pop %v2275
    %v2296 = vmul.f32 %v2256, %v2295
    %v2297 = vrcp.pop %v2278
    %v2298 = vmul.f32 %v2258, %v2297
    %v2299 = vrcp.pop %v2281
    %v2300 = vmul.f32 %v2260, %v2299
    %v2301 = vrcp.pop %v2284
    %v2302 = vmul.f32 %v2262, %v2301
    %v2303 = vrcp.pop %v2287
    %v2304 = vmul.f32 %v2264, %v2303
    %v2305 = vrcp.pop %v2290
    %v2306 = vmul.f32 %v2266, %v2305
    %v2307 = vpack.c.bf16 %v2292, %v2292
    %v2308 = vpack.c.bf16 %v2294, %v2294
    %v2309 = vpack.c.bf16 %v2296, %v2296
    %v2310 = vpack.c.bf16 %v2298, %v2298
    %v2311 = vpack.c.bf16 %v2300, %v2300
    %v2312 = vpack.c.bf16 %v2302, %v2302
    %v2313 = vpack.c.bf16 %v2304, %v2304
    %v2314 = vpack.c.bf16 %v2306, %v2306
    %v2316 = vsel %vm1001, %v2307, 0
    %v2319 = vsel %vm1101, %v1827, 0
    %2321 = vmatprep.subr.bf16.mxu0 0
    %2322 = vmatpush1.bf16.msra.mxu0 %v2319
    %2323 = vmatprep.subr.bf16.mxu0 0
    %2324 = vmatpush1.bf16.msra.mxu0 0
    %2325 = vmatprep.subr.bf16.mxu0 0
    %2326 = vmatpush1.bf16.msra.mxu0 0
    %2327 = vmatprep.subr.bf16.mxu0 0
    %2328 = vmatpush1.bf16.msra.mxu0 0
    %2329 = vmatprep.subr.bf16.mxu0 0
    %2330 = vmatpush1.bf16.msra.mxu0 0
    %2331 = vmatprep.subr.bf16.mxu0 0
    %2332 = vmatpush1.bf16.msra.mxu0 0
    %2333 = vmatprep.subr.bf16.mxu0 0
    %2334 = vmatpush1.bf16.msra.mxu0 0
    %2335 = vmatprep.subr.bf16.mxu0 0
    %2336 = vmatpush1.bf16.msra.mxu0 0
    %2337 = vmatprep.subr.bf16.mxu0 0
    %2338 = vmatpush1.bf16.msra.mxu0 0
    %2339 = vmatprep.subr.bf16.mxu0 0
    %2340 = vmatpush1.bf16.msra.mxu0 0
    %2341 = vmatprep.subr.bf16.mxu0 0
    %2342 = vmatpush1.bf16.msra.mxu0 0
    %2343 = vmatprep.subr.bf16.mxu0 0
    %2344 = vmatpush1.bf16.msra.mxu0 0
    %2345 = vmatprep.subr.bf16.mxu0 0
    %2346 = vmatpush1.bf16.msra.mxu0 0
    %2347 = vmatprep.subr.bf16.mxu0 0
    %2348 = vmatpush1.bf16.msra.mxu0 0
    %2349 = vmatprep.subr.bf16.mxu0 0
    %2350 = vmatpush1.bf16.msra.mxu0 0
    %2351 = vmatprep.subr.bf16.mxu0 0
    %2352 = vmatpush1.bf16.msra.mxu0 0
    %2353 = vmatprep.mubr.bf16.mxu0 0
    %2354 = vmatmul.mubr.bf16.gmra.mrb[0].mxu0 %v2316
    %v2355 = vpop.f32.mrb[0].mxu0
    %v2356 = vadd.f32 0.0, %v2355
    %v2357 = vpop.f32.mrb[0].mxu0
    %v2358 = vpop.f32.mrb[0].mxu0
    %v2359 = vpop.f32.mrb[0].mxu0
    %2360 = vdwg.mxu0
    %v2362 = vsel %vm1001, %v2308, 0
    %v2365 = vsel %vm1101, %v1828, 0
    %2367 = vmatprep.subr.bf16.mxu0 0
    %2368 = vmatpush1.bf16.msra.mxu0 %v2365
    %2369 = vmatprep.subr.bf16.mxu0 0
    %2370 = vmatpush1.bf16.msra.mxu0 0
    %2371 = vmatprep.subr.bf16.mxu0 0
    %2372 = vmatpush1.bf16.msra.mxu0 0
    %2373 = vmatprep.subr.bf16.mxu0 0
    %2374 = vmatpush1.bf16.msra.mxu0 0
    %2375 = vmatprep.subr.bf16.mxu0 0
    %2376 = vmatpush1.bf16.msra.mxu0 0
    %2377 = vmatprep.subr.bf16.mxu0 0
    %2378 = vmatpush1.bf16.msra.mxu0 0
    %2379 = vmatprep.subr.bf16.mxu0 0
    %2380 = vmatpush1.bf16.msra.mxu0 0
    %2381 = vmatprep.subr.bf16.mxu0 0
    %2382 = vmatpush1.bf16.msra.mxu0 0
    %2383 = vmatprep.subr.bf16.mxu0 0
    %2384 = vmatpush1.bf16.msra.mxu0 0
    %2385 = vmatprep.subr.bf16.mxu0 0
    %2386 = vmatpush1.bf16.msra.mxu0 0
    %2387 = vmatprep.subr.bf16.mxu0 0
    %2388 = vmatpush1.bf16.msra.mxu0 0
    %2389 = vmatprep.subr.bf16.mxu0 0
    %2390 = vmatpush1.bf16.msra.mxu0 0
    %2391 = vmatprep.subr.bf16.mxu0 0
    %2392 = vmatpush1.bf16.msra.mxu0 0
    %2393 = vmatprep.subr.bf16.mxu0 0
    %2394 = vmatpush1.bf16.msra.mxu0 0
    %2395 = vmatprep.subr.bf16.mxu0 0
    %2396 = vmatpush1.bf16.msra.mxu0 0
    %2397 = vmatprep.subr.bf16.mxu0 0
    %2398 = vmatpush1.bf16.msra.mxu0 0
    %2399 = vmatprep.mubr.bf16.mxu0 0
    %2400 = vmatmul.mubr.bf16.gmra.mrb[0].mxu0 %v2362
    %v2401 = vpop.f32.mrb[0].mxu0
    %v2402 = vadd.f32 0.0, %v2401
    %v2403 = vpop.f32.mrb[0].mxu0
    %v2404 = vpop.f32.mrb[0].mxu0
    %v2405 = vpop.f32.mrb[0].mxu0
    %2406 = vdwg.mxu0
    %v2408 = vsel %vm1001, %v2309, 0
    %v2411 = vsel %vm1101, %v1829, 0
    %2413 = vmatprep.subr.bf16.mxu0 0
    %2414 = vmatpush1.bf16.msra.mxu0 %v2411
    %2415 = vmatprep.subr.bf16.mxu0 0
    %2416 = vmatpush1.bf16.msra.mxu0 0
    %2417 = vmatprep.subr.bf16.mxu0 0
    %2418 = vmatpush1.bf16.msra.mxu0 0
    %2419 = vmatprep.subr.bf16.mxu0 0
    %2420 = vmatpush1.bf16.msra.mxu0 0
    %2421 = vmatprep.subr.bf16.mxu0 0
    %2422 = vmatpush1.bf16.msra.mxu0 0
    %2423 = vmatprep.subr.bf16.mxu0 0
    %2424 = vmatpush1.bf16.msra.mxu0 0
    %2425 = vmatprep.subr.bf16.mxu0 0
    %2426 = vmatpush1.bf16.msra.mxu0 0
    %2427 = vmatprep.subr.bf16.mxu0 0
    %2428 = vmatpush1.bf16.msra.mxu0 0
    %2429 = vmatprep.subr.bf16.mxu0 0
    %2430 = vmatpush1.bf16.msra.mxu0 0
    %2431 = vmatprep.subr.bf16.mxu0 0
    %2432 = vmatpush1.bf16.msra.mxu0 0
    %2433 = vmatprep.subr.bf16.mxu0 0
    %2434 = vmatpush1.bf16.msra.mxu0 0
    %2435 = vmatprep.subr.bf16.mxu0 0
    %2436 = vmatpush1.bf16.msra.mxu0 0
    %2437 = vmatprep.subr.bf16.mxu0 0
    %2438 = vmatpush1.bf16.msra.mxu0 0
    %2439 = vmatprep.subr.bf16.mxu0 0
    %2440 = vmatpush1.bf16.msra.mxu0 0
    %2441 = vmatprep.subr.bf16.mxu0 0
    %2442 = vmatpush1.bf16.msra.mxu0 0
    %2443 = vmatprep.subr.bf16.mxu0 0
    %2444 = vmatpush1.bf16.msra.mxu0 0
    %2445 = vmatprep.mubr.bf16.mxu0 0
    %2446 = vmatmul.mubr.bf16.gmra.mrb[0].mxu0 %v2408
    %v2447 = vpop.f32.mrb[0].mxu0
    %v2448 = vadd.f32 0.0, %v2447
    %v2449 = vpop.f32.mrb[0].mxu0
    %v2450 = vpop.f32.mrb[0].mxu0
    %v2451 = vpop.f32.mrb[0].mxu0
    %2452 = vdwg.mxu0
    %v2454 = vsel %vm1001, %v2310, 0
    %v2457 = vsel %vm1101, %v1830, 0
    %2459 = vmatprep.subr.bf16.mxu0 0
    %2460 = vmatpush1.bf16.msra.mxu0 %v2457
    %2461 = vmatprep.subr.bf16.mxu0 0
    %2462 = vmatpush1.bf16.msra.mxu0 0
    %2463 = vmatprep.subr.bf16.mxu0 0
    %2464 = vmatpush1.bf16.msra.mxu0 0
    %2465 = vmatprep.subr.bf16.mxu0 0
    %2466 = vmatpush1.bf16.msra.mxu0 0
    %2467 = vmatprep.subr.bf16.mxu0 0
    %2468 = vmatpush1.bf16.msra.mxu0 0
    %2469 = vmatprep.subr.bf16.mxu0 0
    %2470 = vmatpush1.bf16.msra.mxu0 0
    %2471 = vmatprep.subr.bf16.mxu0 0
    %2472 = vmatpush1.bf16.msra.mxu0 0
    %2473 = vmatprep.subr.bf16.mxu0 0
    %2474 = vmatpush1.bf16.msra.mxu0 0
    %2475 = vmatprep.subr.bf16.mxu0 0
    %2476 = vmatpush1.bf16.msra.mxu0 0
    %2477 = vmatprep.subr.bf16.mxu0 0
    %2478 = vmatpush1.bf16.msra.mxu0 0
    %2479 = vmatprep.subr.bf16.mxu0 0
    %2480 = vmatpush1.bf16.msra.mxu0 0
    %2481 = vmatprep.subr.bf16.mxu0 0
    %2482 = vmatpush1.bf16.msra.mxu0 0
    %2483 = vmatprep.subr.bf16.mxu0 0
    %2484 = vmatpush1.bf16.msra.mxu0 0
    %2485 = vmatprep.subr.bf16.mxu0 0
    %2486 = vmatpush1.bf16.msra.mxu0 0
    %2487 = vmatprep.subr.bf16.mxu0 0
    %2488 = vmatpush1.bf16.msra.mxu0 0
    %2489 = vmatprep.subr.bf16.mxu0 0
    %2490 = vmatpush1.bf16.msra.mxu0 0
    %2491 = vmatprep.mubr.bf16.mxu0 0
    %2492 = vmatmul.mubr.bf16.gmra.mrb[0].mxu0 %v2454
    %v2493 = vpop.f32.mrb[0].mxu0
    %v2494 = vadd.f32 0.0, %v2493
    %v2495 = vpop.f32.mrb[0].mxu0
    %v2496 = vpop.f32.mrb[0].mxu0
    %v2497 = vpop.f32.mrb[0].mxu0
    %2498 = vdwg.mxu0
    %v2500 = vsel %vm1001, %v2311, 0
    %v2503 = vsel %vm1101, %v1831, 0
    %2505 = vmatprep.subr.bf16.mxu0 0
    %2506 = vmatpush1.bf16.msra.mxu0 %v2503
    %2507 = vmatprep.subr.bf16.mxu0 0
    %2508 = vmatpush1.bf16.msra.mxu0 0
    %2509 = vmatprep.subr.bf16.mxu0 0
    %2510 = vmatpush1.bf16.msra.mxu0 0
    %2511 = vmatprep.subr.bf16.mxu0 0
    %2512 = vmatpush1.bf16.msra.mxu0 0
    %2513 = vmatprep.subr.bf16.mxu0 0
    %2514 = vmatpush1.bf16.msra.mxu0 0
    %2515 = vmatprep.subr.bf16.mxu0 0
    %2516 = vmatpush1.bf16.msra.mxu0 0
    %2517 = vmatprep.subr.bf16.mxu0 0
    %2518 = vmatpush1.bf16.msra.mxu0 0
    %2519 = vmatprep.subr.bf16.mxu0 0
    %2520 = vmatpush1.bf16.msra.mxu0 0
    %2521 = vmatprep.subr.bf16.mxu0 0
    %2522 = vmatpush1.bf16.msra.mxu0 0
    %2523 = vmatprep.subr.bf16.mxu0 0
    %2524 = vmatpush1.bf16.msra.mxu0 0
    %2525 = vmatprep.subr.bf16.mxu0 0
    %2526 = vmatpush1.bf16.msra.mxu0 0
    %2527 = vmatprep.subr.bf16.mxu0 0
    %2528 = vmatpush1.bf16.msra.mxu0 0
    %2529 = vmatprep.subr.bf16.mxu0 0
    %2530 = vmatpush1.bf16.msra.mxu0 0
    %2531 = vmatprep.subr.bf16.mxu0 0
    %2532 = vmatpush1.bf16.msra.mxu0 0
    %2533 = vmatprep.subr.bf16.mxu0 0
    %2534 = vmatpush1.bf16.msra.mxu0 0
    %2535 = vmatprep.subr.bf16.mxu0 0
    %2536 = vmatpush1.bf16.msra.mxu0 0
    %2537 = vmatprep.mubr.bf16.mxu0 0
    %2538 = vmatmul.mubr.bf16.gmra.mrb[0].mxu0 %v2500
    %v2539 = vpop.f32.mrb[0].mxu0
    %v2540 = vadd.f32 0.0, %v2539
    %v2541 = vpop.f32.mrb[0].mxu0
    %v2542 = vpop.f32.mrb[0].mxu0
    %v2543 = vpop.f32.mrb[0].mxu0
    %2544 = vdwg.mxu0
    %v2546 = vsel %vm1001, %v2312, 0
    %v2549 = vsel %vm1101, %v1832, 0
    %2551 = vmatprep.subr.bf16.mxu0 0
    %2552 = vmatpush1.bf16.msra.mxu0 %v2549
    %2553 = vmatprep.subr.bf16.mxu0 0
    %2554 = vmatpush1.bf16.msra.mxu0 0
    %2555 = vmatprep.subr.bf16.mxu0 0
    %2556 = vmatpush1.bf16.msra.mxu0 0
    %2557 = vmatprep.subr.bf16.mxu0 0
    %2558 = vmatpush1.bf16.msra.mxu0 0
    %2559 = vmatprep.subr.bf16.mxu0 0
    %2560 = vmatpush1.bf16.msra.mxu0 0
    %2561 = vmatprep.subr.bf16.mxu0 0
    %2562 = vmatpush1.bf16.msra.mxu0 0
    %2563 = vmatprep.subr.bf16.mxu0 0
    %2564 = vmatpush1.bf16.msra.mxu0 0
    %2565 = vmatprep.subr.bf16.mxu0 0
    %2566 = vmatpush1.bf16.msra.mxu0 0
    %2567 = vmatprep.subr.bf16.mxu0 0
    %2568 = vmatpush1.bf16.msra.mxu0 0
    %2569 = vmatprep.subr.bf16.mxu0 0
    %2570 = vmatpush1.bf16.msra.mxu0 0
    %2571 = vmatprep.subr.bf16.mxu0 0
    %2572 = vmatpush1.bf16.msra.mxu0 0
    %2573 = vmatprep.subr.bf16.mxu0 0
    %2574 = vmatpush1.bf16.msra.mxu0 0
    %2575 = vmatprep.subr.bf16.mxu0 0
    %2576 = vmatpush1.bf16.msra.mxu0 0
    %2577 = vmatprep.subr.bf16.mxu0 0
    %2578 = vmatpush1.bf16.msra.mxu0 0
    %2579 = vmatprep.subr.bf16.mxu0 0
    %2580 = vmatpush1.bf16.msra.mxu0 0
    %2581 = vmatprep.subr.bf16.mxu0 0
    %2582 = vmatpush1.bf16.msra.mxu0 0
    %2583 = vmatprep.mubr.bf16.mxu0 0
    %2584 = vmatmul.mubr.bf16.gmra.mrb[0].mxu0 %v2546
    %v2585 = vpop.f32.mrb[0].mxu0
    %v2586 = vadd.f32 0.0, %v2585
    %v2587 = vpop.f32.mrb[0].mxu0
    %v2588 = vpop.f32.mrb[0].mxu0
    %v2589 = vpop.f32.mrb[0].mxu0
    %2590 = vdwg.mxu0
    %v2592 = vsel %vm1001, %v2313, 0
    %v2595 = vsel %vm1101, %v1833, 0
    %2597 = vmatprep.subr.bf16.mxu0 0
    %2598 = vmatpush1.bf16.msra.mxu0 %v2595
    %2599 = vmatprep.subr.bf16.mxu0 0
    %2600 = vmatpush1.bf16.msra.mxu0 0
    %2601 = vmatprep.subr.bf16.mxu0 0
    %2602 = vmatpush1.bf16.msra.mxu0 0
    %2603 = vmatprep.subr.bf16.mxu0 0
    %2604 = vmatpush1.bf16.msra.mxu0 0
    %2605 = vmatprep.subr.bf16.mxu0 0
    %2606 = vmatpush1.bf16.msra.mxu0 0
    %2607 = vmatprep.subr.bf16.mxu0 0
    %2608 = vmatpush1.bf16.msra.mxu0 0
    %2609 = vmatprep.subr.bf16.mxu0 0
    %2610 = vmatpush1.bf16.msra.mxu0 0
    %2611 = vmatprep.subr.bf16.mxu0 0
    %2612 = vmatpush1.bf16.msra.mxu0 0
    %2613 = vmatprep.subr.bf16.mxu0 0
    %2614 = vmatpush1.bf16.msra.mxu0 0
    %2615 = vmatprep.subr.bf16.mxu0 0
    %2616 = vmatpush1.bf16.msra.mxu0 0
    %2617 = vmatprep.subr.bf16.mxu0 0
    %2618 = vmatpush1.bf16.msra.mxu0 0
    %2619 = vmatprep.subr.bf16.mxu0 0
    %2620 = vmatpush1.bf16.msra.mxu0 0
    %2621 = vmatprep.subr.bf16.mxu0 0
    %2622 = vmatpush1.bf16.msra.mxu0 0
    %2623 = vmatprep.subr.bf16.mxu0 0
    %2624 = vmatpush1.bf16.msra.mxu0 0
    %2625 = vmatprep.subr.bf16.mxu0 0
    %2626 = vmatpush1.bf16.msra.mxu0 0
    %2627 = vmatprep.subr.bf16.mxu0 0
    %2628 = vmatpush1.bf16.msra.mxu0 0
    %2629 = vmatprep.mubr.bf16.mxu0 0
    %2630 = vmatmul.mubr.bf16.gmra.mrb[0].mxu0 %v2592
    %v2631 = vpop.f32.mrb[0].mxu0
    %v2632 = vadd.f32 0.0, %v2631
    %v2633 = vpop.f32.mrb[0].mxu0
    %v2634 = vpop.f32.mrb[0].mxu0
    %v2635 = vpop.f32.mrb[0].mxu0
    %2636 = vdwg.mxu0
    %v2638 = vsel %vm1001, %v2314, 0
    %v2641 = vsel %vm1101, %v1834, 0
    %2643 = vmatprep.subr.bf16.mxu0 0
    %2644 = vmatpush1.bf16.msra.mxu0 %v2641
    %2645 = vmatprep.subr.bf16.mxu0 0
    %2646 = vmatpush1.bf16.msra.mxu0 0
    %2647 = vmatprep.subr.bf16.mxu0 0
    %2648 = vmatpush1.bf16.msra.mxu0 0
    %2649 = vmatprep.subr.bf16.mxu0 0
    %2650 = vmatpush1.bf16.msra.mxu0 0
    %2651 = vmatprep.subr.bf16.mxu0 0
    %2652 = vmatpush1.bf16.msra.mxu0 0
    %2653 = vmatprep.subr.bf16.mxu0 0
    %2654 = vmatpush1.bf16.msra.mxu0 0
    %2655 = vmatprep.subr.bf16.mxu0 0
    %2656 = vmatpush1.bf16.msra.mxu0 0
    %2657 = vmatprep.subr.bf16.mxu0 0
    %2658 = vmatpush1.bf16.msra.mxu0 0
    %2659 = vmatprep.subr.bf16.mxu0 0
    %2660 = vmatpush1.bf16.msra.mxu0 0
    %2661 = vmatprep.subr.bf16.mxu0 0
    %2662 = vmatpush1.bf16.msra.mxu0 0
    %2663 = vmatprep.subr.bf16.mxu0 0
    %2664 = vmatpush1.bf16.msra.mxu0 0
    %2665 = vmatprep.subr.bf16.mxu0 0
    %2666 = vmatpush1.bf16.msra.mxu0 0
    %2667 = vmatprep.subr.bf16.mxu0 0
    %2668 = vmatpush1.bf16.msra.mxu0 0
    %2669 = vmatprep.subr.bf16.mxu0 0
    %2670 = vmatpush1.bf16.msra.mxu0 0
    %2671 = vmatprep.subr.bf16.mxu0 0
    %2672 = vmatpush1.bf16.msra.mxu0 0
    %2673 = vmatprep.subr.bf16.mxu0 0
    %2674 = vmatpush1.bf16.msra.mxu0 0
    %2675 = vmatprep.mubr.bf16.mxu0 0
    %2676 = vmatmul.mubr.bf16.gmra.mrb[0].mxu0 %v2638
    %v2677 = vpop.f32.mrb[0].mxu0
    %v2678 = vadd.f32 0.0, %v2677
    %v2679 = vpop.f32.mrb[0].mxu0
    %v2680 = vpop.f32.mrb[0].mxu0
    %v2681 = vpop.f32.mrb[0].mxu0
    %2682 = vdwg.mxu0
    %v2683 = vpack.c.bf16 %v2402, %v2356
    %v2684 = vpack.c.bf16 %v2494, %v2448
    %v2685 = vpack.c.bf16 %v2586, %v2540
    %v2686 = vpack.c.bf16 %v2678, %v2632
    %v2689 = vunpack.c.l.b16 %v273
    %v2690 = vunpack.c.l.b16 %v274
    %v2691 = vpack.c.b16 %v2690, %v2689
    %v2694 = vsel %vm568, %v2683, 0
    %v2697 = vsel %vm568, %v2684, 0
    %v2700 = vsel %vm568, %v2685, 0
    %v2703 = vsel %vm568, %v2686, 0
    %2705 = vmatprep.subr.bf16.mxu0 0
    %2706 = vmatpush1.bf16.msra.mxu0 %v2691
    %2707 = vmatprep.subr.bf16.mxu0 0
    %2708 = vmatpush1.bf16.msra.mxu0 0
    %2709 = vmatprep.subr.bf16.mxu0 0
    %2710 = vmatpush1.bf16.msra.mxu0 0
    %2711 = vmatprep.subr.bf16.mxu0 0
    %2712 = vmatpush1.bf16.msra.mxu0 0
    %2713 = vmatprep.subr.bf16.mxu0 0
    %2714 = vmatpush1.bf16.msra.mxu0 0
    %2715 = vmatprep.subr.bf16.mxu0 0
    %2716 = vmatpush1.bf16.msra.mxu0 0
    %2717 = vmatprep.subr.bf16.mxu0 0
    %2718 = vmatpush1.bf16.msra.mxu0 0
    %2719 = vmatprep.subr.bf16.mxu0 0
    %2720 = vmatpush1.bf16.msra.mxu0 0
    %2721 = vmatprep.subr.bf16.mxu0 0
    %2722 = vmatpush1.bf16.msra.mxu0 0
    %2723 = vmatprep.subr.bf16.mxu0 0
    %2724 = vmatpush1.bf16.msra.mxu0 0
    %2725 = vmatprep.subr.bf16.mxu0 0
    %2726 = vmatpush1.bf16.msra.mxu0 0
    %2727 = vmatprep.subr.bf16.mxu0 0
    %2728 = vmatpush1.bf16.msra.mxu0 0
    %2729 = vmatprep.subr.bf16.mxu0 0
    %2730 = vmatpush1.bf16.msra.mxu0 0
    %2731 = vmatprep.subr.bf16.mxu0 0
    %2732 = vmatpush1.bf16.msra.mxu0 0
    %2733 = vmatprep.subr.bf16.mxu0 0
    %2734 = vmatpush1.bf16.msra.mxu0 0
    %2735 = vmatprep.subr.bf16.mxu0 0
    %2736 = vmatpush1.bf16.msra.mxu0 0
    %2737 = vmatprep.mubr.bf16.mxu0 0
    %2738 = vmatmul.mubr.bf16.gmra.mrb[0].mxu0 %v2694
    %v2739 = vpop.f32.mrb[0].mxu0
    %v2740 = vadd.f32 0.0, %v2739
    %v2741 = vpop.f32.mrb[0].mxu0
    %v2742 = vpop.f32.mrb[0].mxu0
    %v2743 = vadd.f32 0.0, %v2742
    %v2744 = vpop.f32.mrb[0].mxu0
    %2745 = vmatprep.mubr.bf16.mxu0 0
    %2746 = vmatmul.mubr.bf16.gmra.mrb[0].mxu0 %v2697
    %v2747 = vpop.f32.mrb[0].mxu0
    %v2748 = vadd.f32 0.0, %v2747
    %v2749 = vpop.f32.mrb[0].mxu0
    %v2750 = vpop.f32.mrb[0].mxu0
    %v2751 = vadd.f32 0.0, %v2750
    %v2752 = vpop.f32.mrb[0].mxu0
    %2753 = vmatprep.mubr.bf16.mxu0 0
    %2754 = vmatmul.mubr.bf16.gmra.mrb[0].mxu0 %v2700
    %v2755 = vpop.f32.mrb[0].mxu0
    %v2756 = vadd.f32 0.0, %v2755
    %v2757 = vpop.f32.mrb[0].mxu0
    %v2758 = vpop.f32.mrb[0].mxu0
    %v2759 = vadd.f32 0.0, %v2758
    %v2760 = vpop.f32.mrb[0].mxu0
    %2761 = vmatprep.mubr.bf16.mxu0 0
    %2762 = vmatmul.mubr.bf16.gmra.mrb[0].mxu0 %v2703
    %v2763 = vpop.f32.mrb[0].mxu0
    %v2764 = vadd.f32 0.0, %v2763
    %v2765 = vpop.f32.mrb[0].mxu0
    %v2766 = vpop.f32.mrb[0].mxu0
    %v2767 = vadd.f32 0.0, %v2766
    %v2768 = vpop.f32.mrb[0].mxu0
    %2769 = vdwg.mxu0
    %v2770 = vadd.f32 %v1554, %v2740
    %v2771 = vadd.f32 %v1555, %v2743
    %v2772 = vadd.f32 %v1556, %v2748
    %v2773 = vadd.f32 %v1557, %v2751
    %v2774 = vadd.f32 %v1558, %v2756
    %v2775 = vadd.f32 %v1559, %v2759
    %v2776 = vadd.f32 %v1560, %v2764
    %v2777 = vadd.f32 %v1561, %v2767
    %v2778 = vadd.f32 %v2770, %v221
    %v2779 = vadd.f32 %v2771, %v222
    %v2780 = vadd.f32 %v2772, %v223
    %v2781 = vadd.f32 %v2773, %v224
    %v2782 = vadd.f32 %v2774, %v225
    %v2783 = vadd.f32 %v2775, %v226
    %v2784 = vadd.f32 %v2776, %v227
    %v2785 = vadd.f32 %v2777, %v228
    %v2786 = vld [vmem:[%s14] sm:$0x1]
    %v2787 = vld [vmem:[%s15] sm:$0x1]
    %v2788 = vsel %vm95, %v2778, 0.0
    %2789 = vadd.xlane.f32.xlu0 %v2788
    %v2790 = vpop.xlane.xlu0 %2789
    %v2791 = vsel %vm95, %v2779, 0.0
    %2792 = vadd.xlane.f32.xlu0 %v2791
    %v2793 = vpop.xlane.xlu0 %2792
    %v2794 = vsel %vm95, %v2780, 0.0
    %2795 = vadd.xlane.f32.xlu0 %v2794
    %v2796 = vpop.xlane.xlu0 %2795
    %v2797 = vsel %vm95, %v2781, 0.0
    %2798 = vadd.xlane.f32.xlu0 %v2797
    %v2799 = vpop.xlane.xlu0 %2798
    %v2800 = vsel %vm95, %v2782, 0.0
    %2801 = vadd.xlane.f32.xlu0 %v2800
    %v2802 = vpop.xlane.xlu0 %2801
    %v2803 = vsel %vm95, %v2783, 0.0
    %2804 = vadd.xlane.f32.xlu0 %v2803
    %v2805 = vpop.xlane.xlu0 %2804
    %v2806 = vsel %vm95, %v2784, 0.0
    %2807 = vadd.xlane.f32.xlu0 %v2806
    %v2808 = vpop.xlane.xlu0 %2807
    %v2809 = vsel %vm95, %v2785, 0.0
    %2810 = vadd.xlane.f32.xlu0 %v2809
    %v2811 = vpop.xlane.xlu0 %2810
    %v2812 = vmul.f32 %v2790, %v120
    %v2813 = vmul.f32 %v2793, %v120
    %v2814 = vmul.f32 %v2796, %v120
    %v2815 = vmul.f32 %v2799, %v120
    %v2816 = vmul.f32 %v2802, %v120
    %v2817 = vmul.f32 %v2805, %v120
    %v2818 = vmul.f32 %v2808, %v120
    %v2819 = vmul.f32 %v2811, %v120
    %v2820 = vsub.f32 %v2778, %v2812
    %v2821 = vsub.f32 %v2779, %v2813
    %v2822 = vsub.f32 %v2780, %v2814
    %v2823 = vsub.f32 %v2781, %v2815
    %v2824 = vsub.f32 %v2782, %v2816
    %v2825 = vsub.f32 %v2783, %v2817
    %v2826 = vsub.f32 %v2784, %v2818
    %v2827 = vsub.f32 %v2785, %v2819
    %v2828 = vmul.f32 %v2820, %v2820
    %v2829 = vmul.f32 %v2821, %v2821
    %v2830 = vmul.f32 %v2822, %v2822
    %v2831 = vmul.f32 %v2823, %v2823
    %v2832 = vmul.f32 %v2824, %v2824
    %v2833 = vmul.f32 %v2825, %v2825
    %v2834 = vmul.f32 %v2826, %v2826
    %v2835 = vmul.f32 %v2827, %v2827
    %v2836 = vsel %vm95, %v2828, 0.0
    %2837 = vadd.xlane.f32.xlu0 %v2836
    %v2838 = vpop.xlane.xlu0 %2837
    %v2839 = vsel %vm95, %v2829, 0.0
    %2840 = vadd.xlane.f32.xlu0 %v2839
    %v2841 = vpop.xlane.xlu0 %2840
    %v2842 = vsel %vm95, %v2830, 0.0
    %2843 = vadd.xlane.f32.xlu0 %v2842
    %v2844 = vpop.xlane.xlu0 %2843
    %v2845 = vsel %vm95, %v2831, 0.0
    %2846 = vadd.xlane.f32.xlu0 %v2845
    %v2847 = vpop.xlane.xlu0 %2846
    %v2848 = vsel %vm95, %v2832, 0.0
    %2849 = vadd.xlane.f32.xlu0 %v2848
    %v2850 = vpop.xlane.xlu0 %2849
    %v2851 = vsel %vm95, %v2833, 0.0
    %2852 = vadd.xlane.f32.xlu0 %v2851
    %v2853 = vpop.xlane.xlu0 %2852
    %v2854 = vsel %vm95, %v2834, 0.0
    %2855 = vadd.xlane.f32.xlu0 %v2854
    %v2856 = vpop.xlane.xlu0 %2855
    %v2857 = vsel %vm95, %v2835, 0.0
    %2858 = vadd.xlane.f32.xlu0 %v2857
    %v2859 = vpop.xlane.xlu0 %2858
    %v2860 = vmul.f32 %v2838, %v120
    %v2861 = vmul.f32 %v2841, %v120
    %v2862 = vmul.f32 %v2844, %v120
    %v2863 = vmul.f32 %v2847, %v120
    %v2864 = vmul.f32 %v2850, %v120
    %v2865 = vmul.f32 %v2853, %v120
    %v2866 = vmul.f32 %v2856, %v120
    %v2867 = vmul.f32 %v2859, %v120
    %v2868 = vadd.f32 %v2860, 1e-12
    %v2869 = vadd.f32 %v2861, 1e-12
    %v2870 = vadd.f32 %v2862, 1e-12
    %v2871 = vadd.f32 %v2863, 1e-12
    %v2872 = vadd.f32 %v2864, 1e-12
    %v2873 = vadd.f32 %v2865, 1e-12
    %v2874 = vadd.f32 %v2866, 1e-12
    %v2875 = vadd.f32 %v2867, 1e-12
    %v2876 = vrsqrt.pop %v2868
    %v2877 = vrsqrt.pop %v2869
    %v2878 = vrsqrt.pop %v2870
    %v2879 = vrsqrt.pop %v2871
    %v2880 = vrsqrt.pop %v2872
    %v2881 = vrsqrt.pop %v2873
    %v2882 = vrsqrt.pop %v2874
    %v2883 = vrsqrt.pop %v2875
    %v2884 = vmul.f32 %v2820, %v2876
    %v2885 = vmul.f32 %v2821, %v2877
    %v2886 = vmul.f32 %v2822, %v2878
    %v2887 = vmul.f32 %v2823, %v2879
    %v2888 = vmul.f32 %v2824, %v2880
    %v2889 = vmul.f32 %v2825, %v2881
    %v2890 = vmul.f32 %v2826, %v2882
    %v2891 = vmul.f32 %v2827, %v2883
    %v2893 = vlaneseq
    %v2894 = vshrl.u32 %v2893, 7
    %v2895 = vsub.s32 0, %v2894
    %v2896 = vrot.slane %v2786, %v2895
    %v2898 = vmul.f32 %v2884, %v2896
    %v2899 = vmul.f32 %v2885, %v2896
    %v2900 = vmul.f32 %v2886, %v2896
    %v2901 = vmul.f32 %v2887, %v2896
    %v2902 = vmul.f32 %v2888, %v2896
    %v2903 = vmul.f32 %v2889, %v2896
    %v2904 = vmul.f32 %v2890, %v2896
    %v2905 = vmul.f32 %v2891, %v2896
    %v2907 = vlaneseq
    %v2908 = vshrl.u32 %v2907, 7
    %v2909 = vsub.s32 0, %v2908
    %v2910 = vrot.slane %v2787, %v2909
    %v2912 = vadd.f32 %v2898, %v2910
    %v2913 = vadd.f32 %v2899, %v2910
    %v2914 = vadd.f32 %v2900, %v2910
    %v2915 = vadd.f32 %v2901, %v2910
    %v2916 = vadd.f32 %v2902, %v2910
    %v2917 = vadd.f32 %v2903, %v2910
    %v2918 = vadd.f32 %v2904, %v2910
    %v2919 = vadd.f32 %v2905, %v2910
    %v2920 = vpack.c.bf16 %v2913, %v2912
    %v2921 = vpack.c.bf16 %v2915, %v2914
    %v2922 = vpack.c.bf16 %v2917, %v2916
    %v2923 = vpack.c.bf16 %v2919, %v2918
    %v2924 = vld [vmem:[%s16] sm:$0xf]
    %v2925 = vld [vmem:[%s16 + $0x4] sm:$0xf]
    %v2926 = vld [vmem:[%s16 + $0x8] sm:$0xf]
    %v2927 = vld [vmem:[%s16 + $0xc] sm:$0xf]
    %v2928 = vld [vmem:[%s17] sm:$0x1]
    %v2930 = vlaneseq
    %v2931 = vshrl.u32 %v2930, 7
    %v2932 = vsub.s32 0, %v2931
    %v2933 = vrot.slane %v2928, %v2932
    %v2939 = vunpack.c.l.b16 %v2924
    %v2940 = vunpack.c.l.b16 %v2925
    %v2941 = vunpack.c.l.b16 %v2926
    %v2942 = vunpack.c.l.b16 %v2927
    %v2943 = vpack.c.b16 %v2940, %v2939
    %v2944 = vpack.c.b16 %v2942, %v2941
    %v2948 = vsel %vm95, %v2920, 0
    %v2951 = vsel %vm95, %v2921, 0
    %v2954 = vsel %vm95, %v2922, 0
    %v2957 = vsel %vm95, %v2923, 0
    %2959 = vmatprep.subr.bf16.mxu0 0
    %2960 = vmatpush1.bf16.msra.mxu0 %v2943
    %2961 = vmatprep.subr.bf16.mxu0 0
    %2962 = vmatpush1.bf16.msra.mxu0 %v2944
    %2963 = vmatprep.subr.bf16.mxu0 0
    %2964 = vmatpush1.bf16.msra.mxu0 0
    %2965 = vmatprep.subr.bf16.mxu0 0
    %2966 = vmatpush1.bf16.msra.mxu0 0
    %2967 = vmatprep.subr.bf16.mxu0 0
    %2968 = vmatpush1.bf16.msra.mxu0 0
    %2969 = vmatprep.subr.bf16.mxu0 0
    %2970 = vmatpush1.bf16.msra.mxu0 0
    %2971 = vmatprep.subr.bf16.mxu0 0
    %2972 = vmatpush1.bf16.msra.mxu0 0
    %2973 = vmatprep.subr.bf16.mxu0 0
    %2974 = vmatpush1.bf16.msra.mxu0 0
    %2975 = vmatprep.subr.bf16.mxu0 0
    %2976 = vmatpush1.bf16.msra.mxu0 0
    %2977 = vmatprep.subr.bf16.mxu0 0
    %2978 = vmatpush1.bf16.msra.mxu0 0
    %2979 = vmatprep.subr.bf16.mxu0 0
    %2980 = vmatpush1.bf16.msra.mxu0 0
    %2981 = vmatprep.subr.bf16.mxu0 0
    %2982 = vmatpush1.bf16.msra.mxu0 0
    %2983 = vmatprep.subr.bf16.mxu0 0
    %2984 = vmatpush1.bf16.msra.mxu0 0
    %2985 = vmatprep.subr.bf16.mxu0 0
    %2986 = vmatpush1.bf16.msra.mxu0 0
    %2987 = vmatprep.subr.bf16.mxu0 0
    %2988 = vmatpush1.bf16.msra.mxu0 0
    %2989 = vmatprep.subr.bf16.mxu0 0
    %2990 = vmatpush1.bf16.msra.mxu0 0
    %2991 = vmatprep.mubr.bf16.mxu0 0
    %2992 = vmatmul.mubr.bf16.gmra.mrb[0].mxu0 %v2948
    %v2993 = vpop.f32.mrb[0].mxu0
    %v2994 = vadd.f32 %v2933, %v2993
    %v2995 = vpop.f32.mrb[0].mxu0
    %v2996 = vpop.f32.mrb[0].mxu0
    %v2997 = vadd.f32 %v2933, %v2996
    %v2998 = vpop.f32.mrb[0].mxu0
    %2999 = vmatprep.mubr.bf16.mxu0 0
    %3000 = vmatmul.mubr.bf16.gmra.mrb[0].mxu0 %v2951
    %v3001 = vpop.f32.mrb[0].mxu0
    %v3002 = vadd.f32 %v2933, %v3001
    %v3003 = vpop.f32.mrb[0].mxu0
    %v3004 = vpop.f32.mrb[0].mxu0
    %v3005 = vadd.f32 %v2933, %v3004
    %v3006 = vpop.f32.mrb[0].mxu0
    %3007 = vmatprep.mubr.bf16.mxu0 0
    %3008 = vmatmul.mubr.bf16.gmra.mrb[0].mxu0 %v2954
    %v3009 = vpop.f32.mrb[0].mxu0
    %v3010 = vadd.f32 %v2933, %v3009
    %v3011 = vpop.f32.mrb[0].mxu0
    %v3012 = vpop.f32.mrb[0].mxu0
    %v3013 = vadd.f32 %v2933, %v3012
    %v3014 = vpop.f32.mrb[0].mxu0
    %3015 = vmatprep.mubr.bf16.mxu0 0
    %3016 = vmatmul.mubr.bf16.gmra.mrb[0].mxu0 %v2957
    %v3017 = vpop.f32.mrb[0].mxu0
    %v3018 = vadd.f32 %v2933, %v3017
    %v3019 = vpop.f32.mrb[0].mxu0
    %v3020 = vpop.f32.mrb[0].mxu0
    %v3021 = vadd.f32 %v2933, %v3020
    %v3022 = vpop.f32.mrb[0].mxu0
    %3023 = vdwg.mxu0
    %v3024 = vmul.f32 %v2994, 0.5
    %v3025 = vmul.f32 %v2997, 0.5
    %v3026 = vmul.f32 %v3002, 0.5
    %v3027 = vmul.f32 %v3005, 0.5
    %v3028 = vmul.f32 %v3010, 0.5
    %v3029 = vmul.f32 %v3013, 0.5
    %v3030 = vmul.f32 %v3018, 0.5
    %v3031 = vmul.f32 %v3021, 0.5
    %v3032 = vmul.f32 %v2994, 0.044715
    %v3033 = vmul.f32 %v2997, 0.044715
    %v3034 = vmul.f32 %v3002, 0.044715
    %v3035 = vmul.f32 %v3005, 0.044715
    %v3036 = vmul.f32 %v3010, 0.044715
    %v3037 = vmul.f32 %v3013, 0.044715
    %v3038 = vmul.f32 %v3018, 0.044715
    %v3039 = vmul.f32 %v3021, 0.044715
    %v3040 = vmul.f32 %v3032, %v2994
    %v3041 = vmul.f32 %v3033, %v2997
    %v3042 = vmul.f32 %v3034, %v3002
    %v3043 = vmul.f32 %v3035, %v3005
    %v3044 = vmul.f32 %v3036, %v3010
    %v3045 = vmul.f32 %v3037, %v3013
    %v3046 = vmul.f32 %v3038, %v3018
    %v3047 = vmul.f32 %v3039, %v3021
    %v3048 = vmul.f32 %v3040, %v2994
    %v3049 = vmul.f32 %v3041, %v2997
    %v3050 = vmul.f32 %v3042, %v3002
    %v3051 = vmul.f32 %v3043, %v3005
    %v3052 = vmul.f32 %v3044, %v3010
    %v3053 = vmul.f32 %v3045, %v3013
    %v3054 = vmul.f32 %v3046, %v3018
    %v3055 = vmul.f32 %v3047, %v3021
    %v3056 = vadd.f32 %v2994, %v3048
    %v3057 = vadd.f32 %v2997, %v3049
    %v3058 = vadd.f32 %v3002, %v3050
    %v3059 = vadd.f32 %v3005, %v3051
    %v3060 = vadd.f32 %v3010, %v3052
    %v3061 = vadd.f32 %v3013, %v3053
    %v3062 = vadd.f32 %v3018, %v3054
    %v3063 = vadd.f32 %v3021, %v3055
    %v3064 = vmul.f32 %v3056, 0.7978846
    %v3065 = vmul.f32 %v3057, 0.7978846
    %v3066 = vmul.f32 %v3058, 0.7978846
    %v3067 = vmul.f32 %v3059, 0.7978846
    %v3068 = vmul.f32 %v3060, 0.7978846
    %v3069 = vmul.f32 %v3061, 0.7978846
    %v3070 = vmul.f32 %v3062, 0.7978846
    %v3071 = vmul.f32 %v3063, 0.7978846
    %v3072 = vtanh.pop %v3064
    %v3073 = vtanh.pop %v3065
    %v3074 = vtanh.pop %v3066
    %v3075 = vtanh.pop %v3067
    %v3076 = vtanh.pop %v3068
    %v3077 = vtanh.pop %v3069
    %v3078 = vtanh.pop %v3070
    %v3079 = vtanh.pop %v3071
    %v3080 = vadd.f32 %v3072, 1.0
    %v3081 = vadd.f32 %v3073, 1.0
    %v3082 = vadd.f32 %v3074, 1.0
    %v3083 = vadd.f32 %v3075, 1.0
    %v3084 = vadd.f32 %v3076, 1.0
    %v3085 = vadd.f32 %v3077, 1.0
    %v3086 = vadd.f32 %v3078, 1.0
    %v3087 = vadd.f32 %v3079, 1.0
    %v3088 = vmul.f32 %v3024, %v3080
    %v3089 = vmul.f32 %v3025, %v3081
    %v3090 = vmul.f32 %v3026, %v3082
    %v3091 = vmul.f32 %v3027, %v3083
    %v3092 = vmul.f32 %v3028, %v3084
    %v3093 = vmul.f32 %v3029, %v3085
    %v3094 = vmul.f32 %v3030, %v3086
    %v3095 = vmul.f32 %v3031, %v3087
    %v3096 = vpack.c.bf16 %v3089, %v3088
    %v3097 = vpack.c.bf16 %v3091, %v3090
    %v3098 = vpack.c.bf16 %v3093, %v3092
    %v3099 = vpack.c.bf16 %v3095, %v3094
    %v3100 = vld [vmem:[%s18] sm:$0xf]
    %v3101 = vld [vmem:[%s18 + $0x4] sm:$0xf]
    %v3102 = vld [vmem:[%s18 + $0x8] sm:$0xf]
    %v3103 = vld [vmem:[%s18 + $0xc] sm:$0xf]
    %v3104 = vld [vmem:[%s18 + $0x10] sm:$0xf]
    %v3105 = vld [vmem:[%s18 + $0x14] sm:$0xf]
    %v3106 = vld [vmem:[%s18 + $0x18] sm:$0xf]
    %v3107 = vld [vmem:[%s18 + $0x1c] sm:$0xf]
    %v3108 = vld [vmem:[%s19] sm:$0x1]
    %v3110 = vlaneseq
    %v3111 = vshrl.u32 %v3110, 7
    %v3112 = vsub.s32 0, %v3111
    %v3113 = vrot.slane %v3108, %v3112
    %v3123 = vunpack.c.l.b16 %v3100
    %v3124 = vunpack.c.l.b16 %v3101
    %v3125 = vunpack.c.l.b16 %v3102
    %v3126 = vunpack.c.l.b16 %v3103
    %v3127 = vunpack.c.l.b16 %v3104
    %v3128 = vunpack.c.l.b16 %v3105
    %v3129 = vunpack.c.l.b16 %v3106
    %v3130 = vunpack.c.l.b16 %v3107
    %v3131 = vpack.c.b16 %v3124, %v3123
    %v3132 = vpack.c.b16 %v3126, %v3125
    %v3133 = vpack.c.b16 %v3128, %v3127
    %v3134 = vpack.c.b16 %v3130, %v3129
    %vm3139 = vcmask 523264
    %v3141 = vsel %vm3139, %v3096, 0
    %v3144 = vsel %vm3139, %v3097, 0
    %v3147 = vsel %vm3139, %v3098, 0
    %v3150 = vsel %vm3139, %v3099, 0
    %3152 = vmatprep.subr.bf16.mxu0 0
    %3153 = vmatpush1.bf16.msra.mxu0 %v3131
    %3154 = vmatprep.subr.bf16.mxu0 0
    %3155 = vmatpush1.bf16.msra.mxu0 %v3132
    %3156 = vmatprep.subr.bf16.mxu0 0
    %3157 = vmatpush1.bf16.msra.mxu0 %v3133
    %3158 = vmatprep.subr.bf16.mxu0 0
    %3159 = vmatpush1.bf16.msra.mxu0 %v3134
    %3160 = vmatprep.subr.bf16.mxu0 0
    %3161 = vmatpush1.bf16.msra.mxu0 0
    %3162 = vmatprep.subr.bf16.mxu0 0
    %3163 = vmatpush1.bf16.msra.mxu0 0
    %3164 = vmatprep.subr.bf16.mxu0 0
    %3165 = vmatpush1.bf16.msra.mxu0 0
    %3166 = vmatprep.subr.bf16.mxu0 0
    %3167 = vmatpush1.bf16.msra.mxu0 0
    %3168 = vmatprep.subr.bf16.mxu0 0
    %3169 = vmatpush1.bf16.msra.mxu0 0
    %3170 = vmatprep.subr.bf16.mxu0 0
    %3171 = vmatpush1.bf16.msra.mxu0 0
    %3172 = vmatprep.subr.bf16.mxu0 0
    %3173 = vmatpush1.bf16.msra.mxu0 0
    %3174 = vmatprep.subr.bf16.mxu0 0
    %3175 = vmatpush1.bf16.msra.mxu0 0
    %3176 = vmatprep.subr.bf16.mxu0 0
    %3177 = vmatpush1.bf16.msra.mxu0 0
    %3178 = vmatprep.subr.bf16.mxu0 0
    %3179 = vmatpush1.bf16.msra.mxu0 0
    %3180 = vmatprep.subr.bf16.mxu0 0
    %3181 = vmatpush1.bf16.msra.mxu0 0
    %3182 = vmatprep.subr.bf16.mxu0 0
    %3183 = vmatpush1.bf16.msra.mxu0 0
    %3184 = vmatprep.mubr.bf16.mxu0 0
    %3185 = vmatmul.mubr.bf16.gmra.mrb[0].mxu0 %v3141
    %v3186 = vpop.f32.mrb[0].mxu0
    %v3187 = vadd.f32 %v3113, %v3186
    %v3188 = vpop.f32.mrb[0].mxu0
    %v3189 = vpop.f32.mrb[0].mxu0
    %v3190 = vadd.f32 %v3113, %v3189
    %v3191 = vpop.f32.mrb[0].mxu0
    %3192 = vmatprep.mubr.bf16.mxu0 0
    %3193 = vmatmul.mubr.bf16.gmra.mrb[0].mxu0 %v3144
    %v3194 = vpop.f32.mrb[0].mxu0
    %v3195 = vadd.f32 %v3113, %v3194
    %v3196 = vpop.f32.mrb[0].mxu0
    %v3197 = vpop.f32.mrb[0].mxu0
    %v3198 = vadd.f32 %v3113, %v3197
    %v3199 = vpop.f32.mrb[0].mxu0
    %3200 = vmatprep.mubr.bf16.mxu0 0
    %3201 = vmatmul.mubr.bf16.gmra.mrb[0].mxu0 %v3147
    %v3202 = vpop.f32.mrb[0].mxu0
    %v3203 = vadd.f32 %v3113, %v3202
    %v3204 = vpop.f32.mrb[0].mxu0
    %v3205 = vpop.f32.mrb[0].mxu0
    %v3206 = vadd.f32 %v3113, %v3205
    %v3207 = vpop.f32.mrb[0].mxu0
    %3208 = vmatprep.mubr.bf16.mxu0 0
    %3209 = vmatmul.mubr.bf16.gmra.mrb[0].mxu0 %v3150
    %v3210 = vpop.f32.mrb[0].mxu0
    %v3211 = vadd.f32 %v3113, %v3210
    %v3212 = vpop.f32.mrb[0].mxu0
    %v3213 = vpop.f32.mrb[0].mxu0
    %v3214 = vadd.f32 %v3113, %v3213
    %v3215 = vpop.f32.mrb[0].mxu0
    %3216 = vdwg.mxu0
    %v3217 = vadd.f32 %v3187, %v2912
    %v3218 = vadd.f32 %v3190, %v2913
    %v3219 = vadd.f32 %v3195, %v2914
    %v3220 = vadd.f32 %v3198, %v2915
    %v3221 = vadd.f32 %v3203, %v2916
    %v3222 = vadd.f32 %v3206, %v2917
    %v3223 = vadd.f32 %v3211, %v2918
    %v3224 = vadd.f32 %v3214, %v2919
    %v3225 = vld [vmem:[%s20] sm:$0x1]
    %v3226 = vld [vmem:[%s21] sm:$0x1]
    %v3227 = vsel %vm95, %v3217, 0.0
    %3228 = vadd.xlane.f32.xlu0 %v3227
    %v3229 = vpop.xlane.xlu0 %3228
    %v3230 = vsel %vm95, %v3218, 0.0
    %3231 = vadd.xlane.f32.xlu0 %v3230
    %v3232 = vpop.xlane.xlu0 %3231
    %v3233 = vsel %vm95, %v3219, 0.0
    %3234 = vadd.xlane.f32.xlu0 %v3233
    %v3235 = vpop.xlane.xlu0 %3234
    %v3236 = vsel %vm95, %v3220, 0.0
    %3237 = vadd.xlane.f32.xlu0 %v3236
    %v3238 = vpop.xlane.xlu0 %3237
    %v3239 = vsel %vm95, %v3221, 0.0
    %3240 = vadd.xlane.f32.xlu0 %v3239
    %v3241 = vpop.xlane.xlu0 %3240
    %v3242 = vsel %vm95, %v3222, 0.0
    %3243 = vadd.xlane.f32.xlu0 %v3242
    %v3244 = vpop.xlane.xlu0 %3243
    %v3245 = vsel %vm95, %v3223, 0.0
    %3246 = vadd.xlane.f32.xlu0 %v3245
    %v3247 = vpop.xlane.xlu0 %3246
    %v3248 = vsel %vm95, %v3224, 0.0
    %3249 = vadd.xlane.f32.xlu0 %v3248
    %v3250 = vpop.xlane.xlu0 %3249
    %v3251 = vmul.f32 %v3229, %v120
    %v3252 = vmul.f32 %v3232, %v120
    %v3253 = vmul.f32 %v3235, %v120
    %v3254 = vmul.f32 %v3238, %v120
    %v3255 = vmul.f32 %v3241, %v120
    %v3256 = vmul.f32 %v3244, %v120
    %v3257 = vmul.f32 %v3247, %v120
    %v3258 = vmul.f32 %v3250, %v120
    %v3259 = vsub.f32 %v3217, %v3251
    %v3260 = vsub.f32 %v3218, %v3252
    %v3261 = vsub.f32 %v3219, %v3253
    %v3262 = vsub.f32 %v3220, %v3254
    %v3263 = vsub.f32 %v3221, %v3255
    %v3264 = vsub.f32 %v3222, %v3256
    %v3265 = vsub.f32 %v3223, %v3257
    %v3266 = vsub.f32 %v3224, %v3258
    %v3267 = vmul.f32 %v3259, %v3259
    %v3268 = vmul.f32 %v3260, %v3260
    %v3269 = vmul.f32 %v3261, %v3261
    %v3270 = vmul.f32 %v3262, %v3262
    %v3271 = vmul.f32 %v3263, %v3263
    %v3272 = vmul.f32 %v3264, %v3264
    %v3273 = vmul.f32 %v3265, %v3265
    %v3274 = vmul.f32 %v3266, %v3266
    %v3275 = vsel %vm95, %v3267, 0.0
    %3276 = vadd.xlane.f32.xlu0 %v3275
    %v3277 = vpop.xlane.xlu0 %3276
    %v3278 = vsel %vm95, %v3268, 0.0
    %3279 = vadd.xlane.f32.xlu0 %v3278
    %v3280 = vpop.xlane.xlu0 %3279
    %v3281 = vsel %vm95, %v3269, 0.0
    %3282 = vadd.xlane.f32.xlu0 %v3281
    %v3283 = vpop.xlane.xlu0 %3282
    %v3284 = vsel %vm95, %v3270, 0.0
    %3285 = vadd.xlane.f32.xlu0 %v3284
    %v3286 = vpop.xlane.xlu0 %3285
    %v3287 = vsel %vm95, %v3271, 0.0
    %3288 = vadd.xlane.f32.xlu0 %v3287
    %v3289 = vpop.xlane.xlu0 %3288
    %v3290 = vsel %vm95, %v3272, 0.0
    %3291 = vadd.xlane.f32.xlu0 %v3290
    %v3292 = vpop.xlane.xlu0 %3291
    %v3293 = vsel %vm95, %v3273, 0.0
    %3294 = vadd.xlane.f32.xlu0 %v3293
    %v3295 = vpop.xlane.xlu0 %3294
    %v3296 = vsel %vm95, %v3274, 0.0
    %3297 = vadd.xlane.f32.xlu0 %v3296
    %v3298 = vpop.xlane.xlu0 %3297
    %v3299 = vmul.f32 %v3277, %v120
    %v3300 = vmul.f32 %v3280, %v120
    %v3301 = vmul.f32 %v3283, %v120
    %v3302 = vmul.f32 %v3286, %v120
    %v3303 = vmul.f32 %v3289, %v120
    %v3304 = vmul.f32 %v3292, %v120
    %v3305 = vmul.f32 %v3295, %v120
    %v3306 = vmul.f32 %v3298, %v120
    %v3307 = vadd.f32 %v3299, 1e-12
    %v3308 = vadd.f32 %v3300, 1e-12
    %v3309 = vadd.f32 %v3301, 1e-12
    %v3310 = vadd.f32 %v3302, 1e-12
    %v3311 = vadd.f32 %v3303, 1e-12
    %v3312 = vadd.f32 %v3304, 1e-12
    %v3313 = vadd.f32 %v3305, 1e-12
    %v3314 = vadd.f32 %v3306, 1e-12
    %v3315 = vrsqrt.pop %v3307
    %v3316 = vrsqrt.pop %v3308
    %v3317 = vrsqrt.pop %v3309
    %v3318 = vrsqrt.pop %v3310
    %v3319 = vrsqrt.pop %v3311
    %v3320 = vrsqrt.pop %v3312
    %v3321 = vrsqrt.pop %v3313
    %v3322 = vrsqrt.pop %v3314
    %v3323 = vmul.f32 %v3259, %v3315
    %v3324 = vmul.f32 %v3260, %v3316
    %v3325 = vmul.f32 %v3261, %v3317
    %v3326 = vmul.f32 %v3262, %v3318
    %v3327 = vmul.f32 %v3263, %v3319
    %v3328 = vmul.f32 %v3264, %v3320
    %v3329 = vmul.f32 %v3265, %v3321
    %v3330 = vmul.f32 %v3266, %v3322
    %v3332 = vlaneseq
    %v3333 = vshrl.u32 %v3332, 7
    %v3334 = vsub.s32 0, %v3333
    %v3335 = vrot.slane %v3225, %v3334
    %v3337 = vmul.f32 %v3323, %v3335
    %v3338 = vmul.f32 %v3324, %v3335
    %v3339 = vmul.f32 %v3325, %v3335
    %v3340 = vmul.f32 %v3326, %v3335
    %v3341 = vmul.f32 %v3327, %v3335
    %v3342 = vmul.f32 %v3328, %v3335
    %v3343 = vmul.f32 %v3329, %v3335
    %v3344 = vmul.f32 %v3330, %v3335
    %v3346 = vlaneseq
    %v3347 = vshrl.u32 %v3346, 7
    %v3348 = vsub.s32 0, %v3347
    %v3349 = vrot.slane %v3226, %v3348
    %v3351 = vadd.f32 %v3337, %v3349
    %v3352 = vadd.f32 %v3338, %v3349
    %v3353 = vadd.f32 %v3339, %v3349
    %v3354 = vadd.f32 %v3340, %v3349
    %v3355 = vadd.f32 %v3341, %v3349
    %v3356 = vadd.f32 %v3342, %v3349
    %v3357 = vadd.f32 %v3343, %v3349
    %v3358 = vadd.f32 %v3344, %v3349
    %v3359 = vpack.c.bf16 %v3352, %v3351
    %v3360 = vpack.c.bf16 %v3354, %v3353
    %v3361 = vpack.c.bf16 %v3356, %v3355
    %v3362 = vpack.c.bf16 %v3358, %v3357
    %s3363 = scalar_lea.vmem %s6, 32
    %v3364 = vld [vmem:[%s3363] sm:$0xf]
    %v3365 = vld [vmem:[%s3363 + $0x4] sm:$0xf]
    %v3366 = vld [vmem:[%s3363 + $0x8] sm:$0xf]
    %v3367 = vld [vmem:[%s3363 + $0xc] sm:$0xf]
    %v3368 = vld [vmem:[%s3363 + $0x10] sm:$0xf]
    %v3369 = vld [vmem:[%s3363 + $0x14] sm:$0xf]
    %v3370 = vld [vmem:[%s3363 + $0x18] sm:$0xf]
    %v3371 = vld [vmem:[%s3363 + $0x1c] sm:$0xf]
    %s3372 = scalar_lea.vmem %s7, 2
    %v3373 = vld [vmem:[%s3372] sm:$0x1]
    %v3374 = vld [vmem:[%s3372 + $0x1] sm:$0x1]
    %s3375 = scalar_lea.vmem %s8, 32
    %v3376 = vld [vmem:[%s3375] sm:$0xf]
    %v3377 = vld [vmem:[%s3375 + $0x4] sm:$0xf]
    %v3378 = vld [vmem:[%s3375 + $0x8] sm:$0xf]
    %v3379 = vld [vmem:[%s3375 + $0xc] sm:$0xf]
    %v3380 = vld [vmem:[%s3375 + $0x10] sm:$0xf]
    %v3381 = vld [vmem:[%s3375 + $0x14] sm:$0xf]
    %v3382 = vld [vmem:[%s3375 + $0x18] sm:$0xf]
    %v3383 = vld [vmem:[%s3375 + $0x1c] sm:$0xf]
    %s3384 = scalar_lea.vmem %s9, 2
    %v3385 = vld [vmem:[%s3384] sm:$0x1]
    %v3386 = vld [vmem:[%s3384 + $0x1] sm:$0x1]
    %s3387 = scalar_lea.vmem %s10, 32
    %v3388 = vld [vmem:[%s3387] sm:$0xf]
    %v3389 = vld [vmem:[%s3387 + $0x4] sm:$0xf]
    %v3390 = vld [vmem:[%s3387 + $0x8] sm:$0xf]
    %v3391 = vld [vmem:[%s3387 + $0xc] sm:$0xf]
    %v3392 = vld [vmem:[%s3387 + $0x10] sm:$0xf]
    %v3393 = vld [vmem:[%s3387 + $0x14] sm:$0xf]
    %v3394 = vld [vmem:[%s3387 + $0x18] sm:$0xf]
    %v3395 = vld [vmem:[%s3387 + $0x1c] sm:$0xf]
    %s3396 = scalar_lea.vmem %s11, 2
    %v3397 = vld [vmem:[%s3396] sm:$0x1]
    %v3398 = vld [vmem:[%s3396 + $0x1] sm:$0x1]
    %s3399 = scalar_lea.vmem %s12, 16
    %v3400 = vld [vmem:[%s3399] sm:$0xf]
    %v3401 = vld [vmem:[%s3399 + $0x4] sm:$0xf]
    %v3402 = vld [vmem:[%s3399 + $0x8] sm:$0xf]
    %v3403 = vld [vmem:[%s3399 + $0xc] sm:$0xf]
    %s3404 = scalar_lea.vmem %s13, 1
    %v3405 = vld [vmem:[%s3404] sm:$0x1]
    %v3407 = vlaneseq
    %v3408 = vshrl.u32 %v3407, 7
    %v3409 = vsub.s32 0, %v3408
    %v3410 = vrot.slane %v3405, %v3409
    %v3412 = vadd.f32 %v3410, 0.0
    %v3414 = vlaneseq
    %v3415 = vshrl.u32 %v3414, 7
    %v3416 = vsub.s32 0, %v3415
    %v3417 = vrot.slane %v3373, %v3416
    %v3423 = vunpack.c.l.b16 %v3364
    %v3424 = vunpack.c.l.b16 %v3365
    %v3425 = vunpack.c.l.b16 %v3366
    %v3426 = vunpack.c.l.b16 %v3367
    %v3427 = vpack.c.b16 %v3424, %v3423
    %v3428 = vpack.c.b16 %v3426, %v3425
    %v3432 = vsel %vm95, %v3359, 0
    %v3435 = vsel %vm95, %v3360, 0
    %v3438 = vsel %vm95, %v3361, 0
    %v3441 = vsel %vm95, %v3362, 0
    %3443 = vmatprep.subr.bf16.mxu0 0
    %3444 = vmatpush1.bf16.msra.mxu0 %v3427
    %3445 = vmatprep.subr.bf16.mxu0 0
    %3446 = vmatpush1.bf16.msra.mxu0 %v3428
    %3447 = vmatprep.subr.bf16.mxu0 0
    %3448 = vmatpush1.bf16.msra.mxu0 0
    %3449 = vmatprep.subr.bf16.mxu0 0
    %3450 = vmatpush1.bf16.msra.mxu0 0
    %3451 = vmatprep.subr.bf16.mxu0 0
    %3452 = vmatpush1.bf16.msra.mxu0 0
    %3453 = vmatprep.subr.bf16.mxu0 0
    %3454 = vmatpush1.bf16.msra.mxu0 0
    %3455 = vmatprep.subr.bf16.mxu0 0
    %3456 = vmatpush1.bf16.msra.mxu0 0
    %3457 = vmatprep.subr.bf16.mxu0 0
    %3458 = vmatpush1.bf16.msra.mxu0 0
    %3459 = vmatprep.subr.bf16.mxu0 0
    %3460 = vmatpush1.bf16.msra.mxu0 0
    %3461 = vmatprep.subr.bf16.mxu0 0
    %3462 = vmatpush1.bf16.msra.mxu0 0
    %3463 = vmatprep.subr.bf16.mxu0 0
    %3464 = vmatpush1.bf16.msra.mxu0 0
    %3465 = vmatprep.subr.bf16.mxu0 0
    %3466 = vmatpush1.bf16.msra.mxu0 0
    %3467 = vmatprep.subr.bf16.mxu0 0
    %3468 = vmatpush1.bf16.msra.mxu0 0
    %3469 = vmatprep.subr.bf16.mxu0 0
    %3470 = vmatpush1.bf16.msra.mxu0 0
    %3471 = vmatprep.subr.bf16.mxu0 0
    %3472 = vmatpush1.bf16.msra.mxu0 0
    %3473 = vmatprep.subr.bf16.mxu0 0
    %3474 = vmatpush1.bf16.msra.mxu0 0
    %3475 = vmatprep.mubr.bf16.mxu0 0
    %3476 = vmatmul.mubr.bf16.gmra.mrb[0].mxu0 %v3432
    %v3477 = vpop.f32.mrb[0].mxu0
    %v3478 = vadd.f32 %v3417, %v3477
    %v3479 = vpop.f32.mrb[0].mxu0
    %v3480 = vpop.f32.mrb[0].mxu0
    %v3481 = vadd.f32 %v3417, %v3480
    %v3482 = vpop.f32.mrb[0].mxu0
    %3483 = vmatprep.mubr.bf16.mxu0 0
    %3484 = vmatmul.mubr.bf16.gmra.mrb[0].mxu0 %v3435
    %v3485 = vpop.f32.mrb[0].mxu0
    %v3486 = vadd.f32 %v3417, %v3485
    %v3487 = vpop.f32.mrb[0].mxu0
    %v3488 = vpop.f32.mrb[0].mxu0
    %v3489 = vadd.f32 %v3417, %v3488
    %v3490 = vpop.f32.mrb[0].mxu0
    %3491 = vmatprep.mubr.bf16.mxu0 0
    %3492 = vmatmul.mubr.bf16.gmra.mrb[0].mxu0 %v3438
    %v3493 = vpop.f32.mrb[0].mxu0
    %v3494 = vadd.f32 %v3417, %v3493
    %v3495 = vpop.f32.mrb[0].mxu0
    %v3496 = vpop.f32.mrb[0].mxu0
    %v3497 = vadd.f32 %v3417, %v3496
    %v3498 = vpop.f32.mrb[0].mxu0
    %3499 = vmatprep.mubr.bf16.mxu0 0
    %3500 = vmatmul.mubr.bf16.gmra.mrb[0].mxu0 %v3441
    %v3501 = vpop.f32.mrb[0].mxu0
    %v3502 = vadd.f32 %v3417, %v3501
    %v3503 = vpop.f32.mrb[0].mxu0
    %v3504 = vpop.f32.mrb[0].mxu0
    %v3505 = vadd.f32 %v3417, %v3504
    %v3506 = vpop.f32.mrb[0].mxu0
    %3507 = vdwg.mxu0
    %v3509 = vlaneseq
    %v3510 = vshrl.u32 %v3509, 7
    %v3511 = vsub.s32 0, %v3510
    %v3512 = vrot.slane %v3385, %v3511
    %v3518 = vunpack.c.l.b16 %v3376
    %v3519 = vunpack.c.l.b16 %v3377
    %v3520 = vunpack.c.l.b16 %v3378
    %v3521 = vunpack.c.l.b16 %v3379
    %v3522 = vpack.c.b16 %v3519, %v3518
    %v3523 = vpack.c.b16 %v3521, %v3520
    %3526 = vmatprep.subr.bf16.mxu0 0
    %3527 = vmatpush1.bf16.msra.mxu0 %v3522
    %3528 = vmatprep.subr.bf16.mxu0 0
    %3529 = vmatpush1.bf16.msra.mxu0 %v3523
    %3530 = vmatprep.subr.bf16.mxu0 0
    %3531 = vmatpush1.bf16.msra.mxu0 0
    %3532 = vmatprep.subr.bf16.mxu0 0
    %3533 = vmatpush1.bf16.msra.mxu0 0
    %3534 = vmatprep.subr.bf16.mxu0 0
    %3535 = vmatpush1.bf16.msra.mxu0 0
    %3536 = vmatprep.subr.bf16.mxu0 0
    %3537 = vmatpush1.bf16.msra.mxu0 0
    %3538 = vmatprep.subr.bf16.mxu0 0
    %3539 = vmatpush1.bf16.msra.mxu0 0
    %3540 = vmatprep.subr.bf16.mxu0 0
    %3541 = vmatpush1.bf16.msra.mxu0 0
    %3542 = vmatprep.subr.bf16.mxu0 0
    %3543 = vmatpush1.bf16.msra.mxu0 0
    %3544 = vmatprep.subr.bf16.mxu0 0
    %3545 = vmatpush1.bf16.msra.mxu0 0
    %3546 = vmatprep.subr.bf16.mxu0 0
    %3547 = vmatpush1.bf16.msra.mxu0 0
    %3548 = vmatprep.subr.bf16.mxu0 0
    %3549 = vmatpush1.bf16.msra.mxu0 0
    %3550 = vmatprep.subr.bf16.mxu0 0
    %3551 = vmatpush1.bf16.msra.mxu0 0
    %3552 = vmatprep.subr.bf16.mxu0 0
    %3553 = vmatpush1.bf16.msra.mxu0 0
    %3554 = vmatprep.subr.bf16.mxu0 0
    %3555 = vmatpush1.bf16.msra.mxu0 0
    %3556 = vmatprep.subr.bf16.mxu0 0
    %3557 = vmatpush1.bf16.msra.mxu0 0
    %3558 = vmatprep.mubr.bf16.mxu0 0
    %3559 = vmatmul.mubr.bf16.gmra.mrb[0].mxu0 %v3432
    %v3560 = vpop.f32.mrb[0].mxu0
    %v3561 = vadd.f32 %v3512, %v3560
    %v3562 = vpop.f32.mrb[0].mxu0
    %v3563 = vpop.f32.mrb[0].mxu0
    %v3564 = vadd.f32 %v3512, %v3563
    %v3565 = vpop.f32.mrb[0].mxu0
    %3566 = vmatprep.mubr.bf16.mxu0 0
    %3567 = vmatmul.mubr.bf16.gmra.mrb[0].mxu0 %v3435
    %v3568 = vpop.f32.mrb[0].mxu0
    %v3569 = vadd.f32 %v3512, %v3568
    %v3570 = vpop.f32.mrb[0].mxu0
    %v3571 = vpop.f32.mrb[0].mxu0
    %v3572 = vadd.f32 %v3512, %v3571
    %v3573 = vpop.f32.mrb[0].mxu0
    %3574 = vmatprep.mubr.bf16.mxu0 0
    %3575 = vmatmul.mubr.bf16.gmra.mrb[0].mxu0 %v3438
    %v3576 = vpop.f32.mrb[0].mxu0
    %v3577 = vadd.f32 %v3512, %v3576
    %v3578 = vpop.f32.mrb[0].mxu0
    %v3579 = vpop.f32.mrb[0].mxu0
    %v3580 = vadd.f32 %v3512, %v3579
    %v3581 = vpop.f32.mrb[0].mxu0
    %3582 = vmatprep.mubr.bf16.mxu0 0
    %3583 = vmatmul.mubr.bf16.gmra.mrb[0].mxu0 %v3441
    %v3584 = vpop.f32.mrb[0].mxu0
    %v3585 = vadd.f32 %v3512, %v3584
    %v3586 = vpop.f32.mrb[0].mxu0
    %v3587 = vpop.f32.mrb[0].mxu0
    %v3588 = vadd.f32 %v3512, %v3587
    %v3589 = vpop.f32.mrb[0].mxu0
    %3590 = vdwg.mxu0
    %v3592 = vlaneseq
    %v3593 = vshrl.u32 %v3592, 7
    %v3594 = vsub.s32 0, %v3593
    %v3595 = vrot.slane %v3397, %v3594
    %v3601 = vunpack.c.l.b16 %v3388
    %v3602 = vunpack.c.l.b16 %v3389
    %v3603 = vunpack.c.l.b16 %v3390
    %v3604 = vunpack.c.l.b16 %v3391
    %v3605 = vpack.c.b16 %v3602, %v3601
    %v3606 = vpack.c.b16 %v3604, %v3603
    %3609 = vmatprep.subr.bf16.mxu0 0
    %3610 = vmatpush1.bf16.msra.mxu0 %v3605
    %3611 = vmatprep.subr.bf16.mxu0 0
    %3612 = vmatpush1.bf16.msra.mxu0 %v3606
    %3613 = vmatprep.subr.bf16.mxu0 0
    %3614 = vmatpush1.bf16.msra.mxu0 0
    %3615 = vmatprep.subr.bf16.mxu0 0
    %3616 = vmatpush1.bf16.msra.mxu0 0
    %3617 = vmatprep.subr.bf16.mxu0 0
    %3618 = vmatpush1.bf16.msra.mxu0 0
    %3619 = vmatprep.subr.bf16.mxu0 0
    %3620 = vmatpush1.bf16.msra.mxu0 0
    %3621 = vmatprep.subr.bf16.mxu0 0
    %3622 = vmatpush1.bf16.msra.mxu0 0
    %3623 = vmatprep.subr.bf16.mxu0 0
    %3624 = vmatpush1.bf16.msra.mxu0 0
    %3625 = vmatprep.subr.bf16.mxu0 0
    %3626 = vmatpush1.bf16.msra.mxu0 0
    %3627 = vmatprep.subr.bf16.mxu0 0
    %3628 = vmatpush1.bf16.msra.mxu0 0
    %3629 = vmatprep.subr.bf16.mxu0 0
    %3630 = vmatpush1.bf16.msra.mxu0 0
    %3631 = vmatprep.subr.bf16.mxu0 0
    %3632 = vmatpush1.bf16.msra.mxu0 0
    %3633 = vmatprep.subr.bf16.mxu0 0
    %3634 = vmatpush1.bf16.msra.mxu0 0
    %3635 = vmatprep.subr.bf16.mxu0 0
    %3636 = vmatpush1.bf16.msra.mxu0 0
    %3637 = vmatprep.subr.bf16.mxu0 0
    %3638 = vmatpush1.bf16.msra.mxu0 0
    %3639 = vmatprep.subr.bf16.mxu0 0
    %3640 = vmatpush1.bf16.msra.mxu0 0
    %3641 = vmatprep.mubr.bf16.mxu0 0
    %3642 = vmatmul.mubr.bf16.gmra.mrb[0].mxu0 %v3432
    %v3643 = vpop.f32.mrb[0].mxu0
    %v3644 = vadd.f32 %v3595, %v3643
    %v3645 = vpop.f32.mrb[0].mxu0
    %v3646 = vpop.f32.mrb[0].mxu0
    %v3647 = vadd.f32 %v3595, %v3646
    %v3648 = vpop.f32.mrb[0].mxu0
    %3649 = vmatprep.mubr.bf16.mxu0 0
    %3650 = vmatmul.mubr.bf16.gmra.mrb[0].mxu0 %v3435
    %v3651 = vpop.f32.mrb[0].mxu0
    %v3652 = vadd.f32 %v3595, %v3651
    %v3653 = vpop.f32.mrb[0].mxu0
    %v3654 = vpop.f32.mrb[0].mxu0
    %v3655 = vadd.f32 %v3595, %v3654
    %v3656 = vpop.f32.mrb[0].mxu0
    %3657 = vmatprep.mubr.bf16.mxu0 0
    %3658 = vmatmul.mubr.bf16.gmra.mrb[0].mxu0 %v3438
    %v3659 = vpop.f32.mrb[0].mxu0
    %v3660 = vadd.f32 %v3595, %v3659
    %v3661 = vpop.f32.mrb[0].mxu0
    %v3662 = vpop.f32.mrb[0].mxu0
    %v3663 = vadd.f32 %v3595, %v3662
    %v3664 = vpop.f32.mrb[0].mxu0
    %3665 = vmatprep.mubr.bf16.mxu0 0
    %3666 = vmatmul.mubr.bf16.gmra.mrb[0].mxu0 %v3441
    %v3667 = vpop.f32.mrb[0].mxu0
    %v3668 = vadd.f32 %v3595, %v3667
    %v3669 = vpop.f32.mrb[0].mxu0
    %v3670 = vpop.f32.mrb[0].mxu0
    %v3671 = vadd.f32 %v3595, %v3670
    %v3672 = vpop.f32.mrb[0].mxu0
    %3673 = vdwg.mxu0
    %v3674 = vpack.c.bf16 %v3478, %v3478
    %v3675 = vpack.c.bf16 %v3481, %v3481
    %v3676 = vpack.c.bf16 %v3486, %v3486
    %v3677 = vpack.c.bf16 %v3489, %v3489
    %v3678 = vpack.c.bf16 %v3494, %v3494
    %v3679 = vpack.c.bf16 %v3497, %v3497
    %v3680 = vpack.c.bf16 %v3502, %v3502
    %v3681 = vpack.c.bf16 %v3505, %v3505
    %v3682 = vpack.c.bf16 %v3561, %v3561
    %v3683 = vpack.c.bf16 %v3564, %v3564
    %v3684 = vpack.c.bf16 %v3569, %v3569
    %v3685 = vpack.c.bf16 %v3572, %v3572
    %v3686 = vpack.c.bf16 %v3577, %v3577
    %v3687 = vpack.c.bf16 %v3580, %v3580
    %v3688 = vpack.c.bf16 %v3585, %v3585
    %v3689 = vpack.c.bf16 %v3588, %v3588
    %v3690 = vpack.c.bf16 %v3644, %v3644
    %v3691 = vpack.c.bf16 %v3647, %v3647
    %v3692 = vpack.c.bf16 %v3652, %v3652
    %v3693 = vpack.c.bf16 %v3655, %v3655
    %v3694 = vpack.c.bf16 %v3660, %v3660
    %v3695 = vpack.c.bf16 %v3663, %v3663
    %v3696 = vpack.c.bf16 %v3668, %v3668
    %v3697 = vpack.c.bf16 %v3671, %v3671
    %v3699 = vsel %vm568, %v3674, 0
    %v3702 = vsel %vm568, %v3682, 0
    %3704 = vmatprep.subr.bf16.mxu0 0
    %3705 = vmatpush1.bf16.xpose.msra.mxu0 %v3702
    %3706 = vmatprep.subr.bf16.mxu0 0
    %3707 = vmatpush1.bf16.xpose.msra.mxu0 0
    %3708 = vmatprep.subr.bf16.mxu0 0
    %3709 = vmatpush1.bf16.xpose.msra.mxu0 0
    %3710 = vmatprep.subr.bf16.mxu0 0
    %3711 = vmatpush1.bf16.xpose.msra.mxu0 0
    %3712 = vmatprep.subr.bf16.mxu0 0
    %3713 = vmatpush1.bf16.xpose.msra.mxu0 0
    %3714 = vmatprep.subr.bf16.mxu0 0
    %3715 = vmatpush1.bf16.xpose.msra.mxu0 0
    %3716 = vmatprep.subr.bf16.mxu0 0
    %3717 = vmatpush1.bf16.xpose.msra.mxu0 0
    %3718 = vmatprep.subr.bf16.mxu0 0
    %3719 = vmatpush1.bf16.xpose.msra.mxu0 0
    %3720 = vmatprep.subr.bf16.mxu0 0
    %3721 = vmatpush1.bf16.xpose.msra.mxu0 0
    %3722 = vmatprep.subr.bf16.mxu0 0
    %3723 = vmatpush1.bf16.xpose.msra.mxu0 0
    %3724 = vmatprep.subr.bf16.mxu0 0
    %3725 = vmatpush1.bf16.xpose.msra.mxu0 0
    %3726 = vmatprep.subr.bf16.mxu0 0
    %3727 = vmatpush1.bf16.xpose.msra.mxu0 0
    %3728 = vmatprep.subr.bf16.mxu0 0
    %3729 = vmatpush1.bf16.xpose.msra.mxu0 0
    %3730 = vmatprep.subr.bf16.mxu0 0
    %3731 = vmatpush1.bf16.xpose.msra.mxu0 0
    %3732 = vmatprep.subr.bf16.mxu0 0
    %3733 = vmatpush1.bf16.xpose.msra.mxu0 0
    %3734 = vmatprep.subr.bf16.mxu0 0
    %3735 = vmatpush1.bf16.xpose.msra.mxu0 0
    %3736 = vmatprep.mubr.bf16.mxu0 0
    %3737 = vmatmul.mubr.bf16.gmra.mrb[0].mxu0 %v3699
    %v3738 = vpop.f32.mrb[0].mxu0
    %v3739 = vadd.f32 0.0, %v3738
    %v3740 = vpop.f32.mrb[0].mxu0
    %v3741 = vpop.f32.mrb[0].mxu0
    %v3742 = vpop.f32.mrb[0].mxu0
    %3743 = vdwg.mxu0
    %v3745 = vsel %vm568, %v3675, 0
    %v3748 = vsel %vm568, %v3683, 0
    %3750 = vmatprep.subr.bf16.mxu0 0
    %3751 = vmatpush1.bf16.xpose.msra.mxu0 %v3748
    %3752 = vmatprep.subr.bf16.mxu0 0
    %3753 = vmatpush1.bf16.xpose.msra.mxu0 0
    %3754 = vmatprep.subr.bf16.mxu0 0
    %3755 = vmatpush1.bf16.xpose.msra.mxu0 0
    %3756 = vmatprep.subr.bf16.mxu0 0
    %3757 = vmatpush1.bf16.xpose.msra.mxu0 0
    %3758 = vmatprep.subr.bf16.mxu0 0
    %3759 = vmatpush1.bf16.xpose.msra.mxu0 0
    %3760 = vmatprep.subr.bf16.mxu0 0
    %3761 = vmatpush1.bf16.xpose.msra.mxu0 0
    %3762 = vmatprep.subr.bf16.mxu0 0
    %3763 = vmatpush1.bf16.xpose.msra.mxu0 0
    %3764 = vmatprep.subr.bf16.mxu0 0
    %3765 = vmatpush1.bf16.xpose.msra.mxu0 0
    %3766 = vmatprep.subr.bf16.mxu0 0
    %3767 = vmatpush1.bf16.xpose.msra.mxu0 0
    %3768 = vmatprep.subr.bf16.mxu0 0
    %3769 = vmatpush1.bf16.xpose.msra.mxu0 0
    %3770 = vmatprep.subr.bf16.mxu0 0
    %3771 = vmatpush1.bf16.xpose.msra.mxu0 0
    %3772 = vmatprep.subr.bf16.mxu0 0
    %3773 = vmatpush1.bf16.xpose.msra.mxu0 0
    %3774 = vmatprep.subr.bf16.mxu0 0
    %3775 = vmatpush1.bf16.xpose.msra.mxu0 0
    %3776 = vmatprep.subr.bf16.mxu0 0
    %3777 = vmatpush1.bf16.xpose.msra.mxu0 0
    %3778 = vmatprep.subr.bf16.mxu0 0
    %3779 = vmatpush1.bf16.xpose.msra.mxu0 0
    %3780 = vmatprep.subr.bf16.mxu0 0
    %3781 = vmatpush1.bf16.xpose.msra.mxu0 0
    %3782 = vmatprep.mubr.bf16.mxu0 0
    %3783 = vmatmul.mubr.bf16.gmra.mrb[0].mxu0 %v3745
    %v3784 = vpop.f32.mrb[0].mxu0
    %v3785 = vadd.f32 0.0, %v3784
    %v3786 = vpop.f32.mrb[0].mxu0
    %v3787 = vpop.f32.mrb[0].mxu0
    %v3788 = vpop.f32.mrb[0].mxu0
    %3789 = vdwg.mxu0
    %v3791 = vsel %vm568, %v3676, 0
    %v3794 = vsel %vm568, %v3684, 0
    %3796 = vmatprep.subr.bf16.mxu0 0
    %3797 = vmatpush1.bf16.xpose.msra.mxu0 %v3794
    %3798 = vmatprep.subr.bf16.mxu0 0
    %3799 = vmatpush1.bf16.xpose.msra.mxu0 0
    %3800 = vmatprep.subr.bf16.mxu0 0
    %3801 = vmatpush1.bf16.xpose.msra.mxu0 0
    %3802 = vmatprep.subr.bf16.mxu0 0
    %3803 = vmatpush1.bf16.xpose.msra.mxu0 0
    %3804 = vmatprep.subr.bf16.mxu0 0
    %3805 = vmatpush1.bf16.xpose.msra.mxu0 0
    %3806 = vmatprep.subr.bf16.mxu0 0
    %3807 = vmatpush1.bf16.xpose.msra.mxu0 0
    %3808 = vmatprep.subr.bf16.mxu0 0
    %3809 = vmatpush1.bf16.xpose.msra.mxu0 0
    %3810 = vmatprep.subr.bf16.mxu0 0
    %3811 = vmatpush1.bf16.xpose.msra.mxu0 0
    %3812 = vmatprep.subr.bf16.mxu0 0
    %3813 = vmatpush1.bf16.xpose.msra.mxu0 0
    %3814 = vmatprep.subr.bf16.mxu0 0
    %3815 = vmatpush1.bf16.xpose.msra.mxu0 0
    %3816 = vmatprep.subr.bf16.mxu0 0
    %3817 = vmatpush1.bf16.xpose.msra.mxu0 0
    %3818 = vmatprep.subr.bf16.mxu0 0
    %3819 = vmatpush1.bf16.xpose.msra.mxu0 0
    %3820 = vmatprep.subr.bf16.mxu0 0
    %3821 = vmatpush1.bf16.xpose.msra.mxu0 0
    %3822 = vmatprep.subr.bf16.mxu0 0
    %3823 = vmatpush1.bf16.xpose.msra.mxu0 0
    %3824 = vmatprep.subr.bf16.mxu0 0
    %3825 = vmatpush1.bf16.xpose.msra.mxu0 0
    %3826 = vmatprep.subr.bf16.mxu0 0
    %3827 = vmatpush1.bf16.xpose.msra.mxu0 0
    %3828 = vmatprep.mubr.bf16.mxu0 0
    %3829 = vmatmul.mubr.bf16.gmra.mrb[0].mxu0 %v3791
    %v3830 = vpop.f32.mrb[0].mxu0
    %v3831 = vadd.f32 0.0, %v3830
    %v3832 = vpop.f32.mrb[0].mxu0
    %v3833 = vpop.f32.mrb[0].mxu0
    %v3834 = vpop.f32.mrb[0].mxu0
    %3835 = vdwg.mxu0
    %v3837 = vsel %vm568, %v3677, 0
    %v3840 = vsel %vm568, %v3685, 0
    %3842 = vmatprep.subr.bf16.mxu0 0
    %3843 = vmatpush1.bf16.xpose.msra.mxu0 %v3840
    %3844 = vmatprep.subr.bf16.mxu0 0
    %3845 = vmatpush1.bf16.xpose.msra.mxu0 0
    %3846 = vmatprep.subr.bf16.mxu0 0
    %3847 = vmatpush1.bf16.xpose.msra.mxu0 0
    %3848 = vmatprep.subr.bf16.mxu0 0
    %3849 = vmatpush1.bf16.xpose.msra.mxu0 0
    %3850 = vmatprep.subr.bf16.mxu0 0
    %3851 = vmatpush1.bf16.xpose.msra.mxu0 0
    %3852 = vmatprep.subr.bf16.mxu0 0
    %3853 = vmatpush1.bf16.xpose.msra.mxu0 0
    %3854 = vmatprep.subr.bf16.mxu0 0
    %3855 = vmatpush1.bf16.xpose.msra.mxu0 0
    %3856 = vmatprep.subr.bf16.mxu0 0
    %3857 = vmatpush1.bf16.xpose.msra.mxu0 0
    %3858 = vmatprep.subr.bf16.mxu0 0
    %3859 = vmatpush1.bf16.xpose.msra.mxu0 0
    %3860 = vmatprep.subr.bf16.mxu0 0
    %3861 = vmatpush1.bf16.xpose.msra.mxu0 0
    %3862 = vmatprep.subr.bf16.mxu0 0
    %3863 = vmatpush1.bf16.xpose.msra.mxu0 0
    %3864 = vmatprep.subr.bf16.mxu0 0
    %3865 = vmatpush1.bf16.xpose.msra.mxu0 0
    %3866 = vmatprep.subr.bf16.mxu0 0
    %3867 = vmatpush1.bf16.xpose.msra.mxu0 0
    %3868 = vmatprep.subr.bf16.mxu0 0
    %3869 = vmatpush1.bf16.xpose.msra.mxu0 0
    %3870 = vmatprep.subr.bf16.mxu0 0
    %3871 = vmatpush1.bf16.xpose.msra.mxu0 0
    %3872 = vmatprep.subr.bf16.mxu0 0
    %3873 = vmatpush1.bf16.xpose.msra.mxu0 0
    %3874 = vmatprep.mubr.bf16.mxu0 0
    %3875 = vmatmul.mubr.bf16.gmra.mrb[0].mxu0 %v3837
    %v3876 = vpop.f32.mrb[0].mxu0
    %v3877 = vadd.f32 0.0, %v3876
    %v3878 = vpop.f32.mrb[0].mxu0
    %v3879 = vpop.f32.mrb[0].mxu0
    %v3880 = vpop.f32.mrb[0].mxu0
    %3881 = vdwg.mxu0
    %v3883 = vsel %vm568, %v3678, 0
    %v3886 = vsel %vm568, %v3686, 0
    %3888 = vmatprep.subr.bf16.mxu0 0
    %3889 = vmatpush1.bf16.xpose.msra.mxu0 %v3886
    %3890 = vmatprep.subr.bf16.mxu0 0
    %3891 = vmatpush1.bf16.xpose.msra.mxu0 0
    %3892 = vmatprep.subr.bf16.mxu0 0
    %3893 = vmatpush1.bf16.xpose.msra.mxu0 0
    %3894 = vmatprep.subr.bf16.mxu0 0
    %3895 = vmatpush1.bf16.xpose.msra.mxu0 0
    %3896 = vmatprep.subr.bf16.mxu0 0
    %3897 = vmatpush1.bf16.xpose.msra.mxu0 0
    %3898 = vmatprep.subr.bf16.mxu0 0
    %3899 = vmatpush1.bf16.xpose.msra.mxu0 0
    %3900 = vmatprep.subr.bf16.mxu0 0
    %3901 = vmatpush1.bf16.xpose.msra.mxu0 0
    %3902 = vmatprep.subr.bf16.mxu0 0
    %3903 = vmatpush1.bf16.xpose.msra.mxu0 0
    %3904 = vmatprep.subr.bf16.mxu0 0
    %3905 = vmatpush1.bf16.xpose.msra.mxu0 0
    %3906 = vmatprep.subr.bf16.mxu0 0
    %3907 = vmatpush1.bf16.xpose.msra.mxu0 0
    %3908 = vmatprep.subr.bf16.mxu0 0
    %3909 = vmatpush1.bf16.xpose.msra.mxu0 0
    %3910 = vmatprep.subr.bf16.mxu0 0
    %3911 = vmatpush1.bf16.xpose.msra.mxu0 0
    %3912 = vmatprep.subr.bf16.mxu0 0
    %3913 = vmatpush1.bf16.xpose.msra.mxu0 0
    %3914 = vmatprep.subr.bf16.mxu0 0
    %3915 = vmatpush1.bf16.xpose.msra.mxu0 0
    %3916 = vmatprep.subr.bf16.mxu0 0
    %3917 = vmatpush1.bf16.xpose.msra.mxu0 0
    %3918 = vmatprep.subr.bf16.mxu0 0
    %3919 = vmatpush1.bf16.xpose.msra.mxu0 0
    %3920 = vmatprep.mubr.bf16.mxu0 0
    %3921 = vmatmul.mubr.bf16.gmra.mrb[0].mxu0 %v3883
    %v3922 = vpop.f32.mrb[0].mxu0
    %v3923 = vadd.f32 0.0, %v3922
    %v3924 = vpop.f32.mrb[0].mxu0
    %v3925 = vpop.f32.mrb[0].mxu0
    %v3926 = vpop.f32.mrb[0].mxu0
    %3927 = vdwg.mxu0
    %v3929 = vsel %vm568, %v3679, 0
    %v3932 = vsel %vm568, %v3687, 0
    %3934 = vmatprep.subr.bf16.mxu0 0
    %3935 = vmatpush1.bf16.xpose.msra.mxu0 %v3932
    %3936 = vmatprep.subr.bf16.mxu0 0
    %3937 = vmatpush1.bf16.xpose.msra.mxu0 0
    %3938 = vmatprep.subr.bf16.mxu0 0
    %3939 = vmatpush1.bf16.xpose.msra.mxu0 0
    %3940 = vmatprep.subr.bf16.mxu0 0
    %3941 = vmatpush1.bf16.xpose.msra.mxu0 0
    %3942 = vmatprep.subr.bf16.mxu0 0
    %3943 = vmatpush1.bf16.xpose.msra.mxu0 0
    %3944 = vmatprep.subr.bf16.mxu0 0
    %3945 = vmatpush1.bf16.xpose.msra.mxu0 0
    %3946 = vmatprep.subr.bf16.mxu0 0
    %3947 = vmatpush1.bf16.xpose.msra.mxu0 0
    %3948 = vmatprep.subr.bf16.mxu0 0
    %3949 = vmatpush1.bf16.xpose.msra.mxu0 0
    %3950 = vmatprep.subr.bf16.mxu0 0
    %3951 = vmatpush1.bf16.xpose.msra.mxu0 0
    %3952 = vmatprep.subr.bf16.mxu0 0
    %3953 = vmatpush1.bf16.xpose.msra.mxu0 0
    %3954 = vmatprep.subr.bf16.mxu0 0
    %3955 = vmatpush1.bf16.xpose.msra.mxu0 0
    %3956 = vmatprep.subr.bf16.mxu0 0
    %3957 = vmatpush1.bf16.xpose.msra.mxu0 0
    %3958 = vmatprep.subr.bf16.mxu0 0
    %3959 = vmatpush1.bf16.xpose.msra.mxu0 0
    %3960 = vmatprep.subr.bf16.mxu0 0
    %3961 = vmatpush1.bf16.xpose.msra.mxu0 0
    %3962 = vmatprep.subr.bf16.mxu0 0
    %3963 = vmatpush1.bf16.xpose.msra.mxu0 0
    %3964 = vmatprep.subr.bf16.mxu0 0
    %3965 = vmatpush1.bf16.xpose.msra.mxu0 0
    %3966 = vmatprep.mubr.bf16.mxu0 0
    %3967 = vmatmul.mubr.bf16.gmra.mrb[0].mxu0 %v3929
    %v3968 = vpop.f32.mrb[0].mxu0
    %v3969 = vadd.f32 0.0, %v3968
    %v3970 = vpop.f32.mrb[0].mxu0
    %v3971 = vpop.f32.mrb[0].mxu0
    %v3972 = vpop.f32.mrb[0].mxu0
    %3973 = vdwg.mxu0
    %v3975 = vsel %vm568, %v3680, 0
    %v3978 = vsel %vm568, %v3688, 0
    %3980 = vmatprep.subr.bf16.mxu0 0
    %3981 = vmatpush1.bf16.xpose.msra.mxu0 %v3978
    %3982 = vmatprep.subr.bf16.mxu0 0
    %3983 = vmatpush1.bf16.xpose.msra.mxu0 0
    %3984 = vmatprep.subr.bf16.mxu0 0
    %3985 = vmatpush1.bf16.xpose.msra.mxu0 0
    %3986 = vmatprep.subr.bf16.mxu0 0
    %3987 = vmatpush1.bf16.xpose.msra.mxu0 0
    %3988 = vmatprep.subr.bf16.mxu0 0
    %3989 = vmatpush1.bf16.xpose.msra.mxu0 0
    %3990 = vmatprep.subr.bf16.mxu0 0
    %3991 = vmatpush1.bf16.xpose.msra.mxu0 0
    %3992 = vmatprep.subr.bf16.mxu0 0
    %3993 = vmatpush1.bf16.xpose.msra.mxu0 0
    %3994 = vmatprep.subr.bf16.mxu0 0
    %3995 = vmatpush1.bf16.xpose.msra.mxu0 0
    %3996 = vmatprep.subr.bf16.mxu0 0
    %3997 = vmatpush1.bf16.xpose.msra.mxu0 0
    %3998 = vmatprep.subr.bf16.mxu0 0
    %3999 = vmatpush1.bf16.xpose.msra.mxu0 0
    %4000 = vmatprep.subr.bf16.mxu0 0
    %4001 = vmatpush1.bf16.xpose.msra.mxu0 0
    %4002 = vmatprep.subr.bf16.mxu0 0
    %4003 = vmatpush1.bf16.xpose.msra.mxu0 0
    %4004 = vmatprep.subr.bf16.mxu0 0
    %4005 = vmatpush1.bf16.xpose.msra.mxu0 0
    %4006 = vmatprep.subr.bf16.mxu0 0
    %4007 = vmatpush1.bf16.xpose.msra.mxu0 0
    %4008 = vmatprep.subr.bf16.mxu0 0
    %4009 = vmatpush1.bf16.xpose.msra.mxu0 0
    %4010 = vmatprep.subr.bf16.mxu0 0
    %4011 = vmatpush1.bf16.xpose.msra.mxu0 0
    %4012 = vmatprep.mubr.bf16.mxu0 0
    %4013 = vmatmul.mubr.bf16.gmra.mrb[0].mxu0 %v3975
    %v4014 = vpop.f32.mrb[0].mxu0
    %v4015 = vadd.f32 0.0, %v4014
    %v4016 = vpop.f32.mrb[0].mxu0
    %v4017 = vpop.f32.mrb[0].mxu0
    %v4018 = vpop.f32.mrb[0].mxu0
    %4019 = vdwg.mxu0
    %v4021 = vsel %vm568, %v3681, 0
    %v4024 = vsel %vm568, %v3689, 0
    %4026 = vmatprep.subr.bf16.mxu0 0
    %4027 = vmatpush1.bf16.xpose.msra.mxu0 %v4024
    %4028 = vmatprep.subr.bf16.mxu0 0
    %4029 = vmatpush1.bf16.xpose.msra.mxu0 0
    %4030 = vmatprep.subr.bf16.mxu0 0
    %4031 = vmatpush1.bf16.xpose.msra.mxu0 0
    %4032 = vmatprep.subr.bf16.mxu0 0
    %4033 = vmatpush1.bf16.xpose.msra.mxu0 0
    %4034 = vmatprep.subr.bf16.mxu0 0
    %4035 = vmatpush1.bf16.xpose.msra.mxu0 0
    %4036 = vmatprep.subr.bf16.mxu0 0
    %4037 = vmatpush1.bf16.xpose.msra.mxu0 0
    %4038 = vmatprep.subr.bf16.mxu0 0
    %4039 = vmatpush1.bf16.xpose.msra.mxu0 0
    %4040 = vmatprep.subr.bf16.mxu0 0
    %4041 = vmatpush1.bf16.xpose.msra.mxu0 0
    %4042 = vmatprep.subr.bf16.mxu0 0
    %4043 = vmatpush1.bf16.xpose.msra.mxu0 0
    %4044 = vmatprep.subr.bf16.mxu0 0
    %4045 = vmatpush1.bf16.xpose.msra.mxu0 0
    %4046 = vmatprep.subr.bf16.mxu0 0
    %4047 = vmatpush1.bf16.xpose.msra.mxu0 0
    %4048 = vmatprep.subr.bf16.mxu0 0
    %4049 = vmatpush1.bf16.xpose.msra.mxu0 0
    %4050 = vmatprep.subr.bf16.mxu0 0
    %4051 = vmatpush1.bf16.xpose.msra.mxu0 0
    %4052 = vmatprep.subr.bf16.mxu0 0
    %4053 = vmatpush1.bf16.xpose.msra.mxu0 0
    %4054 = vmatprep.subr.bf16.mxu0 0
    %4055 = vmatpush1.bf16.xpose.msra.mxu0 0
    %4056 = vmatprep.subr.bf16.mxu0 0
    %4057 = vmatpush1.bf16.xpose.msra.mxu0 0
    %4058 = vmatprep.mubr.bf16.mxu0 0
    %4059 = vmatmul.mubr.bf16.gmra.mrb[0].mxu0 %v4021
    %v4060 = vpop.f32.mrb[0].mxu0
    %v4061 = vadd.f32 0.0, %v4060
    %v4062 = vpop.f32.mrb[0].mxu0
    %v4063 = vpop.f32.mrb[0].mxu0
    %v4064 = vpop.f32.mrb[0].mxu0
    %4065 = vdwg.mxu0
    %v4066 = vmul.f32 %v3739, 0.25
    %v4067 = vmul.f32 %v3785, 0.25
    %v4068 = vmul.f32 %v3831, 0.25
    %v4069 = vmul.f32 %v3877, 0.25
    %v4070 = vmul.f32 %v3923, 0.25
    %v4071 = vmul.f32 %v3969, 0.25
    %v4072 = vmul.f32 %v4015, 0.25
    %v4073 = vmul.f32 %v4061, 0.25
    %v4074 = vadd.f32 %v4066, %v956
    %v4075 = vadd.f32 %v4067, %v960
    %v4076 = vadd.f32 %v4068, %v964
    %v4077 = vadd.f32 %v4069, %v968
    %v4078 = vadd.f32 %v4070, %v972
    %v4079 = vadd.f32 %v4071, %v976
    %v4080 = vadd.f32 %v4072, %v980
    %v4081 = vadd.f32 %v4073, %v984
    %v4082 = vsel %vm1001, %v4074, -inf
    %4083 = vmax.xlane.f32.xlu0 %v4082
    %v4084 = vpop.xlane.xlu0 %4083
    %v4085 = vsel %vm1001, %v4075, -inf
    %4086 = vmax.xlane.f32.xlu0 %v4085
    %v4087 = vpop.xlane.xlu0 %4086
    %v4088 = vsel %vm1001, %v4076, -inf
    %4089 = vmax.xlane.f32.xlu0 %v4088
    %v4090 = vpop.xlane.xlu0 %4089
    %v4091 = vsel %vm1001, %v4077, -inf
    %4092 = vmax.xlane.f32.xlu0 %v4091
    %v4093 = vpop.xlane.xlu0 %4092
    %v4094 = vsel %vm1001, %v4078, -inf
    %4095 = vmax.xlane.f32.xlu0 %v4094
    %v4096 = vpop.xlane.xlu0 %4095
    %v4097 = vsel %vm1001, %v4079, -inf
    %4098 = vmax.xlane.f32.xlu0 %v4097
    %v4099 = vpop.xlane.xlu0 %4098
    %v4100 = vsel %vm1001, %v4080, -inf
    %4101 = vmax.xlane.f32.xlu0 %v4100
    %v4102 = vpop.xlane.xlu0 %4101
    %v4103 = vsel %vm1001, %v4081, -inf
    %4104 = vmax.xlane.f32.xlu0 %v4103
    %v4105 = vpop.xlane.xlu0 %4104
    %v4106 = vsub.f32 %v4074, %v4084
    %v4107 = vsub.f32 %v4075, %v4087
    %v4108 = vsub.f32 %v4076, %v4090
    %v4109 = vsub.f32 %v4077, %v4093
    %v4110 = vsub.f32 %v4078, %v4096
    %v4111 = vsub.f32 %v4079, %v4099
    %v4112 = vsub.f32 %v4080, %v4102
    %v4113 = vsub.f32 %v4081, %v4105
    %v4114 = vmul.f32 %v4106, 1.442695
    %v4115 = vpow.pop %v4114
    %v4116 = vmul.f32 %v4107, 1.442695
    %v4117 = vpow.pop %v4116
    %v4118 = vmul.f32 %v4108, 1.442695
    %v4119 = vpow.pop %v4118
    %v4120 = vmul.f32 %v4109, 1.442695
    %v4121 = vpow.pop %v4120
    %v4122 = vmul.f32 %v4110, 1.442695
    %v4123 = vpow.pop %v4122
    %v4124 = vmul.f32 %v4111, 1.442695
    %v4125 = vpow.pop %v4124
    %v4126 = vmul.f32 %v4112, 1.442695
    %v4127 = vpow.pop %v4126
    %v4128 = vmul.f32 %v4113, 1.442695
    %v4129 = vpow.pop %v4128
    %v4130 = vsel %vm1001, %v4115, 0.0
    %4131 = vadd.xlane.f32.xlu0 %v4130
    %v4132 = vpop.xlane.xlu0 %4131
    %v4133 = vsel %vm1001, %v4117, 0.0
    %4134 = vadd.xlane.f32.xlu0 %v4133
    %v4135 = vpop.xlane.xlu0 %4134
    %v4136 = vsel %vm1001, %v4119, 0.0
    %4137 = vadd.xlane.f32.xlu0 %v4136
    %v4138 = vpop.xlane.xlu0 %4137
    %v4139 = vsel %vm1001, %v4121, 0.0
    %4140 = vadd.xlane.f32.xlu0 %v4139
    %v4141 = vpop.xlane.xlu0 %4140
    %v4142 = vsel %vm1001, %v4123, 0.0
    %4143 = vadd.xlane.f32.xlu0 %v4142
    %v4144 = vpop.xlane.xlu0 %4143
    %v4145 = vsel %vm1001, %v4125, 0.0
    %4146 = vadd.xlane.f32.xlu0 %v4145
    %v4147 = vpop.xlane.xlu0 %4146
    %v4148 = vsel %vm1001, %v4127, 0.0
    %4149 = vadd.xlane.f32.xlu0 %v4148
    %v4150 = vpop.xlane.xlu0 %4149
    %v4151 = vsel %vm1001, %v4129, 0.0
    %4152 = vadd.xlane.f32.xlu0 %v4151
    %v4153 = vpop.xlane.xlu0 %4152
    %v4154 = vrcp.pop %v4132
    %v4155 = vmul.f32 %v4115, %v4154
    %v4156 = vrcp.pop %v4135
    %v4157 = vmul.f32 %v4117, %v4156
    %v4158 = vrcp.pop %v4138
    %v4159 = vmul.f32 %v4119, %v4158
    %v4160 = vrcp.pop %v4141
    %v4161 = vmul.f32 %v4121, %v4160
    %v4162 = vrcp.pop %v4144
    %v4163 = vmul.f32 %v4123, %v4162
    %v4164 = vrcp.pop %v4147
    %v4165 = vmul.f32 %v4125, %v4164
    %v4166 = vrcp.pop %v4150
    %v4167 = vmul.f32 %v4127, %v4166
    %v4168 = vrcp.pop %v4153
    %v4169 = vmul.f32 %v4129, %v4168
    %v4170 = vpack.c.bf16 %v4155, %v4155
    %v4171 = vpack.c.bf16 %v4157, %v4157
    %v4172 = vpack.c.bf16 %v4159, %v4159
    %v4173 = vpack.c.bf16 %v4161, %v4161
    %v4174 = vpack.c.bf16 %v4163, %v4163
    %v4175 = vpack.c.bf16 %v4165, %v4165
    %v4176 = vpack.c.bf16 %v4167, %v4167
    %v4177 = vpack.c.bf16 %v4169, %v4169
    %v4179 = vsel %vm1001, %v4170, 0
    %v4182 = vsel %vm1101, %v3690, 0
    %4184 = vmatprep.subr.bf16.mxu0 0
    %4185 = vmatpush1.bf16.msra.mxu0 %v4182
    %4186 = vmatprep.subr.bf16.mxu0 0
    %4187 = vmatpush1.bf16.msra.mxu0 0
    %4188 = vmatprep.subr.bf16.mxu0 0
    %4189 = vmatpush1.bf16.msra.mxu0 0
    %4190 = vmatprep.subr.bf16.mxu0 0
    %4191 = vmatpush1.bf16.msra.mxu0 0
    %4192 = vmatprep.subr.bf16.mxu0 0
    %4193 = vmatpush1.bf16.msra.mxu0 0
    %4194 = vmatprep.subr.bf16.mxu0 0
    %4195 = vmatpush1.bf16.msra.mxu0 0
    %4196 = vmatprep.subr.bf16.mxu0 0
    %4197 = vmatpush1.bf16.msra.mxu0 0
    %4198 = vmatprep.subr.bf16.mxu0 0
    %4199 = vmatpush1.bf16.msra.mxu0 0
    %4200 = vmatprep.subr.bf16.mxu0 0
    %4201 = vmatpush1.bf16.msra.mxu0 0
    %4202 = vmatprep.subr.bf16.mxu0 0
    %4203 = vmatpush1.bf16.msra.mxu0 0
    %4204 = vmatprep.subr.bf16.mxu0 0
    %4205 = vmatpush1.bf16.msra.mxu0 0
    %4206 = vmatprep.subr.bf16.mxu0 0
    %4207 = vmatpush1.bf16.msra.mxu0 0
    %4208 = vmatprep.subr.bf16.mxu0 0
    %4209 = vmatpush1.bf16.msra.mxu0 0
    %4210 = vmatprep.subr.bf16.mxu0 0
    %4211 = vmatpush1.bf16.msra.mxu0 0
    %4212 = vmatprep.subr.bf16.mxu0 0
    %4213 = vmatpush1.bf16.msra.mxu0 0
    %4214 = vmatprep.subr.bf16.mxu0 0
    %4215 = vmatpush1.bf16.msra.mxu0 0
    %4216 = vmatprep.mubr.bf16.mxu0 0
    %4217 = vmatmul.mubr.bf16.gmra.mrb[0].mxu0 %v4179
    %v4218 = vpop.f32.mrb[0].mxu0
    %v4219 = vadd.f32 0.0, %v4218
    %v4220 = vpop.f32.mrb[0].mxu0
    %v4221 = vpop.f32.mrb[0].mxu0
    %v4222 = vpop.f32.mrb[0].mxu0
    %4223 = vdwg.mxu0
    %v4225 = vsel %vm1001, %v4171, 0
    %v4228 = vsel %vm1101, %v3691, 0
    %4230 = vmatprep.subr.bf16.mxu0 0
    %4231 = vmatpush1.bf16.msra.mxu0 %v4228
    %4232 = vmatprep.subr.bf16.mxu0 0
    %4233 = vmatpush1.bf16.msra.mxu0 0
    %4234 = vmatprep.subr.bf16.mxu0 0
    %4235 = vmatpush1.bf16.msra.mxu0 0
    %4236 = vmatprep.subr.bf16.mxu0 0
    %4237 = vmatpush1.bf16.msra.mxu0 0
    %4238 = vmatprep.subr.bf16.mxu0 0
    %4239 = vmatpush1.bf16.msra.mxu0 0
    %4240 = vmatprep.subr.bf16.mxu0 0
    %4241 = vmatpush1.bf16.msra.mxu0 0
    %4242 = vmatprep.subr.bf16.mxu0 0
    %4243 = vmatpush1.bf16.msra.mxu0 0
    %4244 = vmatprep.subr.bf16.mxu0 0
    %4245 = vmatpush1.bf16.msra.mxu0 0
    %4246 = vmatprep.subr.bf16.mxu0 0
    %4247 = vmatpush1.bf16.msra.mxu0 0
    %4248 = vmatprep.subr.bf16.mxu0 0
    %4249 = vmatpush1.bf16.msra.mxu0 0
    %4250 = vmatprep.subr.bf16.mxu0 0
    %4251 = vmatpush1.bf16.msra.mxu0 0
    %4252 = vmatprep.subr.bf16.mxu0 0
    %4253 = vmatpush1.bf16.msra.mxu0 0
    %4254 = vmatprep.subr.bf16.mxu0 0
    %4255 = vmatpush1.bf16.msra.mxu0 0
    %4256 = vmatprep.subr.bf16.mxu0 0
    %4257 = vmatpush1.bf16.msra.mxu0 0
    %4258 = vmatprep.subr.bf16.mxu0 0
    %4259 = vmatpush1.bf16.msra.mxu0 0
    %4260 = vmatprep.subr.bf16.mxu0 0
    %4261 = vmatpush1.bf16.msra.mxu0 0
    %4262 = vmatprep.mubr.bf16.mxu0 0
    %4263 = vmatmul.mubr.bf16.gmra.mrb[0].mxu0 %v4225
    %v4264 = vpop.f32.mrb[0].mxu0
    %v4265 = vadd.f32 0.0, %v4264
    %v4266 = vpop.f32.mrb[0].mxu0
    %v4267 = vpop.f32.mrb[0].mxu0
    %v4268 = vpop.f32.mrb[0].mxu0
    %4269 = vdwg.mxu0
    %v4271 = vsel %vm1001, %v4172, 0
    %v4274 = vsel %vm1101, %v3692, 0
    %4276 = vmatprep.subr.bf16.mxu0 0
    %4277 = vmatpush1.bf16.msra.mxu0 %v4274
    %4278 = vmatprep.subr.bf16.mxu0 0
    %4279 = vmatpush1.bf16.msra.mxu0 0
    %4280 = vmatprep.subr.bf16.mxu0 0
    %4281 = vmatpush1.bf16.msra.mxu0 0
    %4282 = vmatprep.subr.bf16.mxu0 0
    %4283 = vmatpush1.bf16.msra.mxu0 0
    %4284 = vmatprep.subr.bf16.mxu0 0
    %4285 = vmatpush1.bf16.msra.mxu0 0
    %4286 = vmatprep.subr.bf16.mxu0 0
    %4287 = vmatpush1.bf16.msra.mxu0 0
    %4288 = vmatprep.subr.bf16.mxu0 0
    %4289 = vmatpush1.bf16.msra.mxu0 0
    %4290 = vmatprep.subr.bf16.mxu0 0
    %4291 = vmatpush1.bf16.msra.mxu0 0
    %4292 = vmatprep.subr.bf16.mxu0 0
    %4293 = vmatpush1.bf16.msra.mxu0 0
    %4294 = vmatprep.subr.bf16.mxu0 0
    %4295 = vmatpush1.bf16.msra.mxu0 0
    %4296 = vmatprep.subr.bf16.mxu0 0
    %4297 = vmatpush1.bf16.msra.mxu0 0
    %4298 = vmatprep.subr.bf16.mxu0 0
    %4299 = vmatpush1.bf16.msra.mxu0 0
    %4300 = vmatprep.subr.bf16.mxu0 0
    %4301 = vmatpush1.bf16.msra.mxu0 0
    %4302 = vmatprep.subr.bf16.mxu0 0
    %4303 = vmatpush1.bf16.msra.mxu0 0
    %4304 = vmatprep.subr.bf16.mxu0 0
    %4305 = vmatpush1.bf16.msra.mxu0 0
    %4306 = vmatprep.subr.bf16.mxu0 0
    %4307 = vmatpush1.bf16.msra.mxu0 0
    %4308 = vmatprep.mubr.bf16.mxu0 0
    %4309 = vmatmul.mubr.bf16.gmra.mrb[0].mxu0 %v4271
    %v4310 = vpop.f32.mrb[0].mxu0
    %v4311 = vadd.f32 0.0, %v4310
    %v4312 = vpop.f32.mrb[0].mxu0
    %v4313 = vpop.f32.mrb[0].mxu0
    %v4314 = vpop.f32.mrb[0].mxu0
    %4315 = vdwg.mxu0
    %v4317 = vsel %vm1001, %v4173, 0
    %v4320 = vsel %vm1101, %v3693, 0
    %4322 = vmatprep.subr.bf16.mxu0 0
    %4323 = vmatpush1.bf16.msra.mxu0 %v4320
    %4324 = vmatprep.subr.bf16.mxu0 0
    %4325 = vmatpush1.bf16.msra.mxu0 0
    %4326 = vmatprep.subr.bf16.mxu0 0
    %4327 = vmatpush1.bf16.msra.mxu0 0
    %4328 = vmatprep.subr.bf16.mxu0 0
    %4329 = vmatpush1.bf16.msra.mxu0 0
    %4330 = vmatprep.subr.bf16.mxu0 0
    %4331 = vmatpush1.bf16.msra.mxu0 0
    %4332 = vmatprep.subr.bf16.mxu0 0
    %4333 = vmatpush1.bf16.msra.mxu0 0
    %4334 = vmatprep.subr.bf16.mxu0 0
    %4335 = vmatpush1.bf16.msra.mxu0 0
    %4336 = vmatprep.subr.bf16.mxu0 0
    %4337 = vmatpush1.bf16.msra.mxu0 0
    %4338 = vmatprep.subr.bf16.mxu0 0
    %4339 = vmatpush1.bf16.msra.mxu0 0
    %4340 = vmatprep.subr.bf16.mxu0 0
    %4341 = vmatpush1.bf16.msra.mxu0 0
    %4342 = vmatprep.subr.bf16.mxu0 0
    %4343 = vmatpush1.bf16.msra.mxu0 0
    %4344 = vmatprep.subr.bf16.mxu0 0
    %4345 = vmatpush1.bf16.msra.mxu0 0
    %4346 = vmatprep.subr.bf16.mxu0 0
    %4347 = vmatpush1.bf16.msra.mxu0 0
    %4348 = vmatprep.subr.bf16.mxu0 0
    %4349 = vmatpush1.bf16.msra.mxu0 0
    %4350 = vmatprep.subr.bf16.mxu0 0
    %4351 = vmatpush1.bf16.msra.mxu0 0
    %4352 = vmatprep.subr.bf16.mxu0 0
    %4353 = vmatpush1.bf16.msra.mxu0 0
    %4354 = vmatprep.mubr.bf16.mxu0 0
    %4355 = vmatmul.mubr.bf16.gmra.mrb[0].mxu0 %v4317
    %v4356 = vpop.f32.mrb[0].mxu0
    %v4357 = vadd.f32 0.0, %v4356
    %v4358 = vpop.f32.mrb[0].mxu0
    %v4359 = vpop.f32.mrb[0].mxu0
    %v4360 = vpop.f32.mrb[0].mxu0
    %4361 = vdwg.mxu0
    %v4363 = vsel %vm1001, %v4174, 0
    %v4366 = vsel %vm1101, %v3694, 0
    %4368 = vmatprep.subr.bf16.mxu0 0
    %4369 = vmatpush1.bf16.msra.mxu0 %v4366
    %4370 = vmatprep.subr.bf16.mxu0 0
    %4371 = vmatpush1.bf16.msra.mxu0 0
    %4372 = vmatprep.subr.bf16.mxu0 0
    %4373 = vmatpush1.bf16.msra.mxu0 0
    %4374 = vmatprep.subr.bf16.mxu0 0
    %4375 = vmatpush1.bf16.msra.mxu0 0
    %4376 = vmatprep.subr.bf16.mxu0 0
    %4377 = vmatpush1.bf16.msra.mxu0 0
    %4378 = vmatprep.subr.bf16.mxu0 0
    %4379 = vmatpush1.bf16.msra.mxu0 0
    %4380 = vmatprep.subr.bf16.mxu0 0
    %4381 = vmatpush1.bf16.msra.mxu0 0
    %4382 = vmatprep.subr.bf16.mxu0 0
    %4383 = vmatpush1.bf16.msra.mxu0 0
    %4384 = vmatprep.subr.bf16.mxu0 0
    %4385 = vmatpush1.bf16.msra.mxu0 0
    %4386 = vmatprep.subr.bf16.mxu0 0
    %4387 = vmatpush1.bf16.msra.mxu0 0
    %4388 = vmatprep.subr.bf16.mxu0 0
    %4389 = vmatpush1.bf16.msra.mxu0 0
    %4390 = vmatprep.subr.bf16.mxu0 0
    %4391 = vmatpush1.bf16.msra.mxu0 0
    %4392 = vmatprep.subr.bf16.mxu0 0
    %4393 = vmatpush1.bf16.msra.mxu0 0
    %4394 = vmatprep.subr.bf16.mxu0 0
    %4395 = vmatpush1.bf16.msra.mxu0 0
    %4396 = vmatprep.subr.bf16.mxu0 0
    %4397 = vmatpush1.bf16.msra.mxu0 0
    %4398 = vmatprep.subr.bf16.mxu0 0
    %4399 = vmatpush1.bf16.msra.mxu0 0
    %4400 = vmatprep.mubr.bf16.mxu0 0
    %4401 = vmatmul.mubr.bf16.gmra.mrb[0].mxu0 %v4363
    %v4402 = vpop.f32.mrb[0].mxu0
    %v4403 = vadd.f32 0.0, %v4402
    %v4404 = vpop.f32.mrb[0].mxu0
    %v4405 = vpop.f32.mrb[0].mxu0
    %v4406 = vpop.f32.mrb[0].mxu0
    %4407 = vdwg.mxu0
    %v4409 = vsel %vm1001, %v4175, 0
    %v4412 = vsel %vm1101, %v3695, 0
    %4414 = vmatprep.subr.bf16.mxu0 0
    %4415 = vmatpush1.bf16.msra.mxu0 %v4412
    %4416 = vmatprep.subr.bf16.mxu0 0
    %4417 = vmatpush1.bf16.msra.mxu0 0
    %4418 = vmatprep.subr.bf16.mxu0 0
    %4419 = vmatpush1.bf16.msra.mxu0 0
    %4420 = vmatprep.subr.bf16.mxu0 0
    %4421 = vmatpush1.bf16.msra.mxu0 0
    %4422 = vmatprep.subr.bf16.mxu0 0
    %4423 = vmatpush1.bf16.msra.mxu0 0
    %4424 = vmatprep.subr.bf16.mxu0 0
    %4425 = vmatpush1.bf16.msra.mxu0 0
    %4426 = vmatprep.subr.bf16.mxu0 0
    %4427 = vmatpush1.bf16.msra.mxu0 0
    %4428 = vmatprep.subr.bf16.mxu0 0
    %4429 = vmatpush1.bf16.msra.mxu0 0
    %4430 = vmatprep.subr.bf16.mxu0 0
    %4431 = vmatpush1.bf16.msra.mxu0 0
    %4432 = vmatprep.subr.bf16.mxu0 0
    %4433 = vmatpush1.bf16.msra.mxu0 0
    %4434 = vmatprep.subr.bf16.mxu0 0
    %4435 = vmatpush1.bf16.msra.mxu0 0
    %4436 = vmatprep.subr.bf16.mxu0 0
    %4437 = vmatpush1.bf16.msra.mxu0 0
    %4438 = vmatprep.subr.bf16.mxu0 0
    %4439 = vmatpush1.bf16.msra.mxu0 0
    %4440 = vmatprep.subr.bf16.mxu0 0
    %4441 = vmatpush1.bf16.msra.mxu0 0
    %4442 = vmatprep.subr.bf16.mxu0 0
    %4443 = vmatpush1.bf16.msra.mxu0 0
    %4444 = vmatprep.subr.bf16.mxu0 0
    %4445 = vmatpush1.bf16.msra.mxu0 0
    %4446 = vmatprep.mubr.bf16.mxu0 0
    %4447 = vmatmul.mubr.bf16.gmra.mrb[0].mxu0 %v4409
    %v4448 = vpop.f32.mrb[0].mxu0
    %v4449 = vadd.f32 0.0, %v4448
    %v4450 = vpop.f32.mrb[0].mxu0
    %v4451 = vpop.f32.mrb[0].mxu0
    %v4452 = vpop.f32.mrb[0].mxu0
    %4453 = vdwg.mxu0
    %v4455 = vsel %vm1001, %v4176, 0
    %v4458 = vsel %vm1101, %v3696, 0
    %4460 = vmatprep.subr.bf16.mxu0 0
    %4461 = vmatpush1.bf16.msra.mxu0 %v4458
    %4462 = vmatprep.subr.bf16.mxu0 0
    %4463 = vmatpush1.bf16.msra.mxu0 0
    %4464 = vmatprep.subr.bf16.mxu0 0
    %4465 = vmatpush1.bf16.msra.mxu0 0
    %4466 = vmatprep.subr.bf16.mxu0 0
    %4467 = vmatpush1.bf16.msra.mxu0 0
    %4468 = vmatprep.subr.bf16.mxu0 0
    %4469 = vmatpush1.bf16.msra.mxu0 0
    %4470 = vmatprep.subr.bf16.mxu0 0
    %4471 = vmatpush1.bf16.msra.mxu0 0
    %4472 = vmatprep.subr.bf16.mxu0 0
    %4473 = vmatpush1.bf16.msra.mxu0 0
    %4474 = vmatprep.subr.bf16.mxu0 0
    %4475 = vmatpush1.bf16.msra.mxu0 0
    %4476 = vmatprep.subr.bf16.mxu0 0
    %4477 = vmatpush1.bf16.msra.mxu0 0
    %4478 = vmatprep.subr.bf16.mxu0 0
    %4479 = vmatpush1.bf16.msra.mxu0 0
    %4480 = vmatprep.subr.bf16.mxu0 0
    %4481 = vmatpush1.bf16.msra.mxu0 0
    %4482 = vmatprep.subr.bf16.mxu0 0
    %4483 = vmatpush1.bf16.msra.mxu0 0
    %4484 = vmatprep.subr.bf16.mxu0 0
    %4485 = vmatpush1.bf16.msra.mxu0 0
    %4486 = vmatprep.subr.bf16.mxu0 0
    %4487 = vmatpush1.bf16.msra.mxu0 0
    %4488 = vmatprep.subr.bf16.mxu0 0
    %4489 = vmatpush1.bf16.msra.mxu0 0
    %4490 = vmatprep.subr.bf16.mxu0 0
    %4491 = vmatpush1.bf16.msra.mxu0 0
    %4492 = vmatprep.mubr.bf16.mxu0 0
    %4493 = vmatmul.mubr.bf16.gmra.mrb[0].mxu0 %v4455
    %v4494 = vpop.f32.mrb[0].mxu0
    %v4495 = vadd.f32 0.0, %v4494
    %v4496 = vpop.f32.mrb[0].mxu0
    %v4497 = vpop.f32.mrb[0].mxu0
    %v4498 = vpop.f32.mrb[0].mxu0
    %4499 = vdwg.mxu0
    %v4501 = vsel %vm1001, %v4177, 0
    %v4504 = vsel %vm1101, %v3697, 0
    %4506 = vmatprep.subr.bf16.mxu0 0
    %4507 = vmatpush1.bf16.msra.mxu0 %v4504
    %4508 = vmatprep.subr.bf16.mxu0 0
    %4509 = vmatpush1.bf16.msra.mxu0 0
    %4510 = vmatprep.subr.bf16.mxu0 0
    %4511 = vmatpush1.bf16.msra.mxu0 0
    %4512 = vmatprep.subr.bf16.mxu0 0
    %4513 = vmatpush1.bf16.msra.mxu0 0
    %4514 = vmatprep.subr.bf16.mxu0 0
    %4515 = vmatpush1.bf16.msra.mxu0 0
    %4516 = vmatprep.subr.bf16.mxu0 0
    %4517 = vmatpush1.bf16.msra.mxu0 0
    %4518 = vmatprep.subr.bf16.mxu0 0
    %4519 = vmatpush1.bf16.msra.mxu0 0
    %4520 = vmatprep.subr.bf16.mxu0 0
    %4521 = vmatpush1.bf16.msra.mxu0 0
    %4522 = vmatprep.subr.bf16.mxu0 0
    %4523 = vmatpush1.bf16.msra.mxu0 0
    %4524 = vmatprep.subr.bf16.mxu0 0
    %4525 = vmatpush1.bf16.msra.mxu0 0
    %4526 = vmatprep.subr.bf16.mxu0 0
    %4527 = vmatpush1.bf16.msra.mxu0 0
    %4528 = vmatprep.subr.bf16.mxu0 0
    %4529 = vmatpush1.bf16.msra.mxu0 0
    %4530 = vmatprep.subr.bf16.mxu0 0
    %4531 = vmatpush1.bf16.msra.mxu0 0
    %4532 = vmatprep.subr.bf16.mxu0 0
    %4533 = vmatpush1.bf16.msra.mxu0 0
    %4534 = vmatprep.subr.bf16.mxu0 0
    %4535 = vmatpush1.bf16.msra.mxu0 0
    %4536 = vmatprep.subr.bf16.mxu0 0
    %4537 = vmatpush1.bf16.msra.mxu0 0
    %4538 = vmatprep.mubr.bf16.mxu0 0
    %4539 = vmatmul.mubr.bf16.gmra.mrb[0].mxu0 %v4501
    %v4540 = vpop.f32.mrb[0].mxu0
    %v4541 = vadd.f32 0.0, %v4540
    %v4542 = vpop.f32.mrb[0].mxu0
    %v4543 = vpop.f32.mrb[0].mxu0
    %v4544 = vpop.f32.mrb[0].mxu0
    %4545 = vdwg.mxu0
    %v4546 = vpack.c.bf16 %v4265, %v4219
    %v4547 = vpack.c.bf16 %v4357, %v4311
    %v4548 = vpack.c.bf16 %v4449, %v4403
    %v4549 = vpack.c.bf16 %v4541, %v4495
    %v4552 = vunpack.c.l.b16 %v3400
    %v4553 = vunpack.c.l.b16 %v3401
    %v4554 = vpack.c.b16 %v4553, %v4552
    %v4557 = vsel %vm568, %v4546, 0
    %v4560 = vsel %vm568, %v4547, 0
    %v4563 = vsel %vm568, %v4548, 0
    %v4566 = vsel %vm568, %v4549, 0
    %4568 = vmatprep.subr.bf16.mxu0 0
    %4569 = vmatpush1.bf16.msra.mxu0 %v4554
    %4570 = vmatprep.subr.bf16.mxu0 0
    %4571 = vmatpush1.bf16.msra.mxu0 0
    %4572 = vmatprep.subr.bf16.mxu0 0
    %4573 = vmatpush1.bf16.msra.mxu0 0
    %4574 = vmatprep.subr.bf16.mxu0 0
    %4575 = vmatpush1.bf16.msra.mxu0 0
    %4576 = vmatprep.subr.bf16.mxu0 0
    %4577 = vmatpush1.bf16.msra.mxu0 0
    %4578 = vmatprep.subr.bf16.mxu0 0
    %4579 = vmatpush1.bf16.msra.mxu0 0
    %4580 = vmatprep.subr.bf16.mxu0 0
    %4581 = vmatpush1.bf16.msra.mxu0 0
    %4582 = vmatprep.subr.bf16.mxu0 0
    %4583 = vmatpush1.bf16.msra.mxu0 0
    %4584 = vmatprep.subr.bf16.mxu0 0
    %4585 = vmatpush1.bf16.msra.mxu0 0
    %4586 = vmatprep.subr.bf16.mxu0 0
    %4587 = vmatpush1.bf16.msra.mxu0 0
    %4588 = vmatprep.subr.bf16.mxu0 0
    %4589 = vmatpush1.bf16.msra.mxu0 0
    %4590 = vmatprep.subr.bf16.mxu0 0
    %4591 = vmatpush1.bf16.msra.mxu0 0
    %4592 = vmatprep.subr.bf16.mxu0 0
    %4593 = vmatpush1.bf16.msra.mxu0 0
    %4594 = vmatprep.subr.bf16.mxu0 0
    %4595 = vmatpush1.bf16.msra.mxu0 0
    %4596 = vmatprep.subr.bf16.mxu0 0
    %4597 = vmatpush1.bf16.msra.mxu0 0
    %4598 = vmatprep.subr.bf16.mxu0 0
    %4599 = vmatpush1.bf16.msra.mxu0 0
    %4600 = vmatprep.mubr.bf16.mxu0 0
    %4601 = vmatmul.mubr.bf16.gmra.mrb[0].mxu0 %v4557
    %v4602 = vpop.f32.mrb[0].mxu0
    %v4603 = vadd.f32 0.0, %v4602
    %v4604 = vpop.f32.mrb[0].mxu0
    %v4605 = vpop.f32.mrb[0].mxu0
    %v4606 = vadd.f32 0.0, %v4605
    %v4607 = vpop.f32.mrb[0].mxu0
    %4608 = vmatprep.mubr.bf16.mxu0 0
    %4609 = vmatmul.mubr.bf16.gmra.mrb[0].mxu0 %v4560
    %v4610 = vpop.f32.mrb[0].mxu0
    %v4611 = vadd.f32 0.0, %v4610
    %v4612 = vpop.f32.mrb[0].mxu0
    %v4613 = vpop.f32.mrb[0].mxu0
    %v4614 = vadd.f32 0.0, %v4613
    %v4615 = vpop.f32.mrb[0].mxu0
    %4616 = vmatprep.mubr.bf16.mxu0 0
    %4617 = vmatmul.mubr.bf16.gmra.mrb[0].mxu0 %v4563
    %v4618 = vpop.f32.mrb[0].mxu0
    %v4619 = vadd.f32 0.0, %v4618
    %v4620 = vpop.f32.mrb[0].mxu0
    %v4621 = vpop.f32.mrb[0].mxu0
    %v4622 = vadd.f32 0.0, %v4621
    %v4623 = vpop.f32.mrb[0].mxu0
    %4624 = vmatprep.mubr.bf16.mxu0 0
    %4625 = vmatmul.mubr.bf16.gmra.mrb[0].mxu0 %v4566
    %v4626 = vpop.f32.mrb[0].mxu0
    %v4627 = vadd.f32 0.0, %v4626
    %v4628 = vpop.f32.mrb[0].mxu0
    %v4629 = vpop.f32.mrb[0].mxu0
    %v4630 = vadd.f32 0.0, %v4629
    %v4631 = vpop.f32.mrb[0].mxu0
    %4632 = vdwg.mxu0
    %v4633 = vadd.f32 %v3412, %v4603
    %v4634 = vadd.f32 %v3412, %v4606
    %v4635 = vadd.f32 %v3412, %v4611
    %v4636 = vadd.f32 %v3412, %v4614
    %v4637 = vadd.f32 %v3412, %v4619
    %v4638 = vadd.f32 %v3412, %v4622
    %v4639 = vadd.f32 %v3412, %v4627
    %v4640 = vadd.f32 %v3412, %v4630
    %v4642 = vlaneseq
    %v4643 = vshrl.u32 %v4642, 7
    %v4644 = vsub.s32 0, %v4643
    %v4645 = vrot.slane %v3374, %v4644
    %v4651 = vunpack.c.l.b16 %v3368
    %v4652 = vunpack.c.l.b16 %v3369
    %v4653 = vunpack.c.l.b16 %v3370
    %v4654 = vunpack.c.l.b16 %v3371
    %v4655 = vpack.c.b16 %v4652, %v4651
    %v4656 = vpack.c.b16 %v4654, %v4653
    %4659 = vmatprep.subr.bf16.mxu0 0
    %4660 = vmatpush1.bf16.msra.mxu0 %v4655
    %4661 = vmatprep.subr.bf16.mxu0 0
    %4662 = vmatpush1.bf16.msra.mxu0 %v4656
    %4663 = vmatprep.subr.bf16.mxu0 0
    %4664 = vmatpush1.bf16.msra.mxu0 0
    %4665 = vmatprep.subr.bf16.mxu0 0
    %4666 = vmatpush1.bf16.msra.mxu0 0
    %4667 = vmatprep.subr.bf16.mxu0 0
    %4668 = vmatpush1.bf16.msra.mxu0 0
    %4669 = vmatprep.subr.bf16.mxu0 0
    %4670 = vmatpush1.bf16.msra.mxu0 0
    %4671 = vmatprep.subr.bf16.mxu0 0
    %4672 = vmatpush1.bf16.msra.mxu0 0
    %4673 = vmatprep.subr.bf16.mxu0 0
    %4674 = vmatpush1.bf16.msra.mxu0 0
    %4675 = vmatprep.subr.bf16.mxu0 0
    %4676 = vmatpush1.bf16.msra.mxu0 0
    %4677 = vmatprep.subr.bf16.mxu0 0
    %4678 = vmatpush1.bf16.msra.mxu0 0
    %4679 = vmatprep.subr.bf16.mxu0 0
    %4680 = vmatpush1.bf16.msra.mxu0 0
    %4681 = vmatprep.subr.bf16.mxu0 0
    %4682 = vmatpush1.bf16.msra.mxu0 0
    %4683 = vmatprep.subr.bf16.mxu0 0
    %4684 = vmatpush1.bf16.msra.mxu0 0
    %4685 = vmatprep.subr.bf16.mxu0 0
    %4686 = vmatpush1.bf16.msra.mxu0 0
    %4687 = vmatprep.subr.bf16.mxu0 0
    %4688 = vmatpush1.bf16.msra.mxu0 0
    %4689 = vmatprep.subr.bf16.mxu0 0
    %4690 = vmatpush1.bf16.msra.mxu0 0
    %4691 = vmatprep.mubr.bf16.mxu0 0
    %4692 = vmatmul.mubr.bf16.gmra.mrb[0].mxu0 %v3432
    %v4693 = vpop.f32.mrb[0].mxu0
    %v4694 = vadd.f32 %v4645, %v4693
    %v4695 = vpop.f32.mrb[0].mxu0
    %v4696 = vpop.f32.mrb[0].mxu0
    %v4697 = vadd.f32 %v4645, %v4696
    %v4698 = vpop.f32.mrb[0].mxu0
    %4699 = vmatprep.mubr.bf16.mxu0 0
    %4700 = vmatmul.mubr.bf16.gmra.mrb[0].mxu0 %v3435
    %v4701 = vpop.f32.mrb[0].mxu0
    %v4702 = vadd.f32 %v4645, %v4701
    %v4703 = vpop.f32.mrb[0].mxu0
    %v4704 = vpop.f32.mrb[0].mxu0
    %v4705 = vadd.f32 %v4645, %v4704
    %v4706 = vpop.f32.mrb[0].mxu0
    %4707 = vmatprep.mubr.bf16.mxu0 0
    %4708 = vmatmul.mubr.bf16.gmra.mrb[0].mxu0 %v3438
    %v4709 = vpop.f32.mrb[0].mxu0
    %v4710 = vadd.f32 %v4645, %v4709
    %v4711 = vpop.f32.mrb[0].mxu0
    %v4712 = vpop.f32.mrb[0].mxu0
    %v4713 = vadd.f32 %v4645, %v4712
    %v4714 = vpop.f32.mrb[0].mxu0
    %4715 = vmatprep.mubr.bf16.mxu0 0
    %4716 = vmatmul.mubr.bf16.gmra.mrb[0].mxu0 %v3441
    %v4717 = vpop.f32.mrb[0].mxu0
    %v4718 = vadd.f32 %v4645, %v4717
    %v4719 = vpop.f32.mrb[0].mxu0
    %v4720 = vpop.f32.mrb[0].mxu0
    %v4721 = vadd.f32 %v4645, %v4720
    %v4722 = vpop.f32.mrb[0].mxu0
    %4723 = vdwg.mxu0
    %v4725 = vlaneseq
    %v4726 = vshrl.u32 %v4725, 7
    %v4727 = vsub.s32 0, %v4726
    %v4728 = vrot.slane %v3386, %v4727
    %v4734 = vunpack.c.l.b16 %v3380
    %v4735 = vunpack.c.l.b16 %v3381
    %v4736 = vunpack.c.l.b16 %v3382
    %v4737 = vunpack.c.l.b16 %v3383
    %v4738 = vpack.c.b16 %v4735, %v4734
    %v4739 = vpack.c.b16 %v4737, %v4736
    %4742 = vmatprep.subr.bf16.mxu0 0
    %4743 = vmatpush1.bf16.msra.mxu0 %v4738
    %4744 = vmatprep.subr.bf16.mxu0 0
    %4745 = vmatpush1.bf16.msra.mxu0 %v4739
    %4746 = vmatprep.subr.bf16.mxu0 0
    %4747 = vmatpush1.bf16.msra.mxu0 0
    %4748 = vmatprep.subr.bf16.mxu0 0
    %4749 = vmatpush1.bf16.msra.mxu0 0
    %4750 = vmatprep.subr.bf16.mxu0 0
    %4751 = vmatpush1.bf16.msra.mxu0 0
    %4752 = vmatprep.subr.bf16.mxu0 0
    %4753 = vmatpush1.bf16.msra.mxu0 0
    %4754 = vmatprep.subr.bf16.mxu0 0
    %4755 = vmatpush1.bf16.msra.mxu0 0
    %4756 = vmatprep.subr.bf16.mxu0 0
    %4757 = vmatpush1.bf16.msra.mxu0 0
    %4758 = vmatprep.subr.bf16.mxu0 0
    %4759 = vmatpush1.bf16.msra.mxu0 0
    %4760 = vmatprep.subr.bf16.mxu0 0
    %4761 = vmatpush1.bf16.msra.mxu0 0
    %4762 = vmatprep.subr.bf16.mxu0 0
    %4763 = vmatpush1.bf16.msra.mxu0 0
    %4764 = vmatprep.subr.bf16.mxu0 0
    %4765 = vmatpush1.bf16.msra.mxu0 0
    %4766 = vmatprep.subr.bf16.mxu0 0
    %4767 = vmatpush1.bf16.msra.mxu0 0
    %4768 = vmatprep.subr.bf16.mxu0 0
    %4769 = vmatpush1.bf16.msra.mxu0 0
    %4770 = vmatprep.subr.bf16.mxu0 0
    %4771 = vmatpush1.bf16.msra.mxu0 0
    %4772 = vmatprep.subr.bf16.mxu0 0
    %4773 = vmatpush1.bf16.msra.mxu0 0
    %4774 = vmatprep.mubr.bf16.mxu0 0
    %4775 = vmatmul.mubr.bf16.gmra.mrb[0].mxu0 %v3432
    %v4776 = vpop.f32.mrb[0].mxu0
    %v4777 = vadd.f32 %v4728, %v4776
    %v4778 = vpop.f32.mrb[0].mxu0
    %v4779 = vpop.f32.mrb[0].mxu0
    %v4780 = vadd.f32 %v4728, %v4779
    %v4781 = vpop.f32.mrb[0].mxu0
    %4782 = vmatprep.mubr.bf16.mxu0 0
    %4783 = vmatmul.mubr.bf16.gmra.mrb[0].mxu0 %v3435
    %v4784 = vpop.f32.mrb[0].mxu0
    %v4785 = vadd.f32 %v4728, %v4784
    %v4786 = vpop.f32.mrb[0].mxu0
    %v4787 = vpop.f32.mrb[0].mxu0
    %v4788 = vadd.f32 %v4728, %v4787
    %v4789 = vpop.f32.mrb[0].mxu0
    %4790 = vmatprep.mubr.bf16.mxu0 0
    %4791 = vmatmul.mubr.bf16.gmra.mrb[0].mxu0 %v3438
    %v4792 = vpop.f32.mrb[0].mxu0
    %v4793 = vadd.f32 %v4728, %v4792
    %v4794 = vpop.f32.mrb[0].mxu0
    %v4795 = vpop.f32.mrb[0].mxu0
    %v4796 = vadd.f32 %v4728, %v4795
    %v4797 = vpop.f32.mrb[0].mxu0
    %4798 = vmatprep.mubr.bf16.mxu0 0
    %4799 = vmatmul.mubr.bf16.gmra.mrb[0].mxu0 %v3441
    %v4800 = vpop.f32.mrb[0].mxu0
    %v4801 = vadd.f32 %v4728, %v4800
    %v4802 = vpop.f32.mrb[0].mxu0
    %v4803 = vpop.f32.mrb[0].mxu0
    %v4804 = vadd.f32 %v4728, %v4803
    %v4805 = vpop.f32.mrb[0].mxu0
    %4806 = vdwg.mxu0
    %v4808 = vlaneseq
    %v4809 = vshrl.u32 %v4808, 7
    %v4810 = vsub.s32 0, %v4809
    %v4811 = vrot.slane %v3398, %v4810
    %v4817 = vunpack.c.l.b16 %v3392
    %v4818 = vunpack.c.l.b16 %v3393
    %v4819 = vunpack.c.l.b16 %v3394
    %v4820 = vunpack.c.l.b16 %v3395
    %v4821 = vpack.c.b16 %v4818, %v4817
    %v4822 = vpack.c.b16 %v4820, %v4819
    %4825 = vmatprep.subr.bf16.mxu0 0
    %4826 = vmatpush1.bf16.msra.mxu0 %v4821
    %4827 = vmatprep.subr.bf16.mxu0 0
    %4828 = vmatpush1.bf16.msra.mxu0 %v4822
    %4829 = vmatprep.subr.bf16.mxu0 0
    %4830 = vmatpush1.bf16.msra.mxu0 0
    %4831 = vmatprep.subr.bf16.mxu0 0
    %4832 = vmatpush1.bf16.msra.mxu0 0
    %4833 = vmatprep.subr.bf16.mxu0 0
    %4834 = vmatpush1.bf16.msra.mxu0 0
    %4835 = vmatprep.subr.bf16.mxu0 0
    %4836 = vmatpush1.bf16.msra.mxu0 0
    %4837 = vmatprep.subr.bf16.mxu0 0
    %4838 = vmatpush1.bf16.msra.mxu0 0
    %4839 = vmatprep.subr.bf16.mxu0 0
    %4840 = vmatpush1.bf16.msra.mxu0 0
    %4841 = vmatprep.subr.bf16.mxu0 0
    %4842 = vmatpush1.bf16.msra.mxu0 0
    %4843 = vmatprep.subr.bf16.mxu0 0
    %4844 = vmatpush1.bf16.msra.mxu0 0
    %4845 = vmatprep.subr.bf16.mxu0 0
    %4846 = vmatpush1.bf16.msra.mxu0 0
    %4847 = vmatprep.subr.bf16.mxu0 0
    %4848 = vmatpush1.bf16.msra.mxu0 0
    %4849 = vmatprep.subr.bf16.mxu0 0
    %4850 = vmatpush1.bf16.msra.mxu0 0
    %4851 = vmatprep.subr.bf16.mxu0 0
    %4852 = vmatpush1.bf16.msra.mxu0 0
    %4853 = vmatprep.subr.bf16.mxu0 0
    %4854 = vmatpush1.bf16.msra.mxu0 0
    %4855 = vmatprep.subr.bf16.mxu0 0
    %4856 = vmatpush1.bf16.msra.mxu0 0
    %4857 = vmatprep.mubr.bf16.mxu0 0
    %4858 = vmatmul.mubr.bf16.gmra.mrb[0].mxu0 %v3432
    %v4859 = vpop.f32.mrb[0].mxu0
    %v4860 = vadd.f32 %v4811, %v4859
    %v4861 = vpop.f32.mrb[0].mxu0
    %v4862 = vpop.f32.mrb[0].mxu0
    %v4863 = vadd.f32 %v4811, %v4862
    %v4864 = vpop.f32.mrb[0].mxu0
    %4865 = vmatprep.mubr.bf16.mxu0 0
    %4866 = vmatmul.mubr.bf16.gmra.mrb[0].mxu0 %v3435
    %v4867 = vpop.f32.mrb[0].mxu0
    %v4868 = vadd.f32 %v4811, %v4867
    %v4869 = vpop.f32.mrb[0].mxu0
    %v4870 = vpop.f32.mrb[0].mxu0
    %v4871 = vadd.f32 %v4811, %v4870
    %v4872 = vpop.f32.mrb[0].mxu0
    %4873 = vmatprep.mubr.bf16.mxu0 0
    %4874 = vmatmul.mubr.bf16.gmra.mrb[0].mxu0 %v3438
    %v4875 = vpop.f32.mrb[0].mxu0
    %v4876 = vadd.f32 %v4811, %v4875
    %v4877 = vpop.f32.mrb[0].mxu0
    %v4878 = vpop.f32.mrb[0].mxu0
    %v4879 = vadd.f32 %v4811, %v4878
    %v4880 = vpop.f32.mrb[0].mxu0
    %4881 = vmatprep.mubr.bf16.mxu0 0
    %4882 = vmatmul.mubr.bf16.gmra.mrb[0].mxu0 %v3441
    %v4883 = vpop.f32.mrb[0].mxu0
    %v4884 = vadd.f32 %v4811, %v4883
    %v4885 = vpop.f32.mrb[0].mxu0
    %v4886 = vpop.f32.mrb[0].mxu0
    %v4887 = vadd.f32 %v4811, %v4886
    %v4888 = vpop.f32.mrb[0].mxu0
    %4889 = vdwg.mxu0
    %v4890 = vpack.c.bf16 %v4694, %v4694
    %v4891 = vpack.c.bf16 %v4697, %v4697
    %v4892 = vpack.c.bf16 %v4702, %v4702
    %v4893 = vpack.c.bf16 %v4705, %v4705
    %v4894 = vpack.c.bf16 %v4710, %v4710
    %v4895 = vpack.c.bf16 %v4713, %v4713
    %v4896 = vpack.c.bf16 %v4718, %v4718
    %v4897 = vpack.c.bf16 %v4721, %v4721
    %v4898 = vpack.c.bf16 %v4777, %v4777
    %v4899 = vpack.c.bf16 %v4780, %v4780
    %v4900 = vpack.c.bf16 %v4785, %v4785
    %v4901 = vpack.c.bf16 %v4788, %v4788
    %v4902 = vpack.c.bf16 %v4793, %v4793
    %v4903 = vpack.c.bf16 %v4796, %v4796
    %v4904 = vpack.c.bf16 %v4801, %v4801
    %v4905 = vpack.c.bf16 %v4804, %v4804
    %v4906 = vpack.c.bf16 %v4860, %v4860
    %v4907 = vpack.c.bf16 %v4863, %v4863
    %v4908 = vpack.c.bf16 %v4868, %v4868
    %v4909 = vpack.c.bf16 %v4871, %v4871
    %v4910 = vpack.c.bf16 %v4876, %v4876
    %v4911 = vpack.c.bf16 %v4879, %v4879
    %v4912 = vpack.c.bf16 %v4884, %v4884
    %v4913 = vpack.c.bf16 %v4887, %v4887
    %v4915 = vsel %vm568, %v4890, 0
    %v4918 = vsel %vm568, %v4898, 0
    %4920 = vmatprep.subr.bf16.mxu0 0
    %4921 = vmatpush1.bf16.xpose.msra.mxu0 %v4918
    %4922 = vmatprep.subr.bf16.mxu0 0
    %4923 = vmatpush1.bf16.xpose.msra.mxu0 0
    %4924 = vmatprep.subr.bf16.mxu0 0
    %4925 = vmatpush1.bf16.xpose.msra.mxu0 0
    %4926 = vmatprep.subr.bf16.mxu0 0
    %4927 = vmatpush1.bf16.xpose.msra.mxu0 0
    %4928 = vmatprep.subr.bf16.mxu0 0
    %4929 = vmatpush1.bf16.xpose.msra.mxu0 0
    %4930 = vmatprep.subr.bf16.mxu0 0
    %4931 = vmatpush1.bf16.xpose.msra.mxu0 0
    %4932 = vmatprep.subr.bf16.mxu0 0
    %4933 = vmatpush1.bf16.xpose.msra.mxu0 0
    %4934 = vmatprep.subr.bf16.mxu0 0
    %4935 = vmatpush1.bf16.xpose.msra.mxu0 0
    %4936 = vmatprep.subr.bf16.mxu0 0
    %4937 = vmatpush1.bf16.xpose.msra.mxu0 0
    %4938 = vmatprep.subr.bf16.mxu0 0
    %4939 = vmatpush1.bf16.xpose.msra.mxu0 0
    %4940 = vmatprep.subr.bf16.mxu0 0
    %4941 = vmatpush1.bf16.xpose.msra.mxu0 0
    %4942 = vmatprep.subr.bf16.mxu0 0
    %4943 = vmatpush1.bf16.xpose.msra.mxu0 0
    %4944 = vmatprep.subr.bf16.mxu0 0
    %4945 = vmatpush1.bf16.xpose.msra.mxu0 0
    %4946 = vmatprep.subr.bf16.mxu0 0
    %4947 = vmatpush1.bf16.xpose.msra.mxu0 0
    %4948 = vmatprep.subr.bf16.mxu0 0
    %4949 = vmatpush1.bf16.xpose.msra.mxu0 0
    %4950 = vmatprep.subr.bf16.mxu0 0
    %4951 = vmatpush1.bf16.xpose.msra.mxu0 0
    %4952 = vmatprep.mubr.bf16.mxu0 0
    %4953 = vmatmul.mubr.bf16.gmra.mrb[0].mxu0 %v4915
    %v4954 = vpop.f32.mrb[0].mxu0
    %v4955 = vadd.f32 0.0, %v4954
    %v4956 = vpop.f32.mrb[0].mxu0
    %v4957 = vpop.f32.mrb[0].mxu0
    %v4958 = vpop.f32.mrb[0].mxu0
    %4959 = vdwg.mxu0
    %v4961 = vsel %vm568, %v4891, 0
    %v4964 = vsel %vm568, %v4899, 0
    %4966 = vmatprep.subr.bf16.mxu0 0
    %4967 = vmatpush1.bf16.xpose.msra.mxu0 %v4964
    %4968 = vmatprep.subr.bf16.mxu0 0
    %4969 = vmatpush1.bf16.xpose.msra.mxu0 0
    %4970 = vmatprep.subr.bf16.mxu0 0
    %4971 = vmatpush1.bf16.xpose.msra.mxu0 0
    %4972 = vmatprep.subr.bf16.mxu0 0
    %4973 = vmatpush1.bf16.xpose.msra.mxu0 0
    %4974 = vmatprep.subr.bf16.mxu0 0
    %4975 = vmatpush1.bf16.xpose.msra.mxu0 0
    %4976 = vmatprep.subr.bf16.mxu0 0
    %4977 = vmatpush1.bf16.xpose.msra.mxu0 0
    %4978 = vmatprep.subr.bf16.mxu0 0
    %4979 = vmatpush1.bf16.xpose.msra.mxu0 0
    %4980 = vmatprep.subr.bf16.mxu0 0
    %4981 = vmatpush1.bf16.xpose.msra.mxu0 0
    %4982 = vmatprep.subr.bf16.mxu0 0
    %4983 = vmatpush1.bf16.xpose.msra.mxu0 0
    %4984 = vmatprep.subr.bf16.mxu0 0
    %4985 = vmatpush1.bf16.xpose.msra.mxu0 0
    %4986 = vmatprep.subr.bf16.mxu0 0
    %4987 = vmatpush1.bf16.xpose.msra.mxu0 0
    %4988 = vmatprep.subr.bf16.mxu0 0
    %4989 = vmatpush1.bf16.xpose.msra.mxu0 0
    %4990 = vmatprep.subr.bf16.mxu0 0
    %4991 = vmatpush1.bf16.xpose.msra.mxu0 0
    %4992 = vmatprep.subr.bf16.mxu0 0
    %4993 = vmatpush1.bf16.xpose.msra.mxu0 0
    %4994 = vmatprep.subr.bf16.mxu0 0
    %4995 = vmatpush1.bf16.xpose.msra.mxu0 0
    %4996 = vmatprep.subr.bf16.mxu0 0
    %4997 = vmatpush1.bf16.xpose.msra.mxu0 0
    %4998 = vmatprep.mubr.bf16.mxu0 0
    %4999 = vmatmul.mubr.bf16.gmra.mrb[0].mxu0 %v4961
    %v5000 = vpop.f32.mrb[0].mxu0
    %v5001 = vadd.f32 0.0, %v5000
    %v5002 = vpop.f32.mrb[0].mxu0
    %v5003 = vpop.f32.mrb[0].mxu0
    %v5004 = vpop.f32.mrb[0].mxu0
    %5005 = vdwg.mxu0
    %v5007 = vsel %vm568, %v4892, 0
    %v5010 = vsel %vm568, %v4900, 0
    %5012 = vmatprep.subr.bf16.mxu0 0
    %5013 = vmatpush1.bf16.xpose.msra.mxu0 %v5010
    %5014 = vmatprep.subr.bf16.mxu0 0
    %5015 = vmatpush1.bf16.xpose.msra.mxu0 0
    %5016 = vmatprep.subr.bf16.mxu0 0
    %5017 = vmatpush1.bf16.xpose.msra.mxu0 0
    %5018 = vmatprep.subr.bf16.mxu0 0
    %5019 = vmatpush1.bf16.xpose.msra.mxu0 0
    %5020 = vmatprep.subr.bf16.mxu0 0
    %5021 = vmatpush1.bf16.xpose.msra.mxu0 0
    %5022 = vmatprep.subr.bf16.mxu0 0
    %5023 = vmatpush1.bf16.xpose.msra.mxu0 0
    %5024 = vmatprep.subr.bf16.mxu0 0
    %5025 = vmatpush1.bf16.xpose.msra.mxu0 0
    %5026 = vmatprep.subr.bf16.mxu0 0
    %5027 = vmatpush1.bf16.xpose.msra.mxu0 0
    %5028 = vmatprep.subr.bf16.mxu0 0
    %5029 = vmatpush1.bf16.xpose.msra.mxu0 0
    %5030 = vmatprep.subr.bf16.mxu0 0
    %5031 = vmatpush1.bf16.xpose.msra.mxu0 0
    %5032 = vmatprep.subr.bf16.mxu0 0
    %5033 = vmatpush1.bf16.xpose.msra.mxu0 0
    %5034 = vmatprep.subr.bf16.mxu0 0
    %5035 = vmatpush1.bf16.xpose.msra.mxu0 0
    %5036 = vmatprep.subr.bf16.mxu0 0
    %5037 = vmatpush1.bf16.xpose.msra.mxu0 0
    %5038 = vmatprep.subr.bf16.mxu0 0
    %5039 = vmatpush1.bf16.xpose.msra.mxu0 0
    %5040 = vmatprep.subr.bf16.mxu0 0
    %5041 = vmatpush1.bf16.xpose.msra.mxu0 0
    %5042 = vmatprep.subr.bf16.mxu0 0
    %5043 = vmatpush1.bf16.xpose.msra.mxu0 0
    %5044 = vmatprep.mubr.bf16.mxu0 0
    %5045 = vmatmul.mubr.bf16.gmra.mrb[0].mxu0 %v5007
    %v5046 = vpop.f32.mrb[0].mxu0
    %v5047 = vadd.f32 0.0, %v5046
    %v5048 = vpop.f32.mrb[0].mxu0
    %v5049 = vpop.f32.mrb[0].mxu0
    %v5050 = vpop.f32.mrb[0].mxu0
    %5051 = vdwg.mxu0
    %v5053 = vsel %vm568, %v4893, 0
    %v5056 = vsel %vm568, %v4901, 0
    %5058 = vmatprep.subr.bf16.mxu0 0
    %5059 = vmatpush1.bf16.xpose.msra.mxu0 %v5056
    %5060 = vmatprep.subr.bf16.mxu0 0
    %5061 = vmatpush1.bf16.xpose.msra.mxu0 0
    %5062 = vmatprep.subr.bf16.mxu0 0
    %5063 = vmatpush1.bf16.xpose.msra.mxu0 0
    %5064 = vmatprep.subr.bf16.mxu0 0
    %5065 = vmatpush1.bf16.xpose.msra.mxu0 0
    %5066 = vmatprep.subr.bf16.mxu0 0
    %5067 = vmatpush1.bf16.xpose.msra.mxu0 0
    %5068 = vmatprep.subr.bf16.mxu0 0
    %5069 = vmatpush1.bf16.xpose.msra.mxu0 0
    %5070 = vmatprep.subr.bf16.mxu0 0
    %5071 = vmatpush1.bf16.xpose.msra.mxu0 0
    %5072 = vmatprep.subr.bf16.mxu0 0
    %5073 = vmatpush1.bf16.xpose.msra.mxu0 0
    %5074 = vmatprep.subr.bf16.mxu0 0
    %5075 = vmatpush1.bf16.xpose.msra.mxu0 0
    %5076 = vmatprep.subr.bf16.mxu0 0
    %5077 = vmatpush1.bf16.xpose.msra.mxu0 0
    %5078 = vmatprep.subr.bf16.mxu0 0
    %5079 = vmatpush1.bf16.xpose.msra.mxu0 0
    %5080 = vmatprep.subr.bf16.mxu0 0
    %5081 = vmatpush1.bf16.xpose.msra.mxu0 0
    %5082 = vmatprep.subr.bf16.mxu0 0
    %5083 = vmatpush1.bf16.xpose.msra.mxu0 0
    %5084 = vmatprep.subr.bf16.mxu0 0
    %5085 = vmatpush1.bf16.xpose.msra.mxu0 0
    %5086 = vmatprep.subr.bf16.mxu0 0
    %5087 = vmatpush1.bf16.xpose.msra.mxu0 0
    %5088 = vmatprep.subr.bf16.mxu0 0
    %5089 = vmatpush1.bf16.xpose.msra.mxu0 0
    %5090 = vmatprep.mubr.bf16.mxu0 0
    %5091 = vmatmul.mubr.bf16.gmra.mrb[0].mxu0 %v5053
    %v5092 = vpop.f32.mrb[0].mxu0
    %v5093 = vadd.f32 0.0, %v5092
    %v5094 = vpop.f32.mrb[0].mxu0
    %v5095 = vpop.f32.mrb[0].mxu0
    %v5096 = vpop.f32.mrb[0].mxu0
    %5097 = vdwg.mxu0
    %v5099 = vsel %vm568, %v4894, 0
    %v5102 = vsel %vm568, %v4902, 0
    %5104 = vmatprep.subr.bf16.mxu0 0
    %5105 = vmatpush1.bf16.xpose.msra.mxu0 %v5102
    %5106 = vmatprep.subr.bf16.mxu0 0
    %5107 = vmatpush1.bf16.xpose.msra.mxu0 0
    %5108 = vmatprep.subr.bf16.mxu0 0
    %5109 = vmatpush1.bf16.xpose.msra.mxu0 0
    %5110 = vmatprep.subr.bf16.mxu0 0
    %5111 = vmatpush1.bf16.xpose.msra.mxu0 0
    %5112 = vmatprep.subr.bf16.mxu0 0
    %5113 = vmatpush1.bf16.xpose.msra.mxu0 0
    %5114 = vmatprep.subr.bf16.mxu0 0
    %5115 = vmatpush1.bf16.xpose.msra.mxu0 0
    %5116 = vmatprep.subr.bf16.mxu0 0
    %5117 = vmatpush1.bf16.xpose.msra.mxu0 0
    %5118 = vmatprep.subr.bf16.mxu0 0
    %5119 = vmatpush1.bf16.xpose.msra.mxu0 0
    %5120 = vmatprep.subr.bf16.mxu0 0
    %5121 = vmatpush1.bf16.xpose.msra.mxu0 0
    %5122 = vmatprep.subr.bf16.mxu0 0
    %5123 = vmatpush1.bf16.xpose.msra.mxu0 0
    %5124 = vmatprep.subr.bf16.mxu0 0
    %5125 = vmatpush1.bf16.xpose.msra.mxu0 0
    %5126 = vmatprep.subr.bf16.mxu0 0
    %5127 = vmatpush1.bf16.xpose.msra.mxu0 0
    %5128 = vmatprep.subr.bf16.mxu0 0
    %5129 = vmatpush1.bf16.xpose.msra.mxu0 0
    %5130 = vmatprep.subr.bf16.mxu0 0
    %5131 = vmatpush1.bf16.xpose.msra.mxu0 0
    %5132 = vmatprep.subr.bf16.mxu0 0
    %5133 = vmatpush1.bf16.xpose.msra.mxu0 0
    %5134 = vmatprep.subr.bf16.mxu0 0
    %5135 = vmatpush1.bf16.xpose.msra.mxu0 0
    %5136 = vmatprep.mubr.bf16.mxu0 0
    %5137 = vmatmul.mubr.bf16.gmra.mrb[0].mxu0 %v5099
    %v5138 = vpop.f32.mrb[0].mxu0
    %v5139 = vadd.f32 0.0, %v5138
    %v5140 = vpop.f32.mrb[0].mxu0
    %v5141 = vpop.f32.mrb[0].mxu0
    %v5142 = vpop.f32.mrb[0].mxu0
    %5143 = vdwg.mxu0
    %v5145 = vsel %vm568, %v4895, 0
    %v5148 = vsel %vm568, %v4903, 0
    %5150 = vmatprep.subr.bf16.mxu0 0
    %5151 = vmatpush1.bf16.xpose.msra.mxu0 %v5148
    %5152 = vmatprep.subr.bf16.mxu0 0
    %5153 = vmatpush1.bf16.xpose.msra.mxu0 0
    %5154 = vmatprep.subr.bf16.mxu0 0
    %5155 = vmatpush1.bf16.xpose.msra.mxu0 0
    %5156 = vmatprep.subr.bf16.mxu0 0
    %5157 = vmatpush1.bf16.xpose.msra.mxu0 0
    %5158 = vmatprep.subr.bf16.mxu0 0
    %5159 = vmatpush1.bf16.xpose.msra.mxu0 0
    %5160 = vmatprep.subr.bf16.mxu0 0
    %5161 = vmatpush1.bf16.xpose.msra.mxu0 0
    %5162 = vmatprep.subr.bf16.mxu0 0
    %5163 = vmatpush1.bf16.xpose.msra.mxu0 0
    %5164 = vmatprep.subr.bf16.mxu0 0
    %5165 = vmatpush1.bf16.xpose.msra.mxu0 0
    %5166 = vmatprep.subr.bf16.mxu0 0
    %5167 = vmatpush1.bf16.xpose.msra.mxu0 0
    %5168 = vmatprep.subr.bf16.mxu0 0
    %5169 = vmatpush1.bf16.xpose.msra.mxu0 0
    %5170 = vmatprep.subr.bf16.mxu0 0
    %5171 = vmatpush1.bf16.xpose.msra.mxu0 0
    %5172 = vmatprep.subr.bf16.mxu0 0
    %5173 = vmatpush1.bf16.xpose.msra.mxu0 0
    %5174 = vmatprep.subr.bf16.mxu0 0
    %5175 = vmatpush1.bf16.xpose.msra.mxu0 0
    %5176 = vmatprep.subr.bf16.mxu0 0
    %5177 = vmatpush1.bf16.xpose.msra.mxu0 0
    %5178 = vmatprep.subr.bf16.mxu0 0
    %5179 = vmatpush1.bf16.xpose.msra.mxu0 0
    %5180 = vmatprep.subr.bf16.mxu0 0
    %5181 = vmatpush1.bf16.xpose.msra.mxu0 0
    %5182 = vmatprep.mubr.bf16.mxu0 0
    %5183 = vmatmul.mubr.bf16.gmra.mrb[0].mxu0 %v5145
    %v5184 = vpop.f32.mrb[0].mxu0
    %v5185 = vadd.f32 0.0, %v5184
    %v5186 = vpop.f32.mrb[0].mxu0
    %v5187 = vpop.f32.mrb[0].mxu0
    %v5188 = vpop.f32.mrb[0].mxu0
    %5189 = vdwg.mxu0
    %v5191 = vsel %vm568, %v4896, 0
    %v5194 = vsel %vm568, %v4904, 0
    %5196 = vmatprep.subr.bf16.mxu0 0
    %5197 = vmatpush1.bf16.xpose.msra.mxu0 %v5194
    %5198 = vmatprep.subr.bf16.mxu0 0
    %5199 = vmatpush1.bf16.xpose.msra.mxu0 0
    %5200 = vmatprep.subr.bf16.mxu0 0
    %5201 = vmatpush1.bf16.xpose.msra.mxu0 0
    %5202 = vmatprep.subr.bf16.mxu0 0
    %5203 = vmatpush1.bf16.xpose.msra.mxu0 0
    %5204 = vmatprep.subr.bf16.mxu0 0
    %5205 = vmatpush1.bf16.xpose.msra.mxu0 0
    %5206 = vmatprep.subr.bf16.mxu0 0
    %5207 = vmatpush1.bf16.xpose.msra.mxu0 0
    %5208 = vmatprep.subr.bf16.mxu0 0
    %5209 = vmatpush1.bf16.xpose.msra.mxu0 0
    %5210 = vmatprep.subr.bf16.mxu0 0
    %5211 = vmatpush1.bf16.xpose.msra.mxu0 0
    %5212 = vmatprep.subr.bf16.mxu0 0
    %5213 = vmatpush1.bf16.xpose.msra.mxu0 0
    %5214 = vmatprep.subr.bf16.mxu0 0
    %5215 = vmatpush1.bf16.xpose.msra.mxu0 0
    %5216 = vmatprep.subr.bf16.mxu0 0
    %5217 = vmatpush1.bf16.xpose.msra.mxu0 0
    %5218 = vmatprep.subr.bf16.mxu0 0
    %5219 = vmatpush1.bf16.xpose.msra.mxu0 0
    %5220 = vmatprep.subr.bf16.mxu0 0
    %5221 = vmatpush1.bf16.xpose.msra.mxu0 0
    %5222 = vmatprep.subr.bf16.mxu0 0
    %5223 = vmatpush1.bf16.xpose.msra.mxu0 0
    %5224 = vmatprep.subr.bf16.mxu0 0
    %5225 = vmatpush1.bf16.xpose.msra.mxu0 0
    %5226 = vmatprep.subr.bf16.mxu0 0
    %5227 = vmatpush1.bf16.xpose.msra.mxu0 0
    %5228 = vmatprep.mubr.bf16.mxu0 0
    %5229 = vmatmul.mubr.bf16.gmra.mrb[0].mxu0 %v5191
    %v5230 = vpop.f32.mrb[0].mxu0
    %v5231 = vadd.f32 0.0, %v5230
    %v5232 = vpop.f32.mrb[0].mxu0
    %v5233 = vpop.f32.mrb[0].mxu0
    %v5234 = vpop.f32.mrb[0].mxu0
    %5235 = vdwg.mxu0
    %v5237 = vsel %vm568, %v4897, 0
    %v5240 = vsel %vm568, %v4905, 0
    %5242 = vmatprep.subr.bf16.mxu0 0
    %5243 = vmatpush1.bf16.xpose.msra.mxu0 %v5240
    %5244 = vmatprep.subr.bf16.mxu0 0
    %5245 = vmatpush1.bf16.xpose.msra.mxu0 0
    %5246 = vmatprep.subr.bf16.mxu0 0
    %5247 = vmatpush1.bf16.xpose.msra.mxu0 0
    %5248 = vmatprep.subr.bf16.mxu0 0
    %5249 = vmatpush1.bf16.xpose.msra.mxu0 0
    %5250 = vmatprep.subr.bf16.mxu0 0
    %5251 = vmatpush1.bf16.xpose.msra.mxu0 0
    %5252 = vmatprep.subr.bf16.mxu0 0
    %5253 = vmatpush1.bf16.xpose.msra.mxu0 0
    %5254 = vmatprep.subr.bf16.mxu0 0
    %5255 = vmatpush1.bf16.xpose.msra.mxu0 0
    %5256 = vmatprep.subr.bf16.mxu0 0
    %5257 = vmatpush1.bf16.xpose.msra.mxu0 0
    %5258 = vmatprep.subr.bf16.mxu0 0
    %5259 = vmatpush1.bf16.xpose.msra.mxu0 0
    %5260 = vmatprep.subr.bf16.mxu0 0
    %5261 = vmatpush1.bf16.xpose.msra.mxu0 0
    %5262 = vmatprep.subr.bf16.mxu0 0
    %5263 = vmatpush1.bf16.xpose.msra.mxu0 0
    %5264 = vmatprep.subr.bf16.mxu0 0
    %5265 = vmatpush1.bf16.xpose.msra.mxu0 0
    %5266 = vmatprep.subr.bf16.mxu0 0
    %5267 = vmatpush1.bf16.xpose.msra.mxu0 0
    %5268 = vmatprep.subr.bf16.mxu0 0
    %5269 = vmatpush1.bf16.xpose.msra.mxu0 0
    %5270 = vmatprep.subr.bf16.mxu0 0
    %5271 = vmatpush1.bf16.xpose.msra.mxu0 0
    %5272 = vmatprep.subr.bf16.mxu0 0
    %5273 = vmatpush1.bf16.xpose.msra.mxu0 0
    %5274 = vmatprep.mubr.bf16.mxu0 0
    %5275 = vmatmul.mubr.bf16.gmra.mrb[0].mxu0 %v5237
    %v5276 = vpop.f32.mrb[0].mxu0
    %v5277 = vadd.f32 0.0, %v5276
    %v5278 = vpop.f32.mrb[0].mxu0
    %v5279 = vpop.f32.mrb[0].mxu0
    %v5280 = vpop.f32.mrb[0].mxu0
    %5281 = vdwg.mxu0
    %v5282 = vmul.f32 %v4955, 0.25
    %v5283 = vmul.f32 %v5001, 0.25
    %v5284 = vmul.f32 %v5047, 0.25
    %v5285 = vmul.f32 %v5093, 0.25
    %v5286 = vmul.f32 %v5139, 0.25
    %v5287 = vmul.f32 %v5185, 0.25
    %v5288 = vmul.f32 %v5231, 0.25
    %v5289 = vmul.f32 %v5277, 0.25
    %v5290 = vadd.f32 %v5282, %v956
    %v5291 = vadd.f32 %v5283, %v960
    %v5292 = vadd.f32 %v5284, %v964
    %v5293 = vadd.f32 %v5285, %v968
    %v5294 = vadd.f32 %v5286, %v972
    %v5295 = vadd.f32 %v5287, %v976
    %v5296 = vadd.f32 %v5288, %v980
    %v5297 = vadd.f32 %v5289, %v984
    %v5298 = vsel %vm1001, %v5290, -inf
    %5299 = vmax.xlane.f32.xlu0 %v5298
    %v5300 = vpop.xlane.xlu0 %5299
    %v5301 = vsel %vm1001, %v5291, -inf
    %5302 = vmax.xlane.f32.xlu0 %v5301
    %v5303 = vpop.xlane.xlu0 %5302
    %v5304 = vsel %vm1001, %v5292, -inf
    %5305 = vmax.xlane.f32.xlu0 %v5304
    %v5306 = vpop.xlane.xlu0 %5305
    %v5307 = vsel %vm1001, %v5293, -inf
    %5308 = vmax.xlane.f32.xlu0 %v5307
    %v5309 = vpop.xlane.xlu0 %5308
    %v5310 = vsel %vm1001, %v5294, -inf
    %5311 = vmax.xlane.f32.xlu0 %v5310
    %v5312 = vpop.xlane.xlu0 %5311
    %v5313 = vsel %vm1001, %v5295, -inf
    %5314 = vmax.xlane.f32.xlu0 %v5313
    %v5315 = vpop.xlane.xlu0 %5314
    %v5316 = vsel %vm1001, %v5296, -inf
    %5317 = vmax.xlane.f32.xlu0 %v5316
    %v5318 = vpop.xlane.xlu0 %5317
    %v5319 = vsel %vm1001, %v5297, -inf
    %5320 = vmax.xlane.f32.xlu0 %v5319
    %v5321 = vpop.xlane.xlu0 %5320
    %v5322 = vsub.f32 %v5290, %v5300
    %v5323 = vsub.f32 %v5291, %v5303
    %v5324 = vsub.f32 %v5292, %v5306
    %v5325 = vsub.f32 %v5293, %v5309
    %v5326 = vsub.f32 %v5294, %v5312
    %v5327 = vsub.f32 %v5295, %v5315
    %v5328 = vsub.f32 %v5296, %v5318
    %v5329 = vsub.f32 %v5297, %v5321
    %v5330 = vmul.f32 %v5322, 1.442695
    %v5331 = vpow.pop %v5330
    %v5332 = vmul.f32 %v5323, 1.442695
    %v5333 = vpow.pop %v5332
    %v5334 = vmul.f32 %v5324, 1.442695
    %v5335 = vpow.pop %v5334
    %v5336 = vmul.f32 %v5325, 1.442695
    %v5337 = vpow.pop %v5336
    %v5338 = vmul.f32 %v5326, 1.442695
    %v5339 = vpow.pop %v5338
    %v5340 = vmul.f32 %v5327, 1.442695
    %v5341 = vpow.pop %v5340
    %v5342 = vmul.f32 %v5328, 1.442695
    %v5343 = vpow.pop %v5342
    %v5344 = vmul.f32 %v5329, 1.442695
    %v5345 = vpow.pop %v5344
    %v5346 = vsel %vm1001, %v5331, 0.0
    %5347 = vadd.xlane.f32.xlu0 %v5346
    %v5348 = vpop.xlane.xlu0 %5347
    %v5349 = vsel %vm1001, %v5333, 0.0
    %5350 = vadd.xlane.f32.xlu0 %v5349
    %v5351 = vpop.xlane.xlu0 %5350
    %v5352 = vsel %vm1001, %v5335, 0.0
    %5353 = vadd.xlane.f32.xlu0 %v5352
    %v5354 = vpop.xlane.xlu0 %5353
    %v5355 = vsel %vm1001, %v5337, 0.0
    %5356 = vadd.xlane.f32.xlu0 %v5355
    %v5357 = vpop.xlane.xlu0 %5356
    %v5358 = vsel %vm1001, %v5339, 0.0
    %5359 = vadd.xlane.f32.xlu0 %v5358
    %v5360 = vpop.xlane.xlu0 %5359
    %v5361 = vsel %vm1001, %v5341, 0.0
    %5362 = vadd.xlane.f32.xlu0 %v5361
    %v5363 = vpop.xlane.xlu0 %5362
    %v5364 = vsel %vm1001, %v5343, 0.0
    %5365 = vadd.xlane.f32.xlu0 %v5364
    %v5366 = vpop.xlane.xlu0 %5365
    %v5367 = vsel %vm1001, %v5345, 0.0
    %5368 = vadd.xlane.f32.xlu0 %v5367
    %v5369 = vpop.xlane.xlu0 %5368
    %v5370 = vrcp.pop %v5348
    %v5371 = vmul.f32 %v5331, %v5370
    %v5372 = vrcp.pop %v5351
    %v5373 = vmul.f32 %v5333, %v5372
    %v5374 = vrcp.pop %v5354
    %v5375 = vmul.f32 %v5335, %v5374
    %v5376 = vrcp.pop %v5357
    %v5377 = vmul.f32 %v5337, %v5376
    %v5378 = vrcp.pop %v5360
    %v5379 = vmul.f32 %v5339, %v5378
    %v5380 = vrcp.pop %v5363
    %v5381 = vmul.f32 %v5341, %v5380
    %v5382 = vrcp.pop %v5366
    %v5383 = vmul.f32 %v5343, %v5382
    %v5384 = vrcp.pop %v5369
    %v5385 = vmul.f32 %v5345, %v5384
    %v5386 = vpack.c.bf16 %v5371, %v5371
    %v5387 = vpack.c.bf16 %v5373, %v5373
    %v5388 = vpack.c.bf16 %v5375, %v5375
    %v5389 = vpack.c.bf16 %v5377, %v5377
    %v5390 = vpack.c.bf16 %v5379, %v5379
    %v5391 = vpack.c.bf16 %v5381, %v5381
    %v5392 = vpack.c.bf16 %v5383, %v5383
    %v5393 = vpack.c.bf16 %v5385, %v5385
    %v5395 = vsel %vm1001, %v5386, 0
    %v5398 = vsel %vm1101, %v4906, 0
    %5400 = vmatprep.subr.bf16.mxu0 0
    %5401 = vmatpush1.bf16.msra.mxu0 %v5398
    %5402 = vmatprep.subr.bf16.mxu0 0
    %5403 = vmatpush1.bf16.msra.mxu0 0
    %5404 = vmatprep.subr.bf16.mxu0 0
    %5405 = vmatpush1.bf16.msra.mxu0 0
    %5406 = vmatprep.subr.bf16.mxu0 0
    %5407 = vmatpush1.bf16.msra.mxu0 0
    %5408 = vmatprep.subr.bf16.mxu0 0
    %5409 = vmatpush1.bf16.msra.mxu0 0
    %5410 = vmatprep.subr.bf16.mxu0 0
    %5411 = vmatpush1.bf16.msra.mxu0 0
    %5412 = vmatprep.subr.bf16.mxu0 0
    %5413 = vmatpush1.bf16.msra.mxu0 0
    %5414 = vmatprep.subr.bf16.mxu0 0
    %5415 = vmatpush1.bf16.msra.mxu0 0
    %5416 = vmatprep.subr.bf16.mxu0 0
    %5417 = vmatpush1.bf16.msra.mxu0 0
    %5418 = vmatprep.subr.bf16.mxu0 0
    %5419 = vmatpush1.bf16.msra.mxu0 0
    %5420 = vmatprep.subr.bf16.mxu0 0
    %5421 = vmatpush1.bf16.msra.mxu0 0
    %5422 = vmatprep.subr.bf16.mxu0 0
    %5423 = vmatpush1.bf16.msra.mxu0 0
    %5424 = vmatprep.subr.bf16.mxu0 0
    %5425 = vmatpush1.bf16.msra.mxu0 0
    %5426 = vmatprep.subr.bf16.mxu0 0
    %5427 = vmatpush1.bf16.msra.mxu0 0
    %5428 = vmatprep.subr.bf16.mxu0 0
    %5429 = vmatpush1.bf16.msra.mxu0 0
    %5430 = vmatprep.subr.bf16.mxu0 0
    %5431 = vmatpush1.bf16.msra.mxu0 0
    %5432 = vmatprep.mubr.bf16.mxu0 0
    %5433 = vmatmul.mubr.bf16.gmra.mrb[0].mxu0 %v5395
    %v5434 = vpop.f32.mrb[0].mxu0
    %v5435 = vadd.f32 0.0, %v5434
    %v5436 = vpop.f32.mrb[0].mxu0
    %v5437 = vpop.f32.mrb[0].mxu0
    %v5438 = vpop.f32.mrb[0].mxu0
    %5439 = vdwg.mxu0
    %v5441 = vsel %vm1001, %v5387, 0
    %v5444 = vsel %vm1101, %v4907, 0
    %5446 = vmatprep.subr.bf16.mxu0 0
    %5447 = vmatpush1.bf16.msra.mxu0 %v5444
    %5448 = vmatprep.subr.bf16.mxu0 0
    %5449 = vmatpush1.bf16.msra.mxu0 0
    %5450 = vmatprep.subr.bf16.mxu0 0
    %5451 = vmatpush1.bf16.msra.mxu0 0
    %5452 = vmatprep.subr.bf16.mxu0 0
    %5453 = vmatpush1.bf16.msra.mxu0 0
    %5454 = vmatprep.subr.bf16.mxu0 0
    %5455 = vmatpush1.bf16.msra.mxu0 0
    %5456 = vmatprep.subr.bf16.mxu0 0
    %5457 = vmatpush1.bf16.msra.mxu0 0
    %5458 = vmatprep.subr.bf16.mxu0 0
    %5459 = vmatpush1.bf16.msra.mxu0 0
    %5460 = vmatprep.subr.bf16.mxu0 0
    %5461 = vmatpush1.bf16.msra.mxu0 0
    %5462 = vmatprep.subr.bf16.mxu0 0
    %5463 = vmatpush1.bf16.msra.mxu0 0
    %5464 = vmatprep.subr.bf16.mxu0 0
    %5465 = vmatpush1.bf16.msra.mxu0 0
    %5466 = vmatprep.subr.bf16.mxu0 0
    %5467 = vmatpush1.bf16.msra.mxu0 0
    %5468 = vmatprep.subr.bf16.mxu0 0
    %5469 = vmatpush1.bf16.msra.mxu0 0
    %5470 = vmatprep.subr.bf16.mxu0 0
    %5471 = vmatpush1.bf16.msra.mxu0 0
    %5472 = vmatprep.subr.bf16.mxu0 0
    %5473 = vmatpush1.bf16.msra.mxu0 0
    %5474 = vmatprep.subr.bf16.mxu0 0
    %5475 = vmatpush1.bf16.msra.mxu0 0
    %5476 = vmatprep.subr.bf16.mxu0 0
    %5477 = vmatpush1.bf16.msra.mxu0 0
    %5478 = vmatprep.mubr.bf16.mxu0 0
    %5479 = vmatmul.mubr.bf16.gmra.mrb[0].mxu0 %v5441
    %v5480 = vpop.f32.mrb[0].mxu0
    %v5481 = vadd.f32 0.0, %v5480
    %v5482 = vpop.f32.mrb[0].mxu0
    %v5483 = vpop.f32.mrb[0].mxu0
    %v5484 = vpop.f32.mrb[0].mxu0
    %5485 = vdwg.mxu0
    %v5487 = vsel %vm1001, %v5388, 0
    %v5490 = vsel %vm1101, %v4908, 0
    %5492 = vmatprep.subr.bf16.mxu0 0
    %5493 = vmatpush1.bf16.msra.mxu0 %v5490
    %5494 = vmatprep.subr.bf16.mxu0 0
    %5495 = vmatpush1.bf16.msra.mxu0 0
    %5496 = vmatprep.subr.bf16.mxu0 0
    %5497 = vmatpush1.bf16.msra.mxu0 0
    %5498 = vmatprep.subr.bf16.mxu0 0
    %5499 = vmatpush1.bf16.msra.mxu0 0
    %5500 = vmatprep.subr.bf16.mxu0 0
    %5501 = vmatpush1.bf16.msra.mxu0 0
    %5502 = vmatprep.subr.bf16.mxu0 0
    %5503 = vmatpush1.bf16.msra.mxu0 0
    %5504 = vmatprep.subr.bf16.mxu0 0
    %5505 = vmatpush1.bf16.msra.mxu0 0
    %5506 = vmatprep.subr.bf16.mxu0 0
    %5507 = vmatpush1.bf16.msra.mxu0 0
    %5508 = vmatprep.subr.bf16.mxu0 0
    %5509 = vmatpush1.bf16.msra.mxu0 0
    %5510 = vmatprep.subr.bf16.mxu0 0
    %5511 = vmatpush1.bf16.msra.mxu0 0
    %5512 = vmatprep.subr.bf16.mxu0 0
    %5513 = vmatpush1.bf16.msra.mxu0 0
    %5514 = vmatprep.subr.bf16.mxu0 0
    %5515 = vmatpush1.bf16.msra.mxu0 0
    %5516 = vmatprep.subr.bf16.mxu0 0
    %5517 = vmatpush1.bf16.msra.mxu0 0
    %5518 = vmatprep.subr.bf16.mxu0 0
    %5519 = vmatpush1.bf16.msra.mxu0 0
    %5520 = vmatprep.subr.bf16.mxu0 0
    %5521 = vmatpush1.bf16.msra.mxu0 0
    %5522 = vmatprep.subr.bf16.mxu0 0
    %5523 = vmatpush1.bf16.msra.mxu0 0
    %5524 = vmatprep.mubr.bf16.mxu0 0
    %5525 = vmatmul.mubr.bf16.gmra.mrb[0].mxu0 %v5487
    %v5526 = vpop.f32.mrb[0].mxu0
    %v5527 = vadd.f32 0.0, %v5526
    %v5528 = vpop.f32.mrb[0].mxu0
    %v5529 = vpop.f32.mrb[0].mxu0
    %v5530 = vpop.f32.mrb[0].mxu0
    %5531 = vdwg.mxu0
    %v5533 = vsel %vm1001, %v5389, 0
    %v5536 = vsel %vm1101, %v4909, 0
    %5538 = vmatprep.subr.bf16.mxu0 0
    %5539 = vmatpush1.bf16.msra.mxu0 %v5536
    %5540 = vmatprep.subr.bf16.mxu0 0
    %5541 = vmatpush1.bf16.msra.mxu0 0
    %5542 = vmatprep.subr.bf16.mxu0 0
    %5543 = vmatpush1.bf16.msra.mxu0 0
    %5544 = vmatprep.subr.bf16.mxu0 0
    %5545 = vmatpush1.bf16.msra.mxu0 0
    %5546 = vmatprep.subr.bf16.mxu0 0
    %5547 = vmatpush1.bf16.msra.mxu0 0
    %5548 = vmatprep.subr.bf16.mxu0 0
    %5549 = vmatpush1.bf16.msra.mxu0 0
    %5550 = vmatprep.subr.bf16.mxu0 0
    %5551 = vmatpush1.bf16.msra.mxu0 0
    %5552 = vmatprep.subr.bf16.mxu0 0
    %5553 = vmatpush1.bf16.msra.mxu0 0
    %5554 = vmatprep.subr.bf16.mxu0 0
    %5555 = vmatpush1.bf16.msra.mxu0 0
    %5556 = vmatprep.subr.bf16.mxu0 0
    %5557 = vmatpush1.bf16.msra.mxu0 0
    %5558 = vmatprep.subr.bf16.mxu0 0
    %5559 = vmatpush1.bf16.msra.mxu0 0
    %5560 = vmatprep.subr.bf16.mxu0 0
    %5561 = vmatpush1.bf16.msra.mxu0 0
    %5562 = vmatprep.subr.bf16.mxu0 0
    %5563 = vmatpush1.bf16.msra.mxu0 0
    %5564 = vmatprep.subr.bf16.mxu0 0
    %5565 = vmatpush1.bf16.msra.mxu0 0
    %5566 = vmatprep.subr.bf16.mxu0 0
    %5567 = vmatpush1.bf16.msra.mxu0 0
    %5568 = vmatprep.subr.bf16.mxu0 0
    %5569 = vmatpush1.bf16.msra.mxu0 0
    %5570 = vmatprep.mubr.bf16.mxu0 0
    %5571 = vmatmul.mubr.bf16.gmra.mrb[0].mxu0 %v5533
    %v5572 = vpop.f32.mrb[0].mxu0
    %v5573 = vadd.f32 0.0, %v5572
    %v5574 = vpop.f32.mrb[0].mxu0
    %v5575 = vpop.f32.mrb[0].mxu0
    %v5576 = vpop.f32.mrb[0].mxu0
    %5577 = vdwg.mxu0
    %v5579 = vsel %vm1001, %v5390, 0
    %v5582 = vsel %vm1101, %v4910, 0
    %5584 = vmatprep.subr.bf16.mxu0 0
    %5585 = vmatpush1.bf16.msra.mxu0 %v5582
    %5586 = vmatprep.subr.bf16.mxu0 0
    %5587 = vmatpush1.bf16.msra.mxu0 0
    %5588 = vmatprep.subr.bf16.mxu0 0
    %5589 = vmatpush1.bf16.msra.mxu0 0
    %5590 = vmatprep.subr.bf16.mxu0 0
    %5591 = vmatpush1.bf16.msra.mxu0 0
    %5592 = vmatprep.subr.bf16.mxu0 0
    %5593 = vmatpush1.bf16.msra.mxu0 0
    %5594 = vmatprep.subr.bf16.mxu0 0
    %5595 = vmatpush1.bf16.msra.mxu0 0
    %5596 = vmatprep.subr.bf16.mxu0 0
    %5597 = vmatpush1.bf16.msra.mxu0 0
    %5598 = vmatprep.subr.bf16.mxu0 0
    %5599 = vmatpush1.bf16.msra.mxu0 0
    %5600 = vmatprep.subr.bf16.mxu0 0
    %5601 = vmatpush1.bf16.msra.mxu0 0
    %5602 = vmatprep.subr.bf16.mxu0 0
    %5603 = vmatpush1.bf16.msra.mxu0 0
    %5604 = vmatprep.subr.bf16.mxu0 0
    %5605 = vmatpush1.bf16.msra.mxu0 0
    %5606 = vmatprep.subr.bf16.mxu0 0
    %5607 = vmatpush1.bf16.msra.mxu0 0
    %5608 = vmatprep.subr.bf16.mxu0 0
    %5609 = vmatpush1.bf16.msra.mxu0 0
    %5610 = vmatprep.subr.bf16.mxu0 0
    %5611 = vmatpush1.bf16.msra.mxu0 0
    %5612 = vmatprep.subr.bf16.mxu0 0
    %5613 = vmatpush1.bf16.msra.mxu0 0
    %5614 = vmatprep.subr.bf16.mxu0 0
    %5615 = vmatpush1.bf16.msra.mxu0 0
    %5616 = vmatprep.mubr.bf16.mxu0 0
    %5617 = vmatmul.mubr.bf16.gmra.mrb[0].mxu0 %v5579
    %v5618 = vpop.f32.mrb[0].mxu0
    %v5619 = vadd.f32 0.0, %v5618
    %v5620 = vpop.f32.mrb[0].mxu0
    %v5621 = vpop.f32.mrb[0].mxu0
    %v5622 = vpop.f32.mrb[0].mxu0
    %5623 = vdwg.mxu0
    %v5625 = vsel %vm1001, %v5391, 0
    %v5628 = vsel %vm1101, %v4911, 0
    %5630 = vmatprep.subr.bf16.mxu0 0
    %5631 = vmatpush1.bf16.msra.mxu0 %v5628
    %5632 = vmatprep.subr.bf16.mxu0 0
    %5633 = vmatpush1.bf16.msra.mxu0 0
    %5634 = vmatprep.subr.bf16.mxu0 0
    %5635 = vmatpush1.bf16.msra.mxu0 0
    %5636 = vmatprep.subr.bf16.mxu0 0
    %5637 = vmatpush1.bf16.msra.mxu0 0
    %5638 = vmatprep.subr.bf16.mxu0 0
    %5639 = vmatpush1.bf16.msra.mxu0 0
    %5640 = vmatprep.subr.bf16.mxu0 0
    %5641 = vmatpush1.bf16.msra.mxu0 0
    %5642 = vmatprep.subr.bf16.mxu0 0
    %5643 = vmatpush1.bf16.msra.mxu0 0
    %5644 = vmatprep.subr.bf16.mxu0 0
    %5645 = vmatpush1.bf16.msra.mxu0 0
    %5646 = vmatprep.subr.bf16.mxu0 0
    %5647 = vmatpush1.bf16.msra.mxu0 0
    %5648 = vmatprep.subr.bf16.mxu0 0
    %5649 = vmatpush1.bf16.msra.mxu0 0
    %5650 = vmatprep.subr.bf16.mxu0 0
    %5651 = vmatpush1.bf16.msra.mxu0 0
    %5652 = vmatprep.subr.bf16.mxu0 0
    %5653 = vmatpush1.bf16.msra.mxu0 0
    %5654 = vmatprep.subr.bf16.mxu0 0
    %5655 = vmatpush1.bf16.msra.mxu0 0
    %5656 = vmatprep.subr.bf16.mxu0 0
    %5657 = vmatpush1.bf16.msra.mxu0 0
    %5658 = vmatprep.subr.bf16.mxu0 0
    %5659 = vmatpush1.bf16.msra.mxu0 0
    %5660 = vmatprep.subr.bf16.mxu0 0
    %5661 = vmatpush1.bf16.msra.mxu0 0
    %5662 = vmatprep.mubr.bf16.mxu0 0
    %5663 = vmatmul.mubr.bf16.gmra.mrb[0].mxu0 %v5625
    %v5664 = vpop.f32.mrb[0].mxu0
    %v5665 = vadd.f32 0.0, %v5664
    %v5666 = vpop.f32.mrb[0].mxu0
    %v5667 = vpop.f32.mrb[0].mxu0
    %v5668 = vpop.f32.mrb[0].mxu0
    %5669 = vdwg.mxu0
    %v5671 = vsel %vm1001, %v5392, 0
    %v5674 = vsel %vm1101, %v4912, 0
    %5676 = vmatprep.subr.bf16.mxu0 0
    %5677 = vmatpush1.bf16.msra.mxu0 %v5674
    %5678 = vmatprep.subr.bf16.mxu0 0
    %5679 = vmatpush1.bf16.msra.mxu0 0
    %5680 = vmatprep.subr.bf16.mxu0 0
    %5681 = vmatpush1.bf16.msra.mxu0 0
    %5682 = vmatprep.subr.bf16.mxu0 0
    %5683 = vmatpush1.bf16.msra.mxu0 0
    %5684 = vmatprep.subr.bf16.mxu0 0
    %5685 = vmatpush1.bf16.msra.mxu0 0
    %5686 = vmatprep.subr.bf16.mxu0 0
    %5687 = vmatpush1.bf16.msra.mxu0 0
    %5688 = vmatprep.subr.bf16.mxu0 0
    %5689 = vmatpush1.bf16.msra.mxu0 0
    %5690 = vmatprep.subr.bf16.mxu0 0
    %5691 = vmatpush1.bf16.msra.mxu0 0
    %5692 = vmatprep.subr.bf16.mxu0 0
    %5693 = vmatpush1.bf16.msra.mxu0 0
    %5694 = vmatprep.subr.bf16.mxu0 0
    %5695 = vmatpush1.bf16.msra.mxu0 0
    %5696 = vmatprep.subr.bf16.mxu0 0
    %5697 = vmatpush1.bf16.msra.mxu0 0
    %5698 = vmatprep.subr.bf16.mxu0 0
    %5699 = vmatpush1.bf16.msra.mxu0 0
    %5700 = vmatprep.subr.bf16.mxu0 0
    %5701 = vmatpush1.bf16.msra.mxu0 0
    %5702 = vmatprep.subr.bf16.mxu0 0
    %5703 = vmatpush1.bf16.msra.mxu0 0
    %5704 = vmatprep.subr.bf16.mxu0 0
    %5705 = vmatpush1.bf16.msra.mxu0 0
    %5706 = vmatprep.subr.bf16.mxu0 0
    %5707 = vmatpush1.bf16.msra.mxu0 0
    %5708 = vmatprep.mubr.bf16.mxu0 0
    %5709 = vmatmul.mubr.bf16.gmra.mrb[0].mxu0 %v5671
    %v5710 = vpop.f32.mrb[0].mxu0
    %v5711 = vadd.f32 0.0, %v5710
    %v5712 = vpop.f32.mrb[0].mxu0
    %v5713 = vpop.f32.mrb[0].mxu0
    %v5714 = vpop.f32.mrb[0].mxu0
    %5715 = vdwg.mxu0
    %v5717 = vsel %vm1001, %v5393, 0
    %v5720 = vsel %vm1101, %v4913, 0
    %5722 = vmatprep.subr.bf16.mxu0 0
    %5723 = vmatpush1.bf16.msra.mxu0 %v5720
    %5724 = vmatprep.subr.bf16.mxu0 0
    %5725 = vmatpush1.bf16.msra.mxu0 0
    %5726 = vmatprep.subr.bf16.mxu0 0
    %5727 = vmatpush1.bf16.msra.mxu0 0
    %5728 = vmatprep.subr.bf16.mxu0 0
    %5729 = vmatpush1.bf16.msra.mxu0 0
    %5730 = vmatprep.subr.bf16.mxu0 0
    %5731 = vmatpush1.bf16.msra.mxu0 0
    %5732 = vmatprep.subr.bf16.mxu0 0
    %5733 = vmatpush1.bf16.msra.mxu0 0
    %5734 = vmatprep.subr.bf16.mxu0 0
    %5735 = vmatpush1.bf16.msra.mxu0 0
    %5736 = vmatprep.subr.bf16.mxu0 0
    %5737 = vmatpush1.bf16.msra.mxu0 0
    %5738 = vmatprep.subr.bf16.mxu0 0
    %5739 = vmatpush1.bf16.msra.mxu0 0
    %5740 = vmatprep.subr.bf16.mxu0 0
    %5741 = vmatpush1.bf16.msra.mxu0 0
    %5742 = vmatprep.subr.bf16.mxu0 0
    %5743 = vmatpush1.bf16.msra.mxu0 0
    %5744 = vmatprep.subr.bf16.mxu0 0
    %5745 = vmatpush1.bf16.msra.mxu0 0
    %5746 = vmatprep.subr.bf16.mxu0 0
    %5747 = vmatpush1.bf16.msra.mxu0 0
    %5748 = vmatprep.subr.bf16.mxu0 0
    %5749 = vmatpush1.bf16.msra.mxu0 0
    %5750 = vmatprep.subr.bf16.mxu0 0
    %5751 = vmatpush1.bf16.msra.mxu0 0
    %5752 = vmatprep.subr.bf16.mxu0 0
    %5753 = vmatpush1.bf16.msra.mxu0 0
    %5754 = vmatprep.mubr.bf16.mxu0 0
    %5755 = vmatmul.mubr.bf16.gmra.mrb[0].mxu0 %v5717
    %v5756 = vpop.f32.mrb[0].mxu0
    %v5757 = vadd.f32 0.0, %v5756
    %v5758 = vpop.f32.mrb[0].mxu0
    %v5759 = vpop.f32.mrb[0].mxu0
    %v5760 = vpop.f32.mrb[0].mxu0
    %5761 = vdwg.mxu0
    %v5762 = vpack.c.bf16 %v5481, %v5435
    %v5763 = vpack.c.bf16 %v5573, %v5527
    %v5764 = vpack.c.bf16 %v5665, %v5619
    %v5765 = vpack.c.bf16 %v5757, %v5711
    %v5768 = vunpack.c.l.b16 %v3402
    %v5769 = vunpack.c.l.b16 %v3403
    %v5770 = vpack.c.b16 %v5769, %v5768
    %v5773 = vsel %vm568, %v5762, 0
    %v5776 = vsel %vm568, %v5763, 0
    %v5779 = vsel %vm568, %v5764, 0
    %v5782 = vsel %vm568, %v5765, 0
    %5784 = vmatprep.subr.bf16.mxu0 0
    %5785 = vmatpush1.bf16.msra.mxu0 %v5770
    %5786 = vmatprep.subr.bf16.mxu0 0
    %5787 = vmatpush1.bf16.msra.mxu0 0
    %5788 = vmatprep.subr.bf16.mxu0 0
    %5789 = vmatpush1.bf16.msra.mxu0 0
    %5790 = vmatprep.subr.bf16.mxu0 0
    %5791 = vmatpush1.bf16.msra.mxu0 0
    %5792 = vmatprep.subr.bf16.mxu0 0
    %5793 = vmatpush1.bf16.msra.mxu0 0
    %5794 = vmatprep.subr.bf16.mxu0 0
    %5795 = vmatpush1.bf16.msra.mxu0 0
    %5796 = vmatprep.subr.bf16.mxu0 0
    %5797 = vmatpush1.bf16.msra.mxu0 0
    %5798 = vmatprep.subr.bf16.mxu0 0
    %5799 = vmatpush1.bf16.msra.mxu0 0
    %5800 = vmatprep.subr.bf16.mxu0 0
    %5801 = vmatpush1.bf16.msra.mxu0 0
    %5802 = vmatprep.subr.bf16.mxu0 0
    %5803 = vmatpush1.bf16.msra.mxu0 0
    %5804 = vmatprep.subr.bf16.mxu0 0
    %5805 = vmatpush1.bf16.msra.mxu0 0
    %5806 = vmatprep.subr.bf16.mxu0 0
    %5807 = vmatpush1.bf16.msra.mxu0 0
    %5808 = vmatprep.subr.bf16.mxu0 0
    %5809 = vmatpush1.bf16.msra.mxu0 0
    %5810 = vmatprep.subr.bf16.mxu0 0
    %5811 = vmatpush1.bf16.msra.mxu0 0
    %5812 = vmatprep.subr.bf16.mxu0 0
    %5813 = vmatpush1.bf16.msra.mxu0 0
    %5814 = vmatprep.subr.bf16.mxu0 0
    %5815 = vmatpush1.bf16.msra.mxu0 0
    %5816 = vmatprep.mubr.bf16.mxu0 0
    %5817 = vmatmul.mubr.bf16.gmra.mrb[0].mxu0 %v5773
    %v5818 = vpop.f32.mrb[0].mxu0
    %v5819 = vadd.f32 0.0, %v5818
    %v5820 = vpop.f32.mrb[0].mxu0
    %v5821 = vpop.f32.mrb[0].mxu0
    %v5822 = vadd.f32 0.0, %v5821
    %v5823 = vpop.f32.mrb[0].mxu0
    %5824 = vmatprep.mubr.bf16.mxu0 0
    %5825 = vmatmul.mubr.bf16.gmra.mrb[0].mxu0 %v5776
    %v5826 = vpop.f32.mrb[0].mxu0
    %v5827 = vadd.f32 0.0, %v5826
    %v5828 = vpop.f32.mrb[0].mxu0
    %v5829 = vpop.f32.mrb[0].mxu0
    %v5830 = vadd.f32 0.0, %v5829
    %v5831 = vpop.f32.mrb[0].mxu0
    %5832 = vmatprep.mubr.bf16.mxu0 0
    %5833 = vmatmul.mubr.bf16.gmra.mrb[0].mxu0 %v5779
    %v5834 = vpop.f32.mrb[0].mxu0
    %v5835 = vadd.f32 0.0, %v5834
    %v5836 = vpop.f32.mrb[0].mxu0
    %v5837 = vpop.f32.mrb[0].mxu0
    %v5838 = vadd.f32 0.0, %v5837
    %v5839 = vpop.f32.mrb[0].mxu0
    %5840 = vmatprep.mubr.bf16.mxu0 0
    %5841 = vmatmul.mubr.bf16.gmra.mrb[0].mxu0 %v5782
    %v5842 = vpop.f32.mrb[0].mxu0
    %v5843 = vadd.f32 0.0, %v5842
    %v5844 = vpop.f32.mrb[0].mxu0
    %v5845 = vpop.f32.mrb[0].mxu0
    %v5846 = vadd.f32 0.0, %v5845
    %v5847 = vpop.f32.mrb[0].mxu0
    %5848 = vdwg.mxu0
    %v5849 = vadd.f32 %v4633, %v5819
    %v5850 = vadd.f32 %v4634, %v5822
    %v5851 = vadd.f32 %v4635, %v5827
    %v5852 = vadd.f32 %v4636, %v5830
    %v5853 = vadd.f32 %v4637, %v5835
    %v5854 = vadd.f32 %v4638, %v5838
    %v5855 = vadd.f32 %v4639, %v5843
    %v5856 = vadd.f32 %v4640, %v5846
    %v5857 = vadd.f32 %v5849, %v3351
    %v5858 = vadd.f32 %v5850, %v3352
    %v5859 = vadd.f32 %v5851, %v3353
    %v5860 = vadd.f32 %v5852, %v3354
    %v5861 = vadd.f32 %v5853, %v3355
    %v5862 = vadd.f32 %v5854, %v3356
    %v5863 = vadd.f32 %v5855, %v3357
    %v5864 = vadd.f32 %v5856, %v3358
    %s5865 = scalar_lea.vmem %s14, 1
    %v5866 = vld [vmem:[%s5865] sm:$0x1]
    %s5867 = scalar_lea.vmem %s15, 1
    %v5868 = vld [vmem:[%s5867] sm:$0x1]
    %v5869 = vsel %vm95, %v5857, 0.0
    %5870 = vadd.xlane.f32.xlu0 %v5869
    %v5871 = vpop.xlane.xlu0 %5870
    %v5872 = vsel %vm95, %v5858, 0.0
    %5873 = vadd.xlane.f32.xlu0 %v5872
    %v5874 = vpop.xlane.xlu0 %5873
    %v5875 = vsel %vm95, %v5859, 0.0
    %5876 = vadd.xlane.f32.xlu0 %v5875
    %v5877 = vpop.xlane.xlu0 %5876
    %v5878 = vsel %vm95, %v5860, 0.0
    %5879 = vadd.xlane.f32.xlu0 %v5878
    %v5880 = vpop.xlane.xlu0 %5879
    %v5881 = vsel %vm95, %v5861, 0.0
    %5882 = vadd.xlane.f32.xlu0 %v5881
    %v5883 = vpop.xlane.xlu0 %5882
    %v5884 = vsel %vm95, %v5862, 0.0
    %5885 = vadd.xlane.f32.xlu0 %v5884
    %v5886 = vpop.xlane.xlu0 %5885
    %v5887 = vsel %vm95, %v5863, 0.0
    %5888 = vadd.xlane.f32.xlu0 %v5887
    %v5889 = vpop.xlane.xlu0 %5888
    %v5890 = vsel %vm95, %v5864, 0.0
    %5891 = vadd.xlane.f32.xlu0 %v5890
    %v5892 = vpop.xlane.xlu0 %5891
    %v5893 = vmul.f32 %v5871, %v120
    %v5894 = vmul.f32 %v5874, %v120
    %v5895 = vmul.f32 %v5877, %v120
    %v5896 = vmul.f32 %v5880, %v120
    %v5897 = vmul.f32 %v5883, %v120
    %v5898 = vmul.f32 %v5886, %v120
    %v5899 = vmul.f32 %v5889, %v120
    %v5900 = vmul.f32 %v5892, %v120
    %v5901 = vsub.f32 %v5857, %v5893
    %v5902 = vsub.f32 %v5858, %v5894
    %v5903 = vsub.f32 %v5859, %v5895
    %v5904 = vsub.f32 %v5860, %v5896
    %v5905 = vsub.f32 %v5861, %v5897
    %v5906 = vsub.f32 %v5862, %v5898
    %v5907 = vsub.f32 %v5863, %v5899
    %v5908 = vsub.f32 %v5864, %v5900
    %v5909 = vmul.f32 %v5901, %v5901
    %v5910 = vmul.f32 %v5902, %v5902
    %v5911 = vmul.f32 %v5903, %v5903
    %v5912 = vmul.f32 %v5904, %v5904
    %v5913 = vmul.f32 %v5905, %v5905
    %v5914 = vmul.f32 %v5906, %v5906
    %v5915 = vmul.f32 %v5907, %v5907
    %v5916 = vmul.f32 %v5908, %v5908
    %v5917 = vsel %vm95, %v5909, 0.0
    %5918 = vadd.xlane.f32.xlu0 %v5917
    %v5919 = vpop.xlane.xlu0 %5918
    %v5920 = vsel %vm95, %v5910, 0.0
    %5921 = vadd.xlane.f32.xlu0 %v5920
    %v5922 = vpop.xlane.xlu0 %5921
    %v5923 = vsel %vm95, %v5911, 0.0
    %5924 = vadd.xlane.f32.xlu0 %v5923
    %v5925 = vpop.xlane.xlu0 %5924
    %v5926 = vsel %vm95, %v5912, 0.0
    %5927 = vadd.xlane.f32.xlu0 %v5926
    %v5928 = vpop.xlane.xlu0 %5927
    %v5929 = vsel %vm95, %v5913, 0.0
    %5930 = vadd.xlane.f32.xlu0 %v5929
    %v5931 = vpop.xlane.xlu0 %5930
    %v5932 = vsel %vm95, %v5914, 0.0
    %5933 = vadd.xlane.f32.xlu0 %v5932
    %v5934 = vpop.xlane.xlu0 %5933
    %v5935 = vsel %vm95, %v5915, 0.0
    %5936 = vadd.xlane.f32.xlu0 %v5935
    %v5937 = vpop.xlane.xlu0 %5936
    %v5938 = vsel %vm95, %v5916, 0.0
    %5939 = vadd.xlane.f32.xlu0 %v5938
    %v5940 = vpop.xlane.xlu0 %5939
    %v5941 = vmul.f32 %v5919, %v120
    %v5942 = vmul.f32 %v5922, %v120
    %v5943 = vmul.f32 %v5925, %v120
    %v5944 = vmul.f32 %v5928, %v120
    %v5945 = vmul.f32 %v5931, %v120
    %v5946 = vmul.f32 %v5934, %v120
    %v5947 = vmul.f32 %v5937, %v120
    %v5948 = vmul.f32 %v5940, %v120
    %v5949 = vadd.f32 %v5941, 1e-12
    %v5950 = vadd.f32 %v5942, 1e-12
    %v5951 = vadd.f32 %v5943, 1e-12
    %v5952 = vadd.f32 %v5944, 1e-12
    %v5953 = vadd.f32 %v5945, 1e-12
    %v5954 = vadd.f32 %v5946, 1e-12
    %v5955 = vadd.f32 %v5947, 1e-12
    %v5956 = vadd.f32 %v5948, 1e-12
    %v5957 = vrsqrt.pop %v5949
    %v5958 = vrsqrt.pop %v5950
    %v5959 = vrsqrt.pop %v5951
    %v5960 = vrsqrt.pop %v5952
    %v5961 = vrsqrt.pop %v5953
    %v5962 = vrsqrt.pop %v5954
    %v5963 = vrsqrt.pop %v5955
    %v5964 = vrsqrt.pop %v5956
    %v5965 = vmul.f32 %v5901, %v5957
    %v5966 = vmul.f32 %v5902, %v5958
    %v5967 = vmul.f32 %v5903, %v5959
    %v5968 = vmul.f32 %v5904, %v5960
    %v5969 = vmul.f32 %v5905, %v5961
    %v5970 = vmul.f32 %v5906, %v5962
    %v5971 = vmul.f32 %v5907, %v5963
    %v5972 = vmul.f32 %v5908, %v5964
    %v5974 = vlaneseq
    %v5975 = vshrl.u32 %v5974, 7
    %v5976 = vsub.s32 0, %v5975
    %v5977 = vrot.slane %v5866, %v5976
    %v5979 = vmul.f32 %v5965, %v5977
    %v5980 = vmul.f32 %v5966, %v5977
    %v5981 = vmul.f32 %v5967, %v5977
    %v5982 = vmul.f32 %v5968, %v5977
    %v5983 = vmul.f32 %v5969, %v5977
    %v5984 = vmul.f32 %v5970, %v5977
    %v5985 = vmul.f32 %v5971, %v5977
    %v5986 = vmul.f32 %v5972, %v5977
    %v5988 = vlaneseq
    %v5989 = vshrl.u32 %v5988, 7
    %v5990 = vsub.s32 0, %v5989
    %v5991 = vrot.slane %v5868, %v5990
    %v5993 = vadd.f32 %v5979, %v5991
    %v5994 = vadd.f32 %v5980, %v5991
    %v5995 = vadd.f32 %v5981, %v5991
    %v5996 = vadd.f32 %v5982, %v5991
    %v5997 = vadd.f32 %v5983, %v5991
    %v5998 = vadd.f32 %v5984, %v5991
    %v5999 = vadd.f32 %v5985, %v5991
    %v6000 = vadd.f32 %v5986, %v5991
    %v6001 = vpack.c.bf16 %v5994, %v5993
    %v6002 = vpack.c.bf16 %v5996, %v5995
    %v6003 = vpack.c.bf16 %v5998, %v5997
    %v6004 = vpack.c.bf16 %v6000, %v5999
    %s6005 = scalar_lea.vmem %s16, 16
    %v6006 = vld [vmem:[%s6005] sm:$0xf]
    %v6007 = vld [vmem:[%s6005 + $0x4] sm:$0xf]
    %v6008 = vld [vmem:[%s6005 + $0x8] sm:$0xf]
    %v6009 = vld [vmem:[%s6005 + $0xc] sm:$0xf]
    %s6010 = scalar_lea.vmem %s17, 1
    %v6011 = vld [vmem:[%s6010] sm:$0x1]
    %v6013 = vlaneseq
    %v6014 = vshrl.u32 %v6013, 7
    %v6015 = vsub.s32 0, %v6014
    %v6016 = vrot.slane %v6011, %v6015
    %v6022 = vunpack.c.l.b16 %v6006
    %v6023 = vunpack.c.l.b16 %v6007
    %v6024 = vunpack.c.l.b16 %v6008
    %v6025 = vunpack.c.l.b16 %v6009
    %v6026 = vpack.c.b16 %v6023, %v6022
    %v6027 = vpack.c.b16 %v6025, %v6024
    %v6031 = vsel %vm95, %v6001, 0
    %v6034 = vsel %vm95, %v6002, 0
    %v6037 = vsel %vm95, %v6003, 0
    %v6040 = vsel %vm95, %v6004, 0
    %6042 = vmatprep.subr.bf16.mxu0 0
    %6043 = vmatpush1.bf16.msra.mxu0 %v6026
    %6044 = vmatprep.subr.bf16.mxu0 0
    %6045 = vmatpush1.bf16.msra.mxu0 %v6027
    %6046 = vmatprep.subr.bf16.mxu0 0
    %6047 = vmatpush1.bf16.msra.mxu0 0
    %6048 = vmatprep.subr.bf16.mxu0 0
    %6049 = vmatpush1.bf16.msra.mxu0 0
    %6050 = vmatprep.subr.bf16.mxu0 0
    %6051 = vmatpush1.bf16.msra.mxu0 0
    %6052 = vmatprep.subr.bf16.mxu0 0
    %6053 = vmatpush1.bf16.msra.mxu0 0
    %6054 = vmatprep.subr.bf16.mxu0 0
    %6055 = vmatpush1.bf16.msra.mxu0 0
    %6056 = vmatprep.subr.bf16.mxu0 0
    %6057 = vmatpush1.bf16.msra.mxu0 0
    %6058 = vmatprep.subr.bf16.mxu0 0
    %6059 = vmatpush1.bf16.msra.mxu0 0
    %6060 = vmatprep.subr.bf16.mxu0 0
    %6061 = vmatpush1.bf16.msra.mxu0 0
    %6062 = vmatprep.subr.bf16.mxu0 0
    %6063 = vmatpush1.bf16.msra.mxu0 0
    %6064 = vmatprep.subr.bf16.mxu0 0
    %6065 = vmatpush1.bf16.msra.mxu0 0
    %6066 = vmatprep.subr.bf16.mxu0 0
    %6067 = vmatpush1.bf16.msra.mxu0 0
    %6068 = vmatprep.subr.bf16.mxu0 0
    %6069 = vmatpush1.bf16.msra.mxu0 0
    %6070 = vmatprep.subr.bf16.mxu0 0
    %6071 = vmatpush1.bf16.msra.mxu0 0
    %6072 = vmatprep.subr.bf16.mxu0 0
    %6073 = vmatpush1.bf16.msra.mxu0 0
    %6074 = vmatprep.mubr.bf16.mxu0 0
    %6075 = vmatmul.mubr.bf16.gmra.mrb[0].mxu0 %v6031
    %v6076 = vpop.f32.mrb[0].mxu0
    %v6077 = vadd.f32 %v6016, %v6076
    %v6078 = vpop.f32.mrb[0].mxu0
    %v6079 = vpop.f32.mrb[0].mxu0
    %v6080 = vadd.f32 %v6016, %v6079
    %v6081 = vpop.f32.mrb[0].mxu0
    %6082 = vmatprep.mubr.bf16.mxu0 0
    %6083 = vmatmul.mubr.bf16.gmra.mrb[0].mxu0 %v6034
    %v6084 = vpop.f32.mrb[0].mxu0
    %v6085 = vadd.f32 %v6016, %v6084
    %v6086 = vpop.f32.mrb[0].mxu0
    %v6087 = vpop.f32.mrb[0].mxu0
    %v6088 = vadd.f32 %v6016, %v6087
    %v6089 = vpop.f32.mrb[0].mxu0
    %6090 = vmatprep.mubr.bf16.mxu0 0
    %6091 = vmatmul.mubr.bf16.gmra.mrb[0].mxu0 %v6037
    %v6092 = vpop.f32.mrb[0].mxu0
    %v6093 = vadd.f32 %v6016, %v6092
    %v6094 = vpop.f32.mrb[0].mxu0
    %v6095 = vpop.f32.mrb[0].mxu0
    %v6096 = vadd.f32 %v6016, %v6095
    %v6097 = vpop.f32.mrb[0].mxu0
    %6098 = vmatprep.mubr.bf16.mxu0 0
    %6099 = vmatmul.mubr.bf16.gmra.mrb[0].mxu0 %v6040
    %v6100 = vpop.f32.mrb[0].mxu0
    %v6101 = vadd.f32 %v6016, %v6100
    %v6102 = vpop.f32.mrb[0].mxu0
    %v6103 = vpop.f32.mrb[0].mxu0
    %v6104 = vadd.f32 %v6016, %v6103
    %v6105 = vpop.f32.mrb[0].mxu0
    %6106 = vdwg.mxu0
    %v6107 = vmul.f32 %v6077, 0.5
    %v6108 = vmul.f32 %v6080, 0.5
    %v6109 = vmul.f32 %v6085, 0.5
    %v6110 = vmul.f32 %v6088, 0.5
    %v6111 = vmul.f32 %v6093, 0.5
    %v6112 = vmul.f32 %v6096, 0.5
    %v6113 = vmul.f32 %v6101, 0.5
    %v6114 = vmul.f32 %v6104, 0.5
    %v6115 = vmul.f32 %v6077, 0.044715
    %v6116 = vmul.f32 %v6080, 0.044715
    %v6117 = vmul.f32 %v6085, 0.044715
    %v6118 = vmul.f32 %v6088, 0.044715
    %v6119 = vmul.f32 %v6093, 0.044715
    %v6120 = vmul.f32 %v6096, 0.044715
    %v6121 = vmul.f32 %v6101, 0.044715
    %v6122 = vmul.f32 %v6104, 0.044715
    %v6123 = vmul.f32 %v6115, %v6077
    %v6124 = vmul.f32 %v6116, %v6080
    %v6125 = vmul.f32 %v6117, %v6085
    %v6126 = vmul.f32 %v6118, %v6088
    %v6127 = vmul.f32 %v6119, %v6093
    %v6128 = vmul.f32 %v6120, %v6096
    %v6129 = vmul.f32 %v6121, %v6101
    %v6130 = vmul.f32 %v6122, %v6104
    %v6131 = vmul.f32 %v6123, %v6077
    %v6132 = vmul.f32 %v6124, %v6080
    %v6133 = vmul.f32 %v6125, %v6085
    %v6134 = vmul.f32 %v6126, %v6088
    %v6135 = vmul.f32 %v6127, %v6093
    %v6136 = vmul.f32 %v6128, %v6096
    %v6137 = vmul.f32 %v6129, %v6101
    %v6138 = vmul.f32 %v6130, %v6104
    %v6139 = vadd.f32 %v6077, %v6131
    %v6140 = vadd.f32 %v6080, %v6132
    %v6141 = vadd.f32 %v6085, %v6133
    %v6142 = vadd.f32 %v6088, %v6134
    %v6143 = vadd.f32 %v6093, %v6135
    %v6144 = vadd.f32 %v6096, %v6136
    %v6145 = vadd.f32 %v6101, %v6137
    %v6146 = vadd.f32 %v6104, %v6138
    %v6147 = vmul.f32 %v6139, 0.7978846
    %v6148 = vmul.f32 %v6140, 0.7978846
    %v6149 = vmul.f32 %v6141, 0.7978846
    %v6150 = vmul.f32 %v6142, 0.7978846
    %v6151 = vmul.f32 %v6143, 0.7978846
    %v6152 = vmul.f32 %v6144, 0.7978846
    %v6153 = vmul.f32 %v6145, 0.7978846
    %v6154 = vmul.f32 %v6146, 0.7978846
    %v6155 = vtanh.pop %v6147
    %v6156 = vtanh.pop %v6148
    %v6157 = vtanh.pop %v6149
    %v6158 = vtanh.pop %v6150
    %v6159 = vtanh.pop %v6151
    %v6160 = vtanh.pop %v6152
    %v6161 = vtanh.pop %v6153
    %v6162 = vtanh.pop %v6154
    %v6163 = vadd.f32 %v6155, 1.0
    %v6164 = vadd.f32 %v6156, 1.0
    %v6165 = vadd.f32 %v6157, 1.0
    %v6166 = vadd.f32 %v6158, 1.0
    %v6167 = vadd.f32 %v6159, 1.0
    %v6168 = vadd.f32 %v6160, 1.0
    %v6169 = vadd.f32 %v6161, 1.0
    %v6170 = vadd.f32 %v6162, 1.0
    %v6171 = vmul.f32 %v6107, %v6163
    %v6172 = vmul.f32 %v6108, %v6164
    %v6173 = vmul.f32 %v6109, %v6165
    %v6174 = vmul.f32 %v6110, %v6166
    %v6175 = vmul.f32 %v6111, %v6167
    %v6176 = vmul.f32 %v6112, %v6168
    %v6177 = vmul.f32 %v6113, %v6169
    %v6178 = vmul.f32 %v6114, %v6170
    %v6179 = vpack.c.bf16 %v6172, %v6171
    %v6180 = vpack.c.bf16 %v6174, %v6173
    %v6181 = vpack.c.bf16 %v6176, %v6175
    %v6182 = vpack.c.bf16 %v6178, %v6177
    %s6183 = scalar_lea.vmem %s18, 32
    %v6184 = vld [vmem:[%s6183] sm:$0xf]
    %v6185 = vld [vmem:[%s6183 + $0x4] sm:$0xf]
    %v6186 = vld [vmem:[%s6183 + $0x8] sm:$0xf]
    %v6187 = vld [vmem:[%s6183 + $0xc] sm:$0xf]
    %v6188 = vld [vmem:[%s6183 + $0x10] sm:$0xf]
    %v6189 = vld [vmem:[%s6183 + $0x14] sm:$0xf]
    %v6190 = vld [vmem:[%s6183 + $0x18] sm:$0xf]
    %v6191 = vld [vmem:[%s6183 + $0x1c] sm:$0xf]
    %s6192 = scalar_lea.vmem %s19, 1
    %v6193 = vld [vmem:[%s6192] sm:$0x1]
    %v6195 = vlaneseq
    %v6196 = vshrl.u32 %v6195, 7
    %v6197 = vsub.s32 0, %v6196
    %v6198 = vrot.slane %v6193, %v6197
    %v6208 = vunpack.c.l.b16 %v6184
    %v6209 = vunpack.c.l.b16 %v6185
    %v6210 = vunpack.c.l.b16 %v6186
    %v6211 = vunpack.c.l.b16 %v6187
    %v6212 = vunpack.c.l.b16 %v6188
    %v6213 = vunpack.c.l.b16 %v6189
    %v6214 = vunpack.c.l.b16 %v6190
    %v6215 = vunpack.c.l.b16 %v6191
    %v6216 = vpack.c.b16 %v6209, %v6208
    %v6217 = vpack.c.b16 %v6211, %v6210
    %v6218 = vpack.c.b16 %v6213, %v6212
    %v6219 = vpack.c.b16 %v6215, %v6214
    %v6225 = vsel %vm3139, %v6179, 0
    %v6228 = vsel %vm3139, %v6180, 0
    %v6231 = vsel %vm3139, %v6181, 0
    %v6234 = vsel %vm3139, %v6182, 0
    %6236 = vmatprep.subr.bf16.mxu0 0
    %6237 = vmatpush1.bf16.msra.mxu0 %v6216
    %6238 = vmatprep.subr.bf16.mxu0 0
    %6239 = vmatpush1.bf16.msra.mxu0 %v6217
    %6240 = vmatprep.subr.bf16.mxu0 0
    %6241 = vmatpush1.bf16.msra.mxu0 %v6218
    %6242 = vmatprep.subr.bf16.mxu0 0
    %6243 = vmatpush1.bf16.msra.mxu0 %v6219
    %6244 = vmatprep.subr.bf16.mxu0 0
    %6245 = vmatpush1.bf16.msra.mxu0 0
    %6246 = vmatprep.subr.bf16.mxu0 0
    %6247 = vmatpush1.bf16.msra.mxu0 0
    %6248 = vmatprep.subr.bf16.mxu0 0
    %6249 = vmatpush1.bf16.msra.mxu0 0
    %6250 = vmatprep.subr.bf16.mxu0 0
    %6251 = vmatpush1.bf16.msra.mxu0 0
    %6252 = vmatprep.subr.bf16.mxu0 0
    %6253 = vmatpush1.bf16.msra.mxu0 0
    %6254 = vmatprep.subr.bf16.mxu0 0
    %6255 = vmatpush1.bf16.msra.mxu0 0
    %6256 = vmatprep.subr.bf16.mxu0 0
    %6257 = vmatpush1.bf16.msra.mxu0 0
    %6258 = vmatprep.subr.bf16.mxu0 0
    %6259 = vmatpush1.bf16.msra.mxu0 0
    %6260 = vmatprep.subr.bf16.mxu0 0
    %6261 = vmatpush1.bf16.msra.mxu0 0
    %6262 = vmatprep.subr.bf16.mxu0 0
    %6263 = vmatpush1.bf16.msra.mxu0 0
    %6264 = vmatprep.subr.bf16.mxu0 0
    %6265 = vmatpush1.bf16.msra.mxu0 0
    %6266 = vmatprep.subr.bf16.mxu0 0
    %6267 = vmatpush1.bf16.msra.mxu0 0
    %6268 = vmatprep.mubr.bf16.mxu0 0
    %6269 = vmatmul.mubr.bf16.gmra.mrb[0].mxu0 %v6225
    %v6270 = vpop.f32.mrb[0].mxu0
    %v6271 = vadd.f32 %v6198, %v6270
    %v6272 = vpop.f32.mrb[0].mxu0
    %v6273 = vpop.f32.mrb[0].mxu0
    %v6274 = vadd.f32 %v6198, %v6273
    %v6275 = vpop.f32.mrb[0].mxu0
    %6276 = vmatprep.mubr.bf16.mxu0 0
    %6277 = vmatmul.mubr.bf16.gmra.mrb[0].mxu0 %v6228
    %v6278 = vpop.f32.mrb[0].mxu0
    %v6279 = vadd.f32 %v6198, %v6278
    %v6280 = vpop.f32.mrb[0].mxu0
    %v6281 = vpop.f32.mrb[0].mxu0
    %v6282 = vadd.f32 %v6198, %v6281
    %v6283 = vpop.f32.mrb[0].mxu0
    %6284 = vmatprep.mubr.bf16.mxu0 0
    %6285 = vmatmul.mubr.bf16.gmra.mrb[0].mxu0 %v6231
    %v6286 = vpop.f32.mrb[0].mxu0
    %v6287 = vadd.f32 %v6198, %v6286
    %v6288 = vpop.f32.mrb[0].mxu0
    %v6289 = vpop.f32.mrb[0].mxu0
    %v6290 = vadd.f32 %v6198, %v6289
    %v6291 = vpop.f32.mrb[0].mxu0
    %6292 = vmatprep.mubr.bf16.mxu0 0
    %6293 = vmatmul.mubr.bf16.gmra.mrb[0].mxu0 %v6234
    %v6294 = vpop.f32.mrb[0].mxu0
    %v6295 = vadd.f32 %v6198, %v6294
    %v6296 = vpop.f32.mrb[0].mxu0
    %v6297 = vpop.f32.mrb[0].mxu0
    %v6298 = vadd.f32 %v6198, %v6297
    %v6299 = vpop.f32.mrb[0].mxu0
    %6300 = vdwg.mxu0
    %v6301 = vadd.f32 %v6271, %v5993
    %v6302 = vadd.f32 %v6274, %v5994
    %v6303 = vadd.f32 %v6279, %v5995
    %v6304 = vadd.f32 %v6282, %v5996
    %v6305 = vadd.f32 %v6287, %v5997
    %v6306 = vadd.f32 %v6290, %v5998
    %v6307 = vadd.f32 %v6295, %v5999
    %v6308 = vadd.f32 %v6298, %v6000
    %s6309 = scalar_lea.vmem %s20, 1
    %v6310 = vld [vmem:[%s6309] sm:$0x1]
    %s6311 = scalar_lea.vmem %s21, 1
    %v6312 = vld [vmem:[%s6311] sm:$0x1]
    %v6313 = vsel %vm95, %v6301, 0.0
    %6314 = vadd.xlane.f32.xlu0 %v6313
    %v6315 = vpop.xlane.xlu0 %6314
    %v6316 = vsel %vm95, %v6302, 0.0
    %6317 = vadd.xlane.f32.xlu0 %v6316
    %v6318 = vpop.xlane.xlu0 %6317
    %v6319 = vsel %vm95, %v6303, 0.0
    %6320 = vadd.xlane.f32.xlu0 %v6319
    %v6321 = vpop.xlane.xlu0 %6320
    %v6322 = vsel %vm95, %v6304, 0.0
    %6323 = vadd.xlane.f32.xlu0 %v6322
    %v6324 = vpop.xlane.xlu0 %6323
    %v6325 = vsel %vm95, %v6305, 0.0
    %6326 = vadd.xlane.f32.xlu0 %v6325
    %v6327 = vpop.xlane.xlu0 %6326
    %v6328 = vsel %vm95, %v6306, 0.0
    %6329 = vadd.xlane.f32.xlu0 %v6328
    %v6330 = vpop.xlane.xlu0 %6329
    %v6331 = vsel %vm95, %v6307, 0.0
    %6332 = vadd.xlane.f32.xlu0 %v6331
    %v6333 = vpop.xlane.xlu0 %6332
    %v6334 = vsel %vm95, %v6308, 0.0
    %6335 = vadd.xlane.f32.xlu0 %v6334
    %v6336 = vpop.xlane.xlu0 %6335
    %v6337 = vmul.f32 %v6315, %v120
    %v6338 = vmul.f32 %v6318, %v120
    %v6339 = vmul.f32 %v6321, %v120
    %v6340 = vmul.f32 %v6324, %v120
    %v6341 = vmul.f32 %v6327, %v120
    %v6342 = vmul.f32 %v6330, %v120
    %v6343 = vmul.f32 %v6333, %v120
    %v6344 = vmul.f32 %v6336, %v120
    %v6345 = vsub.f32 %v6301, %v6337
    %v6346 = vsub.f32 %v6302, %v6338
    %v6347 = vsub.f32 %v6303, %v6339
    %v6348 = vsub.f32 %v6304, %v6340
    %v6349 = vsub.f32 %v6305, %v6341
    %v6350 = vsub.f32 %v6306, %v6342
    %v6351 = vsub.f32 %v6307, %v6343
    %v6352 = vsub.f32 %v6308, %v6344
    %v6353 = vmul.f32 %v6345, %v6345
    %v6354 = vmul.f32 %v6346, %v6346
    %v6355 = vmul.f32 %v6347, %v6347
    %v6356 = vmul.f32 %v6348, %v6348
    %v6357 = vmul.f32 %v6349, %v6349
    %v6358 = vmul.f32 %v6350, %v6350
    %v6359 = vmul.f32 %v6351, %v6351
    %v6360 = vmul.f32 %v6352, %v6352
    %v6361 = vsel %vm95, %v6353, 0.0
    %6362 = vadd.xlane.f32.xlu0 %v6361
    %v6363 = vpop.xlane.xlu0 %6362
    %v6364 = vsel %vm95, %v6354, 0.0
    %6365 = vadd.xlane.f32.xlu0 %v6364
    %v6366 = vpop.xlane.xlu0 %6365
    %v6367 = vsel %vm95, %v6355, 0.0
    %6368 = vadd.xlane.f32.xlu0 %v6367
    %v6369 = vpop.xlane.xlu0 %6368
    %v6370 = vsel %vm95, %v6356, 0.0
    %6371 = vadd.xlane.f32.xlu0 %v6370
    %v6372 = vpop.xlane.xlu0 %6371
    %v6373 = vsel %vm95, %v6357, 0.0
    %6374 = vadd.xlane.f32.xlu0 %v6373
    %v6375 = vpop.xlane.xlu0 %6374
    %v6376 = vsel %vm95, %v6358, 0.0
    %6377 = vadd.xlane.f32.xlu0 %v6376
    %v6378 = vpop.xlane.xlu0 %6377
    %v6379 = vsel %vm95, %v6359, 0.0
    %6380 = vadd.xlane.f32.xlu0 %v6379
    %v6381 = vpop.xlane.xlu0 %6380
    %v6382 = vsel %vm95, %v6360, 0.0
    %6383 = vadd.xlane.f32.xlu0 %v6382
    %v6384 = vpop.xlane.xlu0 %6383
    %v6385 = vmul.f32 %v6363, %v120
    %v6386 = vmul.f32 %v6366, %v120
    %v6387 = vmul.f32 %v6369, %v120
    %v6388 = vmul.f32 %v6372, %v120
    %v6389 = vmul.f32 %v6375, %v120
    %v6390 = vmul.f32 %v6378, %v120
    %v6391 = vmul.f32 %v6381, %v120
    %v6392 = vmul.f32 %v6384, %v120
    %v6393 = vadd.f32 %v6385, 1e-12
    %v6394 = vadd.f32 %v6386, 1e-12
    %v6395 = vadd.f32 %v6387, 1e-12
    %v6396 = vadd.f32 %v6388, 1e-12
    %v6397 = vadd.f32 %v6389, 1e-12
    %v6398 = vadd.f32 %v6390, 1e-12
    %v6399 = vadd.f32 %v6391, 1e-12
    %v6400 = vadd.f32 %v6392, 1e-12
    %v6401 = vrsqrt.pop %v6393
    %v6402 = vrsqrt.pop %v6394
    %v6403 = vrsqrt.pop %v6395
    %v6404 = vrsqrt.pop %v6396
    %v6405 = vrsqrt.pop %v6397
    %v6406 = vrsqrt.pop %v6398
    %v6407 = vrsqrt.pop %v6399
    %v6408 = vrsqrt.pop %v6400
    %v6409 = vmul.f32 %v6345, %v6401
    %v6410 = vmul.f32 %v6346, %v6402
    %v6411 = vmul.f32 %v6347, %v6403
    %v6412 = vmul.f32 %v6348, %v6404
    %v6413 = vmul.f32 %v6349, %v6405
    %v6414 = vmul.f32 %v6350, %v6406
    %v6415 = vmul.f32 %v6351, %v6407
    %v6416 = vmul.f32 %v6352, %v6408
    %v6418 = vlaneseq
    %v6419 = vshrl.u32 %v6418, 7
    %v6420 = vsub.s32 0, %v6419
    %v6421 = vrot.slane %v6310, %v6420
    %v6423 = vmul.f32 %v6409, %v6421
    %v6424 = vmul.f32 %v6410, %v6421
    %v6425 = vmul.f32 %v6411, %v6421
    %v6426 = vmul.f32 %v6412, %v6421
    %v6427 = vmul.f32 %v6413, %v6421
    %v6428 = vmul.f32 %v6414, %v6421
    %v6429 = vmul.f32 %v6415, %v6421
    %v6430 = vmul.f32 %v6416, %v6421
    %v6432 = vlaneseq
    %v6433 = vshrl.u32 %v6432, 7
    %v6434 = vsub.s32 0, %v6433
    %v6435 = vrot.slane %v6312, %v6434
    %v6437 = vadd.f32 %v6423, %v6435
    %v6438 = vadd.f32 %v6424, %v6435
    %v6439 = vadd.f32 %v6425, %v6435
    %v6440 = vadd.f32 %v6426, %v6435
    %v6441 = vadd.f32 %v6427, %v6435
    %v6442 = vadd.f32 %v6428, %v6435
    %v6443 = vadd.f32 %v6429, %v6435
    %v6444 = vadd.f32 %v6430, %v6435
    %v6445 = vld [vmem:[%s22] sm:$0xff]
    %v6446 = vld [vmem:[%s22 + $0x8] sm:$0xff]
    %v6447 = vld [vmem:[%s22 + $0x10] sm:$0xff]
    %v6448 = vld [vmem:[%s22 + $0x18] sm:$0xff]
    %v6450 = vsel %vm95, %v6437, 0
    %v6453 = vsel %vm95, %v6438, 0
    %v6456 = vsel %vm95, %v6439, 0
    %v6459 = vsel %vm95, %v6440, 0
    %v6462 = vsel %vm95, %v6441, 0
    %v6465 = vsel %vm95, %v6442, 0
    %v6468 = vsel %vm95, %v6443, 0
    %v6471 = vsel %vm95, %v6444, 0
    %6473 = vmatprep.subr.mxu0 0.0
    %6474 = vmatpush1.msra.mxu0 %v6445
    %6475 = vmatprep.subr.mxu0 0.0
    %6476 = vmatpush1.msra.mxu0 %v6446
    %6477 = vmatprep.subr.mxu0 0.0
    %6478 = vmatpush1.msra.mxu0 %v6447
    %6479 = vmatprep.subr.mxu0 0.0
    %6480 = vmatpush1.msra.mxu0 %v6448
    %6481 = vmatprep.subr.mxu0 0.0
    %6482 = vmatpush1.msra.mxu0 0.0
    %6483 = vmatprep.subr.mxu0 0.0
    %6484 = vmatpush1.msra.mxu0 0.0
    %6485 = vmatprep.subr.mxu0 0.0
    %6486 = vmatpush1.msra.mxu0 0.0
    %6487 = vmatprep.subr.mxu0 0.0
    %6488 = vmatpush1.msra.mxu0 0.0
    %6489 = vmatprep.subr.mxu0 0.0
    %6490 = vmatpush1.msra.mxu0 0.0
    %6491 = vmatprep.subr.mxu0 0.0
    %6492 = vmatpush1.msra.mxu0 0.0
    %6493 = vmatprep.subr.mxu0 0.0
    %6494 = vmatpush1.msra.mxu0 0.0
    %6495 = vmatprep.subr.mxu0 0.0
    %6496 = vmatpush1.msra.mxu0 0.0
    %6497 = vmatprep.subr.mxu0 0.0
    %6498 = vmatpush1.msra.mxu0 0.0
    %6499 = vmatprep.subr.mxu0 0.0
    %6500 = vmatpush1.msra.mxu0 0.0
    %6501 = vmatprep.subr.mxu0 0.0
    %6502 = vmatpush1.msra.mxu0 0.0
    %6503 = vmatprep.subr.mxu0 0.0
    %6504 = vmatpush1.msra.mxu0 0.0
    %6505 = vmatprep.subr.mxu0 0.0
    %6506 = vmatpush1.msra.mxu0 0.0
    %6507 = vmatprep.subr.mxu0 0.0
    %6508 = vmatpush1.msra.mxu0 0.0
    %6509 = vmatprep.subr.mxu0 0.0
    %6510 = vmatpush1.msra.mxu0 0.0
    %6511 = vmatprep.subr.mxu0 0.0
    %6512 = vmatpush1.msra.mxu0 0.0
    %6513 = vmatprep.subr.mxu0 0.0
    %6514 = vmatpush1.msra.mxu0 0.0
    %6515 = vmatprep.subr.mxu0 0.0
    %6516 = vmatpush1.msra.mxu0 0.0
    %6517 = vmatprep.subr.mxu0 0.0
    %6518 = vmatpush1.msra.mxu0 0.0
    %6519 = vmatprep.subr.mxu0 0.0
    %6520 = vmatpush1.msra.mxu0 0.0
    %6521 = vmatprep.subr.mxu0 0.0
    %6522 = vmatpush1.msra.mxu0 0.0
    %6523 = vmatprep.subr.mxu0 0.0
    %6524 = vmatpush1.msra.mxu0 0.0
    %6525 = vmatprep.subr.mxu0 0.0
    %6526 = vmatpush1.msra.mxu0 0.0
    %6527 = vmatprep.subr.mxu0 0.0
    %6528 = vmatpush1.msra.mxu0 0.0
    %6529 = vmatprep.subr.mxu0 0.0
    %6530 = vmatpush1.msra.mxu0 0.0
    %6531 = vmatprep.subr.mxu0 0.0
    %6532 = vmatpush1.msra.mxu0 0.0
    %6533 = vmatprep.subr.mxu0 0.0
    %6534 = vmatpush1.msra.mxu0 0.0
    %6535 = vmatprep.subr.mxu0 0.0
    %6536 = vmatpush1.msra.mxu0 0.0
    %6537 = vmatprep.mubr.f32.mxu0 0.0
    %6538 = vmatmul.mubr.f32.gmra.mrb[0].mxu0 %v6450
    %v6539 = vpop.f32.mrb[0].mxu0
    %v6540 = vadd.f32 0.0, %v6539
    %v6541 = vpop.f32.mrb[0].mxu0
    %6542 = vmatprep.mubr.f32.mxu0 0.0
    %6543 = vmatmul.mubr.f32.gmra.mrb[0].mxu0 %v6453
    %v6544 = vpop.f32.mrb[0].mxu0
    %v6545 = vadd.f32 0.0, %v6544
    %v6546 = vpop.f32.mrb[0].mxu0
    %6547 = vmatprep.mubr.f32.mxu0 0.0
    %6548 = vmatmul.mubr.f32.gmra.mrb[0].mxu0 %v6456
    %v6549 = vpop.f32.mrb[0].mxu0
    %v6550 = vadd.f32 0.0, %v6549
    %v6551 = vpop.f32.mrb[0].mxu0
    %6552 = vmatprep.mubr.f32.mxu0 0.0
    %6553 = vmatmul.mubr.f32.gmra.mrb[0].mxu0 %v6459
    %v6554 = vpop.f32.mrb[0].mxu0
    %v6555 = vadd.f32 0.0, %v6554
    %v6556 = vpop.f32.mrb[0].mxu0
    %6557 = vmatprep.mubr.f32.mxu0 0.0
    %6558 = vmatmul.mubr.f32.gmra.mrb[0].mxu0 %v6462
    %v6559 = vpop.f32.mrb[0].mxu0
    %v6560 = vadd.f32 0.0, %v6559
    %v6561 = vpop.f32.mrb[0].mxu0
    %6562 = vmatprep.mubr.f32.mxu0 0.0
    %6563 = vmatmul.mubr.f32.gmra.mrb[0].mxu0 %v6465
    %v6564 = vpop.f32.mrb[0].mxu0
    %v6565 = vadd.f32 0.0, %v6564
    %v6566 = vpop.f32.mrb[0].mxu0
    %6567 = vmatprep.mubr.f32.mxu0 0.0
    %6568 = vmatmul.mubr.f32.gmra.mrb[0].mxu0 %v6468
    %v6569 = vpop.f32.mrb[0].mxu0
    %v6570 = vadd.f32 0.0, %v6569
    %v6571 = vpop.f32.mrb[0].mxu0
    %6572 = vmatprep.mubr.f32.mxu0 0.0
    %6573 = vmatmul.mubr.f32.gmra.mrb[0].mxu0 %v6471
    %v6574 = vpop.f32.mrb[0].mxu0
    %v6575 = vadd.f32 0.0, %v6574
    %v6576 = vpop.f32.mrb[0].mxu0
    %6577 = vdwg.mxu0
    %v6578 = vld [vmem:[%s2] sm:$0xff]
    %v6579 = vld [vmem:[%s2 + $0x8] sm:$0xff]
    %v6580 = vld [vmem:[%s2 + $0x10] sm:$0xff]
    %v6581 = vld [vmem:[%s2 + $0x18] sm:$0xff]
    %v6582 = vld [vmem:[%s2 + $0x20] sm:$0xff]
    %v6583 = vld [vmem:[%s2 + $0x28] sm:$0xff]
    %v6584 = vld [vmem:[%s2 + $0x30] sm:$0xff]
    %v6585 = vld [vmem:[%s2 + $0x38] sm:$0xff]
    %vm6586 = vcmp.eq.f32.partialorder %v6578, 0.0
    %vm6587 = vcmp.eq.f32.partialorder %v6579, 0.0
    %vm6588 = vcmp.eq.f32.partialorder %v6580, 0.0
    %vm6589 = vcmp.eq.f32.partialorder %v6581, 0.0
    %vm6590 = vcmp.eq.f32.partialorder %v6582, 0.0
    %vm6591 = vcmp.eq.f32.partialorder %v6583, 0.0
    %vm6592 = vcmp.eq.f32.partialorder %v6584, 0.0
    %vm6593 = vcmp.eq.f32.partialorder %v6585, 0.0
    %v6594 = vsel %vm6586, -1e+09, %v6540
    %v6595 = vsel %vm6587, -1e+09, %v6545
    %v6596 = vsel %vm6588, -1e+09, %v6550
    %v6597 = vsel %vm6589, -1e+09, %v6555
    %v6598 = vsel %vm6590, -1e+09, %v6560
    %v6599 = vsel %vm6591, -1e+09, %v6565
    %v6600 = vsel %vm6592, -1e+09, %v6570
    %v6601 = vsel %vm6593, -1e+09, %v6575
    %vm6602 = vcmask 7168
    %v6603 = vsel %vm6602, %v6594, -inf
    %v6604 = vrot.slane %v6603, 4
    %v6605 = vmax.f32 %v6603, %v6604
    %v6606 = vrot.slane %v6605, 2
    %v6607 = vmax.f32 %v6605, %v6606
    %v6608 = vrot.slane %v6607, 1
    %v6609 = vmax.f32 %v6607, %v6608
    %v6610 = vsel %vm6602, %v6595, -inf
    %v6611 = vrot.slane %v6610, 4
    %v6612 = vmax.f32 %v6610, %v6611
    %v6613 = vrot.slane %v6612, 2
    %v6614 = vmax.f32 %v6612, %v6613
    %v6615 = vrot.slane %v6614, 1
    %v6616 = vmax.f32 %v6614, %v6615
    %v6617 = vsel %vm6602, %v6596, -inf
    %v6618 = vrot.slane %v6617, 4
    %v6619 = vmax.f32 %v6617, %v6618
    %v6620 = vrot.slane %v6619, 2
    %v6621 = vmax.f32 %v6619, %v6620
    %v6622 = vrot.slane %v6621, 1
    %v6623 = vmax.f32 %v6621, %v6622
    %v6624 = vsel %vm6602, %v6597, -inf
    %v6625 = vrot.slane %v6624, 4
    %v6626 = vmax.f32 %v6624, %v6625
    %v6627 = vrot.slane %v6626, 2
    %v6628 = vmax.f32 %v6626, %v6627
    %v6629 = vrot.slane %v6628, 1
    %v6630 = vmax.f32 %v6628, %v6629
    %v6631 = vsel %vm6602, %v6598, -inf
    %v6632 = vrot.slane %v6631, 4
    %v6633 = vmax.f32 %v6631, %v6632
    %v6634 = vrot.slane %v6633, 2
    %v6635 = vmax.f32 %v6633, %v6634
    %v6636 = vrot.slane %v6635, 1
    %v6637 = vmax.f32 %v6635, %v6636
    %v6638 = vsel %vm6602, %v6599, -inf
    %v6639 = vrot.slane %v6638, 4
    %v6640 = vmax.f32 %v6638, %v6639
    %v6641 = vrot.slane %v6640, 2
    %v6642 = vmax.f32 %v6640, %v6641
    %v6643 = vrot.slane %v6642, 1
    %v6644 = vmax.f32 %v6642, %v6643
    %v6645 = vsel %vm6602, %v6600, -inf
    %v6646 = vrot.slane %v6645, 4
    %v6647 = vmax.f32 %v6645, %v6646
    %v6648 = vrot.slane %v6647, 2
    %v6649 = vmax.f32 %v6647, %v6648
    %v6650 = vrot.slane %v6649, 1
    %v6651 = vmax.f32 %v6649, %v6650
    %v6652 = vsel %vm6602, %v6601, -inf
    %v6653 = vrot.slane %v6652, 4
    %v6654 = vmax.f32 %v6652, %v6653
    %v6655 = vrot.slane %v6654, 2
    %v6656 = vmax.f32 %v6654, %v6655
    %v6657 = vrot.slane %v6656, 1
    %v6658 = vmax.f32 %v6656, %v6657
    %v6659 = vsub.f32 %v6594, %v6609
    %v6660 = vsub.f32 %v6595, %v6616
    %v6661 = vsub.f32 %v6596, %v6623
    %v6662 = vsub.f32 %v6597, %v6630
    %v6663 = vsub.f32 %v6598, %v6637
    %v6664 = vsub.f32 %v6599, %v6644
    %v6665 = vsub.f32 %v6600, %v6651
    %v6666 = vsub.f32 %v6601, %v6658
    %v6667 = vmul.f32 %v6659, 1.442695
    %v6668 = vpow.pop %v6667
    %v6669 = vmul.f32 %v6660, 1.442695
    %v6670 = vpow.pop %v6669
    %v6671 = vmul.f32 %v6661, 1.442695
    %v6672 = vpow.pop %v6671
    %v6673 = vmul.f32 %v6662, 1.442695
    %v6674 = vpow.pop %v6673
    %v6675 = vmul.f32 %v6663, 1.442695
    %v6676 = vpow.pop %v6675
    %v6677 = vmul.f32 %v6664, 1.442695
    %v6678 = vpow.pop %v6677
    %v6679 = vmul.f32 %v6665, 1.442695
    %v6680 = vpow.pop %v6679
    %v6681 = vmul.f32 %v6666, 1.442695
    %v6682 = vpow.pop %v6681
    %v6683 = vsel %vm6602, %v6668, 0.0
    %v6684 = vrot.slane %v6683, 4
    %v6685 = vadd.f32 %v6683, %v6684
    %v6686 = vrot.slane %v6685, 2
    %v6687 = vadd.f32 %v6685, %v6686
    %v6688 = vrot.slane %v6687, 1
    %v6689 = vadd.f32 %v6687, %v6688
    %v6690 = vsel %vm6602, %v6670, 0.0
    %v6691 = vrot.slane %v6690, 4
    %v6692 = vadd.f32 %v6690, %v6691
    %v6693 = vrot.slane %v6692, 2
    %v6694 = vadd.f32 %v6692, %v6693
    %v6695 = vrot.slane %v6694, 1
    %v6696 = vadd.f32 %v6694, %v6695
    %v6697 = vsel %vm6602, %v6672, 0.0
    %v6698 = vrot.slane %v6697, 4
    %v6699 = vadd.f32 %v6697, %v6698
    %v6700 = vrot.slane %v6699, 2
    %v6701 = vadd.f32 %v6699, %v6700
    %v6702 = vrot.slane %v6701, 1
    %v6703 = vadd.f32 %v6701, %v6702
    %v6704 = vsel %vm6602, %v6674, 0.0
    %v6705 = vrot.slane %v6704, 4
    %v6706 = vadd.f32 %v6704, %v6705
    %v6707 = vrot.slane %v6706, 2
    %v6708 = vadd.f32 %v6706, %v6707
    %v6709 = vrot.slane %v6708, 1
    %v6710 = vadd.f32 %v6708, %v6709
    %v6711 = vsel %vm6602, %v6676, 0.0
    %v6712 = vrot.slane %v6711, 4
    %v6713 = vadd.f32 %v6711, %v6712
    %v6714 = vrot.slane %v6713, 2
    %v6715 = vadd.f32 %v6713, %v6714
    %v6716 = vrot.slane %v6715, 1
    %v6717 = vadd.f32 %v6715, %v6716
    %v6718 = vsel %vm6602, %v6678, 0.0
    %v6719 = vrot.slane %v6718, 4
    %v6720 = vadd.f32 %v6718, %v6719
    %v6721 = vrot.slane %v6720, 2
    %v6722 = vadd.f32 %v6720, %v6721
    %v6723 = vrot.slane %v6722, 1
    %v6724 = vadd.f32 %v6722, %v6723
    %v6725 = vsel %vm6602, %v6680, 0.0
    %v6726 = vrot.slane %v6725, 4
    %v6727 = vadd.f32 %v6725, %v6726
    %v6728 = vrot.slane %v6727, 2
    %v6729 = vadd.f32 %v6727, %v6728
    %v6730 = vrot.slane %v6729, 1
    %v6731 = vadd.f32 %v6729, %v6730
    %v6732 = vsel %vm6602, %v6682, 0.0
    %v6733 = vrot.slane %v6732, 4
    %v6734 = vadd.f32 %v6732, %v6733
    %v6735 = vrot.slane %v6734, 2
    %v6736 = vadd.f32 %v6734, %v6735
    %v6737 = vrot.slane %v6736, 1
    %v6738 = vadd.f32 %v6736, %v6737
    %v6739 = vrcp.pop %v6689
    %v6740 = vmul.f32 %v6668, %v6739
    %v6741 = vrcp.pop %v6696
    %v6742 = vmul.f32 %v6670, %v6741
    %v6743 = vrcp.pop %v6703
    %v6744 = vmul.f32 %v6672, %v6743
    %v6745 = vrcp.pop %v6710
    %v6746 = vmul.f32 %v6674, %v6745
    %v6747 = vrcp.pop %v6717
    %v6748 = vmul.f32 %v6676, %v6747
    %v6749 = vrcp.pop %v6724
    %v6750 = vmul.f32 %v6678, %v6749
    %v6751 = vrcp.pop %v6731
    %v6752 = vmul.f32 %v6680, %v6751
    %v6753 = vrcp.pop %v6738
    %v6754 = vmul.f32 %v6682, %v6753
    %6756 = vset.pattern.permute.xlu0 0
    %6757 = vperm.xlu0 %6756, %v6740
    %v6758 = vpop.permute.xlu0 %6757
    %6761 = vset.pattern.permute.xlu0 0
    %6762 = vperm.xlu0 %6761, %v6742
    %v6763 = vpop.permute.xlu0 %6762
    %6766 = vset.pattern.permute.xlu0 0
    %6767 = vperm.xlu0 %6766, %v6744
    %v6768 = vpop.permute.xlu0 %6767
    %6771 = vset.pattern.permute.xlu0 0
    %6772 = vperm.xlu0 %6771, %v6746
    %v6773 = vpop.permute.xlu0 %6772
    %6776 = vset.pattern.permute.xlu0 0
    %6777 = vperm.xlu0 %6776, %v6748
    %v6778 = vpop.permute.xlu0 %6777
    %6781 = vset.pattern.permute.xlu0 0
    %6782 = vperm.xlu0 %6781, %v6750
    %v6783 = vpop.permute.xlu0 %6782
    %6786 = vset.pattern.permute.xlu0 0
    %6787 = vperm.xlu0 %6786, %v6752
    %v6788 = vpop.permute.xlu0 %6787
    %6791 = vset.pattern.permute.xlu0 0
    %6792 = vperm.xlu0 %6791, %v6754
    %v6793 = vpop.permute.xlu0 %6792
    %v6795 = vmul.f32 %v6437, %v6758
    %v6796 = vmul.f32 %v6438, %v6763
    %v6797 = vmul.f32 %v6439, %v6768
    %v6798 = vmul.f32 %v6440, %v6773
    %v6799 = vmul.f32 %v6441, %v6778
    %v6800 = vmul.f32 %v6442, %v6783
    %v6801 = vmul.f32 %v6443, %v6788
    %v6802 = vmul.f32 %v6444, %v6793
    %v6803 = vsel %vm95, %v6795, 0.0
    %v6804 = vrot.slane %v6803, 4
    %v6805 = vadd.f32 %v6803, %v6804
    %v6806 = vrot.slane %v6805, 2
    %v6807 = vadd.f32 %v6805, %v6806
    %v6808 = vrot.slane %v6807, 1
    %v6809 = vadd.f32 %v6807, %v6808
    %v6810 = vsel %vm95, %v6796, 0.0
    %v6811 = vrot.slane %v6810, 4
    %v6812 = vadd.f32 %v6810, %v6811
    %v6813 = vrot.slane %v6812, 2
    %v6814 = vadd.f32 %v6812, %v6813
    %v6815 = vrot.slane %v6814, 1
    %v6816 = vadd.f32 %v6814, %v6815
    %v6817 = vsel %vm95, %v6797, 0.0
    %v6818 = vrot.slane %v6817, 4
    %v6819 = vadd.f32 %v6817, %v6818
    %v6820 = vrot.slane %v6819, 2
    %v6821 = vadd.f32 %v6819, %v6820
    %v6822 = vrot.slane %v6821, 1
    %v6823 = vadd.f32 %v6821, %v6822
    %v6824 = vsel %vm95, %v6798, 0.0
    %v6825 = vrot.slane %v6824, 4
    %v6826 = vadd.f32 %v6824, %v6825
    %v6827 = vrot.slane %v6826, 2
    %v6828 = vadd.f32 %v6826, %v6827
    %v6829 = vrot.slane %v6828, 1
    %v6830 = vadd.f32 %v6828, %v6829
    %v6831 = vsel %vm95, %v6799, 0.0
    %v6832 = vrot.slane %v6831, 4
    %v6833 = vadd.f32 %v6831, %v6832
    %v6834 = vrot.slane %v6833, 2
    %v6835 = vadd.f32 %v6833, %v6834
    %v6836 = vrot.slane %v6835, 1
    %v6837 = vadd.f32 %v6835, %v6836
    %v6838 = vsel %vm95, %v6800, 0.0
    %v6839 = vrot.slane %v6838, 4
    %v6840 = vadd.f32 %v6838, %v6839
    %v6841 = vrot.slane %v6840, 2
    %v6842 = vadd.f32 %v6840, %v6841
    %v6843 = vrot.slane %v6842, 1
    %v6844 = vadd.f32 %v6842, %v6843
    %v6845 = vsel %vm95, %v6801, 0.0
    %v6846 = vrot.slane %v6845, 4
    %v6847 = vadd.f32 %v6845, %v6846
    %v6848 = vrot.slane %v6847, 2
    %v6849 = vadd.f32 %v6847, %v6848
    %v6850 = vrot.slane %v6849, 1
    %v6851 = vadd.f32 %v6849, %v6850
    %v6852 = vsel %vm95, %v6802, 0.0
    %v6853 = vrot.slane %v6852, 4
    %v6854 = vadd.f32 %v6852, %v6853
    %v6855 = vrot.slane %v6854, 2
    %v6856 = vadd.f32 %v6854, %v6855
    %v6857 = vrot.slane %v6856, 1
    %v6858 = vadd.f32 %v6856, %v6857
    %v6859 = vld [vmem:[%s23] sm:$0xff]
    %v6860 = vld [vmem:[%s23 + $0x8] sm:$0xff]
    %v6861 = vld [vmem:[%s23 + $0x10] sm:$0xff]
    %v6862 = vld [vmem:[%s23 + $0x18] sm:$0xff]
    %vm6871 = vcmask 1041409
    %v6872 = vsel %vm6871, %v6816, %v6809
    %vm6873 = vcmask 1042434
    %v6874 = vsel %vm6873, %v6823, %v6872
    %vm6875 = vcmask 1043459
    %v6876 = vsel %vm6875, %v6830, %v6874
    %vm6877 = vcmask 1044484
    %v6878 = vsel %vm6877, %v6837, %v6876
    %vm6879 = vcmask 1045509
    %v6880 = vsel %vm6879, %v6844, %v6878
    %vm6881 = vcmask 1046534
    %v6882 = vsel %vm6881, %v6851, %v6880
    %vm6883 = vcmask 1047559
    %v6884 = vsel %vm6883, %v6858, %v6882
    %v6885 = vsel %vm95, %v6884, 0
    %6887 = vmatprep.subr.mxu0 0.0
    %6888 = vmatpush1.msra.mxu0 %v6859
    %6889 = vmatprep.subr.mxu0 0.0
    %6890 = vmatpush1.msra.mxu0 %v6860
    %6891 = vmatprep.subr.mxu0 0.0
    %6892 = vmatpush1.msra.mxu0 %v6861
    %6893 = vmatprep.subr.mxu0 0.0
    %6894 = vmatpush1.msra.mxu0 %v6862
    %6895 = vmatprep.subr.mxu0 0.0
    %6896 = vmatpush1.msra.mxu0 0.0
    %6897 = vmatprep.subr.mxu0 0.0
    %6898 = vmatpush1.msra.mxu0 0.0
    %6899 = vmatprep.subr.mxu0 0.0
    %6900 = vmatpush1.msra.mxu0 0.0
    %6901 = vmatprep.subr.mxu0 0.0
    %6902 = vmatpush1.msra.mxu0 0.0
    %6903 = vmatprep.subr.mxu0 0.0
    %6904 = vmatpush1.msra.mxu0 0.0
    %6905 = vmatprep.subr.mxu0 0.0
    %6906 = vmatpush1.msra.mxu0 0.0
    %6907 = vmatprep.subr.mxu0 0.0
    %6908 = vmatpush1.msra.mxu0 0.0
    %6909 = vmatprep.subr.mxu0 0.0
    %6910 = vmatpush1.msra.mxu0 0.0
    %6911 = vmatprep.subr.mxu0 0.0
    %6912 = vmatpush1.msra.mxu0 0.0
    %6913 = vmatprep.subr.mxu0 0.0
    %6914 = vmatpush1.msra.mxu0 0.0
    %6915 = vmatprep.subr.mxu0 0.0
    %6916 = vmatpush1.msra.mxu0 0.0
    %6917 = vmatprep.subr.mxu0 0.0
    %6918 = vmatpush1.msra.mxu0 0.0
    %6919 = vmatprep.subr.mxu0 0.0
    %6920 = vmatpush1.msra.mxu0 0.0
    %6921 = vmatprep.subr.mxu0 0.0
    %6922 = vmatpush1.msra.mxu0 0.0
    %6923 = vmatprep.subr.mxu0 0.0
    %6924 = vmatpush1.msra.mxu0 0.0
    %6925 = vmatprep.subr.mxu0 0.0
    %6926 = vmatpush1.msra.mxu0 0.0
    %6927 = vmatprep.subr.mxu0 0.0
    %6928 = vmatpush1.msra.mxu0 0.0
    %6929 = vmatprep.subr.mxu0 0.0
    %6930 = vmatpush1.msra.mxu0 0.0
    %6931 = vmatprep.subr.mxu0 0.0
    %6932 = vmatpush1.msra.mxu0 0.0
    %6933 = vmatprep.subr.mxu0 0.0
    %6934 = vmatpush1.msra.mxu0 0.0
    %6935 = vmatprep.subr.mxu0 0.0
    %6936 = vmatpush1.msra.mxu0 0.0
    %6937 = vmatprep.subr.mxu0 0.0
    %6938 = vmatpush1.msra.mxu0 0.0
    %6939 = vmatprep.subr.mxu0 0.0
    %6940 = vmatpush1.msra.mxu0 0.0
    %6941 = vmatprep.subr.mxu0 0.0
    %6942 = vmatpush1.msra.mxu0 0.0
    %6943 = vmatprep.subr.mxu0 0.0
    %6944 = vmatpush1.msra.mxu0 0.0
    %6945 = vmatprep.subr.mxu0 0.0
    %6946 = vmatpush1.msra.mxu0 0.0
    %6947 = vmatprep.subr.mxu0 0.0
    %6948 = vmatpush1.msra.mxu0 0.0
    %6949 = vmatprep.subr.mxu0 0.0
    %6950 = vmatpush1.msra.mxu0 0.0
    %6951 = vmatprep.mubr.f32.mxu0 0.0
    %6952 = vmatmul.mubr.f32.gmra.mrb[0].mxu0 %v6885
    %v6953 = vpop.f32.mrb[0].mxu0
    %v6954 = vadd.f32 0.0, %v6953
    %v6955 = vpop.f32.mrb[0].mxu0
    %6956 = vdwg.mxu0
    %v6958 = vcombine.high %v6954, %v6954
    %v6960 = vld [vmem:[%s3] sm:$0xf]
    %v6961 = vld [vmem:[%s3 + $0x4] sm:$0xf]
    %vm6962 = vcmp.eq.f32.partialorder %v6960, 0.0
    %vm6963 = vcmp.eq.f32.partialorder %v6961, 0.0
    %v6964 = vsel %vm6962, -1e+09, %v6954
    %v6965 = vsel %vm6963, -1e+09, %v6958
    %vm6966 = vcmask 3072
    %v6967 = vsel %vm6966, %v6964, -inf
    %v6968 = vrot.slane %v6967, 4
    %v6969 = vmax.f32 %v6967, %v6968
    %v6970 = vrot.slane %v6969, 2
    %v6971 = vmax.f32 %v6969, %v6970
    %v6972 = vrot.slane %v6971, 1
    %v6973 = vmax.f32 %v6971, %v6972
    %v6974 = vsel %vm6966, %v6965, -inf
    %v6975 = vrot.slane %v6974, 4
    %v6976 = vmax.f32 %v6974, %v6975
    %v6977 = vrot.slane %v6976, 2
    %v6978 = vmax.f32 %v6976, %v6977
    %v6979 = vrot.slane %v6978, 1
    %v6980 = vmax.f32 %v6978, %v6979
    %v6981 = vsub.f32 %v6964, %v6973
    %v6982 = vsub.f32 %v6965, %v6980
    %v6983 = vmul.f32 %v6981, 1.442695
    %v6984 = vpow.pop %v6983
    %v6985 = vmul.f32 %v6982, 1.442695
    %v6986 = vpow.pop %v6985
    %v6987 = vsel %vm6966, %v6984, 0.0
    %v6988 = vrot.slane %v6987, 4
    %v6989 = vadd.f32 %v6987, %v6988
    %v6990 = vrot.slane %v6989, 2
    %v6991 = vadd.f32 %v6989, %v6990
    %v6992 = vrot.slane %v6991, 1
    %v6993 = vadd.f32 %v6991, %v6992
    %v6994 = vsel %vm6966, %v6986, 0.0
    %v6995 = vrot.slane %v6994, 4
    %v6996 = vadd.f32 %v6994, %v6995
    %v6997 = vrot.slane %v6996, 2
    %v6998 = vadd.f32 %v6996, %v6997
    %v6999 = vrot.slane %v6998, 1
    %v7000 = vadd.f32 %v6998, %v6999
    %v7001 = vrcp.pop %v6993
    %v7002 = vmul.f32 %v6984, %v7001
    %v7003 = vrcp.pop %v7000
    %v7004 = vmul.f32 %v6986, %v7003
    %7006 = vset.pattern.permute.xlu0 0
    %7007 = vperm.xlu0 %7006, %v7002
    %v7008 = vpop.permute.xlu0 %7007
    %7010 = vset.pattern.permute.xlu0 0
    %7011 = vperm.xlu0 %7010, %v7004
    %v7012 = vpop.permute.xlu0 %7011
    %v7013 = vrot.slane %v7008, 1
    %v7014 = vrot.slane %v7008, 2
    %v7015 = vrot.slane %v7008, 3
    %v7016 = vrot.slane %v7012, 1
    %v7017 = vrot.slane %v7012, 2
    %v7018 = vrot.slane %v7012, 3
    %v7027 = vmul.f32 %v6809, %v7008
    %v7028 = vmul.f32 %v6816, %v7013
    %v7029 = vmul.f32 %v6823, %v7014
    %v7030 = vmul.f32 %v6830, %v7015
    %v7031 = vmul.f32 %v6837, %v7012
    %v7032 = vmul.f32 %v6844, %v7016
    %v7033 = vmul.f32 %v6851, %v7017
    %v7034 = vmul.f32 %v6858, %v7018
    %v7043 = vrot.slane %v7028, 7
    %v7044 = vsel %vm6871, %v7043, %v7027
    %v7045 = vrot.slane %v7029, 6
    %v7046 = vsel %vm6873, %v7045, %v7044
    %v7047 = vrot.slane %v7030, 5
    %v7048 = vsel %vm6875, %v7047, %v7046
    %v7049 = vrot.slane %v7032, 7
    %v7050 = vsel %vm6871, %v7049, %v7031
    %v7051 = vrot.slane %v7033, 6
    %v7052 = vsel %vm6873, %v7051, %v7050
    %v7053 = vrot.slane %v7034, 5
    %v7054 = vsel %vm6875, %v7053, %v7052
    %vm7057 = vcmask 257024
    %v7058 = vsel %vm7057, %v7048, 0.0
    %v7059 = vrot.slane %v7058, 4
    %v7060 = vadd.f32 %v7058, %v7059
    %v7061 = vrot.slane %v7060, 2
    %v7062 = vadd.f32 %v7060, %v7061
    %v7063 = vrot.slane %v7062, 1
    %v7064 = vadd.f32 %v7062, %v7063
    %v7065 = vsel %vm7057, %v7054, 0.0
    %v7066 = vrot.slane %v7065, 4
    %v7067 = vadd.f32 %v7065, %v7066
    %v7068 = vrot.slane %v7067, 2
    %v7069 = vadd.f32 %v7067, %v7068
    %v7070 = vrot.slane %v7069, 1
    %v7071 = vadd.f32 %v7069, %v7070
    %v7072 = vld [vmem:[%s24] sm:$0xff]
    %v7073 = vld [vmem:[%s24 + $0x8] sm:$0xff]
    %v7074 = vld [vmem:[%s24 + $0x10] sm:$0xff]
    %v7075 = vld [vmem:[%s24 + $0x18] sm:$0xff]
    %v7076 = vld [vmem:[%s25] sm:$0x1]
    %v7078 = vlaneseq
    %v7079 = vshrl.u32 %v7078, 7
    %v7080 = vsub.s32 0, %v7079
    %v7081 = vrot.slane %v7076, %v7080
    %v7085 = vrot.slane %v7071, 7
    %v7086 = vsel %vm6871, %v7085, %v7064
    %v7087 = vsel %vm95, %v7086, 0
    %7089 = vmatprep.subr.mxu0 0.0
    %7090 = vmatpush1.msra.mxu0 %v7072
    %7091 = vmatprep.subr.mxu0 0.0
    %7092 = vmatpush1.msra.mxu0 %v7073
    %7093 = vmatprep.subr.mxu0 0.0
    %7094 = vmatpush1.msra.mxu0 %v7074
    %7095 = vmatprep.subr.mxu0 0.0
    %7096 = vmatpush1.msra.mxu0 %v7075
    %7097 = vmatprep.subr.mxu0 0.0
    %7098 = vmatpush1.msra.mxu0 0.0
    %7099 = vmatprep.subr.mxu0 0.0
    %7100 = vmatpush1.msra.mxu0 0.0
    %7101 = vmatprep.subr.mxu0 0.0
    %7102 = vmatpush1.msra.mxu0 0.0
    %7103 = vmatprep.subr.mxu0 0.0
    %7104 = vmatpush1.msra.mxu0 0.0
    %7105 = vmatprep.subr.mxu0 0.0
    %7106 = vmatpush1.msra.mxu0 0.0
    %7107 = vmatprep.subr.mxu0 0.0
    %7108 = vmatpush1.msra.mxu0 0.0
    %7109 = vmatprep.subr.mxu0 0.0
    %7110 = vmatpush1.msra.mxu0 0.0
    %7111 = vmatprep.subr.mxu0 0.0
    %7112 = vmatpush1.msra.mxu0 0.0
    %7113 = vmatprep.subr.mxu0 0.0
    %7114 = vmatpush1.msra.mxu0 0.0
    %7115 = vmatprep.subr.mxu0 0.0
    %7116 = vmatpush1.msra.mxu0 0.0
    %7117 = vmatprep.subr.mxu0 0.0
    %7118 = vmatpush1.msra.mxu0 0.0
    %7119 = vmatprep.subr.mxu0 0.0
    %7120 = vmatpush1.msra.mxu0 0.0
    %7121 = vmatprep.subr.mxu0 0.0
    %7122 = vmatpush1.msra.mxu0 0.0
    %7123 = vmatprep.subr.mxu0 0.0
    %7124 = vmatpush1.msra.mxu0 0.0
    %7125 = vmatprep.subr.mxu0 0.0
    %7126 = vmatpush1.msra.mxu0 0.0
    %7127 = vmatprep.subr.mxu0 0.0
    %7128 = vmatpush1.msra.mxu0 0.0
    %7129 = vmatprep.subr.mxu0 0.0
    %7130 = vmatpush1.msra.mxu0 0.0
    %7131 = vmatprep.subr.mxu0 0.0
    %7132 = vmatpush1.msra.mxu0 0.0
    %7133 = vmatprep.subr.mxu0 0.0
    %7134 = vmatpush1.msra.mxu0 0.0
    %7135 = vmatprep.subr.mxu0 0.0
    %7136 = vmatpush1.msra.mxu0 0.0
    %7137 = vmatprep.subr.mxu0 0.0
    %7138 = vmatpush1.msra.mxu0 0.0
    %7139 = vmatprep.subr.mxu0 0.0
    %7140 = vmatpush1.msra.mxu0 0.0
    %7141 = vmatprep.subr.mxu0 0.0
    %7142 = vmatpush1.msra.mxu0 0.0
    %7143 = vmatprep.subr.mxu0 0.0
    %7144 = vmatpush1.msra.mxu0 0.0
    %7145 = vmatprep.subr.mxu0 0.0
    %7146 = vmatpush1.msra.mxu0 0.0
    %7147 = vmatprep.subr.mxu0 0.0
    %7148 = vmatpush1.msra.mxu0 0.0
    %7149 = vmatprep.subr.mxu0 0.0
    %7150 = vmatpush1.msra.mxu0 0.0
    %7151 = vmatprep.subr.mxu0 0.0
    %7152 = vmatpush1.msra.mxu0 0.0
    %7153 = vmatprep.mubr.f32.mxu0 0.0
    %7154 = vmatmul.mubr.f32.gmra.mrb[0].mxu0 %v7087
    %v7155 = vpop.f32.mrb[0].mxu0
    %v7156 = vadd.f32 %v7081, %v7155
    %v7157 = vpop.f32.mrb[0].mxu0
    %7158 = vdwg.mxu0
    %vm7159 = vcmask 9216
    %7160 = vst.msk [vmem:[#allocation2] sm:$0x3] %vm7159, %v7156
    // Predicated region
    $region106: #{hierarchical_bert_forward.1} parent=1 // pred_check
      _
    $region107: #{hierarchical_bert_forward.1} parent=1 // pred_check_branch
      %7162 = sbr.rel (0) target = $region109
    $region108: #{hierarchical_bert_forward.1} parent=1 // pred_region
      %s7164 = ssub.s32 32, 32
      %7165 = vsyncadd [#allocation3], %s7164
      %s7167 = sshll.u32 [#allocation2], 4
      %s7168 = int_to_ptr.vmem [resolvable:$true] %s7167
      %7170 = dma.vmem_to_hbm [thread:$0]  %s7168, 32, %s26, [#allocation3]
    $region109: #{hierarchical_bert_forward.1} parent=1 // pred_fallthru
      _
    // Predicated region
    $region110: #{hierarchical_bert_forward.1} parent=1 // pred_check
      _
    $region111: #{hierarchical_bert_forward.1} parent=1 // pred_check_branch
      %7172 = sbr.rel (0) target = $region113
    $region112: #{hierarchical_bert_forward.1} parent=1 // pred_region
      %7173 = dma.done [#allocation3], 32
    $region113: #{hierarchical_bert_forward.1} parent=1 // pred_fallthru
      _
    %7174 = vsyncpa [#allocation3], 1

</llo_original>
